<compile_context>
chip_gen: v6e
topology: v6e:2x2x1
jax: 0.10.0
libtpu: 0.0.40
codegen_flags: <defaults>
</compile_context>

<pallas_src>
import functools

import jax
import jax.numpy as jnp
from jax.experimental import pallas as pl
from jax.experimental.pallas import tpu as pltpu

IN_FEATURES = 6400
HIDDEN = 200
OUT_FEATURES = 3
OUT_PAD = 128  # lane-dense output width; real logits are the first 3 columns


def policy_kernel(x_ref, w1_ref, b1_ref, w2_ref, b2_ref, out_ref):
    """Fused MLP + softmax for one batch tile. Everything lives in vregs:
    no reduction grid, no scratch accumulator."""
    # Layer 1: (tb, 6400)bf16 @ (6400, 200)bf16 -> f32 on the MXU.
    h = jnp.dot(x_ref[...], w1_ref[...], preferred_element_type=jnp.float32)
    h = jnp.maximum(h + b1_ref[...], 0.0)  # bias + ReLU

    # Layer 2: (tb, 200) @ (200, 128); padded lanes have bias -1e30.
    logits = (
        jnp.dot(h, w2_ref[...], preferred_element_type=jnp.float32)
        + b2_ref[...]
    )

    # Numerically-stable softmax over dim=1. Padded lanes: exp(-1e30 - m) = 0,
    # so the real 3 columns are an exact softmax over 3 classes.
    m = jnp.max(logits, axis=1, keepdims=True)
    e = jnp.exp(logits - m)
    out_ref[...] = (e / jnp.sum(e, axis=1, keepdims=True)).astype(out_ref.dtype)


@functools.partial(jax.jit, static_argnames=("tb",))
def _policy_forward_padded(x_bf16, w1_bf16, b1, w2_pad, b2_pad, *, tb):
    Bp, _ = x_bf16.shape
    grid = (Bp // tb,)
    return pl.pallas_call(
        policy_kernel,
        out_shape=jax.ShapeDtypeStruct((Bp, OUT_PAD), jnp.float32),
        grid_spec=pltpu.PrefetchScalarGridSpec(
            num_scalar_prefetch=0,
            grid=grid,
            in_specs=[
                pl.BlockSpec((tb, IN_FEATURES), lambda i: (i, 0)),        # x tile
                pl.BlockSpec((IN_FEATURES, HIDDEN), lambda i: (0, 0)),    # W1 (bf16)
                pl.BlockSpec((1, HIDDEN), lambda i: (0, 0)),              # b1
                pl.BlockSpec((HIDDEN, OUT_PAD), lambda i: (0, 0)),        # W2 (padded)
                pl.BlockSpec((1, OUT_PAD), lambda i: (0, 0)),             # b2 (padded)
            ],
            out_specs=pl.BlockSpec((tb, OUT_PAD), lambda i: (i, 0)),
        ),
        compiler_params=pltpu.CompilerParams(
            # Batch axis is independent -> shardable across v7x's 2 TensorCores.
            dimension_semantics=("parallel",),
        ),
    )(x_bf16, w1_bf16, b1, w2_pad, b2_pad)


def policy_forward(x, w1, b1, w2, b2, *, tb=128):
    """Public entry: handles batch padding, bf16 casting and output slicing."""
    B, K = x.shape
    assert K == IN_FEATURES
    Bp = ((B + tb - 1) // tb) * tb
    if Bp != B:
        x = jnp.pad(x, ((0, Bp - B), (0, 0)))

    # bf16 streaming of the bandwidth-dominant operands (f32 MXU accumulate).
    x_bf16 = x.astype(jnp.bfloat16)
    w1_bf16 = w1.astype(jnp.bfloat16)

    # Lane-dense second layer: pad W2 with zeros and b2 with -1e30 so the
    # padded output lanes get softmax probability exactly 0.
    w2_pad = jnp.zeros((HIDDEN, OUT_PAD), jnp.float32).at[:, :OUT_FEATURES].set(w2)
    b2_pad = jnp.full((1, OUT_PAD), -1e30, jnp.float32).at[:, :OUT_FEATURES].set(b2)

    out = _policy_forward_padded(x_bf16, w1_bf16, b1, w2_pad, b2_pad, tb=tb)
    return out[:B, :OUT_FEATURES]


def init_params(key):
    """Deterministic init mimicking torch.nn.Linear default (U[-1/sqrt(in), 1/sqrt(in)])."""
    k1, k2, k3, k4 = jax.random.split(key, 4)
    bound1 = 1.0 / jnp.sqrt(jnp.float32(IN_FEATURES))
    bound2 = 1.0 / jnp.sqrt(jnp.float32(HIDDEN))
    w1 = jax.random.uniform(k1, (IN_FEATURES, HIDDEN), jnp.float32, -bound1, bound1)
    b1 = jax.random.uniform(k2, (1, HIDDEN), jnp.float32, -bound1, bound1)
    w2 = jax.random.uniform(k3, (HIDDEN, OUT_FEATURES), jnp.float32, -bound2, bound2)
    b2 = jax.random.uniform(k4, (1, OUT_FEATURES), jnp.float32, -bound2, bound2)
    return w1, b1, w2, b2


def policy_reference(x, w1, b1, w2, b2):
    h = jnp.maximum(x @ w1 + b1, 0.0)
    logits = h @ w2 + b2
    return jax.nn.softmax(logits, axis=1)


if __name__ == "__main__":
    key = jax.random.PRNGKey(0)
    k_params, k_x = jax.random.split(key)
    w1, b1, w2, b2 = init_params(k_params)

    B = 4  # small demo batch (wrapper pads to one 128-row tile)
    x = jax.random.normal(k_x, (B, IN_FEATURES), jnp.float32)

    out = policy_forward(x, w1, b1, w2, b2)
    out = jax.block_until_ready(out)

    ref = policy_reference(x, w1, b1, w2, b2)
    assert out.shape == (B, OUT_FEATURES)
    assert jnp.allclose(jnp.sum(out, axis=1), 1.0, atol=1e-4)
    # bf16 streaming of x/W1 -> loosened tolerance vs. the f32 reference.
    assert jnp.allclose(out, ref, atol=2e-2, rtol=2e-2), (
        f"max abs err {float(jnp.max(jnp.abs(out - ref)))}"
    )

    print("KERNEL_OK")
</pallas_src>

<mosaic_0001>
module attributes {stable_mosaic.version = 11 : i64} {
  func.func @policy_kernel(%arg0: i32, %arg1: memref<128x6400xbf16, #tpu.memory_space<vmem>>, %arg2: memref<6400x200xbf16, #tpu.memory_space<vmem>>, %arg3: memref<1x200xf32, #tpu.memory_space<vmem>>, %arg4: memref<200x128xf32, #tpu.memory_space<vmem>>, %arg5: memref<1x128xf32, #tpu.memory_space<vmem>>, %arg6: memref<128x128xf32, #tpu.memory_space<vmem>>) attributes {dimension_semantics = [#tpu.dimension_semantics<parallel>], iteration_bounds = array<i64: 1>, scalar_prefetch = 0 : i64, scratch_operands = 0 : i64, tpu.core_type = #tpu.core_type<tc>, window_params = [{transform_indices = @transform_0, window_bounds = array<i64: 128, 6400>}, {pipeline_mode = #tpu.pipeline_mode<synchronous>, transform_indices = @transform_1, window_bounds = array<i64: 6400, 200>}, {pipeline_mode = #tpu.pipeline_mode<synchronous>, transform_indices = @transform_2, window_bounds = array<i64: 1, 200>}, {pipeline_mode = #tpu.pipeline_mode<synchronous>, transform_indices = @transform_3, window_bounds = array<i64: 200, 128>}, {pipeline_mode = #tpu.pipeline_mode<synchronous>, transform_indices = @transform_4, window_bounds = array<i64: 1, 128>}, {transform_indices = @transform_5, window_bounds = array<i64: 128, 128>}]} {
    %c0 = arith.constant 0 : index
    %c0_0 = arith.constant 0 : index
    %0 = vector.load %arg1[%c0, %c0_0] : memref<128x6400xbf16, #tpu.memory_space<vmem>>, vector<128x6400xbf16>
    %c0_1 = arith.constant 0 : index
    %c0_2 = arith.constant 0 : index
    %1 = vector.load %arg2[%c0_1, %c0_2] : memref<6400x200xbf16, #tpu.memory_space<vmem>>, vector<6400x200xbf16>
    %cst = arith.constant dense<0.000000e+00> : vector<128x200xf32>
    %2 = tpu.matmul %0, %1, %cst {dimension_numbers = #tpu.dot_dimension_numbers<[1], [0], [0], [1], [0, 0, 1, 1], [], []>} : vector<128x6400xbf16>, vector<6400x200xbf16>, vector<128x200xf32> -> vector<128x200xf32>
    %c0_3 = arith.constant 0 : index
    %c0_4 = arith.constant 0 : index
    %3 = vector.load %arg3[%c0_3, %c0_4] : memref<1x200xf32, #tpu.memory_space<vmem>>, vector<1x200xf32>
    %4 = vector.broadcast %3 : vector<1x200xf32> to vector<128x200xf32>
    %5 = arith.addf %2, %4 : vector<128x200xf32>
    %cst_5 = arith.constant 0.000000e+00 : f32
    %6 = vector.broadcast %cst_5 : f32 to vector<128x200xf32>
    %7 = arith.maximumf %5, %6 : vector<128x200xf32>
    %c0_6 = arith.constant 0 : index
    %c0_7 = arith.constant 0 : index
    %8 = vector.load %arg4[%c0_6, %c0_7] : memref<200x128xf32, #tpu.memory_space<vmem>>, vector<200x128xf32>
    %cst_8 = arith.constant dense<0.000000e+00> : vector<128x128xf32>
    %9 = tpu.matmul %7, %8, %cst_8 {dimension_numbers = #tpu.dot_dimension_numbers<[1], [0], [0], [1], [0, 0, 1, 1], [], []>} : vector<128x200xf32>, vector<200x128xf32>, vector<128x128xf32> -> vector<128x128xf32>
    %c0_9 = arith.constant 0 : index
    %c0_10 = arith.constant 0 : index
    %10 = vector.load %arg5[%c0_9, %c0_10] : memref<1x128xf32, #tpu.memory_space<vmem>>, vector<1x128xf32>
    %11 = vector.broadcast %10 : vector<1x128xf32> to vector<128x128xf32>
    %12 = arith.addf %9, %11 : vector<128x128xf32>
    %cst_11 = arith.constant dense<0xFF800000> : vector<128xf32>
    %13 = vector.multi_reduction <maximumf>, %12, %cst_11 [1] : vector<128x128xf32> to vector<128xf32>
    %14 = vector.shape_cast %13 : vector<128xf32> to vector<128x1xf32>
    %15 = vector.broadcast %14 : vector<128x1xf32> to vector<128x128xf32>
    %16 = arith.subf %12, %15 : vector<128x128xf32>
    %17 = math.exp %16 : vector<128x128xf32>
    %cst_12 = arith.constant dense<0.000000e+00> : vector<128xf32>
    %18 = vector.multi_reduction <add>, %17, %cst_12 [1] : vector<128x128xf32> to vector<128xf32>
    %19 = vector.shape_cast %18 : vector<128xf32> to vector<128x1xf32>
    %20 = vector.broadcast %19 : vector<128x1xf32> to vector<128x128xf32>
    %21 = arith.divf %17, %20 : vector<128x128xf32>
    %c0_13 = arith.constant 0 : index
    %c0_14 = arith.constant 0 : index
    %22 = vector.load %arg6[%c0_13, %c0_14] : memref<128x128xf32, #tpu.memory_space<vmem>>, vector<128x128xf32>
    tpu.vector_store %arg6[%c0_13, %c0_14], %21 {strides = array<i32>} : memref<128x128xf32, #tpu.memory_space<vmem>>, vector<128x128xf32>,
    return
  }
  func.func @transform_0(%arg0: i32) -> (i32, i32) {
    %c0_i32 = arith.constant 0 : i32
    %c0_i32_0 = arith.constant 0 : i32
    return %arg0, %c0_i32 : i32, i32
  }
  func.func @transform_1(%arg0: i32) -> (i32, i32) {
    %c0_i32 = arith.constant 0 : i32
    %c0_i32_0 = arith.constant 0 : i32
    %c0_i32_1 = arith.constant 0 : i32
    return %c0_i32, %c0_i32_0 : i32, i32
  }
  func.func @transform_2(%arg0: i32) -> (i32, i32) {
    %c0_i32 = arith.constant 0 : i32
    %c0_i32_0 = arith.constant 0 : i32
    %c0_i32_1 = arith.constant 0 : i32
    return %c0_i32, %c0_i32_0 : i32, i32
  }
  func.func @transform_3(%arg0: i32) -> (i32, i32) {
    %c0_i32 = arith.constant 0 : i32
    %c0_i32_0 = arith.constant 0 : i32
    %c0_i32_1 = arith.constant 0 : i32
    return %c0_i32, %c0_i32_0 : i32, i32
  }
  func.func @transform_4(%arg0: i32) -> (i32, i32) {
    %c0_i32 = arith.constant 0 : i32
    %c0_i32_0 = arith.constant 0 : i32
    %c0_i32_1 = arith.constant 0 : i32
    return %c0_i32, %c0_i32_0 : i32, i32
  }
  func.func @transform_5(%arg0: i32) -> (i32, i32) {
    %c0_i32 = arith.constant 0 : i32
    %c0_i32_0 = arith.constant 0 : i32
    return %arg0, %c0_i32 : i32, i32
  }
}

</mosaic_0001>

<llo_original>
// kernel: _policy_forward_padded.1
$region0: #{_policy_forward_padded.1}
  #allocation0 [shape = 'u32[]', space=smem, size = 0x4, offset = 0x4, fixed_abs, tag = 'smem constant byte address 0x4 - core index']
  #allocation1 [shape = 'u32[144,128]{1,0:T(1,128)}', space=vmem, size = 0x12000, scoped, tag = 'internal scratch']
  %s0 = inlined_call_operand.vmem [shape: bf16[128,6400], index: 0, kind: input, shape index: {}]
  %s1 = inlined_call_operand.vmem [shape: bf16[6400,200], index: 1, kind: input, shape index: {}]
  %s2 = inlined_call_operand.vmem [shape: f32[1,200], index: 2, kind: input, shape index: {}]
  %s3 = inlined_call_operand.vmem [shape: f32[200,128], index: 3, kind: input, shape index: {}]
  %s4 = inlined_call_operand.vmem [shape: f32[1,128], index: 4, kind: input, shape index: {}]
  %s5 = inlined_call_operand.hbm [shape: f32[128,128], index: 5, kind: output, shape index: {}]
  %s6 = sld [smem:[#allocation0]]
  $region30: #{_policy_forward_padded.1} parent=0
    _
  %s8 = ssub.s32 1, %s6
  %s9 = scalar_select 0, %s8, %s6
  $region1: #{_policy_forward_padded.1} parent=0
    #allocation2 [shape = 'u8[65536]{0}', space=vmem, size = 0x10000, scoped, tag = 'output window, operand 0, single buffered']
    #allocation3 [shape = 's32[1]{0}', space=sflag, size = 0x4, scoped, tag = 'scoped memory for _policy_forward_padded.1']
    %10 = vsyncpa [#allocation3], 0
    // Predicated region
    $region2: #{_policy_forward_padded.1} parent=1 // pred_check
      _
    $region3: #{_policy_forward_padded.1} parent=1 // pred_check_branch
      %12 = sbr.rel (0) target = $region5
    $region4: #{_policy_forward_padded.1} parent=1 // pred_region
      _
    $region5: #{_policy_forward_padded.1} parent=1 // pred_fallthru
      _
    // Predicated region
    $region6: #{_policy_forward_padded.1} parent=1 // pred_check
      _
    $region7: #{_policy_forward_padded.1} parent=1 // pred_check_branch
      %14 = sbr.rel (0) target = $region9
    $region8: #{_policy_forward_padded.1} parent=1 // pred_region
      _
    $region9: #{_policy_forward_padded.1} parent=1 // pred_fallthru
      _
    // Predicated region
    $region10: #{_policy_forward_padded.1} parent=1 // pred_check
      _
    $region11: #{_policy_forward_padded.1} parent=1 // pred_check_branch
      %16 = sbr.rel (0) target = $region13
    $region12: #{_policy_forward_padded.1} parent=1 // pred_region
      _
    $region13: #{_policy_forward_padded.1} parent=1 // pred_fallthru
      _
    // Predicated region
    $region14: #{_policy_forward_padded.1} parent=1 // pred_check
      _
    $region15: #{_policy_forward_padded.1} parent=1 // pred_check_branch
      %18 = sbr.rel (0) target = $region17
    $region16: #{_policy_forward_padded.1} parent=1 // pred_region
      _
    $region17: #{_policy_forward_padded.1} parent=1 // pred_fallthru
      _
    // Predicated region
    $region18: #{_policy_forward_padded.1} parent=1 // pred_check
      _
    $region19: #{_policy_forward_padded.1} parent=1 // pred_check_branch
      %20 = sbr.rel (0) target = $region21
    $region20: #{_policy_forward_padded.1} parent=1 // pred_region
      _
    $region21: #{_policy_forward_padded.1} parent=1 // pred_fallthru
      _
    %v21 = vld [vmem:[%s0] sm:$0xff]
    %v22 = vld [vmem:[%s0 + $0x8] sm:$0xff]
    %v23 = vld [vmem:[%s0 + $0x10] sm:$0xff]
    %v24 = vld [vmem:[%s0 + $0x18] sm:$0xff]
    %v25 = vld [vmem:[%s0 + $0x20] sm:$0xff]
    %v26 = vld [vmem:[%s0 + $0x28] sm:$0xff]
    %v27 = vld [vmem:[%s0 + $0x30] sm:$0xff]
    %v28 = vld [vmem:[%s0 + $0x38] sm:$0xff]
    %v29 = vld [vmem:[%s0 + $0x40] sm:$0xff]
    %v30 = vld [vmem:[%s0 + $0x48] sm:$0xff]
    %v31 = vld [vmem:[%s0 + $0x50] sm:$0xff]
    %v32 = vld [vmem:[%s0 + $0x58] sm:$0xff]
    %v33 = vld [vmem:[%s0 + $0x60] sm:$0xff]
    %v34 = vld [vmem:[%s0 + $0x68] sm:$0xff]
    %v35 = vld [vmem:[%s0 + $0x70] sm:$0xff]
    %v36 = vld [vmem:[%s0 + $0x78] sm:$0xff]
    %v37 = vld [vmem:[%s0 + $0x80] sm:$0xff]
    %v38 = vld [vmem:[%s0 + $0x88] sm:$0xff]
    %v39 = vld [vmem:[%s0 + $0x90] sm:$0xff]
    %v40 = vld [vmem:[%s0 + $0x98] sm:$0xff]
    %v41 = vld [vmem:[%s0 + $0xa0] sm:$0xff]
    %v42 = vld [vmem:[%s0 + $0xa8] sm:$0xff]
    %v43 = vld [vmem:[%s0 + $0xb0] sm:$0xff]
    %v44 = vld [vmem:[%s0 + $0xb8] sm:$0xff]
    %v45 = vld [vmem:[%s0 + $0xc0] sm:$0xff]
    %v46 = vld [vmem:[%s0 + $0xc8] sm:$0xff]
    %v47 = vld [vmem:[%s0 + $0xd0] sm:$0xff]
    %v48 = vld [vmem:[%s0 + $0xd8] sm:$0xff]
    %v49 = vld [vmem:[%s0 + $0xe0] sm:$0xff]
    %v50 = vld [vmem:[%s0 + $0xe8] sm:$0xff]
    %v51 = vld [vmem:[%s0 + $0xf0] sm:$0xff]
    %v52 = vld [vmem:[%s0 + $0xf8] sm:$0xff]
    %v53 = vld [vmem:[%s0 + $0x100] sm:$0xff]
    %v54 = vld [vmem:[%s0 + $0x108] sm:$0xff]
    %v55 = vld [vmem:[%s0 + $0x110] sm:$0xff]
    %v56 = vld [vmem:[%s0 + $0x118] sm:$0xff]
    %v57 = vld [vmem:[%s0 + $0x120] sm:$0xff]
    %v58 = vld [vmem:[%s0 + $0x128] sm:$0xff]
    %v59 = vld [vmem:[%s0 + $0x130] sm:$0xff]
    %v60 = vld [vmem:[%s0 + $0x138] sm:$0xff]
    %v61 = vld [vmem:[%s0 + $0x140] sm:$0xff]
    %v62 = vld [vmem:[%s0 + $0x148] sm:$0xff]
    %v63 = vld [vmem:[%s0 + $0x150] sm:$0xff]
    %v64 = vld [vmem:[%s0 + $0x158] sm:$0xff]
    %v65 = vld [vmem:[%s0 + $0x160] sm:$0xff]
    %v66 = vld [vmem:[%s0 + $0x168] sm:$0xff]
    %v67 = vld [vmem:[%s0 + $0x170] sm:$0xff]
    %v68 = vld [vmem:[%s0 + $0x178] sm:$0xff]
    %v69 = vld [vmem:[%s0 + $0x180] sm:$0xff]
    %v70 = vld [vmem:[%s0 + $0x188] sm:$0xff]
    %v71 = vld [vmem:[%s0 + $0x190] sm:$0xff]
    %v72 = vld [vmem:[%s0 + $0x198] sm:$0xff]
    %v73 = vld [vmem:[%s0 + $0x1a0] sm:$0xff]
    %v74 = vld [vmem:[%s0 + $0x1a8] sm:$0xff]
    %v75 = vld [vmem:[%s0 + $0x1b0] sm:$0xff]
    %v76 = vld [vmem:[%s0 + $0x1b8] sm:$0xff]
    %v77 = vld [vmem:[%s0 + $0x1c0] sm:$0xff]
    %v78 = vld [vmem:[%s0 + $0x1c8] sm:$0xff]
    %v79 = vld [vmem:[%s0 + $0x1d0] sm:$0xff]
    %v80 = vld [vmem:[%s0 + $0x1d8] sm:$0xff]
    %v81 = vld [vmem:[%s0 + $0x1e0] sm:$0xff]
    %v82 = vld [vmem:[%s0 + $0x1e8] sm:$0xff]
    %v83 = vld [vmem:[%s0 + $0x1f0] sm:$0xff]
    %v84 = vld [vmem:[%s0 + $0x1f8] sm:$0xff]
    %v85 = vld [vmem:[%s0 + $0x200] sm:$0xff]
    %v86 = vld [vmem:[%s0 + $0x208] sm:$0xff]
    %v87 = vld [vmem:[%s0 + $0x210] sm:$0xff]
    %v88 = vld [vmem:[%s0 + $0x218] sm:$0xff]
    %v89 = vld [vmem:[%s0 + $0x220] sm:$0xff]
    %v90 = vld [vmem:[%s0 + $0x228] sm:$0xff]
    %v91 = vld [vmem:[%s0 + $0x230] sm:$0xff]
    %v92 = vld [vmem:[%s0 + $0x238] sm:$0xff]
    %v93 = vld [vmem:[%s0 + $0x240] sm:$0xff]
    %v94 = vld [vmem:[%s0 + $0x248] sm:$0xff]
    %v95 = vld [vmem:[%s0 + $0x250] sm:$0xff]
    %v96 = vld [vmem:[%s0 + $0x258] sm:$0xff]
    %v97 = vld [vmem:[%s0 + $0x260] sm:$0xff]
    %v98 = vld [vmem:[%s0 + $0x268] sm:$0xff]
    %v99 = vld [vmem:[%s0 + $0x270] sm:$0xff]
    %v100 = vld [vmem:[%s0 + $0x278] sm:$0xff]
    %v101 = vld [vmem:[%s0 + $0x280] sm:$0xff]
    %v102 = vld [vmem:[%s0 + $0x288] sm:$0xff]
    %v103 = vld [vmem:[%s0 + $0x290] sm:$0xff]
    %v104 = vld [vmem:[%s0 + $0x298] sm:$0xff]
    %v105 = vld [vmem:[%s0 + $0x2a0] sm:$0xff]
    %v106 = vld [vmem:[%s0 + $0x2a8] sm:$0xff]
    %v107 = vld [vmem:[%s0 + $0x2b0] sm:$0xff]
    %v108 = vld [vmem:[%s0 + $0x2b8] sm:$0xff]
    %v109 = vld [vmem:[%s0 + $0x2c0] sm:$0xff]
    %v110 = vld [vmem:[%s0 + $0x2c8] sm:$0xff]
    %v111 = vld [vmem:[%s0 + $0x2d0] sm:$0xff]
    %v112 = vld [vmem:[%s0 + $0x2d8] sm:$0xff]
    %v113 = vld [vmem:[%s0 + $0x2e0] sm:$0xff]
    %v114 = vld [vmem:[%s0 + $0x2e8] sm:$0xff]
    %v115 = vld [vmem:[%s0 + $0x2f0] sm:$0xff]
    %v116 = vld [vmem:[%s0 + $0x2f8] sm:$0xff]
    %v117 = vld [vmem:[%s0 + $0x300] sm:$0xff]
    %v118 = vld [vmem:[%s0 + $0x308] sm:$0xff]
    %v119 = vld [vmem:[%s0 + $0x310] sm:$0xff]
    %v120 = vld [vmem:[%s0 + $0x318] sm:$0xff]
    %v121 = vld [vmem:[%s0 + $0x320] sm:$0xff]
    %v122 = vld [vmem:[%s0 + $0x328] sm:$0xff]
    %v123 = vld [vmem:[%s0 + $0x330] sm:$0xff]
    %v124 = vld [vmem:[%s0 + $0x338] sm:$0xff]
    %v125 = vld [vmem:[%s0 + $0x340] sm:$0xff]
    %v126 = vld [vmem:[%s0 + $0x348] sm:$0xff]
    %v127 = vld [vmem:[%s0 + $0x350] sm:$0xff]
    %v128 = vld [vmem:[%s0 + $0x358] sm:$0xff]
    %v129 = vld [vmem:[%s0 + $0x360] sm:$0xff]
    %v130 = vld [vmem:[%s0 + $0x368] sm:$0xff]
    %v131 = vld [vmem:[%s0 + $0x370] sm:$0xff]
    %v132 = vld [vmem:[%s0 + $0x378] sm:$0xff]
    %v133 = vld [vmem:[%s0 + $0x380] sm:$0xff]
    %v134 = vld [vmem:[%s0 + $0x388] sm:$0xff]
    %v135 = vld [vmem:[%s0 + $0x390] sm:$0xff]
    %v136 = vld [vmem:[%s0 + $0x398] sm:$0xff]
    %v137 = vld [vmem:[%s0 + $0x3a0] sm:$0xff]
    %v138 = vld [vmem:[%s0 + $0x3a8] sm:$0xff]
    %v139 = vld [vmem:[%s0 + $0x3b0] sm:$0xff]
    %v140 = vld [vmem:[%s0 + $0x3b8] sm:$0xff]
    %v141 = vld [vmem:[%s0 + $0x3c0] sm:$0xff]
    %v142 = vld [vmem:[%s0 + $0x3c8] sm:$0xff]
    %v143 = vld [vmem:[%s0 + $0x3d0] sm:$0xff]
    %v144 = vld [vmem:[%s0 + $0x3d8] sm:$0xff]
    %v145 = vld [vmem:[%s0 + $0x3e0] sm:$0xff]
    %v146 = vld [vmem:[%s0 + $0x3e8] sm:$0xff]
    %v147 = vld [vmem:[%s0 + $0x3f0] sm:$0xff]
    %v148 = vld [vmem:[%s0 + $0x3f8] sm:$0xff]
    %v149 = vld [vmem:[%s0 + $0x400] sm:$0xff]
    %v150 = vld [vmem:[%s0 + $0x408] sm:$0xff]
    %v151 = vld [vmem:[%s0 + $0x410] sm:$0xff]
    %v152 = vld [vmem:[%s0 + $0x418] sm:$0xff]
    %v153 = vld [vmem:[%s0 + $0x420] sm:$0xff]
    %v154 = vld [vmem:[%s0 + $0x428] sm:$0xff]
    %v155 = vld [vmem:[%s0 + $0x430] sm:$0xff]
    %v156 = vld [vmem:[%s0 + $0x438] sm:$0xff]
    %v157 = vld [vmem:[%s0 + $0x440] sm:$0xff]
    %v158 = vld [vmem:[%s0 + $0x448] sm:$0xff]
    %v159 = vld [vmem:[%s0 + $0x450] sm:$0xff]
    %v160 = vld [vmem:[%s0 + $0x458] sm:$0xff]
    %v161 = vld [vmem:[%s0 + $0x460] sm:$0xff]
    %v162 = vld [vmem:[%s0 + $0x468] sm:$0xff]
    %v163 = vld [vmem:[%s0 + $0x470] sm:$0xff]
    %v164 = vld [vmem:[%s0 + $0x478] sm:$0xff]
    %v165 = vld [vmem:[%s0 + $0x480] sm:$0xff]
    %v166 = vld [vmem:[%s0 + $0x488] sm:$0xff]
    %v167 = vld [vmem:[%s0 + $0x490] sm:$0xff]
    %v168 = vld [vmem:[%s0 + $0x498] sm:$0xff]
    %v169 = vld [vmem:[%s0 + $0x4a0] sm:$0xff]
    %v170 = vld [vmem:[%s0 + $0x4a8] sm:$0xff]
    %v171 = vld [vmem:[%s0 + $0x4b0] sm:$0xff]
    %v172 = vld [vmem:[%s0 + $0x4b8] sm:$0xff]
    %v173 = vld [vmem:[%s0 + $0x4c0] sm:$0xff]
    %v174 = vld [vmem:[%s0 + $0x4c8] sm:$0xff]
    %v175 = vld [vmem:[%s0 + $0x4d0] sm:$0xff]
    %v176 = vld [vmem:[%s0 + $0x4d8] sm:$0xff]
    %v177 = vld [vmem:[%s0 + $0x4e0] sm:$0xff]
    %v178 = vld [vmem:[%s0 + $0x4e8] sm:$0xff]
    %v179 = vld [vmem:[%s0 + $0x4f0] sm:$0xff]
    %v180 = vld [vmem:[%s0 + $0x4f8] sm:$0xff]
    %v181 = vld [vmem:[%s0 + $0x500] sm:$0xff]
    %v182 = vld [vmem:[%s0 + $0x508] sm:$0xff]
    %v183 = vld [vmem:[%s0 + $0x510] sm:$0xff]
    %v184 = vld [vmem:[%s0 + $0x518] sm:$0xff]
    %v185 = vld [vmem:[%s0 + $0x520] sm:$0xff]
    %v186 = vld [vmem:[%s0 + $0x528] sm:$0xff]
    %v187 = vld [vmem:[%s0 + $0x530] sm:$0xff]
    %v188 = vld [vmem:[%s0 + $0x538] sm:$0xff]
    %v189 = vld [vmem:[%s0 + $0x540] sm:$0xff]
    %v190 = vld [vmem:[%s0 + $0x548] sm:$0xff]
    %v191 = vld [vmem:[%s0 + $0x550] sm:$0xff]
    %v192 = vld [vmem:[%s0 + $0x558] sm:$0xff]
    %v193 = vld [vmem:[%s0 + $0x560] sm:$0xff]
    %v194 = vld [vmem:[%s0 + $0x568] sm:$0xff]
    %v195 = vld [vmem:[%s0 + $0x570] sm:$0xff]
    %v196 = vld [vmem:[%s0 + $0x578] sm:$0xff]
    %v197 = vld [vmem:[%s0 + $0x580] sm:$0xff]
    %v198 = vld [vmem:[%s0 + $0x588] sm:$0xff]
    %v199 = vld [vmem:[%s0 + $0x590] sm:$0xff]
    %v200 = vld [vmem:[%s0 + $0x598] sm:$0xff]
    %v201 = vld [vmem:[%s0 + $0x5a0] sm:$0xff]
    %v202 = vld [vmem:[%s0 + $0x5a8] sm:$0xff]
    %v203 = vld [vmem:[%s0 + $0x5b0] sm:$0xff]
    %v204 = vld [vmem:[%s0 + $0x5b8] sm:$0xff]
    %v205 = vld [vmem:[%s0 + $0x5c0] sm:$0xff]
    %v206 = vld [vmem:[%s0 + $0x5c8] sm:$0xff]
    %v207 = vld [vmem:[%s0 + $0x5d0] sm:$0xff]
    %v208 = vld [vmem:[%s0 + $0x5d8] sm:$0xff]
    %v209 = vld [vmem:[%s0 + $0x5e0] sm:$0xff]
    %v210 = vld [vmem:[%s0 + $0x5e8] sm:$0xff]
    %v211 = vld [vmem:[%s0 + $0x5f0] sm:$0xff]
    %v212 = vld [vmem:[%s0 + $0x5f8] sm:$0xff]
    %v213 = vld [vmem:[%s0 + $0x600] sm:$0xff]
    %v214 = vld [vmem:[%s0 + $0x608] sm:$0xff]
    %v215 = vld [vmem:[%s0 + $0x610] sm:$0xff]
    %v216 = vld [vmem:[%s0 + $0x618] sm:$0xff]
    %v217 = vld [vmem:[%s0 + $0x620] sm:$0xff]
    %v218 = vld [vmem:[%s0 + $0x628] sm:$0xff]
    %v219 = vld [vmem:[%s0 + $0x630] sm:$0xff]
    %v220 = vld [vmem:[%s0 + $0x638] sm:$0xff]
    %v221 = vld [vmem:[%s0 + $0x640] sm:$0xff]
    %v222 = vld [vmem:[%s0 + $0x648] sm:$0xff]
    %v223 = vld [vmem:[%s0 + $0x650] sm:$0xff]
    %v224 = vld [vmem:[%s0 + $0x658] sm:$0xff]
    %v225 = vld [vmem:[%s0 + $0x660] sm:$0xff]
    %v226 = vld [vmem:[%s0 + $0x668] sm:$0xff]
    %v227 = vld [vmem:[%s0 + $0x670] sm:$0xff]
    %v228 = vld [vmem:[%s0 + $0x678] sm:$0xff]
    %v229 = vld [vmem:[%s0 + $0x680] sm:$0xff]
    %v230 = vld [vmem:[%s0 + $0x688] sm:$0xff]
    %v231 = vld [vmem:[%s0 + $0x690] sm:$0xff]
    %v232 = vld [vmem:[%s0 + $0x698] sm:$0xff]
    %v233 = vld [vmem:[%s0 + $0x6a0] sm:$0xff]
    %v234 = vld [vmem:[%s0 + $0x6a8] sm:$0xff]
    %v235 = vld [vmem:[%s0 + $0x6b0] sm:$0xff]
    %v236 = vld [vmem:[%s0 + $0x6b8] sm:$0xff]
    %v237 = vld [vmem:[%s0 + $0x6c0] sm:$0xff]
    %v238 = vld [vmem:[%s0 + $0x6c8] sm:$0xff]
    %v239 = vld [vmem:[%s0 + $0x6d0] sm:$0xff]
    %v240 = vld [vmem:[%s0 + $0x6d8] sm:$0xff]
    %v241 = vld [vmem:[%s0 + $0x6e0] sm:$0xff]
    %v242 = vld [vmem:[%s0 + $0x6e8] sm:$0xff]
    %v243 = vld [vmem:[%s0 + $0x6f0] sm:$0xff]
    %v244 = vld [vmem:[%s0 + $0x6f8] sm:$0xff]
    %v245 = vld [vmem:[%s0 + $0x700] sm:$0xff]
    %v246 = vld [vmem:[%s0 + $0x708] sm:$0xff]
    %v247 = vld [vmem:[%s0 + $0x710] sm:$0xff]
    %v248 = vld [vmem:[%s0 + $0x718] sm:$0xff]
    %v249 = vld [vmem:[%s0 + $0x720] sm:$0xff]
    %v250 = vld [vmem:[%s0 + $0x728] sm:$0xff]
    %v251 = vld [vmem:[%s0 + $0x730] sm:$0xff]
    %v252 = vld [vmem:[%s0 + $0x738] sm:$0xff]
    %v253 = vld [vmem:[%s0 + $0x740] sm:$0xff]
    %v254 = vld [vmem:[%s0 + $0x748] sm:$0xff]
    %v255 = vld [vmem:[%s0 + $0x750] sm:$0xff]
    %v256 = vld [vmem:[%s0 + $0x758] sm:$0xff]
    %v257 = vld [vmem:[%s0 + $0x760] sm:$0xff]
    %v258 = vld [vmem:[%s0 + $0x768] sm:$0xff]
    %v259 = vld [vmem:[%s0 + $0x770] sm:$0xff]
    %v260 = vld [vmem:[%s0 + $0x778] sm:$0xff]
    %v261 = vld [vmem:[%s0 + $0x780] sm:$0xff]
    %v262 = vld [vmem:[%s0 + $0x788] sm:$0xff]
    %v263 = vld [vmem:[%s0 + $0x790] sm:$0xff]
    %v264 = vld [vmem:[%s0 + $0x798] sm:$0xff]
    %v265 = vld [vmem:[%s0 + $0x7a0] sm:$0xff]
    %v266 = vld [vmem:[%s0 + $0x7a8] sm:$0xff]
    %v267 = vld [vmem:[%s0 + $0x7b0] sm:$0xff]
    %v268 = vld [vmem:[%s0 + $0x7b8] sm:$0xff]
    %v269 = vld [vmem:[%s0 + $0x7c0] sm:$0xff]
    %v270 = vld [vmem:[%s0 + $0x7c8] sm:$0xff]
    %v271 = vld [vmem:[%s0 + $0x7d0] sm:$0xff]
    %v272 = vld [vmem:[%s0 + $0x7d8] sm:$0xff]
    %v273 = vld [vmem:[%s0 + $0x7e0] sm:$0xff]
    %v274 = vld [vmem:[%s0 + $0x7e8] sm:$0xff]
    %v275 = vld [vmem:[%s0 + $0x7f0] sm:$0xff]
    %v276 = vld [vmem:[%s0 + $0x7f8] sm:$0xff]
    %v277 = vld [vmem:[%s0 + $0x800] sm:$0xff]
    %v278 = vld [vmem:[%s0 + $0x808] sm:$0xff]
    %v279 = vld [vmem:[%s0 + $0x810] sm:$0xff]
    %v280 = vld [vmem:[%s0 + $0x818] sm:$0xff]
    %v281 = vld [vmem:[%s0 + $0x820] sm:$0xff]
    %v282 = vld [vmem:[%s0 + $0x828] sm:$0xff]
    %v283 = vld [vmem:[%s0 + $0x830] sm:$0xff]
    %v284 = vld [vmem:[%s0 + $0x838] sm:$0xff]
    %v285 = vld [vmem:[%s0 + $0x840] sm:$0xff]
    %v286 = vld [vmem:[%s0 + $0x848] sm:$0xff]
    %v287 = vld [vmem:[%s0 + $0x850] sm:$0xff]
    %v288 = vld [vmem:[%s0 + $0x858] sm:$0xff]
    %v289 = vld [vmem:[%s0 + $0x860] sm:$0xff]
    %v290 = vld [vmem:[%s0 + $0x868] sm:$0xff]
    %v291 = vld [vmem:[%s0 + $0x870] sm:$0xff]
    %v292 = vld [vmem:[%s0 + $0x878] sm:$0xff]
    %v293 = vld [vmem:[%s0 + $0x880] sm:$0xff]
    %v294 = vld [vmem:[%s0 + $0x888] sm:$0xff]
    %v295 = vld [vmem:[%s0 + $0x890] sm:$0xff]
    %v296 = vld [vmem:[%s0 + $0x898] sm:$0xff]
    %v297 = vld [vmem:[%s0 + $0x8a0] sm:$0xff]
    %v298 = vld [vmem:[%s0 + $0x8a8] sm:$0xff]
    %v299 = vld [vmem:[%s0 + $0x8b0] sm:$0xff]
    %v300 = vld [vmem:[%s0 + $0x8b8] sm:$0xff]
    %v301 = vld [vmem:[%s0 + $0x8c0] sm:$0xff]
    %v302 = vld [vmem:[%s0 + $0x8c8] sm:$0xff]
    %v303 = vld [vmem:[%s0 + $0x8d0] sm:$0xff]
    %v304 = vld [vmem:[%s0 + $0x8d8] sm:$0xff]
    %v305 = vld [vmem:[%s0 + $0x8e0] sm:$0xff]
    %v306 = vld [vmem:[%s0 + $0x8e8] sm:$0xff]
    %v307 = vld [vmem:[%s0 + $0x8f0] sm:$0xff]
    %v308 = vld [vmem:[%s0 + $0x8f8] sm:$0xff]
    %v309 = vld [vmem:[%s0 + $0x900] sm:$0xff]
    %v310 = vld [vmem:[%s0 + $0x908] sm:$0xff]
    %v311 = vld [vmem:[%s0 + $0x910] sm:$0xff]
    %v312 = vld [vmem:[%s0 + $0x918] sm:$0xff]
    %v313 = vld [vmem:[%s0 + $0x920] sm:$0xff]
    %v314 = vld [vmem:[%s0 + $0x928] sm:$0xff]
    %v315 = vld [vmem:[%s0 + $0x930] sm:$0xff]
    %v316 = vld [vmem:[%s0 + $0x938] sm:$0xff]
    %v317 = vld [vmem:[%s0 + $0x940] sm:$0xff]
    %v318 = vld [vmem:[%s0 + $0x948] sm:$0xff]
    %v319 = vld [vmem:[%s0 + $0x950] sm:$0xff]
    %v320 = vld [vmem:[%s0 + $0x958] sm:$0xff]
    %v321 = vld [vmem:[%s0 + $0x960] sm:$0xff]
    %v322 = vld [vmem:[%s0 + $0x968] sm:$0xff]
    %v323 = vld [vmem:[%s0 + $0x970] sm:$0xff]
    %v324 = vld [vmem:[%s0 + $0x978] sm:$0xff]
    %v325 = vld [vmem:[%s0 + $0x980] sm:$0xff]
    %v326 = vld [vmem:[%s0 + $0x988] sm:$0xff]
    %v327 = vld [vmem:[%s0 + $0x990] sm:$0xff]
    %v328 = vld [vmem:[%s0 + $0x998] sm:$0xff]
    %v329 = vld [vmem:[%s0 + $0x9a0] sm:$0xff]
    %v330 = vld [vmem:[%s0 + $0x9a8] sm:$0xff]
    %v331 = vld [vmem:[%s0 + $0x9b0] sm:$0xff]
    %v332 = vld [vmem:[%s0 + $0x9b8] sm:$0xff]
    %v333 = vld [vmem:[%s0 + $0x9c0] sm:$0xff]
    %v334 = vld [vmem:[%s0 + $0x9c8] sm:$0xff]
    %v335 = vld [vmem:[%s0 + $0x9d0] sm:$0xff]
    %v336 = vld [vmem:[%s0 + $0x9d8] sm:$0xff]
    %v337 = vld [vmem:[%s0 + $0x9e0] sm:$0xff]
    %v338 = vld [vmem:[%s0 + $0x9e8] sm:$0xff]
    %v339 = vld [vmem:[%s0 + $0x9f0] sm:$0xff]
    %v340 = vld [vmem:[%s0 + $0x9f8] sm:$0xff]
    %v341 = vld [vmem:[%s0 + $0xa00] sm:$0xff]
    %v342 = vld [vmem:[%s0 + $0xa08] sm:$0xff]
    %v343 = vld [vmem:[%s0 + $0xa10] sm:$0xff]
    %v344 = vld [vmem:[%s0 + $0xa18] sm:$0xff]
    %v345 = vld [vmem:[%s0 + $0xa20] sm:$0xff]
    %v346 = vld [vmem:[%s0 + $0xa28] sm:$0xff]
    %v347 = vld [vmem:[%s0 + $0xa30] sm:$0xff]
    %v348 = vld [vmem:[%s0 + $0xa38] sm:$0xff]
    %v349 = vld [vmem:[%s0 + $0xa40] sm:$0xff]
    %v350 = vld [vmem:[%s0 + $0xa48] sm:$0xff]
    %v351 = vld [vmem:[%s0 + $0xa50] sm:$0xff]
    %v352 = vld [vmem:[%s0 + $0xa58] sm:$0xff]
    %v353 = vld [vmem:[%s0 + $0xa60] sm:$0xff]
    %v354 = vld [vmem:[%s0 + $0xa68] sm:$0xff]
    %v355 = vld [vmem:[%s0 + $0xa70] sm:$0xff]
    %v356 = vld [vmem:[%s0 + $0xa78] sm:$0xff]
    %v357 = vld [vmem:[%s0 + $0xa80] sm:$0xff]
    %v358 = vld [vmem:[%s0 + $0xa88] sm:$0xff]
    %v359 = vld [vmem:[%s0 + $0xa90] sm:$0xff]
    %v360 = vld [vmem:[%s0 + $0xa98] sm:$0xff]
    %v361 = vld [vmem:[%s0 + $0xaa0] sm:$0xff]
    %v362 = vld [vmem:[%s0 + $0xaa8] sm:$0xff]
    %v363 = vld [vmem:[%s0 + $0xab0] sm:$0xff]
    %v364 = vld [vmem:[%s0 + $0xab8] sm:$0xff]
    %v365 = vld [vmem:[%s0 + $0xac0] sm:$0xff]
    %v366 = vld [vmem:[%s0 + $0xac8] sm:$0xff]
    %v367 = vld [vmem:[%s0 + $0xad0] sm:$0xff]
    %v368 = vld [vmem:[%s0 + $0xad8] sm:$0xff]
    %v369 = vld [vmem:[%s0 + $0xae0] sm:$0xff]
    %v370 = vld [vmem:[%s0 + $0xae8] sm:$0xff]
    %v371 = vld [vmem:[%s0 + $0xaf0] sm:$0xff]
    %v372 = vld [vmem:[%s0 + $0xaf8] sm:$0xff]
    %v373 = vld [vmem:[%s0 + $0xb00] sm:$0xff]
    %v374 = vld [vmem:[%s0 + $0xb08] sm:$0xff]
    %v375 = vld [vmem:[%s0 + $0xb10] sm:$0xff]
    %v376 = vld [vmem:[%s0 + $0xb18] sm:$0xff]
    %v377 = vld [vmem:[%s0 + $0xb20] sm:$0xff]
    %v378 = vld [vmem:[%s0 + $0xb28] sm:$0xff]
    %v379 = vld [vmem:[%s0 + $0xb30] sm:$0xff]
    %v380 = vld [vmem:[%s0 + $0xb38] sm:$0xff]
    %v381 = vld [vmem:[%s0 + $0xb40] sm:$0xff]
    %v382 = vld [vmem:[%s0 + $0xb48] sm:$0xff]
    %v383 = vld [vmem:[%s0 + $0xb50] sm:$0xff]
    %v384 = vld [vmem:[%s0 + $0xb58] sm:$0xff]
    %v385 = vld [vmem:[%s0 + $0xb60] sm:$0xff]
    %v386 = vld [vmem:[%s0 + $0xb68] sm:$0xff]
    %v387 = vld [vmem:[%s0 + $0xb70] sm:$0xff]
    %v388 = vld [vmem:[%s0 + $0xb78] sm:$0xff]
    %v389 = vld [vmem:[%s0 + $0xb80] sm:$0xff]
    %v390 = vld [vmem:[%s0 + $0xb88] sm:$0xff]
    %v391 = vld [vmem:[%s0 + $0xb90] sm:$0xff]
    %v392 = vld [vmem:[%s0 + $0xb98] sm:$0xff]
    %v393 = vld [vmem:[%s0 + $0xba0] sm:$0xff]
    %v394 = vld [vmem:[%s0 + $0xba8] sm:$0xff]
    %v395 = vld [vmem:[%s0 + $0xbb0] sm:$0xff]
    %v396 = vld [vmem:[%s0 + $0xbb8] sm:$0xff]
    %v397 = vld [vmem:[%s0 + $0xbc0] sm:$0xff]
    %v398 = vld [vmem:[%s0 + $0xbc8] sm:$0xff]
    %v399 = vld [vmem:[%s0 + $0xbd0] sm:$0xff]
    %v400 = vld [vmem:[%s0 + $0xbd8] sm:$0xff]
    %v401 = vld [vmem:[%s0 + $0xbe0] sm:$0xff]
    %v402 = vld [vmem:[%s0 + $0xbe8] sm:$0xff]
    %v403 = vld [vmem:[%s0 + $0xbf0] sm:$0xff]
    %v404 = vld [vmem:[%s0 + $0xbf8] sm:$0xff]
    %v405 = vld [vmem:[%s0 + $0xc00] sm:$0xff]
    %v406 = vld [vmem:[%s0 + $0xc08] sm:$0xff]
    %v407 = vld [vmem:[%s0 + $0xc10] sm:$0xff]
    %v408 = vld [vmem:[%s0 + $0xc18] sm:$0xff]
    %v409 = vld [vmem:[%s0 + $0xc20] sm:$0xff]
    %v410 = vld [vmem:[%s0 + $0xc28] sm:$0xff]
    %v411 = vld [vmem:[%s0 + $0xc30] sm:$0xff]
    %v412 = vld [vmem:[%s0 + $0xc38] sm:$0xff]
    %v413 = vld [vmem:[%s0 + $0xc40] sm:$0xff]
    %v414 = vld [vmem:[%s0 + $0xc48] sm:$0xff]
    %v415 = vld [vmem:[%s0 + $0xc50] sm:$0xff]
    %v416 = vld [vmem:[%s0 + $0xc58] sm:$0xff]
    %v417 = vld [vmem:[%s0 + $0xc60] sm:$0xff]
    %v418 = vld [vmem:[%s0 + $0xc68] sm:$0xff]
    %v419 = vld [vmem:[%s0 + $0xc70] sm:$0xff]
    %v420 = vld [vmem:[%s0 + $0xc78] sm:$0xff]
    %v421 = vld [vmem:[%s1] sm:$0xff]
    %v422 = vld [vmem:[%s1 + $0x8] sm:$0xff]
    %v423 = vld [vmem:[%s1 + $0x10] sm:$0xff]
    %v424 = vld [vmem:[%s1 + $0x18] sm:$0xff]
    %v425 = vld [vmem:[%s1 + $0x20] sm:$0xff]
    %v426 = vld [vmem:[%s1 + $0x28] sm:$0xff]
    %v427 = vld [vmem:[%s1 + $0x30] sm:$0xff]
    %v428 = vld [vmem:[%s1 + $0x38] sm:$0xff]
    %v429 = vld [vmem:[%s1 + $0x40] sm:$0xff]
    %v430 = vld [vmem:[%s1 + $0x48] sm:$0xff]
    %v431 = vld [vmem:[%s1 + $0x50] sm:$0xff]
    %v432 = vld [vmem:[%s1 + $0x58] sm:$0xff]
    %v433 = vld [vmem:[%s1 + $0x60] sm:$0xff]
    %v434 = vld [vmem:[%s1 + $0x68] sm:$0xff]
    %v435 = vld [vmem:[%s1 + $0x70] sm:$0xff]
    %v436 = vld [vmem:[%s1 + $0x78] sm:$0xff]
    %v437 = vld [vmem:[%s1 + $0x80] sm:$0xff]
    %v438 = vld [vmem:[%s1 + $0x88] sm:$0xff]
    %v439 = vld [vmem:[%s1 + $0x90] sm:$0xff]
    %v440 = vld [vmem:[%s1 + $0x98] sm:$0xff]
    %v441 = vld [vmem:[%s1 + $0xa0] sm:$0xff]
    %v442 = vld [vmem:[%s1 + $0xa8] sm:$0xff]
    %v443 = vld [vmem:[%s1 + $0xb0] sm:$0xff]
    %v444 = vld [vmem:[%s1 + $0xb8] sm:$0xff]
    %v445 = vld [vmem:[%s1 + $0xc0] sm:$0xff]
    %v446 = vld [vmem:[%s1 + $0xc8] sm:$0xff]
    %v447 = vld [vmem:[%s1 + $0xd0] sm:$0xff]
    %v448 = vld [vmem:[%s1 + $0xd8] sm:$0xff]
    %v449 = vld [vmem:[%s1 + $0xe0] sm:$0xff]
    %v450 = vld [vmem:[%s1 + $0xe8] sm:$0xff]
    %v451 = vld [vmem:[%s1 + $0xf0] sm:$0xff]
    %v452 = vld [vmem:[%s1 + $0xf8] sm:$0xff]
    %v453 = vld [vmem:[%s1 + $0x100] sm:$0xff]
    %v454 = vld [vmem:[%s1 + $0x108] sm:$0xff]
    %v455 = vld [vmem:[%s1 + $0x110] sm:$0xff]
    %v456 = vld [vmem:[%s1 + $0x118] sm:$0xff]
    %v457 = vld [vmem:[%s1 + $0x120] sm:$0xff]
    %v458 = vld [vmem:[%s1 + $0x128] sm:$0xff]
    %v459 = vld [vmem:[%s1 + $0x130] sm:$0xff]
    %v460 = vld [vmem:[%s1 + $0x138] sm:$0xff]
    %v461 = vld [vmem:[%s1 + $0x140] sm:$0xff]
    %v462 = vld [vmem:[%s1 + $0x148] sm:$0xff]
    %v463 = vld [vmem:[%s1 + $0x150] sm:$0xff]
    %v464 = vld [vmem:[%s1 + $0x158] sm:$0xff]
    %v465 = vld [vmem:[%s1 + $0x160] sm:$0xff]
    %v466 = vld [vmem:[%s1 + $0x168] sm:$0xff]
    %v467 = vld [vmem:[%s1 + $0x170] sm:$0xff]
    %v468 = vld [vmem:[%s1 + $0x178] sm:$0xff]
    %v469 = vld [vmem:[%s1 + $0x180] sm:$0xff]
    %v470 = vld [vmem:[%s1 + $0x188] sm:$0xff]
    %v471 = vld [vmem:[%s1 + $0x190] sm:$0xff]
    %v472 = vld [vmem:[%s1 + $0x198] sm:$0xff]
    %v473 = vld [vmem:[%s1 + $0x1a0] sm:$0xff]
    %v474 = vld [vmem:[%s1 + $0x1a8] sm:$0xff]
    %v475 = vld [vmem:[%s1 + $0x1b0] sm:$0xff]
    %v476 = vld [vmem:[%s1 + $0x1b8] sm:$0xff]
    %v477 = vld [vmem:[%s1 + $0x1c0] sm:$0xff]
    %v478 = vld [vmem:[%s1 + $0x1c8] sm:$0xff]
    %v479 = vld [vmem:[%s1 + $0x1d0] sm:$0xff]
    %v480 = vld [vmem:[%s1 + $0x1d8] sm:$0xff]
    %v481 = vld [vmem:[%s1 + $0x1e0] sm:$0xff]
    %v482 = vld [vmem:[%s1 + $0x1e8] sm:$0xff]
    %v483 = vld [vmem:[%s1 + $0x1f0] sm:$0xff]
    %v484 = vld [vmem:[%s1 + $0x1f8] sm:$0xff]
    %v485 = vld [vmem:[%s1 + $0x200] sm:$0xff]
    %v486 = vld [vmem:[%s1 + $0x208] sm:$0xff]
    %v487 = vld [vmem:[%s1 + $0x210] sm:$0xff]
    %v488 = vld [vmem:[%s1 + $0x218] sm:$0xff]
    %v489 = vld [vmem:[%s1 + $0x220] sm:$0xff]
    %v490 = vld [vmem:[%s1 + $0x228] sm:$0xff]
    %v491 = vld [vmem:[%s1 + $0x230] sm:$0xff]
    %v492 = vld [vmem:[%s1 + $0x238] sm:$0xff]
    %v493 = vld [vmem:[%s1 + $0x240] sm:$0xff]
    %v494 = vld [vmem:[%s1 + $0x248] sm:$0xff]
    %v495 = vld [vmem:[%s1 + $0x250] sm:$0xff]
    %v496 = vld [vmem:[%s1 + $0x258] sm:$0xff]
    %v497 = vld [vmem:[%s1 + $0x260] sm:$0xff]
    %v498 = vld [vmem:[%s1 + $0x268] sm:$0xff]
    %v499 = vld [vmem:[%s1 + $0x270] sm:$0xff]
    %v500 = vld [vmem:[%s1 + $0x278] sm:$0xff]
    %v501 = vld [vmem:[%s1 + $0x280] sm:$0xff]
    %v502 = vld [vmem:[%s1 + $0x288] sm:$0xff]
    %v503 = vld [vmem:[%s1 + $0x290] sm:$0xff]
    %v504 = vld [vmem:[%s1 + $0x298] sm:$0xff]
    %v505 = vld [vmem:[%s1 + $0x2a0] sm:$0xff]
    %v506 = vld [vmem:[%s1 + $0x2a8] sm:$0xff]
    %v507 = vld [vmem:[%s1 + $0x2b0] sm:$0xff]
    %v508 = vld [vmem:[%s1 + $0x2b8] sm:$0xff]
    %v509 = vld [vmem:[%s1 + $0x2c0] sm:$0xff]
    %v510 = vld [vmem:[%s1 + $0x2c8] sm:$0xff]
    %v511 = vld [vmem:[%s1 + $0x2d0] sm:$0xff]
    %v512 = vld [vmem:[%s1 + $0x2d8] sm:$0xff]
    %v513 = vld [vmem:[%s1 + $0x2e0] sm:$0xff]
    %v514 = vld [vmem:[%s1 + $0x2e8] sm:$0xff]
    %v515 = vld [vmem:[%s1 + $0x2f0] sm:$0xff]
    %v516 = vld [vmem:[%s1 + $0x2f8] sm:$0xff]
    %v517 = vld [vmem:[%s1 + $0x300] sm:$0xff]
    %v518 = vld [vmem:[%s1 + $0x308] sm:$0xff]
    %v519 = vld [vmem:[%s1 + $0x310] sm:$0xff]
    %v520 = vld [vmem:[%s1 + $0x318] sm:$0xff]
    %v521 = vld [vmem:[%s1 + $0x320] sm:$0xff]
    %v522 = vld [vmem:[%s1 + $0x328] sm:$0xff]
    %v523 = vld [vmem:[%s1 + $0x330] sm:$0xff]
    %v524 = vld [vmem:[%s1 + $0x338] sm:$0xff]
    %v525 = vld [vmem:[%s1 + $0x340] sm:$0xff]
    %v526 = vld [vmem:[%s1 + $0x348] sm:$0xff]
    %v527 = vld [vmem:[%s1 + $0x350] sm:$0xff]
    %v528 = vld [vmem:[%s1 + $0x358] sm:$0xff]
    %v529 = vld [vmem:[%s1 + $0x360] sm:$0xff]
    %v530 = vld [vmem:[%s1 + $0x368] sm:$0xff]
    %v531 = vld [vmem:[%s1 + $0x370] sm:$0xff]
    %v532 = vld [vmem:[%s1 + $0x378] sm:$0xff]
    %v533 = vld [vmem:[%s1 + $0x380] sm:$0xff]
    %v534 = vld [vmem:[%s1 + $0x388] sm:$0xff]
    %v535 = vld [vmem:[%s1 + $0x390] sm:$0xff]
    %v536 = vld [vmem:[%s1 + $0x398] sm:$0xff]
    %v537 = vld [vmem:[%s1 + $0x3a0] sm:$0xff]
    %v538 = vld [vmem:[%s1 + $0x3a8] sm:$0xff]
    %v539 = vld [vmem:[%s1 + $0x3b0] sm:$0xff]
    %v540 = vld [vmem:[%s1 + $0x3b8] sm:$0xff]
    %v541 = vld [vmem:[%s1 + $0x3c0] sm:$0xff]
    %v542 = vld [vmem:[%s1 + $0x3c8] sm:$0xff]
    %v543 = vld [vmem:[%s1 + $0x3d0] sm:$0xff]
    %v544 = vld [vmem:[%s1 + $0x3d8] sm:$0xff]
    %v545 = vld [vmem:[%s1 + $0x3e0] sm:$0xff]
    %v546 = vld [vmem:[%s1 + $0x3e8] sm:$0xff]
    %v547 = vld [vmem:[%s1 + $0x3f0] sm:$0xff]
    %v548 = vld [vmem:[%s1 + $0x3f8] sm:$0xff]
    %v549 = vld [vmem:[%s1 + $0x400] sm:$0xff]
    %v550 = vld [vmem:[%s1 + $0x408] sm:$0xff]
    %v551 = vld [vmem:[%s1 + $0x410] sm:$0xff]
    %v552 = vld [vmem:[%s1 + $0x418] sm:$0xff]
    %v553 = vld [vmem:[%s1 + $0x420] sm:$0xff]
    %v554 = vld [vmem:[%s1 + $0x428] sm:$0xff]
    %v555 = vld [vmem:[%s1 + $0x430] sm:$0xff]
    %v556 = vld [vmem:[%s1 + $0x438] sm:$0xff]
    %v557 = vld [vmem:[%s1 + $0x440] sm:$0xff]
    %v558 = vld [vmem:[%s1 + $0x448] sm:$0xff]
    %v559 = vld [vmem:[%s1 + $0x450] sm:$0xff]
    %v560 = vld [vmem:[%s1 + $0x458] sm:$0xff]
    %v561 = vld [vmem:[%s1 + $0x460] sm:$0xff]
    %v562 = vld [vmem:[%s1 + $0x468] sm:$0xff]
    %v563 = vld [vmem:[%s1 + $0x470] sm:$0xff]
    %v564 = vld [vmem:[%s1 + $0x478] sm:$0xff]
    %v565 = vld [vmem:[%s1 + $0x480] sm:$0xff]
    %v566 = vld [vmem:[%s1 + $0x488] sm:$0xff]
    %v567 = vld [vmem:[%s1 + $0x490] sm:$0xff]
    %v568 = vld [vmem:[%s1 + $0x498] sm:$0xff]
    %v569 = vld [vmem:[%s1 + $0x4a0] sm:$0xff]
    %v570 = vld [vmem:[%s1 + $0x4a8] sm:$0xff]
    %v571 = vld [vmem:[%s1 + $0x4b0] sm:$0xff]
    %v572 = vld [vmem:[%s1 + $0x4b8] sm:$0xff]
    %v573 = vld [vmem:[%s1 + $0x4c0] sm:$0xff]
    %v574 = vld [vmem:[%s1 + $0x4c8] sm:$0xff]
    %v575 = vld [vmem:[%s1 + $0x4d0] sm:$0xff]
    %v576 = vld [vmem:[%s1 + $0x4d8] sm:$0xff]
    %v577 = vld [vmem:[%s1 + $0x4e0] sm:$0xff]
    %v578 = vld [vmem:[%s1 + $0x4e8] sm:$0xff]
    %v579 = vld [vmem:[%s1 + $0x4f0] sm:$0xff]
    %v580 = vld [vmem:[%s1 + $0x4f8] sm:$0xff]
    %v581 = vld [vmem:[%s1 + $0x500] sm:$0xff]
    %v582 = vld [vmem:[%s1 + $0x508] sm:$0xff]
    %v583 = vld [vmem:[%s1 + $0x510] sm:$0xff]
    %v584 = vld [vmem:[%s1 + $0x518] sm:$0xff]
    %v585 = vld [vmem:[%s1 + $0x520] sm:$0xff]
    %v586 = vld [vmem:[%s1 + $0x528] sm:$0xff]
    %v587 = vld [vmem:[%s1 + $0x530] sm:$0xff]
    %v588 = vld [vmem:[%s1 + $0x538] sm:$0xff]
    %v589 = vld [vmem:[%s1 + $0x540] sm:$0xff]
    %v590 = vld [vmem:[%s1 + $0x548] sm:$0xff]
    %v591 = vld [vmem:[%s1 + $0x550] sm:$0xff]
    %v592 = vld [vmem:[%s1 + $0x558] sm:$0xff]
    %v593 = vld [vmem:[%s1 + $0x560] sm:$0xff]
    %v594 = vld [vmem:[%s1 + $0x568] sm:$0xff]
    %v595 = vld [vmem:[%s1 + $0x570] sm:$0xff]
    %v596 = vld [vmem:[%s1 + $0x578] sm:$0xff]
    %v597 = vld [vmem:[%s1 + $0x580] sm:$0xff]
    %v598 = vld [vmem:[%s1 + $0x588] sm:$0xff]
    %v599 = vld [vmem:[%s1 + $0x590] sm:$0xff]
    %v600 = vld [vmem:[%s1 + $0x598] sm:$0xff]
    %v601 = vld [vmem:[%s1 + $0x5a0] sm:$0xff]
    %v602 = vld [vmem:[%s1 + $0x5a8] sm:$0xff]
    %v603 = vld [vmem:[%s1 + $0x5b0] sm:$0xff]
    %v604 = vld [vmem:[%s1 + $0x5b8] sm:$0xff]
    %v605 = vld [vmem:[%s1 + $0x5c0] sm:$0xff]
    %v606 = vld [vmem:[%s1 + $0x5c8] sm:$0xff]
    %v607 = vld [vmem:[%s1 + $0x5d0] sm:$0xff]
    %v608 = vld [vmem:[%s1 + $0x5d8] sm:$0xff]
    %v609 = vld [vmem:[%s1 + $0x5e0] sm:$0xff]
    %v610 = vld [vmem:[%s1 + $0x5e8] sm:$0xff]
    %v611 = vld [vmem:[%s1 + $0x5f0] sm:$0xff]
    %v612 = vld [vmem:[%s1 + $0x5f8] sm:$0xff]
    %v613 = vld [vmem:[%s1 + $0x600] sm:$0xff]
    %v614 = vld [vmem:[%s1 + $0x608] sm:$0xff]
    %v615 = vld [vmem:[%s1 + $0x610] sm:$0xff]
    %v616 = vld [vmem:[%s1 + $0x618] sm:$0xff]
    %v617 = vld [vmem:[%s1 + $0x620] sm:$0xff]
    %v618 = vld [vmem:[%s1 + $0x628] sm:$0xff]
    %v619 = vld [vmem:[%s1 + $0x630] sm:$0xff]
    %v620 = vld [vmem:[%s1 + $0x638] sm:$0xff]
    %v621 = vld [vmem:[%s1 + $0x640] sm:$0xff]
    %v622 = vld [vmem:[%s1 + $0x648] sm:$0xff]
    %v623 = vld [vmem:[%s1 + $0x650] sm:$0xff]
    %v624 = vld [vmem:[%s1 + $0x658] sm:$0xff]
    %v625 = vld [vmem:[%s1 + $0x660] sm:$0xff]
    %v626 = vld [vmem:[%s1 + $0x668] sm:$0xff]
    %v627 = vld [vmem:[%s1 + $0x670] sm:$0xff]
    %v628 = vld [vmem:[%s1 + $0x678] sm:$0xff]
    %v629 = vld [vmem:[%s1 + $0x680] sm:$0xff]
    %v630 = vld [vmem:[%s1 + $0x688] sm:$0xff]
    %v631 = vld [vmem:[%s1 + $0x690] sm:$0xff]
    %v632 = vld [vmem:[%s1 + $0x698] sm:$0xff]
    %v633 = vld [vmem:[%s1 + $0x6a0] sm:$0xff]
    %v634 = vld [vmem:[%s1 + $0x6a8] sm:$0xff]
    %v635 = vld [vmem:[%s1 + $0x6b0] sm:$0xff]
    %v636 = vld [vmem:[%s1 + $0x6b8] sm:$0xff]
    %v637 = vld [vmem:[%s1 + $0x6c0] sm:$0xff]
    %v638 = vld [vmem:[%s1 + $0x6c8] sm:$0xff]
    %v639 = vld [vmem:[%s1 + $0x6d0] sm:$0xff]
    %v640 = vld [vmem:[%s1 + $0x6d8] sm:$0xff]
    %v641 = vld [vmem:[%s1 + $0x6e0] sm:$0xff]
    %v642 = vld [vmem:[%s1 + $0x6e8] sm:$0xff]
    %v643 = vld [vmem:[%s1 + $0x6f0] sm:$0xff]
    %v644 = vld [vmem:[%s1 + $0x6f8] sm:$0xff]
    %v645 = vld [vmem:[%s1 + $0x700] sm:$0xff]
    %v646 = vld [vmem:[%s1 + $0x708] sm:$0xff]
    %v647 = vld [vmem:[%s1 + $0x710] sm:$0xff]
    %v648 = vld [vmem:[%s1 + $0x718] sm:$0xff]
    %v649 = vld [vmem:[%s1 + $0x720] sm:$0xff]
    %v650 = vld [vmem:[%s1 + $0x728] sm:$0xff]
    %v651 = vld [vmem:[%s1 + $0x730] sm:$0xff]
    %v652 = vld [vmem:[%s1 + $0x738] sm:$0xff]
    %v653 = vld [vmem:[%s1 + $0x740] sm:$0xff]
    %v654 = vld [vmem:[%s1 + $0x748] sm:$0xff]
    %v655 = vld [vmem:[%s1 + $0x750] sm:$0xff]
    %v656 = vld [vmem:[%s1 + $0x758] sm:$0xff]
    %v657 = vld [vmem:[%s1 + $0x760] sm:$0xff]
    %v658 = vld [vmem:[%s1 + $0x768] sm:$0xff]
    %v659 = vld [vmem:[%s1 + $0x770] sm:$0xff]
    %v660 = vld [vmem:[%s1 + $0x778] sm:$0xff]
    %v661 = vld [vmem:[%s1 + $0x780] sm:$0xff]
    %v662 = vld [vmem:[%s1 + $0x788] sm:$0xff]
    %v663 = vld [vmem:[%s1 + $0x790] sm:$0xff]
    %v664 = vld [vmem:[%s1 + $0x798] sm:$0xff]
    %v665 = vld [vmem:[%s1 + $0x7a0] sm:$0xff]
    %v666 = vld [vmem:[%s1 + $0x7a8] sm:$0xff]
    %v667 = vld [vmem:[%s1 + $0x7b0] sm:$0xff]
    %v668 = vld [vmem:[%s1 + $0x7b8] sm:$0xff]
    %v669 = vld [vmem:[%s1 + $0x7c0] sm:$0xff]
    %v670 = vld [vmem:[%s1 + $0x7c8] sm:$0xff]
    %v671 = vld [vmem:[%s1 + $0x7d0] sm:$0xff]
    %v672 = vld [vmem:[%s1 + $0x7d8] sm:$0xff]
    %v673 = vld [vmem:[%s1 + $0x7e0] sm:$0xff]
    %v674 = vld [vmem:[%s1 + $0x7e8] sm:$0xff]
    %v675 = vld [vmem:[%s1 + $0x7f0] sm:$0xff]
    %v676 = vld [vmem:[%s1 + $0x7f8] sm:$0xff]
    %v677 = vld [vmem:[%s1 + $0x800] sm:$0xff]
    %v678 = vld [vmem:[%s1 + $0x808] sm:$0xff]
    %v679 = vld [vmem:[%s1 + $0x810] sm:$0xff]
    %v680 = vld [vmem:[%s1 + $0x818] sm:$0xff]
    %v681 = vld [vmem:[%s1 + $0x820] sm:$0xff]
    %v682 = vld [vmem:[%s1 + $0x828] sm:$0xff]
    %v683 = vld [vmem:[%s1 + $0x830] sm:$0xff]
    %v684 = vld [vmem:[%s1 + $0x838] sm:$0xff]
    %v685 = vld [vmem:[%s1 + $0x840] sm:$0xff]
    %v686 = vld [vmem:[%s1 + $0x848] sm:$0xff]
    %v687 = vld [vmem:[%s1 + $0x850] sm:$0xff]
    %v688 = vld [vmem:[%s1 + $0x858] sm:$0xff]
    %v689 = vld [vmem:[%s1 + $0x860] sm:$0xff]
    %v690 = vld [vmem:[%s1 + $0x868] sm:$0xff]
    %v691 = vld [vmem:[%s1 + $0x870] sm:$0xff]
    %v692 = vld [vmem:[%s1 + $0x878] sm:$0xff]
    %v693 = vld [vmem:[%s1 + $0x880] sm:$0xff]
    %v694 = vld [vmem:[%s1 + $0x888] sm:$0xff]
    %v695 = vld [vmem:[%s1 + $0x890] sm:$0xff]
    %v696 = vld [vmem:[%s1 + $0x898] sm:$0xff]
    %v697 = vld [vmem:[%s1 + $0x8a0] sm:$0xff]
    %v698 = vld [vmem:[%s1 + $0x8a8] sm:$0xff]
    %v699 = vld [vmem:[%s1 + $0x8b0] sm:$0xff]
    %v700 = vld [vmem:[%s1 + $0x8b8] sm:$0xff]
    %v701 = vld [vmem:[%s1 + $0x8c0] sm:$0xff]
    %v702 = vld [vmem:[%s1 + $0x8c8] sm:$0xff]
    %v703 = vld [vmem:[%s1 + $0x8d0] sm:$0xff]
    %v704 = vld [vmem:[%s1 + $0x8d8] sm:$0xff]
    %v705 = vld [vmem:[%s1 + $0x8e0] sm:$0xff]
    %v706 = vld [vmem:[%s1 + $0x8e8] sm:$0xff]
    %v707 = vld [vmem:[%s1 + $0x8f0] sm:$0xff]
    %v708 = vld [vmem:[%s1 + $0x8f8] sm:$0xff]
    %v709 = vld [vmem:[%s1 + $0x900] sm:$0xff]
    %v710 = vld [vmem:[%s1 + $0x908] sm:$0xff]
    %v711 = vld [vmem:[%s1 + $0x910] sm:$0xff]
    %v712 = vld [vmem:[%s1 + $0x918] sm:$0xff]
    %v713 = vld [vmem:[%s1 + $0x920] sm:$0xff]
    %v714 = vld [vmem:[%s1 + $0x928] sm:$0xff]
    %v715 = vld [vmem:[%s1 + $0x930] sm:$0xff]
    %v716 = vld [vmem:[%s1 + $0x938] sm:$0xff]
    %v717 = vld [vmem:[%s1 + $0x940] sm:$0xff]
    %v718 = vld [vmem:[%s1 + $0x948] sm:$0xff]
    %v719 = vld [vmem:[%s1 + $0x950] sm:$0xff]
    %v720 = vld [vmem:[%s1 + $0x958] sm:$0xff]
    %v721 = vld [vmem:[%s1 + $0x960] sm:$0xff]
    %v722 = vld [vmem:[%s1 + $0x968] sm:$0xff]
    %v723 = vld [vmem:[%s1 + $0x970] sm:$0xff]
    %v724 = vld [vmem:[%s1 + $0x978] sm:$0xff]
    %v725 = vld [vmem:[%s1 + $0x980] sm:$0xff]
    %v726 = vld [vmem:[%s1 + $0x988] sm:$0xff]
    %v727 = vld [vmem:[%s1 + $0x990] sm:$0xff]
    %v728 = vld [vmem:[%s1 + $0x998] sm:$0xff]
    %v729 = vld [vmem:[%s1 + $0x9a0] sm:$0xff]
    %v730 = vld [vmem:[%s1 + $0x9a8] sm:$0xff]
    %v731 = vld [vmem:[%s1 + $0x9b0] sm:$0xff]
    %v732 = vld [vmem:[%s1 + $0x9b8] sm:$0xff]
    %v733 = vld [vmem:[%s1 + $0x9c0] sm:$0xff]
    %v734 = vld [vmem:[%s1 + $0x9c8] sm:$0xff]
    %v735 = vld [vmem:[%s1 + $0x9d0] sm:$0xff]
    %v736 = vld [vmem:[%s1 + $0x9d8] sm:$0xff]
    %v737 = vld [vmem:[%s1 + $0x9e0] sm:$0xff]
    %v738 = vld [vmem:[%s1 + $0x9e8] sm:$0xff]
    %v739 = vld [vmem:[%s1 + $0x9f0] sm:$0xff]
    %v740 = vld [vmem:[%s1 + $0x9f8] sm:$0xff]
    %v741 = vld [vmem:[%s1 + $0xa00] sm:$0xff]
    %v742 = vld [vmem:[%s1 + $0xa08] sm:$0xff]
    %v743 = vld [vmem:[%s1 + $0xa10] sm:$0xff]
    %v744 = vld [vmem:[%s1 + $0xa18] sm:$0xff]
    %v745 = vld [vmem:[%s1 + $0xa20] sm:$0xff]
    %v746 = vld [vmem:[%s1 + $0xa28] sm:$0xff]
    %v747 = vld [vmem:[%s1 + $0xa30] sm:$0xff]
    %v748 = vld [vmem:[%s1 + $0xa38] sm:$0xff]
    %v749 = vld [vmem:[%s1 + $0xa40] sm:$0xff]
    %v750 = vld [vmem:[%s1 + $0xa48] sm:$0xff]
    %v751 = vld [vmem:[%s1 + $0xa50] sm:$0xff]
    %v752 = vld [vmem:[%s1 + $0xa58] sm:$0xff]
    %v753 = vld [vmem:[%s1 + $0xa60] sm:$0xff]
    %v754 = vld [vmem:[%s1 + $0xa68] sm:$0xff]
    %v755 = vld [vmem:[%s1 + $0xa70] sm:$0xff]
    %v756 = vld [vmem:[%s1 + $0xa78] sm:$0xff]
    %v757 = vld [vmem:[%s1 + $0xa80] sm:$0xff]
    %v758 = vld [vmem:[%s1 + $0xa88] sm:$0xff]
    %v759 = vld [vmem:[%s1 + $0xa90] sm:$0xff]
    %v760 = vld [vmem:[%s1 + $0xa98] sm:$0xff]
    %v761 = vld [vmem:[%s1 + $0xaa0] sm:$0xff]
    %v762 = vld [vmem:[%s1 + $0xaa8] sm:$0xff]
    %v763 = vld [vmem:[%s1 + $0xab0] sm:$0xff]
    %v764 = vld [vmem:[%s1 + $0xab8] sm:$0xff]
    %v765 = vld [vmem:[%s1 + $0xac0] sm:$0xff]
    %v766 = vld [vmem:[%s1 + $0xac8] sm:$0xff]
    %v767 = vld [vmem:[%s1 + $0xad0] sm:$0xff]
    %v768 = vld [vmem:[%s1 + $0xad8] sm:$0xff]
    %v769 = vld [vmem:[%s1 + $0xae0] sm:$0xff]
    %v770 = vld [vmem:[%s1 + $0xae8] sm:$0xff]
    %v771 = vld [vmem:[%s1 + $0xaf0] sm:$0xff]
    %v772 = vld [vmem:[%s1 + $0xaf8] sm:$0xff]
    %v773 = vld [vmem:[%s1 + $0xb00] sm:$0xff]
    %v774 = vld [vmem:[%s1 + $0xb08] sm:$0xff]
    %v775 = vld [vmem:[%s1 + $0xb10] sm:$0xff]
    %v776 = vld [vmem:[%s1 + $0xb18] sm:$0xff]
    %v777 = vld [vmem:[%s1 + $0xb20] sm:$0xff]
    %v778 = vld [vmem:[%s1 + $0xb28] sm:$0xff]
    %v779 = vld [vmem:[%s1 + $0xb30] sm:$0xff]
    %v780 = vld [vmem:[%s1 + $0xb38] sm:$0xff]
    %v781 = vld [vmem:[%s1 + $0xb40] sm:$0xff]
    %v782 = vld [vmem:[%s1 + $0xb48] sm:$0xff]
    %v783 = vld [vmem:[%s1 + $0xb50] sm:$0xff]
    %v784 = vld [vmem:[%s1 + $0xb58] sm:$0xff]
    %v785 = vld [vmem:[%s1 + $0xb60] sm:$0xff]
    %v786 = vld [vmem:[%s1 + $0xb68] sm:$0xff]
    %v787 = vld [vmem:[%s1 + $0xb70] sm:$0xff]
    %v788 = vld [vmem:[%s1 + $0xb78] sm:$0xff]
    %v789 = vld [vmem:[%s1 + $0xb80] sm:$0xff]
    %v790 = vld [vmem:[%s1 + $0xb88] sm:$0xff]
    %v791 = vld [vmem:[%s1 + $0xb90] sm:$0xff]
    %v792 = vld [vmem:[%s1 + $0xb98] sm:$0xff]
    %v793 = vld [vmem:[%s1 + $0xba0] sm:$0xff]
    %v794 = vld [vmem:[%s1 + $0xba8] sm:$0xff]
    %v795 = vld [vmem:[%s1 + $0xbb0] sm:$0xff]
    %v796 = vld [vmem:[%s1 + $0xbb8] sm:$0xff]
    %v797 = vld [vmem:[%s1 + $0xbc0] sm:$0xff]
    %v798 = vld [vmem:[%s1 + $0xbc8] sm:$0xff]
    %v799 = vld [vmem:[%s1 + $0xbd0] sm:$0xff]
    %v800 = vld [vmem:[%s1 + $0xbd8] sm:$0xff]
    %v801 = vld [vmem:[%s1 + $0xbe0] sm:$0xff]
    %v802 = vld [vmem:[%s1 + $0xbe8] sm:$0xff]
    %v803 = vld [vmem:[%s1 + $0xbf0] sm:$0xff]
    %v804 = vld [vmem:[%s1 + $0xbf8] sm:$0xff]
    %v805 = vld [vmem:[%s1 + $0xc00] sm:$0xff]
    %v806 = vld [vmem:[%s1 + $0xc08] sm:$0xff]
    %v807 = vld [vmem:[%s1 + $0xc10] sm:$0xff]
    %v808 = vld [vmem:[%s1 + $0xc18] sm:$0xff]
    %v809 = vld [vmem:[%s1 + $0xc20] sm:$0xff]
    %v810 = vld [vmem:[%s1 + $0xc28] sm:$0xff]
    %v811 = vld [vmem:[%s1 + $0xc30] sm:$0xff]
    %v812 = vld [vmem:[%s1 + $0xc38] sm:$0xff]
    %v813 = vld [vmem:[%s1 + $0xc40] sm:$0xff]
    %v814 = vld [vmem:[%s1 + $0xc48] sm:$0xff]
    %v815 = vld [vmem:[%s1 + $0xc50] sm:$0xff]
    %v816 = vld [vmem:[%s1 + $0xc58] sm:$0xff]
    %v817 = vld [vmem:[%s1 + $0xc60] sm:$0xff]
    %v818 = vld [vmem:[%s1 + $0xc68] sm:$0xff]
    %v819 = vld [vmem:[%s1 + $0xc70] sm:$0xff]
    %v820 = vld [vmem:[%s1 + $0xc78] sm:$0xff]
    %v821 = vld [vmem:[%s1 + $0xc80] sm:$0xff]
    %v822 = vld [vmem:[%s1 + $0xc88] sm:$0xff]
    %v823 = vld [vmem:[%s1 + $0xc90] sm:$0xff]
    %v824 = vld [vmem:[%s1 + $0xc98] sm:$0xff]
    %v825 = vld [vmem:[%s1 + $0xca0] sm:$0xff]
    %v826 = vld [vmem:[%s1 + $0xca8] sm:$0xff]
    %v827 = vld [vmem:[%s1 + $0xcb0] sm:$0xff]
    %v828 = vld [vmem:[%s1 + $0xcb8] sm:$0xff]
    %v829 = vld [vmem:[%s1 + $0xcc0] sm:$0xff]
    %v830 = vld [vmem:[%s1 + $0xcc8] sm:$0xff]
    %v831 = vld [vmem:[%s1 + $0xcd0] sm:$0xff]
    %v832 = vld [vmem:[%s1 + $0xcd8] sm:$0xff]
    %v833 = vld [vmem:[%s1 + $0xce0] sm:$0xff]
    %v834 = vld [vmem:[%s1 + $0xce8] sm:$0xff]
    %v835 = vld [vmem:[%s1 + $0xcf0] sm:$0xff]
    %v836 = vld [vmem:[%s1 + $0xcf8] sm:$0xff]
    %v837 = vld [vmem:[%s1 + $0xd00] sm:$0xff]
    %v838 = vld [vmem:[%s1 + $0xd08] sm:$0xff]
    %v839 = vld [vmem:[%s1 + $0xd10] sm:$0xff]
    %v840 = vld [vmem:[%s1 + $0xd18] sm:$0xff]
    %v841 = vld [vmem:[%s1 + $0xd20] sm:$0xff]
    %v842 = vld [vmem:[%s1 + $0xd28] sm:$0xff]
    %v843 = vld [vmem:[%s1 + $0xd30] sm:$0xff]
    %v844 = vld [vmem:[%s1 + $0xd38] sm:$0xff]
    %v845 = vld [vmem:[%s1 + $0xd40] sm:$0xff]
    %v846 = vld [vmem:[%s1 + $0xd48] sm:$0xff]
    %v847 = vld [vmem:[%s1 + $0xd50] sm:$0xff]
    %v848 = vld [vmem:[%s1 + $0xd58] sm:$0xff]
    %v849 = vld [vmem:[%s1 + $0xd60] sm:$0xff]
    %v850 = vld [vmem:[%s1 + $0xd68] sm:$0xff]
    %v851 = vld [vmem:[%s1 + $0xd70] sm:$0xff]
    %v852 = vld [vmem:[%s1 + $0xd78] sm:$0xff]
    %v853 = vld [vmem:[%s1 + $0xd80] sm:$0xff]
    %v854 = vld [vmem:[%s1 + $0xd88] sm:$0xff]
    %v855 = vld [vmem:[%s1 + $0xd90] sm:$0xff]
    %v856 = vld [vmem:[%s1 + $0xd98] sm:$0xff]
    %v857 = vld [vmem:[%s1 + $0xda0] sm:$0xff]
    %v858 = vld [vmem:[%s1 + $0xda8] sm:$0xff]
    %v859 = vld [vmem:[%s1 + $0xdb0] sm:$0xff]
    %v860 = vld [vmem:[%s1 + $0xdb8] sm:$0xff]
    %v861 = vld [vmem:[%s1 + $0xdc0] sm:$0xff]
    %v862 = vld [vmem:[%s1 + $0xdc8] sm:$0xff]
    %v863 = vld [vmem:[%s1 + $0xdd0] sm:$0xff]
    %v864 = vld [vmem:[%s1 + $0xdd8] sm:$0xff]
    %v865 = vld [vmem:[%s1 + $0xde0] sm:$0xff]
    %v866 = vld [vmem:[%s1 + $0xde8] sm:$0xff]
    %v867 = vld [vmem:[%s1 + $0xdf0] sm:$0xff]
    %v868 = vld [vmem:[%s1 + $0xdf8] sm:$0xff]
    %v869 = vld [vmem:[%s1 + $0xe00] sm:$0xff]
    %v870 = vld [vmem:[%s1 + $0xe08] sm:$0xff]
    %v871 = vld [vmem:[%s1 + $0xe10] sm:$0xff]
    %v872 = vld [vmem:[%s1 + $0xe18] sm:$0xff]
    %v873 = vld [vmem:[%s1 + $0xe20] sm:$0xff]
    %v874 = vld [vmem:[%s1 + $0xe28] sm:$0xff]
    %v875 = vld [vmem:[%s1 + $0xe30] sm:$0xff]
    %v876 = vld [vmem:[%s1 + $0xe38] sm:$0xff]
    %v877 = vld [vmem:[%s1 + $0xe40] sm:$0xff]
    %v878 = vld [vmem:[%s1 + $0xe48] sm:$0xff]
    %v879 = vld [vmem:[%s1 + $0xe50] sm:$0xff]
    %v880 = vld [vmem:[%s1 + $0xe58] sm:$0xff]
    %v881 = vld [vmem:[%s1 + $0xe60] sm:$0xff]
    %v882 = vld [vmem:[%s1 + $0xe68] sm:$0xff]
    %v883 = vld [vmem:[%s1 + $0xe70] sm:$0xff]
    %v884 = vld [vmem:[%s1 + $0xe78] sm:$0xff]
    %v885 = vld [vmem:[%s1 + $0xe80] sm:$0xff]
    %v886 = vld [vmem:[%s1 + $0xe88] sm:$0xff]
    %v887 = vld [vmem:[%s1 + $0xe90] sm:$0xff]
    %v888 = vld [vmem:[%s1 + $0xe98] sm:$0xff]
    %v889 = vld [vmem:[%s1 + $0xea0] sm:$0xff]
    %v890 = vld [vmem:[%s1 + $0xea8] sm:$0xff]
    %v891 = vld [vmem:[%s1 + $0xeb0] sm:$0xff]
    %v892 = vld [vmem:[%s1 + $0xeb8] sm:$0xff]
    %v893 = vld [vmem:[%s1 + $0xec0] sm:$0xff]
    %v894 = vld [vmem:[%s1 + $0xec8] sm:$0xff]
    %v895 = vld [vmem:[%s1 + $0xed0] sm:$0xff]
    %v896 = vld [vmem:[%s1 + $0xed8] sm:$0xff]
    %v897 = vld [vmem:[%s1 + $0xee0] sm:$0xff]
    %v898 = vld [vmem:[%s1 + $0xee8] sm:$0xff]
    %v899 = vld [vmem:[%s1 + $0xef0] sm:$0xff]
    %v900 = vld [vmem:[%s1 + $0xef8] sm:$0xff]
    %v901 = vld [vmem:[%s1 + $0xf00] sm:$0xff]
    %v902 = vld [vmem:[%s1 + $0xf08] sm:$0xff]
    %v903 = vld [vmem:[%s1 + $0xf10] sm:$0xff]
    %v904 = vld [vmem:[%s1 + $0xf18] sm:$0xff]
    %v905 = vld [vmem:[%s1 + $0xf20] sm:$0xff]
    %v906 = vld [vmem:[%s1 + $0xf28] sm:$0xff]
    %v907 = vld [vmem:[%s1 + $0xf30] sm:$0xff]
    %v908 = vld [vmem:[%s1 + $0xf38] sm:$0xff]
    %v909 = vld [vmem:[%s1 + $0xf40] sm:$0xff]
    %v910 = vld [vmem:[%s1 + $0xf48] sm:$0xff]
    %v911 = vld [vmem:[%s1 + $0xf50] sm:$0xff]
    %v912 = vld [vmem:[%s1 + $0xf58] sm:$0xff]
    %v913 = vld [vmem:[%s1 + $0xf60] sm:$0xff]
    %v914 = vld [vmem:[%s1 + $0xf68] sm:$0xff]
    %v915 = vld [vmem:[%s1 + $0xf70] sm:$0xff]
    %v916 = vld [vmem:[%s1 + $0xf78] sm:$0xff]
    %v917 = vld [vmem:[%s1 + $0xf80] sm:$0xff]
    %v918 = vld [vmem:[%s1 + $0xf88] sm:$0xff]
    %v919 = vld [vmem:[%s1 + $0xf90] sm:$0xff]
    %v920 = vld [vmem:[%s1 + $0xf98] sm:$0xff]
    %v921 = vld [vmem:[%s1 + $0xfa0] sm:$0xff]
    %v922 = vld [vmem:[%s1 + $0xfa8] sm:$0xff]
    %v923 = vld [vmem:[%s1 + $0xfb0] sm:$0xff]
    %v924 = vld [vmem:[%s1 + $0xfb8] sm:$0xff]
    %v925 = vld [vmem:[%s1 + $0xfc0] sm:$0xff]
    %v926 = vld [vmem:[%s1 + $0xfc8] sm:$0xff]
    %v927 = vld [vmem:[%s1 + $0xfd0] sm:$0xff]
    %v928 = vld [vmem:[%s1 + $0xfd8] sm:$0xff]
    %v929 = vld [vmem:[%s1 + $0xfe0] sm:$0xff]
    %v930 = vld [vmem:[%s1 + $0xfe8] sm:$0xff]
    %v931 = vld [vmem:[%s1 + $0xff0] sm:$0xff]
    %v932 = vld [vmem:[%s1 + $0xff8] sm:$0xff]
    %v933 = vld [vmem:[%s1 + $0x1000] sm:$0xff]
    %v934 = vld [vmem:[%s1 + $0x1008] sm:$0xff]
    %v935 = vld [vmem:[%s1 + $0x1010] sm:$0xff]
    %v936 = vld [vmem:[%s1 + $0x1018] sm:$0xff]
    %v937 = vld [vmem:[%s1 + $0x1020] sm:$0xff]
    %v938 = vld [vmem:[%s1 + $0x1028] sm:$0xff]
    %v939 = vld [vmem:[%s1 + $0x1030] sm:$0xff]
    %v940 = vld [vmem:[%s1 + $0x1038] sm:$0xff]
    %v941 = vld [vmem:[%s1 + $0x1040] sm:$0xff]
    %v942 = vld [vmem:[%s1 + $0x1048] sm:$0xff]
    %v943 = vld [vmem:[%s1 + $0x1050] sm:$0xff]
    %v944 = vld [vmem:[%s1 + $0x1058] sm:$0xff]
    %v945 = vld [vmem:[%s1 + $0x1060] sm:$0xff]
    %v946 = vld [vmem:[%s1 + $0x1068] sm:$0xff]
    %v947 = vld [vmem:[%s1 + $0x1070] sm:$0xff]
    %v948 = vld [vmem:[%s1 + $0x1078] sm:$0xff]
    %v949 = vld [vmem:[%s1 + $0x1080] sm:$0xff]
    %v950 = vld [vmem:[%s1 + $0x1088] sm:$0xff]
    %v951 = vld [vmem:[%s1 + $0x1090] sm:$0xff]
    %v952 = vld [vmem:[%s1 + $0x1098] sm:$0xff]
    %v953 = vld [vmem:[%s1 + $0x10a0] sm:$0xff]
    %v954 = vld [vmem:[%s1 + $0x10a8] sm:$0xff]
    %v955 = vld [vmem:[%s1 + $0x10b0] sm:$0xff]
    %v956 = vld [vmem:[%s1 + $0x10b8] sm:$0xff]
    %v957 = vld [vmem:[%s1 + $0x10c0] sm:$0xff]
    %v958 = vld [vmem:[%s1 + $0x10c8] sm:$0xff]
    %v959 = vld [vmem:[%s1 + $0x10d0] sm:$0xff]
    %v960 = vld [vmem:[%s1 + $0x10d8] sm:$0xff]
    %v961 = vld [vmem:[%s1 + $0x10e0] sm:$0xff]
    %v962 = vld [vmem:[%s1 + $0x10e8] sm:$0xff]
    %v963 = vld [vmem:[%s1 + $0x10f0] sm:$0xff]
    %v964 = vld [vmem:[%s1 + $0x10f8] sm:$0xff]
    %v965 = vld [vmem:[%s1 + $0x1100] sm:$0xff]
    %v966 = vld [vmem:[%s1 + $0x1108] sm:$0xff]
    %v967 = vld [vmem:[%s1 + $0x1110] sm:$0xff]
    %v968 = vld [vmem:[%s1 + $0x1118] sm:$0xff]
    %v969 = vld [vmem:[%s1 + $0x1120] sm:$0xff]
    %v970 = vld [vmem:[%s1 + $0x1128] sm:$0xff]
    %v971 = vld [vmem:[%s1 + $0x1130] sm:$0xff]
    %v972 = vld [vmem:[%s1 + $0x1138] sm:$0xff]
    %v973 = vld [vmem:[%s1 + $0x1140] sm:$0xff]
    %v974 = vld [vmem:[%s1 + $0x1148] sm:$0xff]
    %v975 = vld [vmem:[%s1 + $0x1150] sm:$0xff]
    %v976 = vld [vmem:[%s1 + $0x1158] sm:$0xff]
    %v977 = vld [vmem:[%s1 + $0x1160] sm:$0xff]
    %v978 = vld [vmem:[%s1 + $0x1168] sm:$0xff]
    %v979 = vld [vmem:[%s1 + $0x1170] sm:$0xff]
    %v980 = vld [vmem:[%s1 + $0x1178] sm:$0xff]
    %v981 = vld [vmem:[%s1 + $0x1180] sm:$0xff]
    %v982 = vld [vmem:[%s1 + $0x1188] sm:$0xff]
    %v983 = vld [vmem:[%s1 + $0x1190] sm:$0xff]
    %v984 = vld [vmem:[%s1 + $0x1198] sm:$0xff]
    %v985 = vld [vmem:[%s1 + $0x11a0] sm:$0xff]
    %v986 = vld [vmem:[%s1 + $0x11a8] sm:$0xff]
    %v987 = vld [vmem:[%s1 + $0x11b0] sm:$0xff]
    %v988 = vld [vmem:[%s1 + $0x11b8] sm:$0xff]
    %v989 = vld [vmem:[%s1 + $0x11c0] sm:$0xff]
    %v990 = vld [vmem:[%s1 + $0x11c8] sm:$0xff]
    %v991 = vld [vmem:[%s1 + $0x11d0] sm:$0xff]
    %v992 = vld [vmem:[%s1 + $0x11d8] sm:$0xff]
    %v993 = vld [vmem:[%s1 + $0x11e0] sm:$0xff]
    %v994 = vld [vmem:[%s1 + $0x11e8] sm:$0xff]
    %v995 = vld [vmem:[%s1 + $0x11f0] sm:$0xff]
    %v996 = vld [vmem:[%s1 + $0x11f8] sm:$0xff]
    %v997 = vld [vmem:[%s1 + $0x1200] sm:$0xff]
    %v998 = vld [vmem:[%s1 + $0x1208] sm:$0xff]
    %v999 = vld [vmem:[%s1 + $0x1210] sm:$0xff]
    %v1000 = vld [vmem:[%s1 + $0x1218] sm:$0xff]
    %v1001 = vld [vmem:[%s1 + $0x1220] sm:$0xff]
    %v1002 = vld [vmem:[%s1 + $0x1228] sm:$0xff]
    %v1003 = vld [vmem:[%s1 + $0x1230] sm:$0xff]
    %v1004 = vld [vmem:[%s1 + $0x1238] sm:$0xff]
    %v1005 = vld [vmem:[%s1 + $0x1240] sm:$0xff]
    %v1006 = vld [vmem:[%s1 + $0x1248] sm:$0xff]
    %v1007 = vld [vmem:[%s1 + $0x1250] sm:$0xff]
    %v1008 = vld [vmem:[%s1 + $0x1258] sm:$0xff]
    %v1009 = vld [vmem:[%s1 + $0x1260] sm:$0xff]
    %v1010 = vld [vmem:[%s1 + $0x1268] sm:$0xff]
    %v1011 = vld [vmem:[%s1 + $0x1270] sm:$0xff]
    %v1012 = vld [vmem:[%s1 + $0x1278] sm:$0xff]
    %v1013 = vld [vmem:[%s1 + $0x1280] sm:$0xff]
    %v1014 = vld [vmem:[%s1 + $0x1288] sm:$0xff]
    %v1015 = vld [vmem:[%s1 + $0x1290] sm:$0xff]
    %v1016 = vld [vmem:[%s1 + $0x1298] sm:$0xff]
    %v1017 = vld [vmem:[%s1 + $0x12a0] sm:$0xff]
    %v1018 = vld [vmem:[%s1 + $0x12a8] sm:$0xff]
    %v1019 = vld [vmem:[%s1 + $0x12b0] sm:$0xff]
    %v1020 = vld [vmem:[%s1 + $0x12b8] sm:$0xff]
    %v1021 = vld [vmem:[%s1 + $0x12c0] sm:$0xff]
    %v1022 = vld [vmem:[%s1 + $0x12c8] sm:$0xff]
    %v1023 = vld [vmem:[%s1 + $0x12d0] sm:$0xff]
    %v1024 = vld [vmem:[%s1 + $0x12d8] sm:$0xff]
    %v1025 = vld [vmem:[%s1 + $0x12e0] sm:$0xff]
    %v1026 = vld [vmem:[%s1 + $0x12e8] sm:$0xff]
    %v1027 = vld [vmem:[%s1 + $0x12f0] sm:$0xff]
    %v1028 = vld [vmem:[%s1 + $0x12f8] sm:$0xff]
    %v1029 = vld [vmem:[%s1 + $0x1300] sm:$0xff]
    %v1030 = vld [vmem:[%s1 + $0x1308] sm:$0xff]
    %v1031 = vld [vmem:[%s1 + $0x1310] sm:$0xff]
    %v1032 = vld [vmem:[%s1 + $0x1318] sm:$0xff]
    %v1033 = vld [vmem:[%s1 + $0x1320] sm:$0xff]
    %v1034 = vld [vmem:[%s1 + $0x1328] sm:$0xff]
    %v1035 = vld [vmem:[%s1 + $0x1330] sm:$0xff]
    %v1036 = vld [vmem:[%s1 + $0x1338] sm:$0xff]
    %v1037 = vld [vmem:[%s1 + $0x1340] sm:$0xff]
    %v1038 = vld [vmem:[%s1 + $0x1348] sm:$0xff]
    %v1039 = vld [vmem:[%s1 + $0x1350] sm:$0xff]
    %v1040 = vld [vmem:[%s1 + $0x1358] sm:$0xff]
    %v1041 = vld [vmem:[%s1 + $0x1360] sm:$0xff]
    %v1042 = vld [vmem:[%s1 + $0x1368] sm:$0xff]
    %v1043 = vld [vmem:[%s1 + $0x1370] sm:$0xff]
    %v1044 = vld [vmem:[%s1 + $0x1378] sm:$0xff]
    %v1045 = vld [vmem:[%s1 + $0x1380] sm:$0xff]
    %v1046 = vld [vmem:[%s1 + $0x1388] sm:$0xff]
    %v1047 = vld [vmem:[%s1 + $0x1390] sm:$0xff]
    %v1048 = vld [vmem:[%s1 + $0x1398] sm:$0xff]
    %v1049 = vld [vmem:[%s1 + $0x13a0] sm:$0xff]
    %v1050 = vld [vmem:[%s1 + $0x13a8] sm:$0xff]
    %v1051 = vld [vmem:[%s1 + $0x13b0] sm:$0xff]
    %v1052 = vld [vmem:[%s1 + $0x13b8] sm:$0xff]
    %v1053 = vld [vmem:[%s1 + $0x13c0] sm:$0xff]
    %v1054 = vld [vmem:[%s1 + $0x13c8] sm:$0xff]
    %v1055 = vld [vmem:[%s1 + $0x13d0] sm:$0xff]
    %v1056 = vld [vmem:[%s1 + $0x13d8] sm:$0xff]
    %v1057 = vld [vmem:[%s1 + $0x13e0] sm:$0xff]
    %v1058 = vld [vmem:[%s1 + $0x13e8] sm:$0xff]
    %v1059 = vld [vmem:[%s1 + $0x13f0] sm:$0xff]
    %v1060 = vld [vmem:[%s1 + $0x13f8] sm:$0xff]
    %v1061 = vld [vmem:[%s1 + $0x1400] sm:$0xff]
    %v1062 = vld [vmem:[%s1 + $0x1408] sm:$0xff]
    %v1063 = vld [vmem:[%s1 + $0x1410] sm:$0xff]
    %v1064 = vld [vmem:[%s1 + $0x1418] sm:$0xff]
    %v1065 = vld [vmem:[%s1 + $0x1420] sm:$0xff]
    %v1066 = vld [vmem:[%s1 + $0x1428] sm:$0xff]
    %v1067 = vld [vmem:[%s1 + $0x1430] sm:$0xff]
    %v1068 = vld [vmem:[%s1 + $0x1438] sm:$0xff]
    %v1069 = vld [vmem:[%s1 + $0x1440] sm:$0xff]
    %v1070 = vld [vmem:[%s1 + $0x1448] sm:$0xff]
    %v1071 = vld [vmem:[%s1 + $0x1450] sm:$0xff]
    %v1072 = vld [vmem:[%s1 + $0x1458] sm:$0xff]
    %v1073 = vld [vmem:[%s1 + $0x1460] sm:$0xff]
    %v1074 = vld [vmem:[%s1 + $0x1468] sm:$0xff]
    %v1075 = vld [vmem:[%s1 + $0x1470] sm:$0xff]
    %v1076 = vld [vmem:[%s1 + $0x1478] sm:$0xff]
    %v1077 = vld [vmem:[%s1 + $0x1480] sm:$0xff]
    %v1078 = vld [vmem:[%s1 + $0x1488] sm:$0xff]
    %v1079 = vld [vmem:[%s1 + $0x1490] sm:$0xff]
    %v1080 = vld [vmem:[%s1 + $0x1498] sm:$0xff]
    %v1081 = vld [vmem:[%s1 + $0x14a0] sm:$0xff]
    %v1082 = vld [vmem:[%s1 + $0x14a8] sm:$0xff]
    %v1083 = vld [vmem:[%s1 + $0x14b0] sm:$0xff]
    %v1084 = vld [vmem:[%s1 + $0x14b8] sm:$0xff]
    %v1085 = vld [vmem:[%s1 + $0x14c0] sm:$0xff]
    %v1086 = vld [vmem:[%s1 + $0x14c8] sm:$0xff]
    %v1087 = vld [vmem:[%s1 + $0x14d0] sm:$0xff]
    %v1088 = vld [vmem:[%s1 + $0x14d8] sm:$0xff]
    %v1089 = vld [vmem:[%s1 + $0x14e0] sm:$0xff]
    %v1090 = vld [vmem:[%s1 + $0x14e8] sm:$0xff]
    %v1091 = vld [vmem:[%s1 + $0x14f0] sm:$0xff]
    %v1092 = vld [vmem:[%s1 + $0x14f8] sm:$0xff]
    %v1093 = vld [vmem:[%s1 + $0x1500] sm:$0xff]
    %v1094 = vld [vmem:[%s1 + $0x1508] sm:$0xff]
    %v1095 = vld [vmem:[%s1 + $0x1510] sm:$0xff]
    %v1096 = vld [vmem:[%s1 + $0x1518] sm:$0xff]
    %v1097 = vld [vmem:[%s1 + $0x1520] sm:$0xff]
    %v1098 = vld [vmem:[%s1 + $0x1528] sm:$0xff]
    %v1099 = vld [vmem:[%s1 + $0x1530] sm:$0xff]
    %v1100 = vld [vmem:[%s1 + $0x1538] sm:$0xff]
    %v1101 = vld [vmem:[%s1 + $0x1540] sm:$0xff]
    %v1102 = vld [vmem:[%s1 + $0x1548] sm:$0xff]
    %v1103 = vld [vmem:[%s1 + $0x1550] sm:$0xff]
    %v1104 = vld [vmem:[%s1 + $0x1558] sm:$0xff]
    %v1105 = vld [vmem:[%s1 + $0x1560] sm:$0xff]
    %v1106 = vld [vmem:[%s1 + $0x1568] sm:$0xff]
    %v1107 = vld [vmem:[%s1 + $0x1570] sm:$0xff]
    %v1108 = vld [vmem:[%s1 + $0x1578] sm:$0xff]
    %v1109 = vld [vmem:[%s1 + $0x1580] sm:$0xff]
    %v1110 = vld [vmem:[%s1 + $0x1588] sm:$0xff]
    %v1111 = vld [vmem:[%s1 + $0x1590] sm:$0xff]
    %v1112 = vld [vmem:[%s1 + $0x1598] sm:$0xff]
    %v1113 = vld [vmem:[%s1 + $0x15a0] sm:$0xff]
    %v1114 = vld [vmem:[%s1 + $0x15a8] sm:$0xff]
    %v1115 = vld [vmem:[%s1 + $0x15b0] sm:$0xff]
    %v1116 = vld [vmem:[%s1 + $0x15b8] sm:$0xff]
    %v1117 = vld [vmem:[%s1 + $0x15c0] sm:$0xff]
    %v1118 = vld [vmem:[%s1 + $0x15c8] sm:$0xff]
    %v1119 = vld [vmem:[%s1 + $0x15d0] sm:$0xff]
    %v1120 = vld [vmem:[%s1 + $0x15d8] sm:$0xff]
    %v1121 = vld [vmem:[%s1 + $0x15e0] sm:$0xff]
    %v1122 = vld [vmem:[%s1 + $0x15e8] sm:$0xff]
    %v1123 = vld [vmem:[%s1 + $0x15f0] sm:$0xff]
    %v1124 = vld [vmem:[%s1 + $0x15f8] sm:$0xff]
    %v1125 = vld [vmem:[%s1 + $0x1600] sm:$0xff]
    %v1126 = vld [vmem:[%s1 + $0x1608] sm:$0xff]
    %v1127 = vld [vmem:[%s1 + $0x1610] sm:$0xff]
    %v1128 = vld [vmem:[%s1 + $0x1618] sm:$0xff]
    %v1129 = vld [vmem:[%s1 + $0x1620] sm:$0xff]
    %v1130 = vld [vmem:[%s1 + $0x1628] sm:$0xff]
    %v1131 = vld [vmem:[%s1 + $0x1630] sm:$0xff]
    %v1132 = vld [vmem:[%s1 + $0x1638] sm:$0xff]
    %v1133 = vld [vmem:[%s1 + $0x1640] sm:$0xff]
    %v1134 = vld [vmem:[%s1 + $0x1648] sm:$0xff]
    %v1135 = vld [vmem:[%s1 + $0x1650] sm:$0xff]
    %v1136 = vld [vmem:[%s1 + $0x1658] sm:$0xff]
    %v1137 = vld [vmem:[%s1 + $0x1660] sm:$0xff]
    %v1138 = vld [vmem:[%s1 + $0x1668] sm:$0xff]
    %v1139 = vld [vmem:[%s1 + $0x1670] sm:$0xff]
    %v1140 = vld [vmem:[%s1 + $0x1678] sm:$0xff]
    %v1141 = vld [vmem:[%s1 + $0x1680] sm:$0xff]
    %v1142 = vld [vmem:[%s1 + $0x1688] sm:$0xff]
    %v1143 = vld [vmem:[%s1 + $0x1690] sm:$0xff]
    %v1144 = vld [vmem:[%s1 + $0x1698] sm:$0xff]
    %v1145 = vld [vmem:[%s1 + $0x16a0] sm:$0xff]
    %v1146 = vld [vmem:[%s1 + $0x16a8] sm:$0xff]
    %v1147 = vld [vmem:[%s1 + $0x16b0] sm:$0xff]
    %v1148 = vld [vmem:[%s1 + $0x16b8] sm:$0xff]
    %v1149 = vld [vmem:[%s1 + $0x16c0] sm:$0xff]
    %v1150 = vld [vmem:[%s1 + $0x16c8] sm:$0xff]
    %v1151 = vld [vmem:[%s1 + $0x16d0] sm:$0xff]
    %v1152 = vld [vmem:[%s1 + $0x16d8] sm:$0xff]
    %v1153 = vld [vmem:[%s1 + $0x16e0] sm:$0xff]
    %v1154 = vld [vmem:[%s1 + $0x16e8] sm:$0xff]
    %v1155 = vld [vmem:[%s1 + $0x16f0] sm:$0xff]
    %v1156 = vld [vmem:[%s1 + $0x16f8] sm:$0xff]
    %v1157 = vld [vmem:[%s1 + $0x1700] sm:$0xff]
    %v1158 = vld [vmem:[%s1 + $0x1708] sm:$0xff]
    %v1159 = vld [vmem:[%s1 + $0x1710] sm:$0xff]
    %v1160 = vld [vmem:[%s1 + $0x1718] sm:$0xff]
    %v1161 = vld [vmem:[%s1 + $0x1720] sm:$0xff]
    %v1162 = vld [vmem:[%s1 + $0x1728] sm:$0xff]
    %v1163 = vld [vmem:[%s1 + $0x1730] sm:$0xff]
    %v1164 = vld [vmem:[%s1 + $0x1738] sm:$0xff]
    %v1165 = vld [vmem:[%s1 + $0x1740] sm:$0xff]
    %v1166 = vld [vmem:[%s1 + $0x1748] sm:$0xff]
    %v1167 = vld [vmem:[%s1 + $0x1750] sm:$0xff]
    %v1168 = vld [vmem:[%s1 + $0x1758] sm:$0xff]
    %v1169 = vld [vmem:[%s1 + $0x1760] sm:$0xff]
    %v1170 = vld [vmem:[%s1 + $0x1768] sm:$0xff]
    %v1171 = vld [vmem:[%s1 + $0x1770] sm:$0xff]
    %v1172 = vld [vmem:[%s1 + $0x1778] sm:$0xff]
    %v1173 = vld [vmem:[%s1 + $0x1780] sm:$0xff]
    %v1174 = vld [vmem:[%s1 + $0x1788] sm:$0xff]
    %v1175 = vld [vmem:[%s1 + $0x1790] sm:$0xff]
    %v1176 = vld [vmem:[%s1 + $0x1798] sm:$0xff]
    %v1177 = vld [vmem:[%s1 + $0x17a0] sm:$0xff]
    %v1178 = vld [vmem:[%s1 + $0x17a8] sm:$0xff]
    %v1179 = vld [vmem:[%s1 + $0x17b0] sm:$0xff]
    %v1180 = vld [vmem:[%s1 + $0x17b8] sm:$0xff]
    %v1181 = vld [vmem:[%s1 + $0x17c0] sm:$0xff]
    %v1182 = vld [vmem:[%s1 + $0x17c8] sm:$0xff]
    %v1183 = vld [vmem:[%s1 + $0x17d0] sm:$0xff]
    %v1184 = vld [vmem:[%s1 + $0x17d8] sm:$0xff]
    %v1185 = vld [vmem:[%s1 + $0x17e0] sm:$0xff]
    %v1186 = vld [vmem:[%s1 + $0x17e8] sm:$0xff]
    %v1187 = vld [vmem:[%s1 + $0x17f0] sm:$0xff]
    %v1188 = vld [vmem:[%s1 + $0x17f8] sm:$0xff]
    %v1189 = vld [vmem:[%s1 + $0x1800] sm:$0xff]
    %v1190 = vld [vmem:[%s1 + $0x1808] sm:$0xff]
    %v1191 = vld [vmem:[%s1 + $0x1810] sm:$0xff]
    %v1192 = vld [vmem:[%s1 + $0x1818] sm:$0xff]
    %v1193 = vld [vmem:[%s1 + $0x1820] sm:$0xff]
    %v1194 = vld [vmem:[%s1 + $0x1828] sm:$0xff]
    %v1195 = vld [vmem:[%s1 + $0x1830] sm:$0xff]
    %v1196 = vld [vmem:[%s1 + $0x1838] sm:$0xff]
    %v1197 = vld [vmem:[%s1 + $0x1840] sm:$0xff]
    %v1198 = vld [vmem:[%s1 + $0x1848] sm:$0xff]
    %v1199 = vld [vmem:[%s1 + $0x1850] sm:$0xff]
    %v1200 = vld [vmem:[%s1 + $0x1858] sm:$0xff]
    %v1201 = vld [vmem:[%s1 + $0x1860] sm:$0xff]
    %v1202 = vld [vmem:[%s1 + $0x1868] sm:$0xff]
    %v1203 = vld [vmem:[%s1 + $0x1870] sm:$0xff]
    %v1204 = vld [vmem:[%s1 + $0x1878] sm:$0xff]
    %v1205 = vld [vmem:[%s1 + $0x1880] sm:$0xff]
    %v1206 = vld [vmem:[%s1 + $0x1888] sm:$0xff]
    %v1207 = vld [vmem:[%s1 + $0x1890] sm:$0xff]
    %v1208 = vld [vmem:[%s1 + $0x1898] sm:$0xff]
    %v1209 = vld [vmem:[%s1 + $0x18a0] sm:$0xff]
    %v1210 = vld [vmem:[%s1 + $0x18a8] sm:$0xff]
    %v1211 = vld [vmem:[%s1 + $0x18b0] sm:$0xff]
    %v1212 = vld [vmem:[%s1 + $0x18b8] sm:$0xff]
    %v1213 = vld [vmem:[%s1 + $0x18c0] sm:$0xff]
    %v1214 = vld [vmem:[%s1 + $0x18c8] sm:$0xff]
    %v1215 = vld [vmem:[%s1 + $0x18d0] sm:$0xff]
    %v1216 = vld [vmem:[%s1 + $0x18d8] sm:$0xff]
    %v1217 = vld [vmem:[%s1 + $0x18e0] sm:$0xff]
    %v1218 = vld [vmem:[%s1 + $0x18e8] sm:$0xff]
    %v1219 = vld [vmem:[%s1 + $0x18f0] sm:$0xff]
    %v1220 = vld [vmem:[%s1 + $0x18f8] sm:$0xff]
    %v1221 = vld [vmem:[%s2] sm:$0x3]
    %v1223 = vlaneseq
    %v1224 = vshrl.u32 %v1223, 7
    %v1225 = vsub.s32 0, %v1224
    %v1226 = vrot.slane %v1221, %v1225
    %v1227 = vlaneseq
    %v1228 = vshrl.u32 %v1227, 7
    %v1229 = vsub.s32 1, %v1228
    %v1230 = vrot.slane %v1221, %v1229
    %v1633 = vunpack.c.l.b16 %v21
    %v1634 = vunpack.c.h.b16 %v21
    %v1635 = vunpack.c.l.b16 %v22
    %v1636 = vunpack.c.h.b16 %v22
    %v1637 = vunpack.c.l.b16 %v23
    %v1638 = vunpack.c.h.b16 %v23
    %v1639 = vunpack.c.l.b16 %v24
    %v1640 = vunpack.c.h.b16 %v24
    %v1641 = vunpack.c.l.b16 %v25
    %v1642 = vunpack.c.h.b16 %v25
    %v1643 = vunpack.c.l.b16 %v26
    %v1644 = vunpack.c.h.b16 %v26
    %v1645 = vunpack.c.l.b16 %v27
    %v1646 = vunpack.c.h.b16 %v27
    %v1647 = vunpack.c.l.b16 %v28
    %v1648 = vunpack.c.h.b16 %v28
    %v1649 = vunpack.c.l.b16 %v29
    %v1650 = vunpack.c.h.b16 %v29
    %v1651 = vunpack.c.l.b16 %v30
    %v1652 = vunpack.c.h.b16 %v30
    %v1653 = vunpack.c.l.b16 %v31
    %v1654 = vunpack.c.h.b16 %v31
    %v1655 = vunpack.c.l.b16 %v32
    %v1656 = vunpack.c.h.b16 %v32
    %v1657 = vunpack.c.l.b16 %v33
    %v1658 = vunpack.c.h.b16 %v33
    %v1659 = vunpack.c.l.b16 %v34
    %v1660 = vunpack.c.h.b16 %v34
    %v1661 = vunpack.c.l.b16 %v35
    %v1662 = vunpack.c.h.b16 %v35
    %v1663 = vunpack.c.l.b16 %v36
    %v1664 = vunpack.c.h.b16 %v36
    %v1665 = vunpack.c.l.b16 %v37
    %v1666 = vunpack.c.h.b16 %v37
    %v1667 = vunpack.c.l.b16 %v38
    %v1668 = vunpack.c.h.b16 %v38
    %v1669 = vunpack.c.l.b16 %v39
    %v1670 = vunpack.c.h.b16 %v39
    %v1671 = vunpack.c.l.b16 %v40
    %v1672 = vunpack.c.h.b16 %v40
    %v1673 = vunpack.c.l.b16 %v41
    %v1674 = vunpack.c.h.b16 %v41
    %v1675 = vunpack.c.l.b16 %v42
    %v1676 = vunpack.c.h.b16 %v42
    %v1677 = vunpack.c.l.b16 %v43
    %v1678 = vunpack.c.h.b16 %v43
    %v1679 = vunpack.c.l.b16 %v44
    %v1680 = vunpack.c.h.b16 %v44
    %v1681 = vunpack.c.l.b16 %v45
    %v1682 = vunpack.c.h.b16 %v45
    %v1683 = vunpack.c.l.b16 %v46
    %v1684 = vunpack.c.h.b16 %v46
    %v1685 = vunpack.c.l.b16 %v47
    %v1686 = vunpack.c.h.b16 %v47
    %v1687 = vunpack.c.l.b16 %v48
    %v1688 = vunpack.c.h.b16 %v48
    %v1689 = vunpack.c.l.b16 %v49
    %v1690 = vunpack.c.h.b16 %v49
    %v1691 = vunpack.c.l.b16 %v50
    %v1692 = vunpack.c.h.b16 %v50
    %v1693 = vunpack.c.l.b16 %v51
    %v1694 = vunpack.c.h.b16 %v51
    %v1695 = vunpack.c.l.b16 %v52
    %v1696 = vunpack.c.h.b16 %v52
    %v1697 = vunpack.c.l.b16 %v53
    %v1698 = vunpack.c.h.b16 %v53
    %v1699 = vunpack.c.l.b16 %v54
    %v1700 = vunpack.c.h.b16 %v54
    %v1701 = vunpack.c.l.b16 %v55
    %v1702 = vunpack.c.h.b16 %v55
    %v1703 = vunpack.c.l.b16 %v56
    %v1704 = vunpack.c.h.b16 %v56
    %v1705 = vunpack.c.l.b16 %v57
    %v1706 = vunpack.c.h.b16 %v57
    %v1707 = vunpack.c.l.b16 %v58
    %v1708 = vunpack.c.h.b16 %v58
    %v1709 = vunpack.c.l.b16 %v59
    %v1710 = vunpack.c.h.b16 %v59
    %v1711 = vunpack.c.l.b16 %v60
    %v1712 = vunpack.c.h.b16 %v60
    %v1713 = vunpack.c.l.b16 %v61
    %v1714 = vunpack.c.h.b16 %v61
    %v1715 = vunpack.c.l.b16 %v62
    %v1716 = vunpack.c.h.b16 %v62
    %v1717 = vunpack.c.l.b16 %v63
    %v1718 = vunpack.c.h.b16 %v63
    %v1719 = vunpack.c.l.b16 %v64
    %v1720 = vunpack.c.h.b16 %v64
    %v1721 = vunpack.c.l.b16 %v65
    %v1722 = vunpack.c.h.b16 %v65
    %v1723 = vunpack.c.l.b16 %v66
    %v1724 = vunpack.c.h.b16 %v66
    %v1725 = vunpack.c.l.b16 %v67
    %v1726 = vunpack.c.h.b16 %v67
    %v1727 = vunpack.c.l.b16 %v68
    %v1728 = vunpack.c.h.b16 %v68
    %v1729 = vunpack.c.l.b16 %v69
    %v1730 = vunpack.c.h.b16 %v69
    %v1731 = vunpack.c.l.b16 %v70
    %v1732 = vunpack.c.h.b16 %v70
    %v1733 = vunpack.c.l.b16 %v71
    %v1734 = vunpack.c.h.b16 %v71
    %v1735 = vunpack.c.l.b16 %v72
    %v1736 = vunpack.c.h.b16 %v72
    %v1737 = vunpack.c.l.b16 %v73
    %v1738 = vunpack.c.h.b16 %v73
    %v1739 = vunpack.c.l.b16 %v74
    %v1740 = vunpack.c.h.b16 %v74
    %v1741 = vunpack.c.l.b16 %v75
    %v1742 = vunpack.c.h.b16 %v75
    %v1743 = vunpack.c.l.b16 %v76
    %v1744 = vunpack.c.h.b16 %v76
    %v1745 = vunpack.c.l.b16 %v77
    %v1746 = vunpack.c.h.b16 %v77
    %v1747 = vunpack.c.l.b16 %v78
    %v1748 = vunpack.c.h.b16 %v78
    %v1749 = vunpack.c.l.b16 %v79
    %v1750 = vunpack.c.h.b16 %v79
    %v1751 = vunpack.c.l.b16 %v80
    %v1752 = vunpack.c.h.b16 %v80
    %v1753 = vunpack.c.l.b16 %v81
    %v1754 = vunpack.c.h.b16 %v81
    %v1755 = vunpack.c.l.b16 %v82
    %v1756 = vunpack.c.h.b16 %v82
    %v1757 = vunpack.c.l.b16 %v83
    %v1758 = vunpack.c.h.b16 %v83
    %v1759 = vunpack.c.l.b16 %v84
    %v1760 = vunpack.c.h.b16 %v84
    %v1761 = vunpack.c.l.b16 %v85
    %v1762 = vunpack.c.h.b16 %v85
    %v1763 = vunpack.c.l.b16 %v86
    %v1764 = vunpack.c.h.b16 %v86
    %v1765 = vunpack.c.l.b16 %v87
    %v1766 = vunpack.c.h.b16 %v87
    %v1767 = vunpack.c.l.b16 %v88
    %v1768 = vunpack.c.h.b16 %v88
    %v1769 = vunpack.c.l.b16 %v89
    %v1770 = vunpack.c.h.b16 %v89
    %v1771 = vunpack.c.l.b16 %v90
    %v1772 = vunpack.c.h.b16 %v90
    %v1773 = vunpack.c.l.b16 %v91
    %v1774 = vunpack.c.h.b16 %v91
    %v1775 = vunpack.c.l.b16 %v92
    %v1776 = vunpack.c.h.b16 %v92
    %v1777 = vunpack.c.l.b16 %v93
    %v1778 = vunpack.c.h.b16 %v93
    %v1779 = vunpack.c.l.b16 %v94
    %v1780 = vunpack.c.h.b16 %v94
    %v1781 = vunpack.c.l.b16 %v95
    %v1782 = vunpack.c.h.b16 %v95
    %v1783 = vunpack.c.l.b16 %v96
    %v1784 = vunpack.c.h.b16 %v96
    %v1785 = vunpack.c.l.b16 %v97
    %v1786 = vunpack.c.h.b16 %v97
    %v1787 = vunpack.c.l.b16 %v98
    %v1788 = vunpack.c.h.b16 %v98
    %v1789 = vunpack.c.l.b16 %v99
    %v1790 = vunpack.c.h.b16 %v99
    %v1791 = vunpack.c.l.b16 %v100
    %v1792 = vunpack.c.h.b16 %v100
    %v1793 = vunpack.c.l.b16 %v101
    %v1794 = vunpack.c.h.b16 %v101
    %v1795 = vunpack.c.l.b16 %v102
    %v1796 = vunpack.c.h.b16 %v102
    %v1797 = vunpack.c.l.b16 %v103
    %v1798 = vunpack.c.h.b16 %v103
    %v1799 = vunpack.c.l.b16 %v104
    %v1800 = vunpack.c.h.b16 %v104
    %v1801 = vunpack.c.l.b16 %v105
    %v1802 = vunpack.c.h.b16 %v105
    %v1803 = vunpack.c.l.b16 %v106
    %v1804 = vunpack.c.h.b16 %v106
    %v1805 = vunpack.c.l.b16 %v107
    %v1806 = vunpack.c.h.b16 %v107
    %v1807 = vunpack.c.l.b16 %v108
    %v1808 = vunpack.c.h.b16 %v108
    %v1809 = vunpack.c.l.b16 %v109
    %v1810 = vunpack.c.h.b16 %v109
    %v1811 = vunpack.c.l.b16 %v110
    %v1812 = vunpack.c.h.b16 %v110
    %v1813 = vunpack.c.l.b16 %v111
    %v1814 = vunpack.c.h.b16 %v111
    %v1815 = vunpack.c.l.b16 %v112
    %v1816 = vunpack.c.h.b16 %v112
    %v1817 = vunpack.c.l.b16 %v113
    %v1818 = vunpack.c.h.b16 %v113
    %v1819 = vunpack.c.l.b16 %v114
    %v1820 = vunpack.c.h.b16 %v114
    %v1821 = vunpack.c.l.b16 %v115
    %v1822 = vunpack.c.h.b16 %v115
    %v1823 = vunpack.c.l.b16 %v116
    %v1824 = vunpack.c.h.b16 %v116
    %v1825 = vunpack.c.l.b16 %v117
    %v1826 = vunpack.c.h.b16 %v117
    %v1827 = vunpack.c.l.b16 %v118
    %v1828 = vunpack.c.h.b16 %v118
    %v1829 = vunpack.c.l.b16 %v119
    %v1830 = vunpack.c.h.b16 %v119
    %v1831 = vunpack.c.l.b16 %v120
    %v1832 = vunpack.c.h.b16 %v120
    %v1833 = vunpack.c.l.b16 %v121
    %v1834 = vunpack.c.h.b16 %v121
    %v1835 = vunpack.c.l.b16 %v122
    %v1836 = vunpack.c.h.b16 %v122
    %v1837 = vunpack.c.l.b16 %v123
    %v1838 = vunpack.c.h.b16 %v123
    %v1839 = vunpack.c.l.b16 %v124
    %v1840 = vunpack.c.h.b16 %v124
    %v1841 = vunpack.c.l.b16 %v125
    %v1842 = vunpack.c.h.b16 %v125
    %v1843 = vunpack.c.l.b16 %v126
    %v1844 = vunpack.c.h.b16 %v126
    %v1845 = vunpack.c.l.b16 %v127
    %v1846 = vunpack.c.h.b16 %v127
    %v1847 = vunpack.c.l.b16 %v128
    %v1848 = vunpack.c.h.b16 %v128
    %v1849 = vunpack.c.l.b16 %v129
    %v1850 = vunpack.c.h.b16 %v129
    %v1851 = vunpack.c.l.b16 %v130
    %v1852 = vunpack.c.h.b16 %v130
    %v1853 = vunpack.c.l.b16 %v131
    %v1854 = vunpack.c.h.b16 %v131
    %v1855 = vunpack.c.l.b16 %v132
    %v1856 = vunpack.c.h.b16 %v132
    %v1857 = vunpack.c.l.b16 %v133
    %v1858 = vunpack.c.h.b16 %v133
    %v1859 = vunpack.c.l.b16 %v134
    %v1860 = vunpack.c.h.b16 %v134
    %v1861 = vunpack.c.l.b16 %v135
    %v1862 = vunpack.c.h.b16 %v135
    %v1863 = vunpack.c.l.b16 %v136
    %v1864 = vunpack.c.h.b16 %v136
    %v1865 = vunpack.c.l.b16 %v137
    %v1866 = vunpack.c.h.b16 %v137
    %v1867 = vunpack.c.l.b16 %v138
    %v1868 = vunpack.c.h.b16 %v138
    %v1869 = vunpack.c.l.b16 %v139
    %v1870 = vunpack.c.h.b16 %v139
    %v1871 = vunpack.c.l.b16 %v140
    %v1872 = vunpack.c.h.b16 %v140
    %v1873 = vunpack.c.l.b16 %v141
    %v1874 = vunpack.c.h.b16 %v141
    %v1875 = vunpack.c.l.b16 %v142
    %v1876 = vunpack.c.h.b16 %v142
    %v1877 = vunpack.c.l.b16 %v143
    %v1878 = vunpack.c.h.b16 %v143
    %v1879 = vunpack.c.l.b16 %v144
    %v1880 = vunpack.c.h.b16 %v144
    %v1881 = vunpack.c.l.b16 %v145
    %v1882 = vunpack.c.h.b16 %v145
    %v1883 = vunpack.c.l.b16 %v146
    %v1884 = vunpack.c.h.b16 %v146
    %v1885 = vunpack.c.l.b16 %v147
    %v1886 = vunpack.c.h.b16 %v147
    %v1887 = vunpack.c.l.b16 %v148
    %v1888 = vunpack.c.h.b16 %v148
    %v1889 = vunpack.c.l.b16 %v149
    %v1890 = vunpack.c.h.b16 %v149
    %v1891 = vunpack.c.l.b16 %v150
    %v1892 = vunpack.c.h.b16 %v150
    %v1893 = vunpack.c.l.b16 %v151
    %v1894 = vunpack.c.h.b16 %v151
    %v1895 = vunpack.c.l.b16 %v152
    %v1896 = vunpack.c.h.b16 %v152
    %v1897 = vunpack.c.l.b16 %v153
    %v1898 = vunpack.c.h.b16 %v153
    %v1899 = vunpack.c.l.b16 %v154
    %v1900 = vunpack.c.h.b16 %v154
    %v1901 = vunpack.c.l.b16 %v155
    %v1902 = vunpack.c.h.b16 %v155
    %v1903 = vunpack.c.l.b16 %v156
    %v1904 = vunpack.c.h.b16 %v156
    %v1905 = vunpack.c.l.b16 %v157
    %v1906 = vunpack.c.h.b16 %v157
    %v1907 = vunpack.c.l.b16 %v158
    %v1908 = vunpack.c.h.b16 %v158
    %v1909 = vunpack.c.l.b16 %v159
    %v1910 = vunpack.c.h.b16 %v159
    %v1911 = vunpack.c.l.b16 %v160
    %v1912 = vunpack.c.h.b16 %v160
    %v1913 = vunpack.c.l.b16 %v161
    %v1914 = vunpack.c.h.b16 %v161
    %v1915 = vunpack.c.l.b16 %v162
    %v1916 = vunpack.c.h.b16 %v162
    %v1917 = vunpack.c.l.b16 %v163
    %v1918 = vunpack.c.h.b16 %v163
    %v1919 = vunpack.c.l.b16 %v164
    %v1920 = vunpack.c.h.b16 %v164
    %v1921 = vunpack.c.l.b16 %v165
    %v1922 = vunpack.c.h.b16 %v165
    %v1923 = vunpack.c.l.b16 %v166
    %v1924 = vunpack.c.h.b16 %v166
    %v1925 = vunpack.c.l.b16 %v167
    %v1926 = vunpack.c.h.b16 %v167
    %v1927 = vunpack.c.l.b16 %v168
    %v1928 = vunpack.c.h.b16 %v168
    %v1929 = vunpack.c.l.b16 %v169
    %v1930 = vunpack.c.h.b16 %v169
    %v1931 = vunpack.c.l.b16 %v170
    %v1932 = vunpack.c.h.b16 %v170
    %v1933 = vunpack.c.l.b16 %v171
    %v1934 = vunpack.c.h.b16 %v171
    %v1935 = vunpack.c.l.b16 %v172
    %v1936 = vunpack.c.h.b16 %v172
    %v1937 = vunpack.c.l.b16 %v173
    %v1938 = vunpack.c.h.b16 %v173
    %v1939 = vunpack.c.l.b16 %v174
    %v1940 = vunpack.c.h.b16 %v174
    %v1941 = vunpack.c.l.b16 %v175
    %v1942 = vunpack.c.h.b16 %v175
    %v1943 = vunpack.c.l.b16 %v176
    %v1944 = vunpack.c.h.b16 %v176
    %v1945 = vunpack.c.l.b16 %v177
    %v1946 = vunpack.c.h.b16 %v177
    %v1947 = vunpack.c.l.b16 %v178
    %v1948 = vunpack.c.h.b16 %v178
    %v1949 = vunpack.c.l.b16 %v179
    %v1950 = vunpack.c.h.b16 %v179
    %v1951 = vunpack.c.l.b16 %v180
    %v1952 = vunpack.c.h.b16 %v180
    %v1953 = vunpack.c.l.b16 %v181
    %v1954 = vunpack.c.h.b16 %v181
    %v1955 = vunpack.c.l.b16 %v182
    %v1956 = vunpack.c.h.b16 %v182
    %v1957 = vunpack.c.l.b16 %v183
    %v1958 = vunpack.c.h.b16 %v183
    %v1959 = vunpack.c.l.b16 %v184
    %v1960 = vunpack.c.h.b16 %v184
    %v1961 = vunpack.c.l.b16 %v185
    %v1962 = vunpack.c.h.b16 %v185
    %v1963 = vunpack.c.l.b16 %v186
    %v1964 = vunpack.c.h.b16 %v186
    %v1965 = vunpack.c.l.b16 %v187
    %v1966 = vunpack.c.h.b16 %v187
    %v1967 = vunpack.c.l.b16 %v188
    %v1968 = vunpack.c.h.b16 %v188
    %v1969 = vunpack.c.l.b16 %v189
    %v1970 = vunpack.c.h.b16 %v189
    %v1971 = vunpack.c.l.b16 %v190
    %v1972 = vunpack.c.h.b16 %v190
    %v1973 = vunpack.c.l.b16 %v191
    %v1974 = vunpack.c.h.b16 %v191
    %v1975 = vunpack.c.l.b16 %v192
    %v1976 = vunpack.c.h.b16 %v192
    %v1977 = vunpack.c.l.b16 %v193
    %v1978 = vunpack.c.h.b16 %v193
    %v1979 = vunpack.c.l.b16 %v194
    %v1980 = vunpack.c.h.b16 %v194
    %v1981 = vunpack.c.l.b16 %v195
    %v1982 = vunpack.c.h.b16 %v195
    %v1983 = vunpack.c.l.b16 %v196
    %v1984 = vunpack.c.h.b16 %v196
    %v1985 = vunpack.c.l.b16 %v197
    %v1986 = vunpack.c.h.b16 %v197
    %v1987 = vunpack.c.l.b16 %v198
    %v1988 = vunpack.c.h.b16 %v198
    %v1989 = vunpack.c.l.b16 %v199
    %v1990 = vunpack.c.h.b16 %v199
    %v1991 = vunpack.c.l.b16 %v200
    %v1992 = vunpack.c.h.b16 %v200
    %v1993 = vunpack.c.l.b16 %v201
    %v1994 = vunpack.c.h.b16 %v201
    %v1995 = vunpack.c.l.b16 %v202
    %v1996 = vunpack.c.h.b16 %v202
    %v1997 = vunpack.c.l.b16 %v203
    %v1998 = vunpack.c.h.b16 %v203
    %v1999 = vunpack.c.l.b16 %v204
    %v2000 = vunpack.c.h.b16 %v204
    %v2001 = vunpack.c.l.b16 %v205
    %v2002 = vunpack.c.h.b16 %v205
    %v2003 = vunpack.c.l.b16 %v206
    %v2004 = vunpack.c.h.b16 %v206
    %v2005 = vunpack.c.l.b16 %v207
    %v2006 = vunpack.c.h.b16 %v207
    %v2007 = vunpack.c.l.b16 %v208
    %v2008 = vunpack.c.h.b16 %v208
    %v2009 = vunpack.c.l.b16 %v209
    %v2010 = vunpack.c.h.b16 %v209
    %v2011 = vunpack.c.l.b16 %v210
    %v2012 = vunpack.c.h.b16 %v210
    %v2013 = vunpack.c.l.b16 %v211
    %v2014 = vunpack.c.h.b16 %v211
    %v2015 = vunpack.c.l.b16 %v212
    %v2016 = vunpack.c.h.b16 %v212
    %v2017 = vunpack.c.l.b16 %v213
    %v2018 = vunpack.c.h.b16 %v213
    %v2019 = vunpack.c.l.b16 %v214
    %v2020 = vunpack.c.h.b16 %v214
    %v2021 = vunpack.c.l.b16 %v215
    %v2022 = vunpack.c.h.b16 %v215
    %v2023 = vunpack.c.l.b16 %v216
    %v2024 = vunpack.c.h.b16 %v216
    %v2025 = vunpack.c.l.b16 %v217
    %v2026 = vunpack.c.h.b16 %v217
    %v2027 = vunpack.c.l.b16 %v218
    %v2028 = vunpack.c.h.b16 %v218
    %v2029 = vunpack.c.l.b16 %v219
    %v2030 = vunpack.c.h.b16 %v219
    %v2031 = vunpack.c.l.b16 %v220
    %v2032 = vunpack.c.h.b16 %v220
    %v2033 = vunpack.c.l.b16 %v221
    %v2034 = vunpack.c.h.b16 %v221
    %v2035 = vunpack.c.l.b16 %v222
    %v2036 = vunpack.c.h.b16 %v222
    %v2037 = vunpack.c.l.b16 %v223
    %v2038 = vunpack.c.h.b16 %v223
    %v2039 = vunpack.c.l.b16 %v224
    %v2040 = vunpack.c.h.b16 %v224
    %v2041 = vunpack.c.l.b16 %v225
    %v2042 = vunpack.c.h.b16 %v225
    %v2043 = vunpack.c.l.b16 %v226
    %v2044 = vunpack.c.h.b16 %v226
    %v2045 = vunpack.c.l.b16 %v227
    %v2046 = vunpack.c.h.b16 %v227
    %v2047 = vunpack.c.l.b16 %v228
    %v2048 = vunpack.c.h.b16 %v228
    %v2049 = vunpack.c.l.b16 %v229
    %v2050 = vunpack.c.h.b16 %v229
    %v2051 = vunpack.c.l.b16 %v230
    %v2052 = vunpack.c.h.b16 %v230
    %v2053 = vunpack.c.l.b16 %v231
    %v2054 = vunpack.c.h.b16 %v231
    %v2055 = vunpack.c.l.b16 %v232
    %v2056 = vunpack.c.h.b16 %v232
    %v2057 = vunpack.c.l.b16 %v233
    %v2058 = vunpack.c.h.b16 %v233
    %v2059 = vunpack.c.l.b16 %v234
    %v2060 = vunpack.c.h.b16 %v234
    %v2061 = vunpack.c.l.b16 %v235
    %v2062 = vunpack.c.h.b16 %v235
    %v2063 = vunpack.c.l.b16 %v236
    %v2064 = vunpack.c.h.b16 %v236
    %v2065 = vunpack.c.l.b16 %v237
    %v2066 = vunpack.c.h.b16 %v237
    %v2067 = vunpack.c.l.b16 %v238
    %v2068 = vunpack.c.h.b16 %v238
    %v2069 = vunpack.c.l.b16 %v239
    %v2070 = vunpack.c.h.b16 %v239
    %v2071 = vunpack.c.l.b16 %v240
    %v2072 = vunpack.c.h.b16 %v240
    %v2073 = vunpack.c.l.b16 %v241
    %v2074 = vunpack.c.h.b16 %v241
    %v2075 = vunpack.c.l.b16 %v242
    %v2076 = vunpack.c.h.b16 %v242
    %v2077 = vunpack.c.l.b16 %v243
    %v2078 = vunpack.c.h.b16 %v243
    %v2079 = vunpack.c.l.b16 %v244
    %v2080 = vunpack.c.h.b16 %v244
    %v2081 = vunpack.c.l.b16 %v245
    %v2082 = vunpack.c.h.b16 %v245
    %v2083 = vunpack.c.l.b16 %v246
    %v2084 = vunpack.c.h.b16 %v246
    %v2085 = vunpack.c.l.b16 %v247
    %v2086 = vunpack.c.h.b16 %v247
    %v2087 = vunpack.c.l.b16 %v248
    %v2088 = vunpack.c.h.b16 %v248
    %v2089 = vunpack.c.l.b16 %v249
    %v2090 = vunpack.c.h.b16 %v249
    %v2091 = vunpack.c.l.b16 %v250
    %v2092 = vunpack.c.h.b16 %v250
    %v2093 = vunpack.c.l.b16 %v251
    %v2094 = vunpack.c.h.b16 %v251
    %v2095 = vunpack.c.l.b16 %v252
    %v2096 = vunpack.c.h.b16 %v252
    %v2097 = vunpack.c.l.b16 %v253
    %v2098 = vunpack.c.h.b16 %v253
    %v2099 = vunpack.c.l.b16 %v254
    %v2100 = vunpack.c.h.b16 %v254
    %v2101 = vunpack.c.l.b16 %v255
    %v2102 = vunpack.c.h.b16 %v255
    %v2103 = vunpack.c.l.b16 %v256
    %v2104 = vunpack.c.h.b16 %v256
    %v2105 = vunpack.c.l.b16 %v257
    %v2106 = vunpack.c.h.b16 %v257
    %v2107 = vunpack.c.l.b16 %v258
    %v2108 = vunpack.c.h.b16 %v258
    %v2109 = vunpack.c.l.b16 %v259
    %v2110 = vunpack.c.h.b16 %v259
    %v2111 = vunpack.c.l.b16 %v260
    %v2112 = vunpack.c.h.b16 %v260
    %v2113 = vunpack.c.l.b16 %v261
    %v2114 = vunpack.c.h.b16 %v261
    %v2115 = vunpack.c.l.b16 %v262
    %v2116 = vunpack.c.h.b16 %v262
    %v2117 = vunpack.c.l.b16 %v263
    %v2118 = vunpack.c.h.b16 %v263
    %v2119 = vunpack.c.l.b16 %v264
    %v2120 = vunpack.c.h.b16 %v264
    %v2121 = vunpack.c.l.b16 %v265
    %v2122 = vunpack.c.h.b16 %v265
    %v2123 = vunpack.c.l.b16 %v266
    %v2124 = vunpack.c.h.b16 %v266
    %v2125 = vunpack.c.l.b16 %v267
    %v2126 = vunpack.c.h.b16 %v267
    %v2127 = vunpack.c.l.b16 %v268
    %v2128 = vunpack.c.h.b16 %v268
    %v2129 = vunpack.c.l.b16 %v269
    %v2130 = vunpack.c.h.b16 %v269
    %v2131 = vunpack.c.l.b16 %v270
    %v2132 = vunpack.c.h.b16 %v270
    %v2133 = vunpack.c.l.b16 %v271
    %v2134 = vunpack.c.h.b16 %v271
    %v2135 = vunpack.c.l.b16 %v272
    %v2136 = vunpack.c.h.b16 %v272
    %v2137 = vunpack.c.l.b16 %v273
    %v2138 = vunpack.c.h.b16 %v273
    %v2139 = vunpack.c.l.b16 %v274
    %v2140 = vunpack.c.h.b16 %v274
    %v2141 = vunpack.c.l.b16 %v275
    %v2142 = vunpack.c.h.b16 %v275
    %v2143 = vunpack.c.l.b16 %v276
    %v2144 = vunpack.c.h.b16 %v276
    %v2145 = vunpack.c.l.b16 %v277
    %v2146 = vunpack.c.h.b16 %v277
    %v2147 = vunpack.c.l.b16 %v278
    %v2148 = vunpack.c.h.b16 %v278
    %v2149 = vunpack.c.l.b16 %v279
    %v2150 = vunpack.c.h.b16 %v279
    %v2151 = vunpack.c.l.b16 %v280
    %v2152 = vunpack.c.h.b16 %v280
    %v2153 = vunpack.c.l.b16 %v281
    %v2154 = vunpack.c.h.b16 %v281
    %v2155 = vunpack.c.l.b16 %v282
    %v2156 = vunpack.c.h.b16 %v282
    %v2157 = vunpack.c.l.b16 %v283
    %v2158 = vunpack.c.h.b16 %v283
    %v2159 = vunpack.c.l.b16 %v284
    %v2160 = vunpack.c.h.b16 %v284
    %v2161 = vunpack.c.l.b16 %v285
    %v2162 = vunpack.c.h.b16 %v285
    %v2163 = vunpack.c.l.b16 %v286
    %v2164 = vunpack.c.h.b16 %v286
    %v2165 = vunpack.c.l.b16 %v287
    %v2166 = vunpack.c.h.b16 %v287
    %v2167 = vunpack.c.l.b16 %v288
    %v2168 = vunpack.c.h.b16 %v288
    %v2169 = vunpack.c.l.b16 %v289
    %v2170 = vunpack.c.h.b16 %v289
    %v2171 = vunpack.c.l.b16 %v290
    %v2172 = vunpack.c.h.b16 %v290
    %v2173 = vunpack.c.l.b16 %v291
    %v2174 = vunpack.c.h.b16 %v291
    %v2175 = vunpack.c.l.b16 %v292
    %v2176 = vunpack.c.h.b16 %v292
    %v2177 = vunpack.c.l.b16 %v293
    %v2178 = vunpack.c.h.b16 %v293
    %v2179 = vunpack.c.l.b16 %v294
    %v2180 = vunpack.c.h.b16 %v294
    %v2181 = vunpack.c.l.b16 %v295
    %v2182 = vunpack.c.h.b16 %v295
    %v2183 = vunpack.c.l.b16 %v296
    %v2184 = vunpack.c.h.b16 %v296
    %v2185 = vunpack.c.l.b16 %v297
    %v2186 = vunpack.c.h.b16 %v297
    %v2187 = vunpack.c.l.b16 %v298
    %v2188 = vunpack.c.h.b16 %v298
    %v2189 = vunpack.c.l.b16 %v299
    %v2190 = vunpack.c.h.b16 %v299
    %v2191 = vunpack.c.l.b16 %v300
    %v2192 = vunpack.c.h.b16 %v300
    %v2193 = vunpack.c.l.b16 %v301
    %v2194 = vunpack.c.h.b16 %v301
    %v2195 = vunpack.c.l.b16 %v302
    %v2196 = vunpack.c.h.b16 %v302
    %v2197 = vunpack.c.l.b16 %v303
    %v2198 = vunpack.c.h.b16 %v303
    %v2199 = vunpack.c.l.b16 %v304
    %v2200 = vunpack.c.h.b16 %v304
    %v2201 = vunpack.c.l.b16 %v305
    %v2202 = vunpack.c.h.b16 %v305
    %v2203 = vunpack.c.l.b16 %v306
    %v2204 = vunpack.c.h.b16 %v306
    %v2205 = vunpack.c.l.b16 %v307
    %v2206 = vunpack.c.h.b16 %v307
    %v2207 = vunpack.c.l.b16 %v308
    %v2208 = vunpack.c.h.b16 %v308
    %v2209 = vunpack.c.l.b16 %v309
    %v2210 = vunpack.c.h.b16 %v309
    %v2211 = vunpack.c.l.b16 %v310
    %v2212 = vunpack.c.h.b16 %v310
    %v2213 = vunpack.c.l.b16 %v311
    %v2214 = vunpack.c.h.b16 %v311
    %v2215 = vunpack.c.l.b16 %v312
    %v2216 = vunpack.c.h.b16 %v312
    %v2217 = vunpack.c.l.b16 %v313
    %v2218 = vunpack.c.h.b16 %v313
    %v2219 = vunpack.c.l.b16 %v314
    %v2220 = vunpack.c.h.b16 %v314
    %v2221 = vunpack.c.l.b16 %v315
    %v2222 = vunpack.c.h.b16 %v315
    %v2223 = vunpack.c.l.b16 %v316
    %v2224 = vunpack.c.h.b16 %v316
    %v2225 = vunpack.c.l.b16 %v317
    %v2226 = vunpack.c.h.b16 %v317
    %v2227 = vunpack.c.l.b16 %v318
    %v2228 = vunpack.c.h.b16 %v318
    %v2229 = vunpack.c.l.b16 %v319
    %v2230 = vunpack.c.h.b16 %v319
    %v2231 = vunpack.c.l.b16 %v320
    %v2232 = vunpack.c.h.b16 %v320
    %v2233 = vunpack.c.l.b16 %v321
    %v2234 = vunpack.c.h.b16 %v321
    %v2235 = vunpack.c.l.b16 %v322
    %v2236 = vunpack.c.h.b16 %v322
    %v2237 = vunpack.c.l.b16 %v323
    %v2238 = vunpack.c.h.b16 %v323
    %v2239 = vunpack.c.l.b16 %v324
    %v2240 = vunpack.c.h.b16 %v324
    %v2241 = vunpack.c.l.b16 %v325
    %v2242 = vunpack.c.h.b16 %v325
    %v2243 = vunpack.c.l.b16 %v326
    %v2244 = vunpack.c.h.b16 %v326
    %v2245 = vunpack.c.l.b16 %v327
    %v2246 = vunpack.c.h.b16 %v327
    %v2247 = vunpack.c.l.b16 %v328
    %v2248 = vunpack.c.h.b16 %v328
    %v2249 = vunpack.c.l.b16 %v329
    %v2250 = vunpack.c.h.b16 %v329
    %v2251 = vunpack.c.l.b16 %v330
    %v2252 = vunpack.c.h.b16 %v330
    %v2253 = vunpack.c.l.b16 %v331
    %v2254 = vunpack.c.h.b16 %v331
    %v2255 = vunpack.c.l.b16 %v332
    %v2256 = vunpack.c.h.b16 %v332
    %v2257 = vunpack.c.l.b16 %v333
    %v2258 = vunpack.c.h.b16 %v333
    %v2259 = vunpack.c.l.b16 %v334
    %v2260 = vunpack.c.h.b16 %v334
    %v2261 = vunpack.c.l.b16 %v335
    %v2262 = vunpack.c.h.b16 %v335
    %v2263 = vunpack.c.l.b16 %v336
    %v2264 = vunpack.c.h.b16 %v336
    %v2265 = vunpack.c.l.b16 %v337
    %v2266 = vunpack.c.h.b16 %v337
    %v2267 = vunpack.c.l.b16 %v338
    %v2268 = vunpack.c.h.b16 %v338
    %v2269 = vunpack.c.l.b16 %v339
    %v2270 = vunpack.c.h.b16 %v339
    %v2271 = vunpack.c.l.b16 %v340
    %v2272 = vunpack.c.h.b16 %v340
    %v2273 = vunpack.c.l.b16 %v341
    %v2274 = vunpack.c.h.b16 %v341
    %v2275 = vunpack.c.l.b16 %v342
    %v2276 = vunpack.c.h.b16 %v342
    %v2277 = vunpack.c.l.b16 %v343
    %v2278 = vunpack.c.h.b16 %v343
    %v2279 = vunpack.c.l.b16 %v344
    %v2280 = vunpack.c.h.b16 %v344
    %v2281 = vunpack.c.l.b16 %v345
    %v2282 = vunpack.c.h.b16 %v345
    %v2283 = vunpack.c.l.b16 %v346
    %v2284 = vunpack.c.h.b16 %v346
    %v2285 = vunpack.c.l.b16 %v347
    %v2286 = vunpack.c.h.b16 %v347
    %v2287 = vunpack.c.l.b16 %v348
    %v2288 = vunpack.c.h.b16 %v348
    %v2289 = vunpack.c.l.b16 %v349
    %v2290 = vunpack.c.h.b16 %v349
    %v2291 = vunpack.c.l.b16 %v350
    %v2292 = vunpack.c.h.b16 %v350
    %v2293 = vunpack.c.l.b16 %v351
    %v2294 = vunpack.c.h.b16 %v351
    %v2295 = vunpack.c.l.b16 %v352
    %v2296 = vunpack.c.h.b16 %v352
    %v2297 = vunpack.c.l.b16 %v353
    %v2298 = vunpack.c.h.b16 %v353
    %v2299 = vunpack.c.l.b16 %v354
    %v2300 = vunpack.c.h.b16 %v354
    %v2301 = vunpack.c.l.b16 %v355
    %v2302 = vunpack.c.h.b16 %v355
    %v2303 = vunpack.c.l.b16 %v356
    %v2304 = vunpack.c.h.b16 %v356
    %v2305 = vunpack.c.l.b16 %v357
    %v2306 = vunpack.c.h.b16 %v357
    %v2307 = vunpack.c.l.b16 %v358
    %v2308 = vunpack.c.h.b16 %v358
    %v2309 = vunpack.c.l.b16 %v359
    %v2310 = vunpack.c.h.b16 %v359
    %v2311 = vunpack.c.l.b16 %v360
    %v2312 = vunpack.c.h.b16 %v360
    %v2313 = vunpack.c.l.b16 %v361
    %v2314 = vunpack.c.h.b16 %v361
    %v2315 = vunpack.c.l.b16 %v362
    %v2316 = vunpack.c.h.b16 %v362
    %v2317 = vunpack.c.l.b16 %v363
    %v2318 = vunpack.c.h.b16 %v363
    %v2319 = vunpack.c.l.b16 %v364
    %v2320 = vunpack.c.h.b16 %v364
    %v2321 = vunpack.c.l.b16 %v365
    %v2322 = vunpack.c.h.b16 %v365
    %v2323 = vunpack.c.l.b16 %v366
    %v2324 = vunpack.c.h.b16 %v366
    %v2325 = vunpack.c.l.b16 %v367
    %v2326 = vunpack.c.h.b16 %v367
    %v2327 = vunpack.c.l.b16 %v368
    %v2328 = vunpack.c.h.b16 %v368
    %v2329 = vunpack.c.l.b16 %v369
    %v2330 = vunpack.c.h.b16 %v369
    %v2331 = vunpack.c.l.b16 %v370
    %v2332 = vunpack.c.h.b16 %v370
    %v2333 = vunpack.c.l.b16 %v371
    %v2334 = vunpack.c.h.b16 %v371
    %v2335 = vunpack.c.l.b16 %v372
    %v2336 = vunpack.c.h.b16 %v372
    %v2337 = vunpack.c.l.b16 %v373
    %v2338 = vunpack.c.h.b16 %v373
    %v2339 = vunpack.c.l.b16 %v374
    %v2340 = vunpack.c.h.b16 %v374
    %v2341 = vunpack.c.l.b16 %v375
    %v2342 = vunpack.c.h.b16 %v375
    %v2343 = vunpack.c.l.b16 %v376
    %v2344 = vunpack.c.h.b16 %v376
    %v2345 = vunpack.c.l.b16 %v377
    %v2346 = vunpack.c.h.b16 %v377
    %v2347 = vunpack.c.l.b16 %v378
    %v2348 = vunpack.c.h.b16 %v378
    %v2349 = vunpack.c.l.b16 %v379
    %v2350 = vunpack.c.h.b16 %v379
    %v2351 = vunpack.c.l.b16 %v380
    %v2352 = vunpack.c.h.b16 %v380
    %v2353 = vunpack.c.l.b16 %v381
    %v2354 = vunpack.c.h.b16 %v381
    %v2355 = vunpack.c.l.b16 %v382
    %v2356 = vunpack.c.h.b16 %v382
    %v2357 = vunpack.c.l.b16 %v383
    %v2358 = vunpack.c.h.b16 %v383
    %v2359 = vunpack.c.l.b16 %v384
    %v2360 = vunpack.c.h.b16 %v384
    %v2361 = vunpack.c.l.b16 %v385
    %v2362 = vunpack.c.h.b16 %v385
    %v2363 = vunpack.c.l.b16 %v386
    %v2364 = vunpack.c.h.b16 %v386
    %v2365 = vunpack.c.l.b16 %v387
    %v2366 = vunpack.c.h.b16 %v387
    %v2367 = vunpack.c.l.b16 %v388
    %v2368 = vunpack.c.h.b16 %v388
    %v2369 = vunpack.c.l.b16 %v389
    %v2370 = vunpack.c.h.b16 %v389
    %v2371 = vunpack.c.l.b16 %v390
    %v2372 = vunpack.c.h.b16 %v390
    %v2373 = vunpack.c.l.b16 %v391
    %v2374 = vunpack.c.h.b16 %v391
    %v2375 = vunpack.c.l.b16 %v392
    %v2376 = vunpack.c.h.b16 %v392
    %v2377 = vunpack.c.l.b16 %v393
    %v2378 = vunpack.c.h.b16 %v393
    %v2379 = vunpack.c.l.b16 %v394
    %v2380 = vunpack.c.h.b16 %v394
    %v2381 = vunpack.c.l.b16 %v395
    %v2382 = vunpack.c.h.b16 %v395
    %v2383 = vunpack.c.l.b16 %v396
    %v2384 = vunpack.c.h.b16 %v396
    %v2385 = vunpack.c.l.b16 %v397
    %v2386 = vunpack.c.h.b16 %v397
    %v2387 = vunpack.c.l.b16 %v398
    %v2388 = vunpack.c.h.b16 %v398
    %v2389 = vunpack.c.l.b16 %v399
    %v2390 = vunpack.c.h.b16 %v399
    %v2391 = vunpack.c.l.b16 %v400
    %v2392 = vunpack.c.h.b16 %v400
    %v2393 = vunpack.c.l.b16 %v401
    %v2394 = vunpack.c.h.b16 %v401
    %v2395 = vunpack.c.l.b16 %v402
    %v2396 = vunpack.c.h.b16 %v402
    %v2397 = vunpack.c.l.b16 %v403
    %v2398 = vunpack.c.h.b16 %v403
    %v2399 = vunpack.c.l.b16 %v404
    %v2400 = vunpack.c.h.b16 %v404
    %v2401 = vunpack.c.l.b16 %v405
    %v2402 = vunpack.c.h.b16 %v405
    %v2403 = vunpack.c.l.b16 %v406
    %v2404 = vunpack.c.h.b16 %v406
    %v2405 = vunpack.c.l.b16 %v407
    %v2406 = vunpack.c.h.b16 %v407
    %v2407 = vunpack.c.l.b16 %v408
    %v2408 = vunpack.c.h.b16 %v408
    %v2409 = vunpack.c.l.b16 %v409
    %v2410 = vunpack.c.h.b16 %v409
    %v2411 = vunpack.c.l.b16 %v410
    %v2412 = vunpack.c.h.b16 %v410
    %v2413 = vunpack.c.l.b16 %v411
    %v2414 = vunpack.c.h.b16 %v411
    %v2415 = vunpack.c.l.b16 %v412
    %v2416 = vunpack.c.h.b16 %v412
    %v2417 = vunpack.c.l.b16 %v413
    %v2418 = vunpack.c.h.b16 %v413
    %v2419 = vunpack.c.l.b16 %v414
    %v2420 = vunpack.c.h.b16 %v414
    %v2421 = vunpack.c.l.b16 %v415
    %v2422 = vunpack.c.h.b16 %v415
    %v2423 = vunpack.c.l.b16 %v416
    %v2424 = vunpack.c.h.b16 %v416
    %v2425 = vunpack.c.l.b16 %v417
    %v2426 = vunpack.c.h.b16 %v417
    %v2427 = vunpack.c.l.b16 %v418
    %v2428 = vunpack.c.h.b16 %v418
    %v2429 = vunpack.c.l.b16 %v419
    %v2430 = vunpack.c.h.b16 %v419
    %v2431 = vunpack.c.l.b16 %v420
    %v2432 = vunpack.c.h.b16 %v420
    %v2433 = vpack.c.b16 %v1683, %v1633
    %v2434 = vpack.c.b16 %v1684, %v1634
    %v2435 = vpack.c.b16 %v1685, %v1635
    %v2436 = vpack.c.b16 %v1686, %v1636
    %v2437 = vpack.c.b16 %v1687, %v1637
    %v2438 = vpack.c.b16 %v1688, %v1638
    %v2439 = vpack.c.b16 %v1689, %v1639
    %v2440 = vpack.c.b16 %v1690, %v1640
    %v2441 = vpack.c.b16 %v1691, %v1641
    %v2442 = vpack.c.b16 %v1692, %v1642
    %v2443 = vpack.c.b16 %v1693, %v1643
    %v2444 = vpack.c.b16 %v1694, %v1644
    %v2445 = vpack.c.b16 %v1695, %v1645
    %v2446 = vpack.c.b16 %v1696, %v1646
    %v2447 = vpack.c.b16 %v1697, %v1647
    %v2448 = vpack.c.b16 %v1698, %v1648
    %v2449 = vpack.c.b16 %v1699, %v1649
    %v2450 = vpack.c.b16 %v1700, %v1650
    %v2451 = vpack.c.b16 %v1701, %v1651
    %v2452 = vpack.c.b16 %v1702, %v1652
    %v2453 = vpack.c.b16 %v1703, %v1653
    %v2454 = vpack.c.b16 %v1704, %v1654
    %v2455 = vpack.c.b16 %v1705, %v1655
    %v2456 = vpack.c.b16 %v1706, %v1656
    %v2457 = vpack.c.b16 %v1707, %v1657
    %v2458 = vpack.c.b16 %v1708, %v1658
    %v2459 = vpack.c.b16 %v1709, %v1659
    %v2460 = vpack.c.b16 %v1710, %v1660
    %v2461 = vpack.c.b16 %v1711, %v1661
    %v2462 = vpack.c.b16 %v1712, %v1662
    %v2463 = vpack.c.b16 %v1713, %v1663
    %v2464 = vpack.c.b16 %v1714, %v1664
    %v2465 = vpack.c.b16 %v1715, %v1665
    %v2466 = vpack.c.b16 %v1716, %v1666
    %v2467 = vpack.c.b16 %v1717, %v1667
    %v2468 = vpack.c.b16 %v1718, %v1668
    %v2469 = vpack.c.b16 %v1719, %v1669
    %v2470 = vpack.c.b16 %v1720, %v1670
    %v2471 = vpack.c.b16 %v1721, %v1671
    %v2472 = vpack.c.b16 %v1722, %v1672
    %v2473 = vpack.c.b16 %v1723, %v1673
    %v2474 = vpack.c.b16 %v1724, %v1674
    %v2475 = vpack.c.b16 %v1725, %v1675
    %v2476 = vpack.c.b16 %v1726, %v1676
    %v2477 = vpack.c.b16 %v1727, %v1677
    %v2478 = vpack.c.b16 %v1728, %v1678
    %v2479 = vpack.c.b16 %v1729, %v1679
    %v2480 = vpack.c.b16 %v1730, %v1680
    %v2481 = vpack.c.b16 %v1731, %v1681
    %v2482 = vpack.c.b16 %v1732, %v1682
    %v2483 = vpack.c.b16 %v1783, %v1733
    %v2484 = vpack.c.b16 %v1784, %v1734
    %v2485 = vpack.c.b16 %v1785, %v1735
    %v2486 = vpack.c.b16 %v1786, %v1736
    %v2487 = vpack.c.b16 %v1787, %v1737
    %v2488 = vpack.c.b16 %v1788, %v1738
    %v2489 = vpack.c.b16 %v1789, %v1739
    %v2490 = vpack.c.b16 %v1790, %v1740
    %v2491 = vpack.c.b16 %v1791, %v1741
    %v2492 = vpack.c.b16 %v1792, %v1742
    %v2493 = vpack.c.b16 %v1793, %v1743
    %v2494 = vpack.c.b16 %v1794, %v1744
    %v2495 = vpack.c.b16 %v1795, %v1745
    %v2496 = vpack.c.b16 %v1796, %v1746
    %v2497 = vpack.c.b16 %v1797, %v1747
    %v2498 = vpack.c.b16 %v1798, %v1748
    %v2499 = vpack.c.b16 %v1799, %v1749
    %v2500 = vpack.c.b16 %v1800, %v1750
    %v2501 = vpack.c.b16 %v1801, %v1751
    %v2502 = vpack.c.b16 %v1802, %v1752
    %v2503 = vpack.c.b16 %v1803, %v1753
    %v2504 = vpack.c.b16 %v1804, %v1754
    %v2505 = vpack.c.b16 %v1805, %v1755
    %v2506 = vpack.c.b16 %v1806, %v1756
    %v2507 = vpack.c.b16 %v1807, %v1757
    %v2508 = vpack.c.b16 %v1808, %v1758
    %v2509 = vpack.c.b16 %v1809, %v1759
    %v2510 = vpack.c.b16 %v1810, %v1760
    %v2511 = vpack.c.b16 %v1811, %v1761
    %v2512 = vpack.c.b16 %v1812, %v1762
    %v2513 = vpack.c.b16 %v1813, %v1763
    %v2514 = vpack.c.b16 %v1814, %v1764
    %v2515 = vpack.c.b16 %v1815, %v1765
    %v2516 = vpack.c.b16 %v1816, %v1766
    %v2517 = vpack.c.b16 %v1817, %v1767
    %v2518 = vpack.c.b16 %v1818, %v1768
    %v2519 = vpack.c.b16 %v1819, %v1769
    %v2520 = vpack.c.b16 %v1820, %v1770
    %v2521 = vpack.c.b16 %v1821, %v1771
    %v2522 = vpack.c.b16 %v1822, %v1772
    %v2523 = vpack.c.b16 %v1823, %v1773
    %v2524 = vpack.c.b16 %v1824, %v1774
    %v2525 = vpack.c.b16 %v1825, %v1775
    %v2526 = vpack.c.b16 %v1826, %v1776
    %v2527 = vpack.c.b16 %v1827, %v1777
    %v2528 = vpack.c.b16 %v1828, %v1778
    %v2529 = vpack.c.b16 %v1829, %v1779
    %v2530 = vpack.c.b16 %v1830, %v1780
    %v2531 = vpack.c.b16 %v1831, %v1781
    %v2532 = vpack.c.b16 %v1832, %v1782
    %v2533 = vpack.c.b16 %v1883, %v1833
    %v2534 = vpack.c.b16 %v1884, %v1834
    %v2535 = vpack.c.b16 %v1885, %v1835
    %v2536 = vpack.c.b16 %v1886, %v1836
    %v2537 = vpack.c.b16 %v1887, %v1837
    %v2538 = vpack.c.b16 %v1888, %v1838
    %v2539 = vpack.c.b16 %v1889, %v1839
    %v2540 = vpack.c.b16 %v1890, %v1840
    %v2541 = vpack.c.b16 %v1891, %v1841
    %v2542 = vpack.c.b16 %v1892, %v1842
    %v2543 = vpack.c.b16 %v1893, %v1843
    %v2544 = vpack.c.b16 %v1894, %v1844
    %v2545 = vpack.c.b16 %v1895, %v1845
    %v2546 = vpack.c.b16 %v1896, %v1846
    %v2547 = vpack.c.b16 %v1897, %v1847
    %v2548 = vpack.c.b16 %v1898, %v1848
    %v2549 = vpack.c.b16 %v1899, %v1849
    %v2550 = vpack.c.b16 %v1900, %v1850
    %v2551 = vpack.c.b16 %v1901, %v1851
    %v2552 = vpack.c.b16 %v1902, %v1852
    %v2553 = vpack.c.b16 %v1903, %v1853
    %v2554 = vpack.c.b16 %v1904, %v1854
    %v2555 = vpack.c.b16 %v1905, %v1855
    %v2556 = vpack.c.b16 %v1906, %v1856
    %v2557 = vpack.c.b16 %v1907, %v1857
    %v2558 = vpack.c.b16 %v1908, %v1858
    %v2559 = vpack.c.b16 %v1909, %v1859
    %v2560 = vpack.c.b16 %v1910, %v1860
    %v2561 = vpack.c.b16 %v1911, %v1861
    %v2562 = vpack.c.b16 %v1912, %v1862
    %v2563 = vpack.c.b16 %v1913, %v1863
    %v2564 = vpack.c.b16 %v1914, %v1864
    %v2565 = vpack.c.b16 %v1915, %v1865
    %v2566 = vpack.c.b16 %v1916, %v1866
    %v2567 = vpack.c.b16 %v1917, %v1867
    %v2568 = vpack.c.b16 %v1918, %v1868
    %v2569 = vpack.c.b16 %v1919, %v1869
    %v2570 = vpack.c.b16 %v1920, %v1870
    %v2571 = vpack.c.b16 %v1921, %v1871
    %v2572 = vpack.c.b16 %v1922, %v1872
    %v2573 = vpack.c.b16 %v1923, %v1873
    %v2574 = vpack.c.b16 %v1924, %v1874
    %v2575 = vpack.c.b16 %v1925, %v1875
    %v2576 = vpack.c.b16 %v1926, %v1876
    %v2577 = vpack.c.b16 %v1927, %v1877
    %v2578 = vpack.c.b16 %v1928, %v1878
    %v2579 = vpack.c.b16 %v1929, %v1879
    %v2580 = vpack.c.b16 %v1930, %v1880
    %v2581 = vpack.c.b16 %v1931, %v1881
    %v2582 = vpack.c.b16 %v1932, %v1882
    %v2583 = vpack.c.b16 %v1983, %v1933
    %v2584 = vpack.c.b16 %v1984, %v1934
    %v2585 = vpack.c.b16 %v1985, %v1935
    %v2586 = vpack.c.b16 %v1986, %v1936
    %v2587 = vpack.c.b16 %v1987, %v1937
    %v2588 = vpack.c.b16 %v1988, %v1938
    %v2589 = vpack.c.b16 %v1989, %v1939
    %v2590 = vpack.c.b16 %v1990, %v1940
    %v2591 = vpack.c.b16 %v1991, %v1941
    %v2592 = vpack.c.b16 %v1992, %v1942
    %v2593 = vpack.c.b16 %v1993, %v1943
    %v2594 = vpack.c.b16 %v1994, %v1944
    %v2595 = vpack.c.b16 %v1995, %v1945
    %v2596 = vpack.c.b16 %v1996, %v1946
    %v2597 = vpack.c.b16 %v1997, %v1947
    %v2598 = vpack.c.b16 %v1998, %v1948
    %v2599 = vpack.c.b16 %v1999, %v1949
    %v2600 = vpack.c.b16 %v2000, %v1950
    %v2601 = vpack.c.b16 %v2001, %v1951
    %v2602 = vpack.c.b16 %v2002, %v1952
    %v2603 = vpack.c.b16 %v2003, %v1953
    %v2604 = vpack.c.b16 %v2004, %v1954
    %v2605 = vpack.c.b16 %v2005, %v1955
    %v2606 = vpack.c.b16 %v2006, %v1956
    %v2607 = vpack.c.b16 %v2007, %v1957
    %v2608 = vpack.c.b16 %v2008, %v1958
    %v2609 = vpack.c.b16 %v2009, %v1959
    %v2610 = vpack.c.b16 %v2010, %v1960
    %v2611 = vpack.c.b16 %v2011, %v1961
    %v2612 = vpack.c.b16 %v2012, %v1962
    %v2613 = vpack.c.b16 %v2013, %v1963
    %v2614 = vpack.c.b16 %v2014, %v1964
    %v2615 = vpack.c.b16 %v2015, %v1965
    %v2616 = vpack.c.b16 %v2016, %v1966
    %v2617 = vpack.c.b16 %v2017, %v1967
    %v2618 = vpack.c.b16 %v2018, %v1968
    %v2619 = vpack.c.b16 %v2019, %v1969
    %v2620 = vpack.c.b16 %v2020, %v1970
    %v2621 = vpack.c.b16 %v2021, %v1971
    %v2622 = vpack.c.b16 %v2022, %v1972
    %v2623 = vpack.c.b16 %v2023, %v1973
    %v2624 = vpack.c.b16 %v2024, %v1974
    %v2625 = vpack.c.b16 %v2025, %v1975
    %v2626 = vpack.c.b16 %v2026, %v1976
    %v2627 = vpack.c.b16 %v2027, %v1977
    %v2628 = vpack.c.b16 %v2028, %v1978
    %v2629 = vpack.c.b16 %v2029, %v1979
    %v2630 = vpack.c.b16 %v2030, %v1980
    %v2631 = vpack.c.b16 %v2031, %v1981
    %v2632 = vpack.c.b16 %v2032, %v1982
    %v2633 = vpack.c.b16 %v2083, %v2033
    %v2634 = vpack.c.b16 %v2084, %v2034
    %v2635 = vpack.c.b16 %v2085, %v2035
    %v2636 = vpack.c.b16 %v2086, %v2036
    %v2637 = vpack.c.b16 %v2087, %v2037
    %v2638 = vpack.c.b16 %v2088, %v2038
    %v2639 = vpack.c.b16 %v2089, %v2039
    %v2640 = vpack.c.b16 %v2090, %v2040
    %v2641 = vpack.c.b16 %v2091, %v2041
    %v2642 = vpack.c.b16 %v2092, %v2042
    %v2643 = vpack.c.b16 %v2093, %v2043
    %v2644 = vpack.c.b16 %v2094, %v2044
    %v2645 = vpack.c.b16 %v2095, %v2045
    %v2646 = vpack.c.b16 %v2096, %v2046
    %v2647 = vpack.c.b16 %v2097, %v2047
    %v2648 = vpack.c.b16 %v2098, %v2048
    %v2649 = vpack.c.b16 %v2099, %v2049
    %v2650 = vpack.c.b16 %v2100, %v2050
    %v2651 = vpack.c.b16 %v2101, %v2051
    %v2652 = vpack.c.b16 %v2102, %v2052
    %v2653 = vpack.c.b16 %v2103, %v2053
    %v2654 = vpack.c.b16 %v2104, %v2054
    %v2655 = vpack.c.b16 %v2105, %v2055
    %v2656 = vpack.c.b16 %v2106, %v2056
    %v2657 = vpack.c.b16 %v2107, %v2057
    %v2658 = vpack.c.b16 %v2108, %v2058
    %v2659 = vpack.c.b16 %v2109, %v2059
    %v2660 = vpack.c.b16 %v2110, %v2060
    %v2661 = vpack.c.b16 %v2111, %v2061
    %v2662 = vpack.c.b16 %v2112, %v2062
    %v2663 = vpack.c.b16 %v2113, %v2063
    %v2664 = vpack.c.b16 %v2114, %v2064
    %v2665 = vpack.c.b16 %v2115, %v2065
    %v2666 = vpack.c.b16 %v2116, %v2066
    %v2667 = vpack.c.b16 %v2117, %v2067
    %v2668 = vpack.c.b16 %v2118, %v2068
    %v2669 = vpack.c.b16 %v2119, %v2069
    %v2670 = vpack.c.b16 %v2120, %v2070
    %v2671 = vpack.c.b16 %v2121, %v2071
    %v2672 = vpack.c.b16 %v2122, %v2072
    %v2673 = vpack.c.b16 %v2123, %v2073
    %v2674 = vpack.c.b16 %v2124, %v2074
    %v2675 = vpack.c.b16 %v2125, %v2075
    %v2676 = vpack.c.b16 %v2126, %v2076
    %v2677 = vpack.c.b16 %v2127, %v2077
    %v2678 = vpack.c.b16 %v2128, %v2078
    %v2679 = vpack.c.b16 %v2129, %v2079
    %v2680 = vpack.c.b16 %v2130, %v2080
    %v2681 = vpack.c.b16 %v2131, %v2081
    %v2682 = vpack.c.b16 %v2132, %v2082
    %v2683 = vpack.c.b16 %v2183, %v2133
    %v2684 = vpack.c.b16 %v2184, %v2134
    %v2685 = vpack.c.b16 %v2185, %v2135
    %v2686 = vpack.c.b16 %v2186, %v2136
    %v2687 = vpack.c.b16 %v2187, %v2137
    %v2688 = vpack.c.b16 %v2188, %v2138
    %v2689 = vpack.c.b16 %v2189, %v2139
    %v2690 = vpack.c.b16 %v2190, %v2140
    %v2691 = vpack.c.b16 %v2191, %v2141
    %v2692 = vpack.c.b16 %v2192, %v2142
    %v2693 = vpack.c.b16 %v2193, %v2143
    %v2694 = vpack.c.b16 %v2194, %v2144
    %v2695 = vpack.c.b16 %v2195, %v2145
    %v2696 = vpack.c.b16 %v2196, %v2146
    %v2697 = vpack.c.b16 %v2197, %v2147
    %v2698 = vpack.c.b16 %v2198, %v2148
    %v2699 = vpack.c.b16 %v2199, %v2149
    %v2700 = vpack.c.b16 %v2200, %v2150
    %v2701 = vpack.c.b16 %v2201, %v2151
    %v2702 = vpack.c.b16 %v2202, %v2152
    %v2703 = vpack.c.b16 %v2203, %v2153
    %v2704 = vpack.c.b16 %v2204, %v2154
    %v2705 = vpack.c.b16 %v2205, %v2155
    %v2706 = vpack.c.b16 %v2206, %v2156
    %v2707 = vpack.c.b16 %v2207, %v2157
    %v2708 = vpack.c.b16 %v2208, %v2158
    %v2709 = vpack.c.b16 %v2209, %v2159
    %v2710 = vpack.c.b16 %v2210, %v2160
    %v2711 = vpack.c.b16 %v2211, %v2161
    %v2712 = vpack.c.b16 %v2212, %v2162
    %v2713 = vpack.c.b16 %v2213, %v2163
    %v2714 = vpack.c.b16 %v2214, %v2164
    %v2715 = vpack.c.b16 %v2215, %v2165
    %v2716 = vpack.c.b16 %v2216, %v2166
    %v2717 = vpack.c.b16 %v2217, %v2167
    %v2718 = vpack.c.b16 %v2218, %v2168
    %v2719 = vpack.c.b16 %v2219, %v2169
    %v2720 = vpack.c.b16 %v2220, %v2170
    %v2721 = vpack.c.b16 %v2221, %v2171
    %v2722 = vpack.c.b16 %v2222, %v2172
    %v2723 = vpack.c.b16 %v2223, %v2173
    %v2724 = vpack.c.b16 %v2224, %v2174
    %v2725 = vpack.c.b16 %v2225, %v2175
    %v2726 = vpack.c.b16 %v2226, %v2176
    %v2727 = vpack.c.b16 %v2227, %v2177
    %v2728 = vpack.c.b16 %v2228, %v2178
    %v2729 = vpack.c.b16 %v2229, %v2179
    %v2730 = vpack.c.b16 %v2230, %v2180
    %v2731 = vpack.c.b16 %v2231, %v2181
    %v2732 = vpack.c.b16 %v2232, %v2182
    %v2733 = vpack.c.b16 %v2283, %v2233
    %v2734 = vpack.c.b16 %v2284, %v2234
    %v2735 = vpack.c.b16 %v2285, %v2235
    %v2736 = vpack.c.b16 %v2286, %v2236
    %v2737 = vpack.c.b16 %v2287, %v2237
    %v2738 = vpack.c.b16 %v2288, %v2238
    %v2739 = vpack.c.b16 %v2289, %v2239
    %v2740 = vpack.c.b16 %v2290, %v2240
    %v2741 = vpack.c.b16 %v2291, %v2241
    %v2742 = vpack.c.b16 %v2292, %v2242
    %v2743 = vpack.c.b16 %v2293, %v2243
    %v2744 = vpack.c.b16 %v2294, %v2244
    %v2745 = vpack.c.b16 %v2295, %v2245
    %v2746 = vpack.c.b16 %v2296, %v2246
    %v2747 = vpack.c.b16 %v2297, %v2247
    %v2748 = vpack.c.b16 %v2298, %v2248
    %v2749 = vpack.c.b16 %v2299, %v2249
    %v2750 = vpack.c.b16 %v2300, %v2250
    %v2751 = vpack.c.b16 %v2301, %v2251
    %v2752 = vpack.c.b16 %v2302, %v2252
    %v2753 = vpack.c.b16 %v2303, %v2253
    %v2754 = vpack.c.b16 %v2304, %v2254
    %v2755 = vpack.c.b16 %v2305, %v2255
    %v2756 = vpack.c.b16 %v2306, %v2256
    %v2757 = vpack.c.b16 %v2307, %v2257
    %v2758 = vpack.c.b16 %v2308, %v2258
    %v2759 = vpack.c.b16 %v2309, %v2259
    %v2760 = vpack.c.b16 %v2310, %v2260
    %v2761 = vpack.c.b16 %v2311, %v2261
    %v2762 = vpack.c.b16 %v2312, %v2262
    %v2763 = vpack.c.b16 %v2313, %v2263
    %v2764 = vpack.c.b16 %v2314, %v2264
    %v2765 = vpack.c.b16 %v2315, %v2265
    %v2766 = vpack.c.b16 %v2316, %v2266
    %v2767 = vpack.c.b16 %v2317, %v2267
    %v2768 = vpack.c.b16 %v2318, %v2268
    %v2769 = vpack.c.b16 %v2319, %v2269
    %v2770 = vpack.c.b16 %v2320, %v2270
    %v2771 = vpack.c.b16 %v2321, %v2271
    %v2772 = vpack.c.b16 %v2322, %v2272
    %v2773 = vpack.c.b16 %v2323, %v2273
    %v2774 = vpack.c.b16 %v2324, %v2274
    %v2775 = vpack.c.b16 %v2325, %v2275
    %v2776 = vpack.c.b16 %v2326, %v2276
    %v2777 = vpack.c.b16 %v2327, %v2277
    %v2778 = vpack.c.b16 %v2328, %v2278
    %v2779 = vpack.c.b16 %v2329, %v2279
    %v2780 = vpack.c.b16 %v2330, %v2280
    %v2781 = vpack.c.b16 %v2331, %v2281
    %v2782 = vpack.c.b16 %v2332, %v2282
    %v2783 = vpack.c.b16 %v2383, %v2333
    %v2784 = vpack.c.b16 %v2384, %v2334
    %v2785 = vpack.c.b16 %v2385, %v2335
    %v2786 = vpack.c.b16 %v2386, %v2336
    %v2787 = vpack.c.b16 %v2387, %v2337
    %v2788 = vpack.c.b16 %v2388, %v2338
    %v2789 = vpack.c.b16 %v2389, %v2339
    %v2790 = vpack.c.b16 %v2390, %v2340
    %v2791 = vpack.c.b16 %v2391, %v2341
    %v2792 = vpack.c.b16 %v2392, %v2342
    %v2793 = vpack.c.b16 %v2393, %v2343
    %v2794 = vpack.c.b16 %v2394, %v2344
    %v2795 = vpack.c.b16 %v2395, %v2345
    %v2796 = vpack.c.b16 %v2396, %v2346
    %v2797 = vpack.c.b16 %v2397, %v2347
    %v2798 = vpack.c.b16 %v2398, %v2348
    %v2799 = vpack.c.b16 %v2399, %v2349
    %v2800 = vpack.c.b16 %v2400, %v2350
    %v2801 = vpack.c.b16 %v2401, %v2351
    %v2802 = vpack.c.b16 %v2402, %v2352
    %v2803 = vpack.c.b16 %v2403, %v2353
    %v2804 = vpack.c.b16 %v2404, %v2354
    %v2805 = vpack.c.b16 %v2405, %v2355
    %v2806 = vpack.c.b16 %v2406, %v2356
    %v2807 = vpack.c.b16 %v2407, %v2357
    %v2808 = vpack.c.b16 %v2408, %v2358
    %v2809 = vpack.c.b16 %v2409, %v2359
    %v2810 = vpack.c.b16 %v2410, %v2360
    %v2811 = vpack.c.b16 %v2411, %v2361
    %v2812 = vpack.c.b16 %v2412, %v2362
    %v2813 = vpack.c.b16 %v2413, %v2363
    %v2814 = vpack.c.b16 %v2414, %v2364
    %v2815 = vpack.c.b16 %v2415, %v2365
    %v2816 = vpack.c.b16 %v2416, %v2366
    %v2817 = vpack.c.b16 %v2417, %v2367
    %v2818 = vpack.c.b16 %v2418, %v2368
    %v2819 = vpack.c.b16 %v2419, %v2369
    %v2820 = vpack.c.b16 %v2420, %v2370
    %v2821 = vpack.c.b16 %v2421, %v2371
    %v2822 = vpack.c.b16 %v2422, %v2372
    %v2823 = vpack.c.b16 %v2423, %v2373
    %v2824 = vpack.c.b16 %v2424, %v2374
    %v2825 = vpack.c.b16 %v2425, %v2375
    %v2826 = vpack.c.b16 %v2426, %v2376
    %v2827 = vpack.c.b16 %v2427, %v2377
    %v2828 = vpack.c.b16 %v2428, %v2378
    %v2829 = vpack.c.b16 %v2429, %v2379
    %v2830 = vpack.c.b16 %v2430, %v2380
    %v2831 = vpack.c.b16 %v2431, %v2381
    %v2832 = vpack.c.b16 %v2432, %v2382
    %v4033 = vunpack.c.l.b16 %v421
    %v4034 = vunpack.c.h.b16 %v421
    %v4035 = vunpack.c.l.b16 %v422
    %v4036 = vunpack.c.h.b16 %v422
    %v4037 = vunpack.c.l.b16 %v423
    %v4038 = vunpack.c.h.b16 %v423
    %v4039 = vunpack.c.l.b16 %v424
    %v4040 = vunpack.c.h.b16 %v424
    %v4041 = vunpack.c.l.b16 %v425
    %v4042 = vunpack.c.h.b16 %v425
    %v4043 = vunpack.c.l.b16 %v426
    %v4044 = vunpack.c.h.b16 %v426
    %v4045 = vunpack.c.l.b16 %v427
    %v4046 = vunpack.c.h.b16 %v427
    %v4047 = vunpack.c.l.b16 %v428
    %v4048 = vunpack.c.h.b16 %v428
    %v4049 = vunpack.c.l.b16 %v429
    %v4050 = vunpack.c.h.b16 %v429
    %v4051 = vunpack.c.l.b16 %v430
    %v4052 = vunpack.c.h.b16 %v430
    %v4053 = vunpack.c.l.b16 %v431
    %v4054 = vunpack.c.h.b16 %v431
    %v4055 = vunpack.c.l.b16 %v432
    %v4056 = vunpack.c.h.b16 %v432
    %v4057 = vunpack.c.l.b16 %v433
    %v4058 = vunpack.c.h.b16 %v433
    %v4059 = vunpack.c.l.b16 %v434
    %v4060 = vunpack.c.h.b16 %v434
    %v4061 = vunpack.c.l.b16 %v435
    %v4062 = vunpack.c.h.b16 %v435
    %v4063 = vunpack.c.l.b16 %v436
    %v4064 = vunpack.c.h.b16 %v436
    %v4065 = vunpack.c.l.b16 %v437
    %v4066 = vunpack.c.h.b16 %v437
    %v4067 = vunpack.c.l.b16 %v438
    %v4068 = vunpack.c.h.b16 %v438
    %v4069 = vunpack.c.l.b16 %v439
    %v4070 = vunpack.c.h.b16 %v439
    %v4071 = vunpack.c.l.b16 %v440
    %v4072 = vunpack.c.h.b16 %v440
    %v4073 = vunpack.c.l.b16 %v441
    %v4074 = vunpack.c.h.b16 %v441
    %v4075 = vunpack.c.l.b16 %v442
    %v4076 = vunpack.c.h.b16 %v442
    %v4077 = vunpack.c.l.b16 %v443
    %v4078 = vunpack.c.h.b16 %v443
    %v4079 = vunpack.c.l.b16 %v444
    %v4080 = vunpack.c.h.b16 %v444
    %v4081 = vunpack.c.l.b16 %v445
    %v4082 = vunpack.c.h.b16 %v445
    %v4083 = vunpack.c.l.b16 %v446
    %v4084 = vunpack.c.h.b16 %v446
    %v4085 = vunpack.c.l.b16 %v447
    %v4086 = vunpack.c.h.b16 %v447
    %v4087 = vunpack.c.l.b16 %v448
    %v4088 = vunpack.c.h.b16 %v448
    %v4089 = vunpack.c.l.b16 %v449
    %v4090 = vunpack.c.h.b16 %v449
    %v4091 = vunpack.c.l.b16 %v450
    %v4092 = vunpack.c.h.b16 %v450
    %v4093 = vunpack.c.l.b16 %v451
    %v4094 = vunpack.c.h.b16 %v451
    %v4095 = vunpack.c.l.b16 %v452
    %v4096 = vunpack.c.h.b16 %v452
    %v4097 = vunpack.c.l.b16 %v453
    %v4098 = vunpack.c.h.b16 %v453
    %v4099 = vunpack.c.l.b16 %v454
    %v4100 = vunpack.c.h.b16 %v454
    %v4101 = vunpack.c.l.b16 %v455
    %v4102 = vunpack.c.h.b16 %v455
    %v4103 = vunpack.c.l.b16 %v456
    %v4104 = vunpack.c.h.b16 %v456
    %v4105 = vunpack.c.l.b16 %v457
    %v4106 = vunpack.c.h.b16 %v457
    %v4107 = vunpack.c.l.b16 %v458
    %v4108 = vunpack.c.h.b16 %v458
    %v4109 = vunpack.c.l.b16 %v459
    %v4110 = vunpack.c.h.b16 %v459
    %v4111 = vunpack.c.l.b16 %v460
    %v4112 = vunpack.c.h.b16 %v460
    %v4113 = vunpack.c.l.b16 %v461
    %v4114 = vunpack.c.h.b16 %v461
    %v4115 = vunpack.c.l.b16 %v462
    %v4116 = vunpack.c.h.b16 %v462
    %v4117 = vunpack.c.l.b16 %v463
    %v4118 = vunpack.c.h.b16 %v463
    %v4119 = vunpack.c.l.b16 %v464
    %v4120 = vunpack.c.h.b16 %v464
    %v4121 = vunpack.c.l.b16 %v465
    %v4122 = vunpack.c.h.b16 %v465
    %v4123 = vunpack.c.l.b16 %v466
    %v4124 = vunpack.c.h.b16 %v466
    %v4125 = vunpack.c.l.b16 %v467
    %v4126 = vunpack.c.h.b16 %v467
    %v4127 = vunpack.c.l.b16 %v468
    %v4128 = vunpack.c.h.b16 %v468
    %v4129 = vunpack.c.l.b16 %v469
    %v4130 = vunpack.c.h.b16 %v469
    %v4131 = vunpack.c.l.b16 %v470
    %v4132 = vunpack.c.h.b16 %v470
    %v4133 = vunpack.c.l.b16 %v471
    %v4134 = vunpack.c.h.b16 %v471
    %v4135 = vunpack.c.l.b16 %v472
    %v4136 = vunpack.c.h.b16 %v472
    %v4137 = vunpack.c.l.b16 %v473
    %v4138 = vunpack.c.h.b16 %v473
    %v4139 = vunpack.c.l.b16 %v474
    %v4140 = vunpack.c.h.b16 %v474
    %v4141 = vunpack.c.l.b16 %v475
    %v4142 = vunpack.c.h.b16 %v475
    %v4143 = vunpack.c.l.b16 %v476
    %v4144 = vunpack.c.h.b16 %v476
    %v4145 = vunpack.c.l.b16 %v477
    %v4146 = vunpack.c.h.b16 %v477
    %v4147 = vunpack.c.l.b16 %v478
    %v4148 = vunpack.c.h.b16 %v478
    %v4149 = vunpack.c.l.b16 %v479
    %v4150 = vunpack.c.h.b16 %v479
    %v4151 = vunpack.c.l.b16 %v480
    %v4152 = vunpack.c.h.b16 %v480
    %v4153 = vunpack.c.l.b16 %v481
    %v4154 = vunpack.c.h.b16 %v481
    %v4155 = vunpack.c.l.b16 %v482
    %v4156 = vunpack.c.h.b16 %v482
    %v4157 = vunpack.c.l.b16 %v483
    %v4158 = vunpack.c.h.b16 %v483
    %v4159 = vunpack.c.l.b16 %v484
    %v4160 = vunpack.c.h.b16 %v484
    %v4161 = vunpack.c.l.b16 %v485
    %v4162 = vunpack.c.h.b16 %v485
    %v4163 = vunpack.c.l.b16 %v486
    %v4164 = vunpack.c.h.b16 %v486
    %v4165 = vunpack.c.l.b16 %v487
    %v4166 = vunpack.c.h.b16 %v487
    %v4167 = vunpack.c.l.b16 %v488
    %v4168 = vunpack.c.h.b16 %v488
    %v4169 = vunpack.c.l.b16 %v489
    %v4170 = vunpack.c.h.b16 %v489
    %v4171 = vunpack.c.l.b16 %v490
    %v4172 = vunpack.c.h.b16 %v490
    %v4173 = vunpack.c.l.b16 %v491
    %v4174 = vunpack.c.h.b16 %v491
    %v4175 = vunpack.c.l.b16 %v492
    %v4176 = vunpack.c.h.b16 %v492
    %v4177 = vunpack.c.l.b16 %v493
    %v4178 = vunpack.c.h.b16 %v493
    %v4179 = vunpack.c.l.b16 %v494
    %v4180 = vunpack.c.h.b16 %v494
    %v4181 = vunpack.c.l.b16 %v495
    %v4182 = vunpack.c.h.b16 %v495
    %v4183 = vunpack.c.l.b16 %v496
    %v4184 = vunpack.c.h.b16 %v496
    %v4185 = vunpack.c.l.b16 %v497
    %v4186 = vunpack.c.h.b16 %v497
    %v4187 = vunpack.c.l.b16 %v498
    %v4188 = vunpack.c.h.b16 %v498
    %v4189 = vunpack.c.l.b16 %v499
    %v4190 = vunpack.c.h.b16 %v499
    %v4191 = vunpack.c.l.b16 %v500
    %v4192 = vunpack.c.h.b16 %v500
    %v4193 = vunpack.c.l.b16 %v501
    %v4194 = vunpack.c.h.b16 %v501
    %v4195 = vunpack.c.l.b16 %v502
    %v4196 = vunpack.c.h.b16 %v502
    %v4197 = vunpack.c.l.b16 %v503
    %v4198 = vunpack.c.h.b16 %v503
    %v4199 = vunpack.c.l.b16 %v504
    %v4200 = vunpack.c.h.b16 %v504
    %v4201 = vunpack.c.l.b16 %v505
    %v4202 = vunpack.c.h.b16 %v505
    %v4203 = vunpack.c.l.b16 %v506
    %v4204 = vunpack.c.h.b16 %v506
    %v4205 = vunpack.c.l.b16 %v507
    %v4206 = vunpack.c.h.b16 %v507
    %v4207 = vunpack.c.l.b16 %v508
    %v4208 = vunpack.c.h.b16 %v508
    %v4209 = vunpack.c.l.b16 %v509
    %v4210 = vunpack.c.h.b16 %v509
    %v4211 = vunpack.c.l.b16 %v510
    %v4212 = vunpack.c.h.b16 %v510
    %v4213 = vunpack.c.l.b16 %v511
    %v4214 = vunpack.c.h.b16 %v511
    %v4215 = vunpack.c.l.b16 %v512
    %v4216 = vunpack.c.h.b16 %v512
    %v4217 = vunpack.c.l.b16 %v513
    %v4218 = vunpack.c.h.b16 %v513
    %v4219 = vunpack.c.l.b16 %v514
    %v4220 = vunpack.c.h.b16 %v514
    %v4221 = vunpack.c.l.b16 %v515
    %v4222 = vunpack.c.h.b16 %v515
    %v4223 = vunpack.c.l.b16 %v516
    %v4224 = vunpack.c.h.b16 %v516
    %v4225 = vunpack.c.l.b16 %v517
    %v4226 = vunpack.c.h.b16 %v517
    %v4227 = vunpack.c.l.b16 %v518
    %v4228 = vunpack.c.h.b16 %v518
    %v4229 = vunpack.c.l.b16 %v519
    %v4230 = vunpack.c.h.b16 %v519
    %v4231 = vunpack.c.l.b16 %v520
    %v4232 = vunpack.c.h.b16 %v520
    %v4233 = vunpack.c.l.b16 %v521
    %v4234 = vunpack.c.h.b16 %v521
    %v4235 = vunpack.c.l.b16 %v522
    %v4236 = vunpack.c.h.b16 %v522
    %v4237 = vunpack.c.l.b16 %v523
    %v4238 = vunpack.c.h.b16 %v523
    %v4239 = vunpack.c.l.b16 %v524
    %v4240 = vunpack.c.h.b16 %v524
    %v4241 = vunpack.c.l.b16 %v525
    %v4242 = vunpack.c.h.b16 %v525
    %v4243 = vunpack.c.l.b16 %v526
    %v4244 = vunpack.c.h.b16 %v526
    %v4245 = vunpack.c.l.b16 %v527
    %v4246 = vunpack.c.h.b16 %v527
    %v4247 = vunpack.c.l.b16 %v528
    %v4248 = vunpack.c.h.b16 %v528
    %v4249 = vunpack.c.l.b16 %v529
    %v4250 = vunpack.c.h.b16 %v529
    %v4251 = vunpack.c.l.b16 %v530
    %v4252 = vunpack.c.h.b16 %v530
    %v4253 = vunpack.c.l.b16 %v531
    %v4254 = vunpack.c.h.b16 %v531
    %v4255 = vunpack.c.l.b16 %v532
    %v4256 = vunpack.c.h.b16 %v532
    %v4257 = vunpack.c.l.b16 %v533
    %v4258 = vunpack.c.h.b16 %v533
    %v4259 = vunpack.c.l.b16 %v534
    %v4260 = vunpack.c.h.b16 %v534
    %v4261 = vunpack.c.l.b16 %v535
    %v4262 = vunpack.c.h.b16 %v535
    %v4263 = vunpack.c.l.b16 %v536
    %v4264 = vunpack.c.h.b16 %v536
    %v4265 = vunpack.c.l.b16 %v537
    %v4266 = vunpack.c.h.b16 %v537
    %v4267 = vunpack.c.l.b16 %v538
    %v4268 = vunpack.c.h.b16 %v538
    %v4269 = vunpack.c.l.b16 %v539
    %v4270 = vunpack.c.h.b16 %v539
    %v4271 = vunpack.c.l.b16 %v540
    %v4272 = vunpack.c.h.b16 %v540
    %v4273 = vunpack.c.l.b16 %v541
    %v4274 = vunpack.c.h.b16 %v541
    %v4275 = vunpack.c.l.b16 %v542
    %v4276 = vunpack.c.h.b16 %v542
    %v4277 = vunpack.c.l.b16 %v543
    %v4278 = vunpack.c.h.b16 %v543
    %v4279 = vunpack.c.l.b16 %v544
    %v4280 = vunpack.c.h.b16 %v544
    %v4281 = vunpack.c.l.b16 %v545
    %v4282 = vunpack.c.h.b16 %v545
    %v4283 = vunpack.c.l.b16 %v546
    %v4284 = vunpack.c.h.b16 %v546
    %v4285 = vunpack.c.l.b16 %v547
    %v4286 = vunpack.c.h.b16 %v547
    %v4287 = vunpack.c.l.b16 %v548
    %v4288 = vunpack.c.h.b16 %v548
    %v4289 = vunpack.c.l.b16 %v549
    %v4290 = vunpack.c.h.b16 %v549
    %v4291 = vunpack.c.l.b16 %v550
    %v4292 = vunpack.c.h.b16 %v550
    %v4293 = vunpack.c.l.b16 %v551
    %v4294 = vunpack.c.h.b16 %v551
    %v4295 = vunpack.c.l.b16 %v552
    %v4296 = vunpack.c.h.b16 %v552
    %v4297 = vunpack.c.l.b16 %v553
    %v4298 = vunpack.c.h.b16 %v553
    %v4299 = vunpack.c.l.b16 %v554
    %v4300 = vunpack.c.h.b16 %v554
    %v4301 = vunpack.c.l.b16 %v555
    %v4302 = vunpack.c.h.b16 %v555
    %v4303 = vunpack.c.l.b16 %v556
    %v4304 = vunpack.c.h.b16 %v556
    %v4305 = vunpack.c.l.b16 %v557
    %v4306 = vunpack.c.h.b16 %v557
    %v4307 = vunpack.c.l.b16 %v558
    %v4308 = vunpack.c.h.b16 %v558
    %v4309 = vunpack.c.l.b16 %v559
    %v4310 = vunpack.c.h.b16 %v559
    %v4311 = vunpack.c.l.b16 %v560
    %v4312 = vunpack.c.h.b16 %v560
    %v4313 = vunpack.c.l.b16 %v561
    %v4314 = vunpack.c.h.b16 %v561
    %v4315 = vunpack.c.l.b16 %v562
    %v4316 = vunpack.c.h.b16 %v562
    %v4317 = vunpack.c.l.b16 %v563
    %v4318 = vunpack.c.h.b16 %v563
    %v4319 = vunpack.c.l.b16 %v564
    %v4320 = vunpack.c.h.b16 %v564
    %v4321 = vunpack.c.l.b16 %v565
    %v4322 = vunpack.c.h.b16 %v565
    %v4323 = vunpack.c.l.b16 %v566
    %v4324 = vunpack.c.h.b16 %v566
    %v4325 = vunpack.c.l.b16 %v567
    %v4326 = vunpack.c.h.b16 %v567
    %v4327 = vunpack.c.l.b16 %v568
    %v4328 = vunpack.c.h.b16 %v568
    %v4329 = vunpack.c.l.b16 %v569
    %v4330 = vunpack.c.h.b16 %v569
    %v4331 = vunpack.c.l.b16 %v570
    %v4332 = vunpack.c.h.b16 %v570
    %v4333 = vunpack.c.l.b16 %v571
    %v4334 = vunpack.c.h.b16 %v571
    %v4335 = vunpack.c.l.b16 %v572
    %v4336 = vunpack.c.h.b16 %v572
    %v4337 = vunpack.c.l.b16 %v573
    %v4338 = vunpack.c.h.b16 %v573
    %v4339 = vunpack.c.l.b16 %v574
    %v4340 = vunpack.c.h.b16 %v574
    %v4341 = vunpack.c.l.b16 %v575
    %v4342 = vunpack.c.h.b16 %v575
    %v4343 = vunpack.c.l.b16 %v576
    %v4344 = vunpack.c.h.b16 %v576
    %v4345 = vunpack.c.l.b16 %v577
    %v4346 = vunpack.c.h.b16 %v577
    %v4347 = vunpack.c.l.b16 %v578
    %v4348 = vunpack.c.h.b16 %v578
    %v4349 = vunpack.c.l.b16 %v579
    %v4350 = vunpack.c.h.b16 %v579
    %v4351 = vunpack.c.l.b16 %v580
    %v4352 = vunpack.c.h.b16 %v580
    %v4353 = vunpack.c.l.b16 %v581
    %v4354 = vunpack.c.h.b16 %v581
    %v4355 = vunpack.c.l.b16 %v582
    %v4356 = vunpack.c.h.b16 %v582
    %v4357 = vunpack.c.l.b16 %v583
    %v4358 = vunpack.c.h.b16 %v583
    %v4359 = vunpack.c.l.b16 %v584
    %v4360 = vunpack.c.h.b16 %v584
    %v4361 = vunpack.c.l.b16 %v585
    %v4362 = vunpack.c.h.b16 %v585
    %v4363 = vunpack.c.l.b16 %v586
    %v4364 = vunpack.c.h.b16 %v586
    %v4365 = vunpack.c.l.b16 %v587
    %v4366 = vunpack.c.h.b16 %v587
    %v4367 = vunpack.c.l.b16 %v588
    %v4368 = vunpack.c.h.b16 %v588
    %v4369 = vunpack.c.l.b16 %v589
    %v4370 = vunpack.c.h.b16 %v589
    %v4371 = vunpack.c.l.b16 %v590
    %v4372 = vunpack.c.h.b16 %v590
    %v4373 = vunpack.c.l.b16 %v591
    %v4374 = vunpack.c.h.b16 %v591
    %v4375 = vunpack.c.l.b16 %v592
    %v4376 = vunpack.c.h.b16 %v592
    %v4377 = vunpack.c.l.b16 %v593
    %v4378 = vunpack.c.h.b16 %v593
    %v4379 = vunpack.c.l.b16 %v594
    %v4380 = vunpack.c.h.b16 %v594
    %v4381 = vunpack.c.l.b16 %v595
    %v4382 = vunpack.c.h.b16 %v595
    %v4383 = vunpack.c.l.b16 %v596
    %v4384 = vunpack.c.h.b16 %v596
    %v4385 = vunpack.c.l.b16 %v597
    %v4386 = vunpack.c.h.b16 %v597
    %v4387 = vunpack.c.l.b16 %v598
    %v4388 = vunpack.c.h.b16 %v598
    %v4389 = vunpack.c.l.b16 %v599
    %v4390 = vunpack.c.h.b16 %v599
    %v4391 = vunpack.c.l.b16 %v600
    %v4392 = vunpack.c.h.b16 %v600
    %v4393 = vunpack.c.l.b16 %v601
    %v4394 = vunpack.c.h.b16 %v601
    %v4395 = vunpack.c.l.b16 %v602
    %v4396 = vunpack.c.h.b16 %v602
    %v4397 = vunpack.c.l.b16 %v603
    %v4398 = vunpack.c.h.b16 %v603
    %v4399 = vunpack.c.l.b16 %v604
    %v4400 = vunpack.c.h.b16 %v604
    %v4401 = vunpack.c.l.b16 %v605
    %v4402 = vunpack.c.h.b16 %v605
    %v4403 = vunpack.c.l.b16 %v606
    %v4404 = vunpack.c.h.b16 %v606
    %v4405 = vunpack.c.l.b16 %v607
    %v4406 = vunpack.c.h.b16 %v607
    %v4407 = vunpack.c.l.b16 %v608
    %v4408 = vunpack.c.h.b16 %v608
    %v4409 = vunpack.c.l.b16 %v609
    %v4410 = vunpack.c.h.b16 %v609
    %v4411 = vunpack.c.l.b16 %v610
    %v4412 = vunpack.c.h.b16 %v610
    %v4413 = vunpack.c.l.b16 %v611
    %v4414 = vunpack.c.h.b16 %v611
    %v4415 = vunpack.c.l.b16 %v612
    %v4416 = vunpack.c.h.b16 %v612
    %v4417 = vunpack.c.l.b16 %v613
    %v4418 = vunpack.c.h.b16 %v613
    %v4419 = vunpack.c.l.b16 %v614
    %v4420 = vunpack.c.h.b16 %v614
    %v4421 = vunpack.c.l.b16 %v615
    %v4422 = vunpack.c.h.b16 %v615
    %v4423 = vunpack.c.l.b16 %v616
    %v4424 = vunpack.c.h.b16 %v616
    %v4425 = vunpack.c.l.b16 %v617
    %v4426 = vunpack.c.h.b16 %v617
    %v4427 = vunpack.c.l.b16 %v618
    %v4428 = vunpack.c.h.b16 %v618
    %v4429 = vunpack.c.l.b16 %v619
    %v4430 = vunpack.c.h.b16 %v619
    %v4431 = vunpack.c.l.b16 %v620
    %v4432 = vunpack.c.h.b16 %v620
    %v4433 = vunpack.c.l.b16 %v621
    %v4434 = vunpack.c.h.b16 %v621
    %v4435 = vunpack.c.l.b16 %v622
    %v4436 = vunpack.c.h.b16 %v622
    %v4437 = vunpack.c.l.b16 %v623
    %v4438 = vunpack.c.h.b16 %v623
    %v4439 = vunpack.c.l.b16 %v624
    %v4440 = vunpack.c.h.b16 %v624
    %v4441 = vunpack.c.l.b16 %v625
    %v4442 = vunpack.c.h.b16 %v625
    %v4443 = vunpack.c.l.b16 %v626
    %v4444 = vunpack.c.h.b16 %v626
    %v4445 = vunpack.c.l.b16 %v627
    %v4446 = vunpack.c.h.b16 %v627
    %v4447 = vunpack.c.l.b16 %v628
    %v4448 = vunpack.c.h.b16 %v628
    %v4449 = vunpack.c.l.b16 %v629
    %v4450 = vunpack.c.h.b16 %v629
    %v4451 = vunpack.c.l.b16 %v630
    %v4452 = vunpack.c.h.b16 %v630
    %v4453 = vunpack.c.l.b16 %v631
    %v4454 = vunpack.c.h.b16 %v631
    %v4455 = vunpack.c.l.b16 %v632
    %v4456 = vunpack.c.h.b16 %v632
    %v4457 = vunpack.c.l.b16 %v633
    %v4458 = vunpack.c.h.b16 %v633
    %v4459 = vunpack.c.l.b16 %v634
    %v4460 = vunpack.c.h.b16 %v634
    %v4461 = vunpack.c.l.b16 %v635
    %v4462 = vunpack.c.h.b16 %v635
    %v4463 = vunpack.c.l.b16 %v636
    %v4464 = vunpack.c.h.b16 %v636
    %v4465 = vunpack.c.l.b16 %v637
    %v4466 = vunpack.c.h.b16 %v637
    %v4467 = vunpack.c.l.b16 %v638
    %v4468 = vunpack.c.h.b16 %v638
    %v4469 = vunpack.c.l.b16 %v639
    %v4470 = vunpack.c.h.b16 %v639
    %v4471 = vunpack.c.l.b16 %v640
    %v4472 = vunpack.c.h.b16 %v640
    %v4473 = vunpack.c.l.b16 %v641
    %v4474 = vunpack.c.h.b16 %v641
    %v4475 = vunpack.c.l.b16 %v642
    %v4476 = vunpack.c.h.b16 %v642
    %v4477 = vunpack.c.l.b16 %v643
    %v4478 = vunpack.c.h.b16 %v643
    %v4479 = vunpack.c.l.b16 %v644
    %v4480 = vunpack.c.h.b16 %v644
    %v4481 = vunpack.c.l.b16 %v645
    %v4482 = vunpack.c.h.b16 %v645
    %v4483 = vunpack.c.l.b16 %v646
    %v4484 = vunpack.c.h.b16 %v646
    %v4485 = vunpack.c.l.b16 %v647
    %v4486 = vunpack.c.h.b16 %v647
    %v4487 = vunpack.c.l.b16 %v648
    %v4488 = vunpack.c.h.b16 %v648
    %v4489 = vunpack.c.l.b16 %v649
    %v4490 = vunpack.c.h.b16 %v649
    %v4491 = vunpack.c.l.b16 %v650
    %v4492 = vunpack.c.h.b16 %v650
    %v4493 = vunpack.c.l.b16 %v651
    %v4494 = vunpack.c.h.b16 %v651
    %v4495 = vunpack.c.l.b16 %v652
    %v4496 = vunpack.c.h.b16 %v652
    %v4497 = vunpack.c.l.b16 %v653
    %v4498 = vunpack.c.h.b16 %v653
    %v4499 = vunpack.c.l.b16 %v654
    %v4500 = vunpack.c.h.b16 %v654
    %v4501 = vunpack.c.l.b16 %v655
    %v4502 = vunpack.c.h.b16 %v655
    %v4503 = vunpack.c.l.b16 %v656
    %v4504 = vunpack.c.h.b16 %v656
    %v4505 = vunpack.c.l.b16 %v657
    %v4506 = vunpack.c.h.b16 %v657
    %v4507 = vunpack.c.l.b16 %v658
    %v4508 = vunpack.c.h.b16 %v658
    %v4509 = vunpack.c.l.b16 %v659
    %v4510 = vunpack.c.h.b16 %v659
    %v4511 = vunpack.c.l.b16 %v660
    %v4512 = vunpack.c.h.b16 %v660
    %v4513 = vunpack.c.l.b16 %v661
    %v4514 = vunpack.c.h.b16 %v661
    %v4515 = vunpack.c.l.b16 %v662
    %v4516 = vunpack.c.h.b16 %v662
    %v4517 = vunpack.c.l.b16 %v663
    %v4518 = vunpack.c.h.b16 %v663
    %v4519 = vunpack.c.l.b16 %v664
    %v4520 = vunpack.c.h.b16 %v664
    %v4521 = vunpack.c.l.b16 %v665
    %v4522 = vunpack.c.h.b16 %v665
    %v4523 = vunpack.c.l.b16 %v666
    %v4524 = vunpack.c.h.b16 %v666
    %v4525 = vunpack.c.l.b16 %v667
    %v4526 = vunpack.c.h.b16 %v667
    %v4527 = vunpack.c.l.b16 %v668
    %v4528 = vunpack.c.h.b16 %v668
    %v4529 = vunpack.c.l.b16 %v669
    %v4530 = vunpack.c.h.b16 %v669
    %v4531 = vunpack.c.l.b16 %v670
    %v4532 = vunpack.c.h.b16 %v670
    %v4533 = vunpack.c.l.b16 %v671
    %v4534 = vunpack.c.h.b16 %v671
    %v4535 = vunpack.c.l.b16 %v672
    %v4536 = vunpack.c.h.b16 %v672
    %v4537 = vunpack.c.l.b16 %v673
    %v4538 = vunpack.c.h.b16 %v673
    %v4539 = vunpack.c.l.b16 %v674
    %v4540 = vunpack.c.h.b16 %v674
    %v4541 = vunpack.c.l.b16 %v675
    %v4542 = vunpack.c.h.b16 %v675
    %v4543 = vunpack.c.l.b16 %v676
    %v4544 = vunpack.c.h.b16 %v676
    %v4545 = vunpack.c.l.b16 %v677
    %v4546 = vunpack.c.h.b16 %v677
    %v4547 = vunpack.c.l.b16 %v678
    %v4548 = vunpack.c.h.b16 %v678
    %v4549 = vunpack.c.l.b16 %v679
    %v4550 = vunpack.c.h.b16 %v679
    %v4551 = vunpack.c.l.b16 %v680
    %v4552 = vunpack.c.h.b16 %v680
    %v4553 = vunpack.c.l.b16 %v681
    %v4554 = vunpack.c.h.b16 %v681
    %v4555 = vunpack.c.l.b16 %v682
    %v4556 = vunpack.c.h.b16 %v682
    %v4557 = vunpack.c.l.b16 %v683
    %v4558 = vunpack.c.h.b16 %v683
    %v4559 = vunpack.c.l.b16 %v684
    %v4560 = vunpack.c.h.b16 %v684
    %v4561 = vunpack.c.l.b16 %v685
    %v4562 = vunpack.c.h.b16 %v685
    %v4563 = vunpack.c.l.b16 %v686
    %v4564 = vunpack.c.h.b16 %v686
    %v4565 = vunpack.c.l.b16 %v687
    %v4566 = vunpack.c.h.b16 %v687
    %v4567 = vunpack.c.l.b16 %v688
    %v4568 = vunpack.c.h.b16 %v688
    %v4569 = vunpack.c.l.b16 %v689
    %v4570 = vunpack.c.h.b16 %v689
    %v4571 = vunpack.c.l.b16 %v690
    %v4572 = vunpack.c.h.b16 %v690
    %v4573 = vunpack.c.l.b16 %v691
    %v4574 = vunpack.c.h.b16 %v691
    %v4575 = vunpack.c.l.b16 %v692
    %v4576 = vunpack.c.h.b16 %v692
    %v4577 = vunpack.c.l.b16 %v693
    %v4578 = vunpack.c.h.b16 %v693
    %v4579 = vunpack.c.l.b16 %v694
    %v4580 = vunpack.c.h.b16 %v694
    %v4581 = vunpack.c.l.b16 %v695
    %v4582 = vunpack.c.h.b16 %v695
    %v4583 = vunpack.c.l.b16 %v696
    %v4584 = vunpack.c.h.b16 %v696
    %v4585 = vunpack.c.l.b16 %v697
    %v4586 = vunpack.c.h.b16 %v697
    %v4587 = vunpack.c.l.b16 %v698
    %v4588 = vunpack.c.h.b16 %v698
    %v4589 = vunpack.c.l.b16 %v699
    %v4590 = vunpack.c.h.b16 %v699
    %v4591 = vunpack.c.l.b16 %v700
    %v4592 = vunpack.c.h.b16 %v700
    %v4593 = vunpack.c.l.b16 %v701
    %v4594 = vunpack.c.h.b16 %v701
    %v4595 = vunpack.c.l.b16 %v702
    %v4596 = vunpack.c.h.b16 %v702
    %v4597 = vunpack.c.l.b16 %v703
    %v4598 = vunpack.c.h.b16 %v703
    %v4599 = vunpack.c.l.b16 %v704
    %v4600 = vunpack.c.h.b16 %v704
    %v4601 = vunpack.c.l.b16 %v705
    %v4602 = vunpack.c.h.b16 %v705
    %v4603 = vunpack.c.l.b16 %v706
    %v4604 = vunpack.c.h.b16 %v706
    %v4605 = vunpack.c.l.b16 %v707
    %v4606 = vunpack.c.h.b16 %v707
    %v4607 = vunpack.c.l.b16 %v708
    %v4608 = vunpack.c.h.b16 %v708
    %v4609 = vunpack.c.l.b16 %v709
    %v4610 = vunpack.c.h.b16 %v709
    %v4611 = vunpack.c.l.b16 %v710
    %v4612 = vunpack.c.h.b16 %v710
    %v4613 = vunpack.c.l.b16 %v711
    %v4614 = vunpack.c.h.b16 %v711
    %v4615 = vunpack.c.l.b16 %v712
    %v4616 = vunpack.c.h.b16 %v712
    %v4617 = vunpack.c.l.b16 %v713
    %v4618 = vunpack.c.h.b16 %v713
    %v4619 = vunpack.c.l.b16 %v714
    %v4620 = vunpack.c.h.b16 %v714
    %v4621 = vunpack.c.l.b16 %v715
    %v4622 = vunpack.c.h.b16 %v715
    %v4623 = vunpack.c.l.b16 %v716
    %v4624 = vunpack.c.h.b16 %v716
    %v4625 = vunpack.c.l.b16 %v717
    %v4626 = vunpack.c.h.b16 %v717
    %v4627 = vunpack.c.l.b16 %v718
    %v4628 = vunpack.c.h.b16 %v718
    %v4629 = vunpack.c.l.b16 %v719
    %v4630 = vunpack.c.h.b16 %v719
    %v4631 = vunpack.c.l.b16 %v720
    %v4632 = vunpack.c.h.b16 %v720
    %v4633 = vunpack.c.l.b16 %v721
    %v4634 = vunpack.c.h.b16 %v721
    %v4635 = vunpack.c.l.b16 %v722
    %v4636 = vunpack.c.h.b16 %v722
    %v4637 = vunpack.c.l.b16 %v723
    %v4638 = vunpack.c.h.b16 %v723
    %v4639 = vunpack.c.l.b16 %v724
    %v4640 = vunpack.c.h.b16 %v724
    %v4641 = vunpack.c.l.b16 %v725
    %v4642 = vunpack.c.h.b16 %v725
    %v4643 = vunpack.c.l.b16 %v726
    %v4644 = vunpack.c.h.b16 %v726
    %v4645 = vunpack.c.l.b16 %v727
    %v4646 = vunpack.c.h.b16 %v727
    %v4647 = vunpack.c.l.b16 %v728
    %v4648 = vunpack.c.h.b16 %v728
    %v4649 = vunpack.c.l.b16 %v729
    %v4650 = vunpack.c.h.b16 %v729
    %v4651 = vunpack.c.l.b16 %v730
    %v4652 = vunpack.c.h.b16 %v730
    %v4653 = vunpack.c.l.b16 %v731
    %v4654 = vunpack.c.h.b16 %v731
    %v4655 = vunpack.c.l.b16 %v732
    %v4656 = vunpack.c.h.b16 %v732
    %v4657 = vunpack.c.l.b16 %v733
    %v4658 = vunpack.c.h.b16 %v733
    %v4659 = vunpack.c.l.b16 %v734
    %v4660 = vunpack.c.h.b16 %v734
    %v4661 = vunpack.c.l.b16 %v735
    %v4662 = vunpack.c.h.b16 %v735
    %v4663 = vunpack.c.l.b16 %v736
    %v4664 = vunpack.c.h.b16 %v736
    %v4665 = vunpack.c.l.b16 %v737
    %v4666 = vunpack.c.h.b16 %v737
    %v4667 = vunpack.c.l.b16 %v738
    %v4668 = vunpack.c.h.b16 %v738
    %v4669 = vunpack.c.l.b16 %v739
    %v4670 = vunpack.c.h.b16 %v739
    %v4671 = vunpack.c.l.b16 %v740
    %v4672 = vunpack.c.h.b16 %v740
    %v4673 = vunpack.c.l.b16 %v741
    %v4674 = vunpack.c.h.b16 %v741
    %v4675 = vunpack.c.l.b16 %v742
    %v4676 = vunpack.c.h.b16 %v742
    %v4677 = vunpack.c.l.b16 %v743
    %v4678 = vunpack.c.h.b16 %v743
    %v4679 = vunpack.c.l.b16 %v744
    %v4680 = vunpack.c.h.b16 %v744
    %v4681 = vunpack.c.l.b16 %v745
    %v4682 = vunpack.c.h.b16 %v745
    %v4683 = vunpack.c.l.b16 %v746
    %v4684 = vunpack.c.h.b16 %v746
    %v4685 = vunpack.c.l.b16 %v747
    %v4686 = vunpack.c.h.b16 %v747
    %v4687 = vunpack.c.l.b16 %v748
    %v4688 = vunpack.c.h.b16 %v748
    %v4689 = vunpack.c.l.b16 %v749
    %v4690 = vunpack.c.h.b16 %v749
    %v4691 = vunpack.c.l.b16 %v750
    %v4692 = vunpack.c.h.b16 %v750
    %v4693 = vunpack.c.l.b16 %v751
    %v4694 = vunpack.c.h.b16 %v751
    %v4695 = vunpack.c.l.b16 %v752
    %v4696 = vunpack.c.h.b16 %v752
    %v4697 = vunpack.c.l.b16 %v753
    %v4698 = vunpack.c.h.b16 %v753
    %v4699 = vunpack.c.l.b16 %v754
    %v4700 = vunpack.c.h.b16 %v754
    %v4701 = vunpack.c.l.b16 %v755
    %v4702 = vunpack.c.h.b16 %v755
    %v4703 = vunpack.c.l.b16 %v756
    %v4704 = vunpack.c.h.b16 %v756
    %v4705 = vunpack.c.l.b16 %v757
    %v4706 = vunpack.c.h.b16 %v757
    %v4707 = vunpack.c.l.b16 %v758
    %v4708 = vunpack.c.h.b16 %v758
    %v4709 = vunpack.c.l.b16 %v759
    %v4710 = vunpack.c.h.b16 %v759
    %v4711 = vunpack.c.l.b16 %v760
    %v4712 = vunpack.c.h.b16 %v760
    %v4713 = vunpack.c.l.b16 %v761
    %v4714 = vunpack.c.h.b16 %v761
    %v4715 = vunpack.c.l.b16 %v762
    %v4716 = vunpack.c.h.b16 %v762
    %v4717 = vunpack.c.l.b16 %v763
    %v4718 = vunpack.c.h.b16 %v763
    %v4719 = vunpack.c.l.b16 %v764
    %v4720 = vunpack.c.h.b16 %v764
    %v4721 = vunpack.c.l.b16 %v765
    %v4722 = vunpack.c.h.b16 %v765
    %v4723 = vunpack.c.l.b16 %v766
    %v4724 = vunpack.c.h.b16 %v766
    %v4725 = vunpack.c.l.b16 %v767
    %v4726 = vunpack.c.h.b16 %v767
    %v4727 = vunpack.c.l.b16 %v768
    %v4728 = vunpack.c.h.b16 %v768
    %v4729 = vunpack.c.l.b16 %v769
    %v4730 = vunpack.c.h.b16 %v769
    %v4731 = vunpack.c.l.b16 %v770
    %v4732 = vunpack.c.h.b16 %v770
    %v4733 = vunpack.c.l.b16 %v771
    %v4734 = vunpack.c.h.b16 %v771
    %v4735 = vunpack.c.l.b16 %v772
    %v4736 = vunpack.c.h.b16 %v772
    %v4737 = vunpack.c.l.b16 %v773
    %v4738 = vunpack.c.h.b16 %v773
    %v4739 = vunpack.c.l.b16 %v774
    %v4740 = vunpack.c.h.b16 %v774
    %v4741 = vunpack.c.l.b16 %v775
    %v4742 = vunpack.c.h.b16 %v775
    %v4743 = vunpack.c.l.b16 %v776
    %v4744 = vunpack.c.h.b16 %v776
    %v4745 = vunpack.c.l.b16 %v777
    %v4746 = vunpack.c.h.b16 %v777
    %v4747 = vunpack.c.l.b16 %v778
    %v4748 = vunpack.c.h.b16 %v778
    %v4749 = vunpack.c.l.b16 %v779
    %v4750 = vunpack.c.h.b16 %v779
    %v4751 = vunpack.c.l.b16 %v780
    %v4752 = vunpack.c.h.b16 %v780
    %v4753 = vunpack.c.l.b16 %v781
    %v4754 = vunpack.c.h.b16 %v781
    %v4755 = vunpack.c.l.b16 %v782
    %v4756 = vunpack.c.h.b16 %v782
    %v4757 = vunpack.c.l.b16 %v783
    %v4758 = vunpack.c.h.b16 %v783
    %v4759 = vunpack.c.l.b16 %v784
    %v4760 = vunpack.c.h.b16 %v784
    %v4761 = vunpack.c.l.b16 %v785
    %v4762 = vunpack.c.h.b16 %v785
    %v4763 = vunpack.c.l.b16 %v786
    %v4764 = vunpack.c.h.b16 %v786
    %v4765 = vunpack.c.l.b16 %v787
    %v4766 = vunpack.c.h.b16 %v787
    %v4767 = vunpack.c.l.b16 %v788
    %v4768 = vunpack.c.h.b16 %v788
    %v4769 = vunpack.c.l.b16 %v789
    %v4770 = vunpack.c.h.b16 %v789
    %v4771 = vunpack.c.l.b16 %v790
    %v4772 = vunpack.c.h.b16 %v790
    %v4773 = vunpack.c.l.b16 %v791
    %v4774 = vunpack.c.h.b16 %v791
    %v4775 = vunpack.c.l.b16 %v792
    %v4776 = vunpack.c.h.b16 %v792
    %v4777 = vunpack.c.l.b16 %v793
    %v4778 = vunpack.c.h.b16 %v793
    %v4779 = vunpack.c.l.b16 %v794
    %v4780 = vunpack.c.h.b16 %v794
    %v4781 = vunpack.c.l.b16 %v795
    %v4782 = vunpack.c.h.b16 %v795
    %v4783 = vunpack.c.l.b16 %v796
    %v4784 = vunpack.c.h.b16 %v796
    %v4785 = vunpack.c.l.b16 %v797
    %v4786 = vunpack.c.h.b16 %v797
    %v4787 = vunpack.c.l.b16 %v798
    %v4788 = vunpack.c.h.b16 %v798
    %v4789 = vunpack.c.l.b16 %v799
    %v4790 = vunpack.c.h.b16 %v799
    %v4791 = vunpack.c.l.b16 %v800
    %v4792 = vunpack.c.h.b16 %v800
    %v4793 = vunpack.c.l.b16 %v801
    %v4794 = vunpack.c.h.b16 %v801
    %v4795 = vunpack.c.l.b16 %v802
    %v4796 = vunpack.c.h.b16 %v802
    %v4797 = vunpack.c.l.b16 %v803
    %v4798 = vunpack.c.h.b16 %v803
    %v4799 = vunpack.c.l.b16 %v804
    %v4800 = vunpack.c.h.b16 %v804
    %v4801 = vunpack.c.l.b16 %v805
    %v4802 = vunpack.c.h.b16 %v805
    %v4803 = vunpack.c.l.b16 %v806
    %v4804 = vunpack.c.h.b16 %v806
    %v4805 = vunpack.c.l.b16 %v807
    %v4806 = vunpack.c.h.b16 %v807
    %v4807 = vunpack.c.l.b16 %v808
    %v4808 = vunpack.c.h.b16 %v808
    %v4809 = vunpack.c.l.b16 %v809
    %v4810 = vunpack.c.h.b16 %v809
    %v4811 = vunpack.c.l.b16 %v810
    %v4812 = vunpack.c.h.b16 %v810
    %v4813 = vunpack.c.l.b16 %v811
    %v4814 = vunpack.c.h.b16 %v811
    %v4815 = vunpack.c.l.b16 %v812
    %v4816 = vunpack.c.h.b16 %v812
    %v4817 = vunpack.c.l.b16 %v813
    %v4818 = vunpack.c.h.b16 %v813
    %v4819 = vunpack.c.l.b16 %v814
    %v4820 = vunpack.c.h.b16 %v814
    %v4821 = vunpack.c.l.b16 %v815
    %v4822 = vunpack.c.h.b16 %v815
    %v4823 = vunpack.c.l.b16 %v816
    %v4824 = vunpack.c.h.b16 %v816
    %v4825 = vunpack.c.l.b16 %v817
    %v4826 = vunpack.c.h.b16 %v817
    %v4827 = vunpack.c.l.b16 %v818
    %v4828 = vunpack.c.h.b16 %v818
    %v4829 = vunpack.c.l.b16 %v819
    %v4830 = vunpack.c.h.b16 %v819
    %v4831 = vunpack.c.l.b16 %v820
    %v4832 = vunpack.c.h.b16 %v820
    %v4833 = vunpack.c.l.b16 %v821
    %v4834 = vunpack.c.h.b16 %v821
    %v4835 = vunpack.c.l.b16 %v822
    %v4836 = vunpack.c.h.b16 %v822
    %v4837 = vunpack.c.l.b16 %v823
    %v4838 = vunpack.c.h.b16 %v823
    %v4839 = vunpack.c.l.b16 %v824
    %v4840 = vunpack.c.h.b16 %v824
    %v4841 = vunpack.c.l.b16 %v825
    %v4842 = vunpack.c.h.b16 %v825
    %v4843 = vunpack.c.l.b16 %v826
    %v4844 = vunpack.c.h.b16 %v826
    %v4845 = vunpack.c.l.b16 %v827
    %v4846 = vunpack.c.h.b16 %v827
    %v4847 = vunpack.c.l.b16 %v828
    %v4848 = vunpack.c.h.b16 %v828
    %v4849 = vunpack.c.l.b16 %v829
    %v4850 = vunpack.c.h.b16 %v829
    %v4851 = vunpack.c.l.b16 %v830
    %v4852 = vunpack.c.h.b16 %v830
    %v4853 = vunpack.c.l.b16 %v831
    %v4854 = vunpack.c.h.b16 %v831
    %v4855 = vunpack.c.l.b16 %v832
    %v4856 = vunpack.c.h.b16 %v832
    %v4857 = vunpack.c.l.b16 %v833
    %v4858 = vunpack.c.h.b16 %v833
    %v4859 = vunpack.c.l.b16 %v834
    %v4860 = vunpack.c.h.b16 %v834
    %v4861 = vunpack.c.l.b16 %v835
    %v4862 = vunpack.c.h.b16 %v835
    %v4863 = vunpack.c.l.b16 %v836
    %v4864 = vunpack.c.h.b16 %v836
    %v4865 = vunpack.c.l.b16 %v837
    %v4866 = vunpack.c.h.b16 %v837
    %v4867 = vunpack.c.l.b16 %v838
    %v4868 = vunpack.c.h.b16 %v838
    %v4869 = vunpack.c.l.b16 %v839
    %v4870 = vunpack.c.h.b16 %v839
    %v4871 = vunpack.c.l.b16 %v840
    %v4872 = vunpack.c.h.b16 %v840
    %v4873 = vunpack.c.l.b16 %v841
    %v4874 = vunpack.c.h.b16 %v841
    %v4875 = vunpack.c.l.b16 %v842
    %v4876 = vunpack.c.h.b16 %v842
    %v4877 = vunpack.c.l.b16 %v843
    %v4878 = vunpack.c.h.b16 %v843
    %v4879 = vunpack.c.l.b16 %v844
    %v4880 = vunpack.c.h.b16 %v844
    %v4881 = vunpack.c.l.b16 %v845
    %v4882 = vunpack.c.h.b16 %v845
    %v4883 = vunpack.c.l.b16 %v846
    %v4884 = vunpack.c.h.b16 %v846
    %v4885 = vunpack.c.l.b16 %v847
    %v4886 = vunpack.c.h.b16 %v847
    %v4887 = vunpack.c.l.b16 %v848
    %v4888 = vunpack.c.h.b16 %v848
    %v4889 = vunpack.c.l.b16 %v849
    %v4890 = vunpack.c.h.b16 %v849
    %v4891 = vunpack.c.l.b16 %v850
    %v4892 = vunpack.c.h.b16 %v850
    %v4893 = vunpack.c.l.b16 %v851
    %v4894 = vunpack.c.h.b16 %v851
    %v4895 = vunpack.c.l.b16 %v852
    %v4896 = vunpack.c.h.b16 %v852
    %v4897 = vunpack.c.l.b16 %v853
    %v4898 = vunpack.c.h.b16 %v853
    %v4899 = vunpack.c.l.b16 %v854
    %v4900 = vunpack.c.h.b16 %v854
    %v4901 = vunpack.c.l.b16 %v855
    %v4902 = vunpack.c.h.b16 %v855
    %v4903 = vunpack.c.l.b16 %v856
    %v4904 = vunpack.c.h.b16 %v856
    %v4905 = vunpack.c.l.b16 %v857
    %v4906 = vunpack.c.h.b16 %v857
    %v4907 = vunpack.c.l.b16 %v858
    %v4908 = vunpack.c.h.b16 %v858
    %v4909 = vunpack.c.l.b16 %v859
    %v4910 = vunpack.c.h.b16 %v859
    %v4911 = vunpack.c.l.b16 %v860
    %v4912 = vunpack.c.h.b16 %v860
    %v4913 = vunpack.c.l.b16 %v861
    %v4914 = vunpack.c.h.b16 %v861
    %v4915 = vunpack.c.l.b16 %v862
    %v4916 = vunpack.c.h.b16 %v862
    %v4917 = vunpack.c.l.b16 %v863
    %v4918 = vunpack.c.h.b16 %v863
    %v4919 = vunpack.c.l.b16 %v864
    %v4920 = vunpack.c.h.b16 %v864
    %v4921 = vunpack.c.l.b16 %v865
    %v4922 = vunpack.c.h.b16 %v865
    %v4923 = vunpack.c.l.b16 %v866
    %v4924 = vunpack.c.h.b16 %v866
    %v4925 = vunpack.c.l.b16 %v867
    %v4926 = vunpack.c.h.b16 %v867
    %v4927 = vunpack.c.l.b16 %v868
    %v4928 = vunpack.c.h.b16 %v868
    %v4929 = vunpack.c.l.b16 %v869
    %v4930 = vunpack.c.h.b16 %v869
    %v4931 = vunpack.c.l.b16 %v870
    %v4932 = vunpack.c.h.b16 %v870
    %v4933 = vunpack.c.l.b16 %v871
    %v4934 = vunpack.c.h.b16 %v871
    %v4935 = vunpack.c.l.b16 %v872
    %v4936 = vunpack.c.h.b16 %v872
    %v4937 = vunpack.c.l.b16 %v873
    %v4938 = vunpack.c.h.b16 %v873
    %v4939 = vunpack.c.l.b16 %v874
    %v4940 = vunpack.c.h.b16 %v874
    %v4941 = vunpack.c.l.b16 %v875
    %v4942 = vunpack.c.h.b16 %v875
    %v4943 = vunpack.c.l.b16 %v876
    %v4944 = vunpack.c.h.b16 %v876
    %v4945 = vunpack.c.l.b16 %v877
    %v4946 = vunpack.c.h.b16 %v877
    %v4947 = vunpack.c.l.b16 %v878
    %v4948 = vunpack.c.h.b16 %v878
    %v4949 = vunpack.c.l.b16 %v879
    %v4950 = vunpack.c.h.b16 %v879
    %v4951 = vunpack.c.l.b16 %v880
    %v4952 = vunpack.c.h.b16 %v880
    %v4953 = vunpack.c.l.b16 %v881
    %v4954 = vunpack.c.h.b16 %v881
    %v4955 = vunpack.c.l.b16 %v882
    %v4956 = vunpack.c.h.b16 %v882
    %v4957 = vunpack.c.l.b16 %v883
    %v4958 = vunpack.c.h.b16 %v883
    %v4959 = vunpack.c.l.b16 %v884
    %v4960 = vunpack.c.h.b16 %v884
    %v4961 = vunpack.c.l.b16 %v885
    %v4962 = vunpack.c.h.b16 %v885
    %v4963 = vunpack.c.l.b16 %v886
    %v4964 = vunpack.c.h.b16 %v886
    %v4965 = vunpack.c.l.b16 %v887
    %v4966 = vunpack.c.h.b16 %v887
    %v4967 = vunpack.c.l.b16 %v888
    %v4968 = vunpack.c.h.b16 %v888
    %v4969 = vunpack.c.l.b16 %v889
    %v4970 = vunpack.c.h.b16 %v889
    %v4971 = vunpack.c.l.b16 %v890
    %v4972 = vunpack.c.h.b16 %v890
    %v4973 = vunpack.c.l.b16 %v891
    %v4974 = vunpack.c.h.b16 %v891
    %v4975 = vunpack.c.l.b16 %v892
    %v4976 = vunpack.c.h.b16 %v892
    %v4977 = vunpack.c.l.b16 %v893
    %v4978 = vunpack.c.h.b16 %v893
    %v4979 = vunpack.c.l.b16 %v894
    %v4980 = vunpack.c.h.b16 %v894
    %v4981 = vunpack.c.l.b16 %v895
    %v4982 = vunpack.c.h.b16 %v895
    %v4983 = vunpack.c.l.b16 %v896
    %v4984 = vunpack.c.h.b16 %v896
    %v4985 = vunpack.c.l.b16 %v897
    %v4986 = vunpack.c.h.b16 %v897
    %v4987 = vunpack.c.l.b16 %v898
    %v4988 = vunpack.c.h.b16 %v898
    %v4989 = vunpack.c.l.b16 %v899
    %v4990 = vunpack.c.h.b16 %v899
    %v4991 = vunpack.c.l.b16 %v900
    %v4992 = vunpack.c.h.b16 %v900
    %v4993 = vunpack.c.l.b16 %v901
    %v4994 = vunpack.c.h.b16 %v901
    %v4995 = vunpack.c.l.b16 %v902
    %v4996 = vunpack.c.h.b16 %v902
    %v4997 = vunpack.c.l.b16 %v903
    %v4998 = vunpack.c.h.b16 %v903
    %v4999 = vunpack.c.l.b16 %v904
    %v5000 = vunpack.c.h.b16 %v904
    %v5001 = vunpack.c.l.b16 %v905
    %v5002 = vunpack.c.h.b16 %v905
    %v5003 = vunpack.c.l.b16 %v906
    %v5004 = vunpack.c.h.b16 %v906
    %v5005 = vunpack.c.l.b16 %v907
    %v5006 = vunpack.c.h.b16 %v907
    %v5007 = vunpack.c.l.b16 %v908
    %v5008 = vunpack.c.h.b16 %v908
    %v5009 = vunpack.c.l.b16 %v909
    %v5010 = vunpack.c.h.b16 %v909
    %v5011 = vunpack.c.l.b16 %v910
    %v5012 = vunpack.c.h.b16 %v910
    %v5013 = vunpack.c.l.b16 %v911
    %v5014 = vunpack.c.h.b16 %v911
    %v5015 = vunpack.c.l.b16 %v912
    %v5016 = vunpack.c.h.b16 %v912
    %v5017 = vunpack.c.l.b16 %v913
    %v5018 = vunpack.c.h.b16 %v913
    %v5019 = vunpack.c.l.b16 %v914
    %v5020 = vunpack.c.h.b16 %v914
    %v5021 = vunpack.c.l.b16 %v915
    %v5022 = vunpack.c.h.b16 %v915
    %v5023 = vunpack.c.l.b16 %v916
    %v5024 = vunpack.c.h.b16 %v916
    %v5025 = vunpack.c.l.b16 %v917
    %v5026 = vunpack.c.h.b16 %v917
    %v5027 = vunpack.c.l.b16 %v918
    %v5028 = vunpack.c.h.b16 %v918
    %v5029 = vunpack.c.l.b16 %v919
    %v5030 = vunpack.c.h.b16 %v919
    %v5031 = vunpack.c.l.b16 %v920
    %v5032 = vunpack.c.h.b16 %v920
    %v5033 = vunpack.c.l.b16 %v921
    %v5034 = vunpack.c.h.b16 %v921
    %v5035 = vunpack.c.l.b16 %v922
    %v5036 = vunpack.c.h.b16 %v922
    %v5037 = vunpack.c.l.b16 %v923
    %v5038 = vunpack.c.h.b16 %v923
    %v5039 = vunpack.c.l.b16 %v924
    %v5040 = vunpack.c.h.b16 %v924
    %v5041 = vunpack.c.l.b16 %v925
    %v5042 = vunpack.c.h.b16 %v925
    %v5043 = vunpack.c.l.b16 %v926
    %v5044 = vunpack.c.h.b16 %v926
    %v5045 = vunpack.c.l.b16 %v927
    %v5046 = vunpack.c.h.b16 %v927
    %v5047 = vunpack.c.l.b16 %v928
    %v5048 = vunpack.c.h.b16 %v928
    %v5049 = vunpack.c.l.b16 %v929
    %v5050 = vunpack.c.h.b16 %v929
    %v5051 = vunpack.c.l.b16 %v930
    %v5052 = vunpack.c.h.b16 %v930
    %v5053 = vunpack.c.l.b16 %v931
    %v5054 = vunpack.c.h.b16 %v931
    %v5055 = vunpack.c.l.b16 %v932
    %v5056 = vunpack.c.h.b16 %v932
    %v5057 = vunpack.c.l.b16 %v933
    %v5058 = vunpack.c.h.b16 %v933
    %v5059 = vunpack.c.l.b16 %v934
    %v5060 = vunpack.c.h.b16 %v934
    %v5061 = vunpack.c.l.b16 %v935
    %v5062 = vunpack.c.h.b16 %v935
    %v5063 = vunpack.c.l.b16 %v936
    %v5064 = vunpack.c.h.b16 %v936
    %v5065 = vunpack.c.l.b16 %v937
    %v5066 = vunpack.c.h.b16 %v937
    %v5067 = vunpack.c.l.b16 %v938
    %v5068 = vunpack.c.h.b16 %v938
    %v5069 = vunpack.c.l.b16 %v939
    %v5070 = vunpack.c.h.b16 %v939
    %v5071 = vunpack.c.l.b16 %v940
    %v5072 = vunpack.c.h.b16 %v940
    %v5073 = vunpack.c.l.b16 %v941
    %v5074 = vunpack.c.h.b16 %v941
    %v5075 = vunpack.c.l.b16 %v942
    %v5076 = vunpack.c.h.b16 %v942
    %v5077 = vunpack.c.l.b16 %v943
    %v5078 = vunpack.c.h.b16 %v943
    %v5079 = vunpack.c.l.b16 %v944
    %v5080 = vunpack.c.h.b16 %v944
    %v5081 = vunpack.c.l.b16 %v945
    %v5082 = vunpack.c.h.b16 %v945
    %v5083 = vunpack.c.l.b16 %v946
    %v5084 = vunpack.c.h.b16 %v946
    %v5085 = vunpack.c.l.b16 %v947
    %v5086 = vunpack.c.h.b16 %v947
    %v5087 = vunpack.c.l.b16 %v948
    %v5088 = vunpack.c.h.b16 %v948
    %v5089 = vunpack.c.l.b16 %v949
    %v5090 = vunpack.c.h.b16 %v949
    %v5091 = vunpack.c.l.b16 %v950
    %v5092 = vunpack.c.h.b16 %v950
    %v5093 = vunpack.c.l.b16 %v951
    %v5094 = vunpack.c.h.b16 %v951
    %v5095 = vunpack.c.l.b16 %v952
    %v5096 = vunpack.c.h.b16 %v952
    %v5097 = vunpack.c.l.b16 %v953
    %v5098 = vunpack.c.h.b16 %v953
    %v5099 = vunpack.c.l.b16 %v954
    %v5100 = vunpack.c.h.b16 %v954
    %v5101 = vunpack.c.l.b16 %v955
    %v5102 = vunpack.c.h.b16 %v955
    %v5103 = vunpack.c.l.b16 %v956
    %v5104 = vunpack.c.h.b16 %v956
    %v5105 = vunpack.c.l.b16 %v957
    %v5106 = vunpack.c.h.b16 %v957
    %v5107 = vunpack.c.l.b16 %v958
    %v5108 = vunpack.c.h.b16 %v958
    %v5109 = vunpack.c.l.b16 %v959
    %v5110 = vunpack.c.h.b16 %v959
    %v5111 = vunpack.c.l.b16 %v960
    %v5112 = vunpack.c.h.b16 %v960
    %v5113 = vunpack.c.l.b16 %v961
    %v5114 = vunpack.c.h.b16 %v961
    %v5115 = vunpack.c.l.b16 %v962
    %v5116 = vunpack.c.h.b16 %v962
    %v5117 = vunpack.c.l.b16 %v963
    %v5118 = vunpack.c.h.b16 %v963
    %v5119 = vunpack.c.l.b16 %v964
    %v5120 = vunpack.c.h.b16 %v964
    %v5121 = vunpack.c.l.b16 %v965
    %v5122 = vunpack.c.h.b16 %v965
    %v5123 = vunpack.c.l.b16 %v966
    %v5124 = vunpack.c.h.b16 %v966
    %v5125 = vunpack.c.l.b16 %v967
    %v5126 = vunpack.c.h.b16 %v967
    %v5127 = vunpack.c.l.b16 %v968
    %v5128 = vunpack.c.h.b16 %v968
    %v5129 = vunpack.c.l.b16 %v969
    %v5130 = vunpack.c.h.b16 %v969
    %v5131 = vunpack.c.l.b16 %v970
    %v5132 = vunpack.c.h.b16 %v970
    %v5133 = vunpack.c.l.b16 %v971
    %v5134 = vunpack.c.h.b16 %v971
    %v5135 = vunpack.c.l.b16 %v972
    %v5136 = vunpack.c.h.b16 %v972
    %v5137 = vunpack.c.l.b16 %v973
    %v5138 = vunpack.c.h.b16 %v973
    %v5139 = vunpack.c.l.b16 %v974
    %v5140 = vunpack.c.h.b16 %v974
    %v5141 = vunpack.c.l.b16 %v975
    %v5142 = vunpack.c.h.b16 %v975
    %v5143 = vunpack.c.l.b16 %v976
    %v5144 = vunpack.c.h.b16 %v976
    %v5145 = vunpack.c.l.b16 %v977
    %v5146 = vunpack.c.h.b16 %v977
    %v5147 = vunpack.c.l.b16 %v978
    %v5148 = vunpack.c.h.b16 %v978
    %v5149 = vunpack.c.l.b16 %v979
    %v5150 = vunpack.c.h.b16 %v979
    %v5151 = vunpack.c.l.b16 %v980
    %v5152 = vunpack.c.h.b16 %v980
    %v5153 = vunpack.c.l.b16 %v981
    %v5154 = vunpack.c.h.b16 %v981
    %v5155 = vunpack.c.l.b16 %v982
    %v5156 = vunpack.c.h.b16 %v982
    %v5157 = vunpack.c.l.b16 %v983
    %v5158 = vunpack.c.h.b16 %v983
    %v5159 = vunpack.c.l.b16 %v984
    %v5160 = vunpack.c.h.b16 %v984
    %v5161 = vunpack.c.l.b16 %v985
    %v5162 = vunpack.c.h.b16 %v985
    %v5163 = vunpack.c.l.b16 %v986
    %v5164 = vunpack.c.h.b16 %v986
    %v5165 = vunpack.c.l.b16 %v987
    %v5166 = vunpack.c.h.b16 %v987
    %v5167 = vunpack.c.l.b16 %v988
    %v5168 = vunpack.c.h.b16 %v988
    %v5169 = vunpack.c.l.b16 %v989
    %v5170 = vunpack.c.h.b16 %v989
    %v5171 = vunpack.c.l.b16 %v990
    %v5172 = vunpack.c.h.b16 %v990
    %v5173 = vunpack.c.l.b16 %v991
    %v5174 = vunpack.c.h.b16 %v991
    %v5175 = vunpack.c.l.b16 %v992
    %v5176 = vunpack.c.h.b16 %v992
    %v5177 = vunpack.c.l.b16 %v993
    %v5178 = vunpack.c.h.b16 %v993
    %v5179 = vunpack.c.l.b16 %v994
    %v5180 = vunpack.c.h.b16 %v994
    %v5181 = vunpack.c.l.b16 %v995
    %v5182 = vunpack.c.h.b16 %v995
    %v5183 = vunpack.c.l.b16 %v996
    %v5184 = vunpack.c.h.b16 %v996
    %v5185 = vunpack.c.l.b16 %v997
    %v5186 = vunpack.c.h.b16 %v997
    %v5187 = vunpack.c.l.b16 %v998
    %v5188 = vunpack.c.h.b16 %v998
    %v5189 = vunpack.c.l.b16 %v999
    %v5190 = vunpack.c.h.b16 %v999
    %v5191 = vunpack.c.l.b16 %v1000
    %v5192 = vunpack.c.h.b16 %v1000
    %v5193 = vunpack.c.l.b16 %v1001
    %v5194 = vunpack.c.h.b16 %v1001
    %v5195 = vunpack.c.l.b16 %v1002
    %v5196 = vunpack.c.h.b16 %v1002
    %v5197 = vunpack.c.l.b16 %v1003
    %v5198 = vunpack.c.h.b16 %v1003
    %v5199 = vunpack.c.l.b16 %v1004
    %v5200 = vunpack.c.h.b16 %v1004
    %v5201 = vunpack.c.l.b16 %v1005
    %v5202 = vunpack.c.h.b16 %v1005
    %v5203 = vunpack.c.l.b16 %v1006
    %v5204 = vunpack.c.h.b16 %v1006
    %v5205 = vunpack.c.l.b16 %v1007
    %v5206 = vunpack.c.h.b16 %v1007
    %v5207 = vunpack.c.l.b16 %v1008
    %v5208 = vunpack.c.h.b16 %v1008
    %v5209 = vunpack.c.l.b16 %v1009
    %v5210 = vunpack.c.h.b16 %v1009
    %v5211 = vunpack.c.l.b16 %v1010
    %v5212 = vunpack.c.h.b16 %v1010
    %v5213 = vunpack.c.l.b16 %v1011
    %v5214 = vunpack.c.h.b16 %v1011
    %v5215 = vunpack.c.l.b16 %v1012
    %v5216 = vunpack.c.h.b16 %v1012
    %v5217 = vunpack.c.l.b16 %v1013
    %v5218 = vunpack.c.h.b16 %v1013
    %v5219 = vunpack.c.l.b16 %v1014
    %v5220 = vunpack.c.h.b16 %v1014
    %v5221 = vunpack.c.l.b16 %v1015
    %v5222 = vunpack.c.h.b16 %v1015
    %v5223 = vunpack.c.l.b16 %v1016
    %v5224 = vunpack.c.h.b16 %v1016
    %v5225 = vunpack.c.l.b16 %v1017
    %v5226 = vunpack.c.h.b16 %v1017
    %v5227 = vunpack.c.l.b16 %v1018
    %v5228 = vunpack.c.h.b16 %v1018
    %v5229 = vunpack.c.l.b16 %v1019
    %v5230 = vunpack.c.h.b16 %v1019
    %v5231 = vunpack.c.l.b16 %v1020
    %v5232 = vunpack.c.h.b16 %v1020
    %v5233 = vunpack.c.l.b16 %v1021
    %v5234 = vunpack.c.h.b16 %v1021
    %v5235 = vunpack.c.l.b16 %v1022
    %v5236 = vunpack.c.h.b16 %v1022
    %v5237 = vunpack.c.l.b16 %v1023
    %v5238 = vunpack.c.h.b16 %v1023
    %v5239 = vunpack.c.l.b16 %v1024
    %v5240 = vunpack.c.h.b16 %v1024
    %v5241 = vunpack.c.l.b16 %v1025
    %v5242 = vunpack.c.h.b16 %v1025
    %v5243 = vunpack.c.l.b16 %v1026
    %v5244 = vunpack.c.h.b16 %v1026
    %v5245 = vunpack.c.l.b16 %v1027
    %v5246 = vunpack.c.h.b16 %v1027
    %v5247 = vunpack.c.l.b16 %v1028
    %v5248 = vunpack.c.h.b16 %v1028
    %v5249 = vunpack.c.l.b16 %v1029
    %v5250 = vunpack.c.h.b16 %v1029
    %v5251 = vunpack.c.l.b16 %v1030
    %v5252 = vunpack.c.h.b16 %v1030
    %v5253 = vunpack.c.l.b16 %v1031
    %v5254 = vunpack.c.h.b16 %v1031
    %v5255 = vunpack.c.l.b16 %v1032
    %v5256 = vunpack.c.h.b16 %v1032
    %v5257 = vunpack.c.l.b16 %v1033
    %v5258 = vunpack.c.h.b16 %v1033
    %v5259 = vunpack.c.l.b16 %v1034
    %v5260 = vunpack.c.h.b16 %v1034
    %v5261 = vunpack.c.l.b16 %v1035
    %v5262 = vunpack.c.h.b16 %v1035
    %v5263 = vunpack.c.l.b16 %v1036
    %v5264 = vunpack.c.h.b16 %v1036
    %v5265 = vunpack.c.l.b16 %v1037
    %v5266 = vunpack.c.h.b16 %v1037
    %v5267 = vunpack.c.l.b16 %v1038
    %v5268 = vunpack.c.h.b16 %v1038
    %v5269 = vunpack.c.l.b16 %v1039
    %v5270 = vunpack.c.h.b16 %v1039
    %v5271 = vunpack.c.l.b16 %v1040
    %v5272 = vunpack.c.h.b16 %v1040
    %v5273 = vunpack.c.l.b16 %v1041
    %v5274 = vunpack.c.h.b16 %v1041
    %v5275 = vunpack.c.l.b16 %v1042
    %v5276 = vunpack.c.h.b16 %v1042
    %v5277 = vunpack.c.l.b16 %v1043
    %v5278 = vunpack.c.h.b16 %v1043
    %v5279 = vunpack.c.l.b16 %v1044
    %v5280 = vunpack.c.h.b16 %v1044
    %v5281 = vunpack.c.l.b16 %v1045
    %v5282 = vunpack.c.h.b16 %v1045
    %v5283 = vunpack.c.l.b16 %v1046
    %v5284 = vunpack.c.h.b16 %v1046
    %v5285 = vunpack.c.l.b16 %v1047
    %v5286 = vunpack.c.h.b16 %v1047
    %v5287 = vunpack.c.l.b16 %v1048
    %v5288 = vunpack.c.h.b16 %v1048
    %v5289 = vunpack.c.l.b16 %v1049
    %v5290 = vunpack.c.h.b16 %v1049
    %v5291 = vunpack.c.l.b16 %v1050
    %v5292 = vunpack.c.h.b16 %v1050
    %v5293 = vunpack.c.l.b16 %v1051
    %v5294 = vunpack.c.h.b16 %v1051
    %v5295 = vunpack.c.l.b16 %v1052
    %v5296 = vunpack.c.h.b16 %v1052
    %v5297 = vunpack.c.l.b16 %v1053
    %v5298 = vunpack.c.h.b16 %v1053
    %v5299 = vunpack.c.l.b16 %v1054
    %v5300 = vunpack.c.h.b16 %v1054
    %v5301 = vunpack.c.l.b16 %v1055
    %v5302 = vunpack.c.h.b16 %v1055
    %v5303 = vunpack.c.l.b16 %v1056
    %v5304 = vunpack.c.h.b16 %v1056
    %v5305 = vunpack.c.l.b16 %v1057
    %v5306 = vunpack.c.h.b16 %v1057
    %v5307 = vunpack.c.l.b16 %v1058
    %v5308 = vunpack.c.h.b16 %v1058
    %v5309 = vunpack.c.l.b16 %v1059
    %v5310 = vunpack.c.h.b16 %v1059
    %v5311 = vunpack.c.l.b16 %v1060
    %v5312 = vunpack.c.h.b16 %v1060
    %v5313 = vunpack.c.l.b16 %v1061
    %v5314 = vunpack.c.h.b16 %v1061
    %v5315 = vunpack.c.l.b16 %v1062
    %v5316 = vunpack.c.h.b16 %v1062
    %v5317 = vunpack.c.l.b16 %v1063
    %v5318 = vunpack.c.h.b16 %v1063
    %v5319 = vunpack.c.l.b16 %v1064
    %v5320 = vunpack.c.h.b16 %v1064
    %v5321 = vunpack.c.l.b16 %v1065
    %v5322 = vunpack.c.h.b16 %v1065
    %v5323 = vunpack.c.l.b16 %v1066
    %v5324 = vunpack.c.h.b16 %v1066
    %v5325 = vunpack.c.l.b16 %v1067
    %v5326 = vunpack.c.h.b16 %v1067
    %v5327 = vunpack.c.l.b16 %v1068
    %v5328 = vunpack.c.h.b16 %v1068
    %v5329 = vunpack.c.l.b16 %v1069
    %v5330 = vunpack.c.h.b16 %v1069
    %v5331 = vunpack.c.l.b16 %v1070
    %v5332 = vunpack.c.h.b16 %v1070
    %v5333 = vunpack.c.l.b16 %v1071
    %v5334 = vunpack.c.h.b16 %v1071
    %v5335 = vunpack.c.l.b16 %v1072
    %v5336 = vunpack.c.h.b16 %v1072
    %v5337 = vunpack.c.l.b16 %v1073
    %v5338 = vunpack.c.h.b16 %v1073
    %v5339 = vunpack.c.l.b16 %v1074
    %v5340 = vunpack.c.h.b16 %v1074
    %v5341 = vunpack.c.l.b16 %v1075
    %v5342 = vunpack.c.h.b16 %v1075
    %v5343 = vunpack.c.l.b16 %v1076
    %v5344 = vunpack.c.h.b16 %v1076
    %v5345 = vunpack.c.l.b16 %v1077
    %v5346 = vunpack.c.h.b16 %v1077
    %v5347 = vunpack.c.l.b16 %v1078
    %v5348 = vunpack.c.h.b16 %v1078
    %v5349 = vunpack.c.l.b16 %v1079
    %v5350 = vunpack.c.h.b16 %v1079
    %v5351 = vunpack.c.l.b16 %v1080
    %v5352 = vunpack.c.h.b16 %v1080
    %v5353 = vunpack.c.l.b16 %v1081
    %v5354 = vunpack.c.h.b16 %v1081
    %v5355 = vunpack.c.l.b16 %v1082
    %v5356 = vunpack.c.h.b16 %v1082
    %v5357 = vunpack.c.l.b16 %v1083
    %v5358 = vunpack.c.h.b16 %v1083
    %v5359 = vunpack.c.l.b16 %v1084
    %v5360 = vunpack.c.h.b16 %v1084
    %v5361 = vunpack.c.l.b16 %v1085
    %v5362 = vunpack.c.h.b16 %v1085
    %v5363 = vunpack.c.l.b16 %v1086
    %v5364 = vunpack.c.h.b16 %v1086
    %v5365 = vunpack.c.l.b16 %v1087
    %v5366 = vunpack.c.h.b16 %v1087
    %v5367 = vunpack.c.l.b16 %v1088
    %v5368 = vunpack.c.h.b16 %v1088
    %v5369 = vunpack.c.l.b16 %v1089
    %v5370 = vunpack.c.h.b16 %v1089
    %v5371 = vunpack.c.l.b16 %v1090
    %v5372 = vunpack.c.h.b16 %v1090
    %v5373 = vunpack.c.l.b16 %v1091
    %v5374 = vunpack.c.h.b16 %v1091
    %v5375 = vunpack.c.l.b16 %v1092
    %v5376 = vunpack.c.h.b16 %v1092
    %v5377 = vunpack.c.l.b16 %v1093
    %v5378 = vunpack.c.h.b16 %v1093
    %v5379 = vunpack.c.l.b16 %v1094
    %v5380 = vunpack.c.h.b16 %v1094
    %v5381 = vunpack.c.l.b16 %v1095
    %v5382 = vunpack.c.h.b16 %v1095
    %v5383 = vunpack.c.l.b16 %v1096
    %v5384 = vunpack.c.h.b16 %v1096
    %v5385 = vunpack.c.l.b16 %v1097
    %v5386 = vunpack.c.h.b16 %v1097
    %v5387 = vunpack.c.l.b16 %v1098
    %v5388 = vunpack.c.h.b16 %v1098
    %v5389 = vunpack.c.l.b16 %v1099
    %v5390 = vunpack.c.h.b16 %v1099
    %v5391 = vunpack.c.l.b16 %v1100
    %v5392 = vunpack.c.h.b16 %v1100
    %v5393 = vunpack.c.l.b16 %v1101
    %v5394 = vunpack.c.h.b16 %v1101
    %v5395 = vunpack.c.l.b16 %v1102
    %v5396 = vunpack.c.h.b16 %v1102
    %v5397 = vunpack.c.l.b16 %v1103
    %v5398 = vunpack.c.h.b16 %v1103
    %v5399 = vunpack.c.l.b16 %v1104
    %v5400 = vunpack.c.h.b16 %v1104
    %v5401 = vunpack.c.l.b16 %v1105
    %v5402 = vunpack.c.h.b16 %v1105
    %v5403 = vunpack.c.l.b16 %v1106
    %v5404 = vunpack.c.h.b16 %v1106
    %v5405 = vunpack.c.l.b16 %v1107
    %v5406 = vunpack.c.h.b16 %v1107
    %v5407 = vunpack.c.l.b16 %v1108
    %v5408 = vunpack.c.h.b16 %v1108
    %v5409 = vunpack.c.l.b16 %v1109
    %v5410 = vunpack.c.h.b16 %v1109
    %v5411 = vunpack.c.l.b16 %v1110
    %v5412 = vunpack.c.h.b16 %v1110
    %v5413 = vunpack.c.l.b16 %v1111
    %v5414 = vunpack.c.h.b16 %v1111
    %v5415 = vunpack.c.l.b16 %v1112
    %v5416 = vunpack.c.h.b16 %v1112
    %v5417 = vunpack.c.l.b16 %v1113
    %v5418 = vunpack.c.h.b16 %v1113
    %v5419 = vunpack.c.l.b16 %v1114
    %v5420 = vunpack.c.h.b16 %v1114
    %v5421 = vunpack.c.l.b16 %v1115
    %v5422 = vunpack.c.h.b16 %v1115
    %v5423 = vunpack.c.l.b16 %v1116
    %v5424 = vunpack.c.h.b16 %v1116
    %v5425 = vunpack.c.l.b16 %v1117
    %v5426 = vunpack.c.h.b16 %v1117
    %v5427 = vunpack.c.l.b16 %v1118
    %v5428 = vunpack.c.h.b16 %v1118
    %v5429 = vunpack.c.l.b16 %v1119
    %v5430 = vunpack.c.h.b16 %v1119
    %v5431 = vunpack.c.l.b16 %v1120
    %v5432 = vunpack.c.h.b16 %v1120
    %v5433 = vunpack.c.l.b16 %v1121
    %v5434 = vunpack.c.h.b16 %v1121
    %v5435 = vunpack.c.l.b16 %v1122
    %v5436 = vunpack.c.h.b16 %v1122
    %v5437 = vunpack.c.l.b16 %v1123
    %v5438 = vunpack.c.h.b16 %v1123
    %v5439 = vunpack.c.l.b16 %v1124
    %v5440 = vunpack.c.h.b16 %v1124
    %v5441 = vunpack.c.l.b16 %v1125
    %v5442 = vunpack.c.h.b16 %v1125
    %v5443 = vunpack.c.l.b16 %v1126
    %v5444 = vunpack.c.h.b16 %v1126
    %v5445 = vunpack.c.l.b16 %v1127
    %v5446 = vunpack.c.h.b16 %v1127
    %v5447 = vunpack.c.l.b16 %v1128
    %v5448 = vunpack.c.h.b16 %v1128
    %v5449 = vunpack.c.l.b16 %v1129
    %v5450 = vunpack.c.h.b16 %v1129
    %v5451 = vunpack.c.l.b16 %v1130
    %v5452 = vunpack.c.h.b16 %v1130
    %v5453 = vunpack.c.l.b16 %v1131
    %v5454 = vunpack.c.h.b16 %v1131
    %v5455 = vunpack.c.l.b16 %v1132
    %v5456 = vunpack.c.h.b16 %v1132
    %v5457 = vunpack.c.l.b16 %v1133
    %v5458 = vunpack.c.h.b16 %v1133
    %v5459 = vunpack.c.l.b16 %v1134
    %v5460 = vunpack.c.h.b16 %v1134
    %v5461 = vunpack.c.l.b16 %v1135
    %v5462 = vunpack.c.h.b16 %v1135
    %v5463 = vunpack.c.l.b16 %v1136
    %v5464 = vunpack.c.h.b16 %v1136
    %v5465 = vunpack.c.l.b16 %v1137
    %v5466 = vunpack.c.h.b16 %v1137
    %v5467 = vunpack.c.l.b16 %v1138
    %v5468 = vunpack.c.h.b16 %v1138
    %v5469 = vunpack.c.l.b16 %v1139
    %v5470 = vunpack.c.h.b16 %v1139
    %v5471 = vunpack.c.l.b16 %v1140
    %v5472 = vunpack.c.h.b16 %v1140
    %v5473 = vunpack.c.l.b16 %v1141
    %v5474 = vunpack.c.h.b16 %v1141
    %v5475 = vunpack.c.l.b16 %v1142
    %v5476 = vunpack.c.h.b16 %v1142
    %v5477 = vunpack.c.l.b16 %v1143
    %v5478 = vunpack.c.h.b16 %v1143
    %v5479 = vunpack.c.l.b16 %v1144
    %v5480 = vunpack.c.h.b16 %v1144
    %v5481 = vunpack.c.l.b16 %v1145
    %v5482 = vunpack.c.h.b16 %v1145
    %v5483 = vunpack.c.l.b16 %v1146
    %v5484 = vunpack.c.h.b16 %v1146
    %v5485 = vunpack.c.l.b16 %v1147
    %v5486 = vunpack.c.h.b16 %v1147
    %v5487 = vunpack.c.l.b16 %v1148
    %v5488 = vunpack.c.h.b16 %v1148
    %v5489 = vunpack.c.l.b16 %v1149
    %v5490 = vunpack.c.h.b16 %v1149
    %v5491 = vunpack.c.l.b16 %v1150
    %v5492 = vunpack.c.h.b16 %v1150
    %v5493 = vunpack.c.l.b16 %v1151
    %v5494 = vunpack.c.h.b16 %v1151
    %v5495 = vunpack.c.l.b16 %v1152
    %v5496 = vunpack.c.h.b16 %v1152
    %v5497 = vunpack.c.l.b16 %v1153
    %v5498 = vunpack.c.h.b16 %v1153
    %v5499 = vunpack.c.l.b16 %v1154
    %v5500 = vunpack.c.h.b16 %v1154
    %v5501 = vunpack.c.l.b16 %v1155
    %v5502 = vunpack.c.h.b16 %v1155
    %v5503 = vunpack.c.l.b16 %v1156
    %v5504 = vunpack.c.h.b16 %v1156
    %v5505 = vunpack.c.l.b16 %v1157
    %v5506 = vunpack.c.h.b16 %v1157
    %v5507 = vunpack.c.l.b16 %v1158
    %v5508 = vunpack.c.h.b16 %v1158
    %v5509 = vunpack.c.l.b16 %v1159
    %v5510 = vunpack.c.h.b16 %v1159
    %v5511 = vunpack.c.l.b16 %v1160
    %v5512 = vunpack.c.h.b16 %v1160
    %v5513 = vunpack.c.l.b16 %v1161
    %v5514 = vunpack.c.h.b16 %v1161
    %v5515 = vunpack.c.l.b16 %v1162
    %v5516 = vunpack.c.h.b16 %v1162
    %v5517 = vunpack.c.l.b16 %v1163
    %v5518 = vunpack.c.h.b16 %v1163
    %v5519 = vunpack.c.l.b16 %v1164
    %v5520 = vunpack.c.h.b16 %v1164
    %v5521 = vunpack.c.l.b16 %v1165
    %v5522 = vunpack.c.h.b16 %v1165
    %v5523 = vunpack.c.l.b16 %v1166
    %v5524 = vunpack.c.h.b16 %v1166
    %v5525 = vunpack.c.l.b16 %v1167
    %v5526 = vunpack.c.h.b16 %v1167
    %v5527 = vunpack.c.l.b16 %v1168
    %v5528 = vunpack.c.h.b16 %v1168
    %v5529 = vunpack.c.l.b16 %v1169
    %v5530 = vunpack.c.h.b16 %v1169
    %v5531 = vunpack.c.l.b16 %v1170
    %v5532 = vunpack.c.h.b16 %v1170
    %v5533 = vunpack.c.l.b16 %v1171
    %v5534 = vunpack.c.h.b16 %v1171
    %v5535 = vunpack.c.l.b16 %v1172
    %v5536 = vunpack.c.h.b16 %v1172
    %v5537 = vunpack.c.l.b16 %v1173
    %v5538 = vunpack.c.h.b16 %v1173
    %v5539 = vunpack.c.l.b16 %v1174
    %v5540 = vunpack.c.h.b16 %v1174
    %v5541 = vunpack.c.l.b16 %v1175
    %v5542 = vunpack.c.h.b16 %v1175
    %v5543 = vunpack.c.l.b16 %v1176
    %v5544 = vunpack.c.h.b16 %v1176
    %v5545 = vunpack.c.l.b16 %v1177
    %v5546 = vunpack.c.h.b16 %v1177
    %v5547 = vunpack.c.l.b16 %v1178
    %v5548 = vunpack.c.h.b16 %v1178
    %v5549 = vunpack.c.l.b16 %v1179
    %v5550 = vunpack.c.h.b16 %v1179
    %v5551 = vunpack.c.l.b16 %v1180
    %v5552 = vunpack.c.h.b16 %v1180
    %v5553 = vunpack.c.l.b16 %v1181
    %v5554 = vunpack.c.h.b16 %v1181
    %v5555 = vunpack.c.l.b16 %v1182
    %v5556 = vunpack.c.h.b16 %v1182
    %v5557 = vunpack.c.l.b16 %v1183
    %v5558 = vunpack.c.h.b16 %v1183
    %v5559 = vunpack.c.l.b16 %v1184
    %v5560 = vunpack.c.h.b16 %v1184
    %v5561 = vunpack.c.l.b16 %v1185
    %v5562 = vunpack.c.h.b16 %v1185
    %v5563 = vunpack.c.l.b16 %v1186
    %v5564 = vunpack.c.h.b16 %v1186
    %v5565 = vunpack.c.l.b16 %v1187
    %v5566 = vunpack.c.h.b16 %v1187
    %v5567 = vunpack.c.l.b16 %v1188
    %v5568 = vunpack.c.h.b16 %v1188
    %v5569 = vunpack.c.l.b16 %v1189
    %v5570 = vunpack.c.h.b16 %v1189
    %v5571 = vunpack.c.l.b16 %v1190
    %v5572 = vunpack.c.h.b16 %v1190
    %v5573 = vunpack.c.l.b16 %v1191
    %v5574 = vunpack.c.h.b16 %v1191
    %v5575 = vunpack.c.l.b16 %v1192
    %v5576 = vunpack.c.h.b16 %v1192
    %v5577 = vunpack.c.l.b16 %v1193
    %v5578 = vunpack.c.h.b16 %v1193
    %v5579 = vunpack.c.l.b16 %v1194
    %v5580 = vunpack.c.h.b16 %v1194
    %v5581 = vunpack.c.l.b16 %v1195
    %v5582 = vunpack.c.h.b16 %v1195
    %v5583 = vunpack.c.l.b16 %v1196
    %v5584 = vunpack.c.h.b16 %v1196
    %v5585 = vunpack.c.l.b16 %v1197
    %v5586 = vunpack.c.h.b16 %v1197
    %v5587 = vunpack.c.l.b16 %v1198
    %v5588 = vunpack.c.h.b16 %v1198
    %v5589 = vunpack.c.l.b16 %v1199
    %v5590 = vunpack.c.h.b16 %v1199
    %v5591 = vunpack.c.l.b16 %v1200
    %v5592 = vunpack.c.h.b16 %v1200
    %v5593 = vunpack.c.l.b16 %v1201
    %v5594 = vunpack.c.h.b16 %v1201
    %v5595 = vunpack.c.l.b16 %v1202
    %v5596 = vunpack.c.h.b16 %v1202
    %v5597 = vunpack.c.l.b16 %v1203
    %v5598 = vunpack.c.h.b16 %v1203
    %v5599 = vunpack.c.l.b16 %v1204
    %v5600 = vunpack.c.h.b16 %v1204
    %v5601 = vunpack.c.l.b16 %v1205
    %v5602 = vunpack.c.h.b16 %v1205
    %v5603 = vunpack.c.l.b16 %v1206
    %v5604 = vunpack.c.h.b16 %v1206
    %v5605 = vunpack.c.l.b16 %v1207
    %v5606 = vunpack.c.h.b16 %v1207
    %v5607 = vunpack.c.l.b16 %v1208
    %v5608 = vunpack.c.h.b16 %v1208
    %v5609 = vunpack.c.l.b16 %v1209
    %v5610 = vunpack.c.h.b16 %v1209
    %v5611 = vunpack.c.l.b16 %v1210
    %v5612 = vunpack.c.h.b16 %v1210
    %v5613 = vunpack.c.l.b16 %v1211
    %v5614 = vunpack.c.h.b16 %v1211
    %v5615 = vunpack.c.l.b16 %v1212
    %v5616 = vunpack.c.h.b16 %v1212
    %v5617 = vunpack.c.l.b16 %v1213
    %v5618 = vunpack.c.h.b16 %v1213
    %v5619 = vunpack.c.l.b16 %v1214
    %v5620 = vunpack.c.h.b16 %v1214
    %v5621 = vunpack.c.l.b16 %v1215
    %v5622 = vunpack.c.h.b16 %v1215
    %v5623 = vunpack.c.l.b16 %v1216
    %v5624 = vunpack.c.h.b16 %v1216
    %v5625 = vunpack.c.l.b16 %v1217
    %v5626 = vunpack.c.h.b16 %v1217
    %v5627 = vunpack.c.l.b16 %v1218
    %v5628 = vunpack.c.h.b16 %v1218
    %v5629 = vunpack.c.l.b16 %v1219
    %v5630 = vunpack.c.h.b16 %v1219
    %v5631 = vunpack.c.l.b16 %v1220
    %v5632 = vunpack.c.h.b16 %v1220
    %v5633 = vpack.c.b16 %v4035, %v4033
    %v5634 = vpack.c.b16 %v4036, %v4034
    %v5635 = vpack.c.b16 %v4039, %v4037
    %v5636 = vpack.c.b16 %v4040, %v4038
    %v5637 = vpack.c.b16 %v4043, %v4041
    %v5638 = vpack.c.b16 %v4044, %v4042
    %v5639 = vpack.c.b16 %v4047, %v4045
    %v5640 = vpack.c.b16 %v4048, %v4046
    %v5641 = vpack.c.b16 %v4051, %v4049
    %v5642 = vpack.c.b16 %v4052, %v4050
    %v5643 = vpack.c.b16 %v4055, %v4053
    %v5644 = vpack.c.b16 %v4056, %v4054
    %v5645 = vpack.c.b16 %v4059, %v4057
    %v5646 = vpack.c.b16 %v4060, %v4058
    %v5647 = vpack.c.b16 %v4063, %v4061
    %v5648 = vpack.c.b16 %v4064, %v4062
    %v5649 = vpack.c.b16 %v4067, %v4065
    %v5650 = vpack.c.b16 %v4068, %v4066
    %v5651 = vpack.c.b16 %v4071, %v4069
    %v5652 = vpack.c.b16 %v4072, %v4070
    %v5653 = vpack.c.b16 %v4075, %v4073
    %v5654 = vpack.c.b16 %v4076, %v4074
    %v5655 = vpack.c.b16 %v4079, %v4077
    %v5656 = vpack.c.b16 %v4080, %v4078
    %v5657 = vpack.c.b16 %v4083, %v4081
    %v5658 = vpack.c.b16 %v4084, %v4082
    %v5659 = vpack.c.b16 %v4087, %v4085
    %v5660 = vpack.c.b16 %v4088, %v4086
    %v5661 = vpack.c.b16 %v4091, %v4089
    %v5662 = vpack.c.b16 %v4092, %v4090
    %v5663 = vpack.c.b16 %v4095, %v4093
    %v5664 = vpack.c.b16 %v4096, %v4094
    %v5665 = vpack.c.b16 %v4099, %v4097
    %v5666 = vpack.c.b16 %v4100, %v4098
    %v5667 = vpack.c.b16 %v4103, %v4101
    %v5668 = vpack.c.b16 %v4104, %v4102
    %v5669 = vpack.c.b16 %v4107, %v4105
    %v5670 = vpack.c.b16 %v4108, %v4106
    %v5671 = vpack.c.b16 %v4111, %v4109
    %v5672 = vpack.c.b16 %v4112, %v4110
    %v5673 = vpack.c.b16 %v4115, %v4113
    %v5674 = vpack.c.b16 %v4116, %v4114
    %v5675 = vpack.c.b16 %v4119, %v4117
    %v5676 = vpack.c.b16 %v4120, %v4118
    %v5677 = vpack.c.b16 %v4123, %v4121
    %v5678 = vpack.c.b16 %v4124, %v4122
    %v5679 = vpack.c.b16 %v4127, %v4125
    %v5680 = vpack.c.b16 %v4128, %v4126
    %v5681 = vpack.c.b16 %v4131, %v4129
    %v5682 = vpack.c.b16 %v4132, %v4130
    %v5683 = vpack.c.b16 %v4135, %v4133
    %v5684 = vpack.c.b16 %v4136, %v4134
    %v5685 = vpack.c.b16 %v4139, %v4137
    %v5686 = vpack.c.b16 %v4140, %v4138
    %v5687 = vpack.c.b16 %v4143, %v4141
    %v5688 = vpack.c.b16 %v4144, %v4142
    %v5689 = vpack.c.b16 %v4147, %v4145
    %v5690 = vpack.c.b16 %v4148, %v4146
    %v5691 = vpack.c.b16 %v4151, %v4149
    %v5692 = vpack.c.b16 %v4152, %v4150
    %v5693 = vpack.c.b16 %v4155, %v4153
    %v5694 = vpack.c.b16 %v4156, %v4154
    %v5695 = vpack.c.b16 %v4159, %v4157
    %v5696 = vpack.c.b16 %v4160, %v4158
    %v5697 = vpack.c.b16 %v4163, %v4161
    %v5698 = vpack.c.b16 %v4164, %v4162
    %v5699 = vpack.c.b16 %v4167, %v4165
    %v5700 = vpack.c.b16 %v4168, %v4166
    %v5701 = vpack.c.b16 %v4171, %v4169
    %v5702 = vpack.c.b16 %v4172, %v4170
    %v5703 = vpack.c.b16 %v4175, %v4173
    %v5704 = vpack.c.b16 %v4176, %v4174
    %v5705 = vpack.c.b16 %v4179, %v4177
    %v5706 = vpack.c.b16 %v4180, %v4178
    %v5707 = vpack.c.b16 %v4183, %v4181
    %v5708 = vpack.c.b16 %v4184, %v4182
    %v5709 = vpack.c.b16 %v4187, %v4185
    %v5710 = vpack.c.b16 %v4188, %v4186
    %v5711 = vpack.c.b16 %v4191, %v4189
    %v5712 = vpack.c.b16 %v4192, %v4190
    %v5713 = vpack.c.b16 %v4195, %v4193
    %v5714 = vpack.c.b16 %v4196, %v4194
    %v5715 = vpack.c.b16 %v4199, %v4197
    %v5716 = vpack.c.b16 %v4200, %v4198
    %v5717 = vpack.c.b16 %v4203, %v4201
    %v5718 = vpack.c.b16 %v4204, %v4202
    %v5719 = vpack.c.b16 %v4207, %v4205
    %v5720 = vpack.c.b16 %v4208, %v4206
    %v5721 = vpack.c.b16 %v4211, %v4209
    %v5722 = vpack.c.b16 %v4212, %v4210
    %v5723 = vpack.c.b16 %v4215, %v4213
    %v5724 = vpack.c.b16 %v4216, %v4214
    %v5725 = vpack.c.b16 %v4219, %v4217
    %v5726 = vpack.c.b16 %v4220, %v4218
    %v5727 = vpack.c.b16 %v4223, %v4221
    %v5728 = vpack.c.b16 %v4224, %v4222
    %v5729 = vpack.c.b16 %v4227, %v4225
    %v5730 = vpack.c.b16 %v4228, %v4226
    %v5731 = vpack.c.b16 %v4231, %v4229
    %v5732 = vpack.c.b16 %v4232, %v4230
    %v5733 = vpack.c.b16 %v4235, %v4233
    %v5734 = vpack.c.b16 %v4236, %v4234
    %v5735 = vpack.c.b16 %v4239, %v4237
    %v5736 = vpack.c.b16 %v4240, %v4238
    %v5737 = vpack.c.b16 %v4243, %v4241
    %v5738 = vpack.c.b16 %v4244, %v4242
    %v5739 = vpack.c.b16 %v4247, %v4245
    %v5740 = vpack.c.b16 %v4248, %v4246
    %v5741 = vpack.c.b16 %v4251, %v4249
    %v5742 = vpack.c.b16 %v4252, %v4250
    %v5743 = vpack.c.b16 %v4255, %v4253
    %v5744 = vpack.c.b16 %v4256, %v4254
    %v5745 = vpack.c.b16 %v4259, %v4257
    %v5746 = vpack.c.b16 %v4260, %v4258
    %v5747 = vpack.c.b16 %v4263, %v4261
    %v5748 = vpack.c.b16 %v4264, %v4262
    %v5749 = vpack.c.b16 %v4267, %v4265
    %v5750 = vpack.c.b16 %v4268, %v4266
    %v5751 = vpack.c.b16 %v4271, %v4269
    %v5752 = vpack.c.b16 %v4272, %v4270
    %v5753 = vpack.c.b16 %v4275, %v4273
    %v5754 = vpack.c.b16 %v4276, %v4274
    %v5755 = vpack.c.b16 %v4279, %v4277
    %v5756 = vpack.c.b16 %v4280, %v4278
    %v5757 = vpack.c.b16 %v4283, %v4281
    %v5758 = vpack.c.b16 %v4284, %v4282
    %v5759 = vpack.c.b16 %v4287, %v4285
    %v5760 = vpack.c.b16 %v4288, %v4286
    %v5761 = vpack.c.b16 %v4291, %v4289
    %v5762 = vpack.c.b16 %v4292, %v4290
    %v5763 = vpack.c.b16 %v4295, %v4293
    %v5764 = vpack.c.b16 %v4296, %v4294
    %v5765 = vpack.c.b16 %v4299, %v4297
    %v5766 = vpack.c.b16 %v4300, %v4298
    %v5767 = vpack.c.b16 %v4303, %v4301
    %v5768 = vpack.c.b16 %v4304, %v4302
    %v5769 = vpack.c.b16 %v4307, %v4305
    %v5770 = vpack.c.b16 %v4308, %v4306
    %v5771 = vpack.c.b16 %v4311, %v4309
    %v5772 = vpack.c.b16 %v4312, %v4310
    %v5773 = vpack.c.b16 %v4315, %v4313
    %v5774 = vpack.c.b16 %v4316, %v4314
    %v5775 = vpack.c.b16 %v4319, %v4317
    %v5776 = vpack.c.b16 %v4320, %v4318
    %v5777 = vpack.c.b16 %v4323, %v4321
    %v5778 = vpack.c.b16 %v4324, %v4322
    %v5779 = vpack.c.b16 %v4327, %v4325
    %v5780 = vpack.c.b16 %v4328, %v4326
    %v5781 = vpack.c.b16 %v4331, %v4329
    %v5782 = vpack.c.b16 %v4332, %v4330
    %v5783 = vpack.c.b16 %v4335, %v4333
    %v5784 = vpack.c.b16 %v4336, %v4334
    %v5785 = vpack.c.b16 %v4339, %v4337
    %v5786 = vpack.c.b16 %v4340, %v4338
    %v5787 = vpack.c.b16 %v4343, %v4341
    %v5788 = vpack.c.b16 %v4344, %v4342
    %v5789 = vpack.c.b16 %v4347, %v4345
    %v5790 = vpack.c.b16 %v4348, %v4346
    %v5791 = vpack.c.b16 %v4351, %v4349
    %v5792 = vpack.c.b16 %v4352, %v4350
    %v5793 = vpack.c.b16 %v4355, %v4353
    %v5794 = vpack.c.b16 %v4356, %v4354
    %v5795 = vpack.c.b16 %v4359, %v4357
    %v5796 = vpack.c.b16 %v4360, %v4358
    %v5797 = vpack.c.b16 %v4363, %v4361
    %v5798 = vpack.c.b16 %v4364, %v4362
    %v5799 = vpack.c.b16 %v4367, %v4365
    %v5800 = vpack.c.b16 %v4368, %v4366
    %v5801 = vpack.c.b16 %v4371, %v4369
    %v5802 = vpack.c.b16 %v4372, %v4370
    %v5803 = vpack.c.b16 %v4375, %v4373
    %v5804 = vpack.c.b16 %v4376, %v4374
    %v5805 = vpack.c.b16 %v4379, %v4377
    %v5806 = vpack.c.b16 %v4380, %v4378
    %v5807 = vpack.c.b16 %v4383, %v4381
    %v5808 = vpack.c.b16 %v4384, %v4382
    %v5809 = vpack.c.b16 %v4387, %v4385
    %v5810 = vpack.c.b16 %v4388, %v4386
    %v5811 = vpack.c.b16 %v4391, %v4389
    %v5812 = vpack.c.b16 %v4392, %v4390
    %v5813 = vpack.c.b16 %v4395, %v4393
    %v5814 = vpack.c.b16 %v4396, %v4394
    %v5815 = vpack.c.b16 %v4399, %v4397
    %v5816 = vpack.c.b16 %v4400, %v4398
    %v5817 = vpack.c.b16 %v4403, %v4401
    %v5818 = vpack.c.b16 %v4404, %v4402
    %v5819 = vpack.c.b16 %v4407, %v4405
    %v5820 = vpack.c.b16 %v4408, %v4406
    %v5821 = vpack.c.b16 %v4411, %v4409
    %v5822 = vpack.c.b16 %v4412, %v4410
    %v5823 = vpack.c.b16 %v4415, %v4413
    %v5824 = vpack.c.b16 %v4416, %v4414
    %v5825 = vpack.c.b16 %v4419, %v4417
    %v5826 = vpack.c.b16 %v4420, %v4418
    %v5827 = vpack.c.b16 %v4423, %v4421
    %v5828 = vpack.c.b16 %v4424, %v4422
    %v5829 = vpack.c.b16 %v4427, %v4425
    %v5830 = vpack.c.b16 %v4428, %v4426
    %v5831 = vpack.c.b16 %v4431, %v4429
    %v5832 = vpack.c.b16 %v4432, %v4430
    %v5833 = vpack.c.b16 %v4435, %v4433
    %v5834 = vpack.c.b16 %v4436, %v4434
    %v5835 = vpack.c.b16 %v4439, %v4437
    %v5836 = vpack.c.b16 %v4440, %v4438
    %v5837 = vpack.c.b16 %v4443, %v4441
    %v5838 = vpack.c.b16 %v4444, %v4442
    %v5839 = vpack.c.b16 %v4447, %v4445
    %v5840 = vpack.c.b16 %v4448, %v4446
    %v5841 = vpack.c.b16 %v4451, %v4449
    %v5842 = vpack.c.b16 %v4452, %v4450
    %v5843 = vpack.c.b16 %v4455, %v4453
    %v5844 = vpack.c.b16 %v4456, %v4454
    %v5845 = vpack.c.b16 %v4459, %v4457
    %v5846 = vpack.c.b16 %v4460, %v4458
    %v5847 = vpack.c.b16 %v4463, %v4461
    %v5848 = vpack.c.b16 %v4464, %v4462
    %v5849 = vpack.c.b16 %v4467, %v4465
    %v5850 = vpack.c.b16 %v4468, %v4466
    %v5851 = vpack.c.b16 %v4471, %v4469
    %v5852 = vpack.c.b16 %v4472, %v4470
    %v5853 = vpack.c.b16 %v4475, %v4473
    %v5854 = vpack.c.b16 %v4476, %v4474
    %v5855 = vpack.c.b16 %v4479, %v4477
    %v5856 = vpack.c.b16 %v4480, %v4478
    %v5857 = vpack.c.b16 %v4483, %v4481
    %v5858 = vpack.c.b16 %v4484, %v4482
    %v5859 = vpack.c.b16 %v4487, %v4485
    %v5860 = vpack.c.b16 %v4488, %v4486
    %v5861 = vpack.c.b16 %v4491, %v4489
    %v5862 = vpack.c.b16 %v4492, %v4490
    %v5863 = vpack.c.b16 %v4495, %v4493
    %v5864 = vpack.c.b16 %v4496, %v4494
    %v5865 = vpack.c.b16 %v4499, %v4497
    %v5866 = vpack.c.b16 %v4500, %v4498
    %v5867 = vpack.c.b16 %v4503, %v4501
    %v5868 = vpack.c.b16 %v4504, %v4502
    %v5869 = vpack.c.b16 %v4507, %v4505
    %v5870 = vpack.c.b16 %v4508, %v4506
    %v5871 = vpack.c.b16 %v4511, %v4509
    %v5872 = vpack.c.b16 %v4512, %v4510
    %v5873 = vpack.c.b16 %v4515, %v4513
    %v5874 = vpack.c.b16 %v4516, %v4514
    %v5875 = vpack.c.b16 %v4519, %v4517
    %v5876 = vpack.c.b16 %v4520, %v4518
    %v5877 = vpack.c.b16 %v4523, %v4521
    %v5878 = vpack.c.b16 %v4524, %v4522
    %v5879 = vpack.c.b16 %v4527, %v4525
    %v5880 = vpack.c.b16 %v4528, %v4526
    %v5881 = vpack.c.b16 %v4531, %v4529
    %v5882 = vpack.c.b16 %v4532, %v4530
    %v5883 = vpack.c.b16 %v4535, %v4533
    %v5884 = vpack.c.b16 %v4536, %v4534
    %v5885 = vpack.c.b16 %v4539, %v4537
    %v5886 = vpack.c.b16 %v4540, %v4538
    %v5887 = vpack.c.b16 %v4543, %v4541
    %v5888 = vpack.c.b16 %v4544, %v4542
    %v5889 = vpack.c.b16 %v4547, %v4545
    %v5890 = vpack.c.b16 %v4548, %v4546
    %v5891 = vpack.c.b16 %v4551, %v4549
    %v5892 = vpack.c.b16 %v4552, %v4550
    %v5893 = vpack.c.b16 %v4555, %v4553
    %v5894 = vpack.c.b16 %v4556, %v4554
    %v5895 = vpack.c.b16 %v4559, %v4557
    %v5896 = vpack.c.b16 %v4560, %v4558
    %v5897 = vpack.c.b16 %v4563, %v4561
    %v5898 = vpack.c.b16 %v4564, %v4562
    %v5899 = vpack.c.b16 %v4567, %v4565
    %v5900 = vpack.c.b16 %v4568, %v4566
    %v5901 = vpack.c.b16 %v4571, %v4569
    %v5902 = vpack.c.b16 %v4572, %v4570
    %v5903 = vpack.c.b16 %v4575, %v4573
    %v5904 = vpack.c.b16 %v4576, %v4574
    %v5905 = vpack.c.b16 %v4579, %v4577
    %v5906 = vpack.c.b16 %v4580, %v4578
    %v5907 = vpack.c.b16 %v4583, %v4581
    %v5908 = vpack.c.b16 %v4584, %v4582
    %v5909 = vpack.c.b16 %v4587, %v4585
    %v5910 = vpack.c.b16 %v4588, %v4586
    %v5911 = vpack.c.b16 %v4591, %v4589
    %v5912 = vpack.c.b16 %v4592, %v4590
    %v5913 = vpack.c.b16 %v4595, %v4593
    %v5914 = vpack.c.b16 %v4596, %v4594
    %v5915 = vpack.c.b16 %v4599, %v4597
    %v5916 = vpack.c.b16 %v4600, %v4598
    %v5917 = vpack.c.b16 %v4603, %v4601
    %v5918 = vpack.c.b16 %v4604, %v4602
    %v5919 = vpack.c.b16 %v4607, %v4605
    %v5920 = vpack.c.b16 %v4608, %v4606
    %v5921 = vpack.c.b16 %v4611, %v4609
    %v5922 = vpack.c.b16 %v4612, %v4610
    %v5923 = vpack.c.b16 %v4615, %v4613
    %v5924 = vpack.c.b16 %v4616, %v4614
    %v5925 = vpack.c.b16 %v4619, %v4617
    %v5926 = vpack.c.b16 %v4620, %v4618
    %v5927 = vpack.c.b16 %v4623, %v4621
    %v5928 = vpack.c.b16 %v4624, %v4622
    %v5929 = vpack.c.b16 %v4627, %v4625
    %v5930 = vpack.c.b16 %v4628, %v4626
    %v5931 = vpack.c.b16 %v4631, %v4629
    %v5932 = vpack.c.b16 %v4632, %v4630
    %v5933 = vpack.c.b16 %v4635, %v4633
    %v5934 = vpack.c.b16 %v4636, %v4634
    %v5935 = vpack.c.b16 %v4639, %v4637
    %v5936 = vpack.c.b16 %v4640, %v4638
    %v5937 = vpack.c.b16 %v4643, %v4641
    %v5938 = vpack.c.b16 %v4644, %v4642
    %v5939 = vpack.c.b16 %v4647, %v4645
    %v5940 = vpack.c.b16 %v4648, %v4646
    %v5941 = vpack.c.b16 %v4651, %v4649
    %v5942 = vpack.c.b16 %v4652, %v4650
    %v5943 = vpack.c.b16 %v4655, %v4653
    %v5944 = vpack.c.b16 %v4656, %v4654
    %v5945 = vpack.c.b16 %v4659, %v4657
    %v5946 = vpack.c.b16 %v4660, %v4658
    %v5947 = vpack.c.b16 %v4663, %v4661
    %v5948 = vpack.c.b16 %v4664, %v4662
    %v5949 = vpack.c.b16 %v4667, %v4665
    %v5950 = vpack.c.b16 %v4668, %v4666
    %v5951 = vpack.c.b16 %v4671, %v4669
    %v5952 = vpack.c.b16 %v4672, %v4670
    %v5953 = vpack.c.b16 %v4675, %v4673
    %v5954 = vpack.c.b16 %v4676, %v4674
    %v5955 = vpack.c.b16 %v4679, %v4677
    %v5956 = vpack.c.b16 %v4680, %v4678
    %v5957 = vpack.c.b16 %v4683, %v4681
    %v5958 = vpack.c.b16 %v4684, %v4682
    %v5959 = vpack.c.b16 %v4687, %v4685
    %v5960 = vpack.c.b16 %v4688, %v4686
    %v5961 = vpack.c.b16 %v4691, %v4689
    %v5962 = vpack.c.b16 %v4692, %v4690
    %v5963 = vpack.c.b16 %v4695, %v4693
    %v5964 = vpack.c.b16 %v4696, %v4694
    %v5965 = vpack.c.b16 %v4699, %v4697
    %v5966 = vpack.c.b16 %v4700, %v4698
    %v5967 = vpack.c.b16 %v4703, %v4701
    %v5968 = vpack.c.b16 %v4704, %v4702
    %v5969 = vpack.c.b16 %v4707, %v4705
    %v5970 = vpack.c.b16 %v4708, %v4706
    %v5971 = vpack.c.b16 %v4711, %v4709
    %v5972 = vpack.c.b16 %v4712, %v4710
    %v5973 = vpack.c.b16 %v4715, %v4713
    %v5974 = vpack.c.b16 %v4716, %v4714
    %v5975 = vpack.c.b16 %v4719, %v4717
    %v5976 = vpack.c.b16 %v4720, %v4718
    %v5977 = vpack.c.b16 %v4723, %v4721
    %v5978 = vpack.c.b16 %v4724, %v4722
    %v5979 = vpack.c.b16 %v4727, %v4725
    %v5980 = vpack.c.b16 %v4728, %v4726
    %v5981 = vpack.c.b16 %v4731, %v4729
    %v5982 = vpack.c.b16 %v4732, %v4730
    %v5983 = vpack.c.b16 %v4735, %v4733
    %v5984 = vpack.c.b16 %v4736, %v4734
    %v5985 = vpack.c.b16 %v4739, %v4737
    %v5986 = vpack.c.b16 %v4740, %v4738
    %v5987 = vpack.c.b16 %v4743, %v4741
    %v5988 = vpack.c.b16 %v4744, %v4742
    %v5989 = vpack.c.b16 %v4747, %v4745
    %v5990 = vpack.c.b16 %v4748, %v4746
    %v5991 = vpack.c.b16 %v4751, %v4749
    %v5992 = vpack.c.b16 %v4752, %v4750
    %v5993 = vpack.c.b16 %v4755, %v4753
    %v5994 = vpack.c.b16 %v4756, %v4754
    %v5995 = vpack.c.b16 %v4759, %v4757
    %v5996 = vpack.c.b16 %v4760, %v4758
    %v5997 = vpack.c.b16 %v4763, %v4761
    %v5998 = vpack.c.b16 %v4764, %v4762
    %v5999 = vpack.c.b16 %v4767, %v4765
    %v6000 = vpack.c.b16 %v4768, %v4766
    %v6001 = vpack.c.b16 %v4771, %v4769
    %v6002 = vpack.c.b16 %v4772, %v4770
    %v6003 = vpack.c.b16 %v4775, %v4773
    %v6004 = vpack.c.b16 %v4776, %v4774
    %v6005 = vpack.c.b16 %v4779, %v4777
    %v6006 = vpack.c.b16 %v4780, %v4778
    %v6007 = vpack.c.b16 %v4783, %v4781
    %v6008 = vpack.c.b16 %v4784, %v4782
    %v6009 = vpack.c.b16 %v4787, %v4785
    %v6010 = vpack.c.b16 %v4788, %v4786
    %v6011 = vpack.c.b16 %v4791, %v4789
    %v6012 = vpack.c.b16 %v4792, %v4790
    %v6013 = vpack.c.b16 %v4795, %v4793
    %v6014 = vpack.c.b16 %v4796, %v4794
    %v6015 = vpack.c.b16 %v4799, %v4797
    %v6016 = vpack.c.b16 %v4800, %v4798
    %v6017 = vpack.c.b16 %v4803, %v4801
    %v6018 = vpack.c.b16 %v4804, %v4802
    %v6019 = vpack.c.b16 %v4807, %v4805
    %v6020 = vpack.c.b16 %v4808, %v4806
    %v6021 = vpack.c.b16 %v4811, %v4809
    %v6022 = vpack.c.b16 %v4812, %v4810
    %v6023 = vpack.c.b16 %v4815, %v4813
    %v6024 = vpack.c.b16 %v4816, %v4814
    %v6025 = vpack.c.b16 %v4819, %v4817
    %v6026 = vpack.c.b16 %v4820, %v4818
    %v6027 = vpack.c.b16 %v4823, %v4821
    %v6028 = vpack.c.b16 %v4824, %v4822
    %v6029 = vpack.c.b16 %v4827, %v4825
    %v6030 = vpack.c.b16 %v4828, %v4826
    %v6031 = vpack.c.b16 %v4831, %v4829
    %v6032 = vpack.c.b16 %v4832, %v4830
    %v6033 = vpack.c.b16 %v4835, %v4833
    %v6034 = vpack.c.b16 %v4836, %v4834
    %v6035 = vpack.c.b16 %v4839, %v4837
    %v6036 = vpack.c.b16 %v4840, %v4838
    %v6037 = vpack.c.b16 %v4843, %v4841
    %v6038 = vpack.c.b16 %v4844, %v4842
    %v6039 = vpack.c.b16 %v4847, %v4845
    %v6040 = vpack.c.b16 %v4848, %v4846
    %v6041 = vpack.c.b16 %v4851, %v4849
    %v6042 = vpack.c.b16 %v4852, %v4850
    %v6043 = vpack.c.b16 %v4855, %v4853
    %v6044 = vpack.c.b16 %v4856, %v4854
    %v6045 = vpack.c.b16 %v4859, %v4857
    %v6046 = vpack.c.b16 %v4860, %v4858
    %v6047 = vpack.c.b16 %v4863, %v4861
    %v6048 = vpack.c.b16 %v4864, %v4862
    %v6049 = vpack.c.b16 %v4867, %v4865
    %v6050 = vpack.c.b16 %v4868, %v4866
    %v6051 = vpack.c.b16 %v4871, %v4869
    %v6052 = vpack.c.b16 %v4872, %v4870
    %v6053 = vpack.c.b16 %v4875, %v4873
    %v6054 = vpack.c.b16 %v4876, %v4874
    %v6055 = vpack.c.b16 %v4879, %v4877
    %v6056 = vpack.c.b16 %v4880, %v4878
    %v6057 = vpack.c.b16 %v4883, %v4881
    %v6058 = vpack.c.b16 %v4884, %v4882
    %v6059 = vpack.c.b16 %v4887, %v4885
    %v6060 = vpack.c.b16 %v4888, %v4886
    %v6061 = vpack.c.b16 %v4891, %v4889
    %v6062 = vpack.c.b16 %v4892, %v4890
    %v6063 = vpack.c.b16 %v4895, %v4893
    %v6064 = vpack.c.b16 %v4896, %v4894
    %v6065 = vpack.c.b16 %v4899, %v4897
    %v6066 = vpack.c.b16 %v4900, %v4898
    %v6067 = vpack.c.b16 %v4903, %v4901
    %v6068 = vpack.c.b16 %v4904, %v4902
    %v6069 = vpack.c.b16 %v4907, %v4905
    %v6070 = vpack.c.b16 %v4908, %v4906
    %v6071 = vpack.c.b16 %v4911, %v4909
    %v6072 = vpack.c.b16 %v4912, %v4910
    %v6073 = vpack.c.b16 %v4915, %v4913
    %v6074 = vpack.c.b16 %v4916, %v4914
    %v6075 = vpack.c.b16 %v4919, %v4917
    %v6076 = vpack.c.b16 %v4920, %v4918
    %v6077 = vpack.c.b16 %v4923, %v4921
    %v6078 = vpack.c.b16 %v4924, %v4922
    %v6079 = vpack.c.b16 %v4927, %v4925
    %v6080 = vpack.c.b16 %v4928, %v4926
    %v6081 = vpack.c.b16 %v4931, %v4929
    %v6082 = vpack.c.b16 %v4932, %v4930
    %v6083 = vpack.c.b16 %v4935, %v4933
    %v6084 = vpack.c.b16 %v4936, %v4934
    %v6085 = vpack.c.b16 %v4939, %v4937
    %v6086 = vpack.c.b16 %v4940, %v4938
    %v6087 = vpack.c.b16 %v4943, %v4941
    %v6088 = vpack.c.b16 %v4944, %v4942
    %v6089 = vpack.c.b16 %v4947, %v4945
    %v6090 = vpack.c.b16 %v4948, %v4946
    %v6091 = vpack.c.b16 %v4951, %v4949
    %v6092 = vpack.c.b16 %v4952, %v4950
    %v6093 = vpack.c.b16 %v4955, %v4953
    %v6094 = vpack.c.b16 %v4956, %v4954
    %v6095 = vpack.c.b16 %v4959, %v4957
    %v6096 = vpack.c.b16 %v4960, %v4958
    %v6097 = vpack.c.b16 %v4963, %v4961
    %v6098 = vpack.c.b16 %v4964, %v4962
    %v6099 = vpack.c.b16 %v4967, %v4965
    %v6100 = vpack.c.b16 %v4968, %v4966
    %v6101 = vpack.c.b16 %v4971, %v4969
    %v6102 = vpack.c.b16 %v4972, %v4970
    %v6103 = vpack.c.b16 %v4975, %v4973
    %v6104 = vpack.c.b16 %v4976, %v4974
    %v6105 = vpack.c.b16 %v4979, %v4977
    %v6106 = vpack.c.b16 %v4980, %v4978
    %v6107 = vpack.c.b16 %v4983, %v4981
    %v6108 = vpack.c.b16 %v4984, %v4982
    %v6109 = vpack.c.b16 %v4987, %v4985
    %v6110 = vpack.c.b16 %v4988, %v4986
    %v6111 = vpack.c.b16 %v4991, %v4989
    %v6112 = vpack.c.b16 %v4992, %v4990
    %v6113 = vpack.c.b16 %v4995, %v4993
    %v6114 = vpack.c.b16 %v4996, %v4994
    %v6115 = vpack.c.b16 %v4999, %v4997
    %v6116 = vpack.c.b16 %v5000, %v4998
    %v6117 = vpack.c.b16 %v5003, %v5001
    %v6118 = vpack.c.b16 %v5004, %v5002
    %v6119 = vpack.c.b16 %v5007, %v5005
    %v6120 = vpack.c.b16 %v5008, %v5006
    %v6121 = vpack.c.b16 %v5011, %v5009
    %v6122 = vpack.c.b16 %v5012, %v5010
    %v6123 = vpack.c.b16 %v5015, %v5013
    %v6124 = vpack.c.b16 %v5016, %v5014
    %v6125 = vpack.c.b16 %v5019, %v5017
    %v6126 = vpack.c.b16 %v5020, %v5018
    %v6127 = vpack.c.b16 %v5023, %v5021
    %v6128 = vpack.c.b16 %v5024, %v5022
    %v6129 = vpack.c.b16 %v5027, %v5025
    %v6130 = vpack.c.b16 %v5028, %v5026
    %v6131 = vpack.c.b16 %v5031, %v5029
    %v6132 = vpack.c.b16 %v5032, %v5030
    %v6133 = vpack.c.b16 %v5035, %v5033
    %v6134 = vpack.c.b16 %v5036, %v5034
    %v6135 = vpack.c.b16 %v5039, %v5037
    %v6136 = vpack.c.b16 %v5040, %v5038
    %v6137 = vpack.c.b16 %v5043, %v5041
    %v6138 = vpack.c.b16 %v5044, %v5042
    %v6139 = vpack.c.b16 %v5047, %v5045
    %v6140 = vpack.c.b16 %v5048, %v5046
    %v6141 = vpack.c.b16 %v5051, %v5049
    %v6142 = vpack.c.b16 %v5052, %v5050
    %v6143 = vpack.c.b16 %v5055, %v5053
    %v6144 = vpack.c.b16 %v5056, %v5054
    %v6145 = vpack.c.b16 %v5059, %v5057
    %v6146 = vpack.c.b16 %v5060, %v5058
    %v6147 = vpack.c.b16 %v5063, %v5061
    %v6148 = vpack.c.b16 %v5064, %v5062
    %v6149 = vpack.c.b16 %v5067, %v5065
    %v6150 = vpack.c.b16 %v5068, %v5066
    %v6151 = vpack.c.b16 %v5071, %v5069
    %v6152 = vpack.c.b16 %v5072, %v5070
    %v6153 = vpack.c.b16 %v5075, %v5073
    %v6154 = vpack.c.b16 %v5076, %v5074
    %v6155 = vpack.c.b16 %v5079, %v5077
    %v6156 = vpack.c.b16 %v5080, %v5078
    %v6157 = vpack.c.b16 %v5083, %v5081
    %v6158 = vpack.c.b16 %v5084, %v5082
    %v6159 = vpack.c.b16 %v5087, %v5085
    %v6160 = vpack.c.b16 %v5088, %v5086
    %v6161 = vpack.c.b16 %v5091, %v5089
    %v6162 = vpack.c.b16 %v5092, %v5090
    %v6163 = vpack.c.b16 %v5095, %v5093
    %v6164 = vpack.c.b16 %v5096, %v5094
    %v6165 = vpack.c.b16 %v5099, %v5097
    %v6166 = vpack.c.b16 %v5100, %v5098
    %v6167 = vpack.c.b16 %v5103, %v5101
    %v6168 = vpack.c.b16 %v5104, %v5102
    %v6169 = vpack.c.b16 %v5107, %v5105
    %v6170 = vpack.c.b16 %v5108, %v5106
    %v6171 = vpack.c.b16 %v5111, %v5109
    %v6172 = vpack.c.b16 %v5112, %v5110
    %v6173 = vpack.c.b16 %v5115, %v5113
    %v6174 = vpack.c.b16 %v5116, %v5114
    %v6175 = vpack.c.b16 %v5119, %v5117
    %v6176 = vpack.c.b16 %v5120, %v5118
    %v6177 = vpack.c.b16 %v5123, %v5121
    %v6178 = vpack.c.b16 %v5124, %v5122
    %v6179 = vpack.c.b16 %v5127, %v5125
    %v6180 = vpack.c.b16 %v5128, %v5126
    %v6181 = vpack.c.b16 %v5131, %v5129
    %v6182 = vpack.c.b16 %v5132, %v5130
    %v6183 = vpack.c.b16 %v5135, %v5133
    %v6184 = vpack.c.b16 %v5136, %v5134
    %v6185 = vpack.c.b16 %v5139, %v5137
    %v6186 = vpack.c.b16 %v5140, %v5138
    %v6187 = vpack.c.b16 %v5143, %v5141
    %v6188 = vpack.c.b16 %v5144, %v5142
    %v6189 = vpack.c.b16 %v5147, %v5145
    %v6190 = vpack.c.b16 %v5148, %v5146
    %v6191 = vpack.c.b16 %v5151, %v5149
    %v6192 = vpack.c.b16 %v5152, %v5150
    %v6193 = vpack.c.b16 %v5155, %v5153
    %v6194 = vpack.c.b16 %v5156, %v5154
    %v6195 = vpack.c.b16 %v5159, %v5157
    %v6196 = vpack.c.b16 %v5160, %v5158
    %v6197 = vpack.c.b16 %v5163, %v5161
    %v6198 = vpack.c.b16 %v5164, %v5162
    %v6199 = vpack.c.b16 %v5167, %v5165
    %v6200 = vpack.c.b16 %v5168, %v5166
    %v6201 = vpack.c.b16 %v5171, %v5169
    %v6202 = vpack.c.b16 %v5172, %v5170
    %v6203 = vpack.c.b16 %v5175, %v5173
    %v6204 = vpack.c.b16 %v5176, %v5174
    %v6205 = vpack.c.b16 %v5179, %v5177
    %v6206 = vpack.c.b16 %v5180, %v5178
    %v6207 = vpack.c.b16 %v5183, %v5181
    %v6208 = vpack.c.b16 %v5184, %v5182
    %v6209 = vpack.c.b16 %v5187, %v5185
    %v6210 = vpack.c.b16 %v5188, %v5186
    %v6211 = vpack.c.b16 %v5191, %v5189
    %v6212 = vpack.c.b16 %v5192, %v5190
    %v6213 = vpack.c.b16 %v5195, %v5193
    %v6214 = vpack.c.b16 %v5196, %v5194
    %v6215 = vpack.c.b16 %v5199, %v5197
    %v6216 = vpack.c.b16 %v5200, %v5198
    %v6217 = vpack.c.b16 %v5203, %v5201
    %v6218 = vpack.c.b16 %v5204, %v5202
    %v6219 = vpack.c.b16 %v5207, %v5205
    %v6220 = vpack.c.b16 %v5208, %v5206
    %v6221 = vpack.c.b16 %v5211, %v5209
    %v6222 = vpack.c.b16 %v5212, %v5210
    %v6223 = vpack.c.b16 %v5215, %v5213
    %v6224 = vpack.c.b16 %v5216, %v5214
    %v6225 = vpack.c.b16 %v5219, %v5217
    %v6226 = vpack.c.b16 %v5220, %v5218
    %v6227 = vpack.c.b16 %v5223, %v5221
    %v6228 = vpack.c.b16 %v5224, %v5222
    %v6229 = vpack.c.b16 %v5227, %v5225
    %v6230 = vpack.c.b16 %v5228, %v5226
    %v6231 = vpack.c.b16 %v5231, %v5229
    %v6232 = vpack.c.b16 %v5232, %v5230
    %v6233 = vpack.c.b16 %v5235, %v5233
    %v6234 = vpack.c.b16 %v5236, %v5234
    %v6235 = vpack.c.b16 %v5239, %v5237
    %v6236 = vpack.c.b16 %v5240, %v5238
    %v6237 = vpack.c.b16 %v5243, %v5241
    %v6238 = vpack.c.b16 %v5244, %v5242
    %v6239 = vpack.c.b16 %v5247, %v5245
    %v6240 = vpack.c.b16 %v5248, %v5246
    %v6241 = vpack.c.b16 %v5251, %v5249
    %v6242 = vpack.c.b16 %v5252, %v5250
    %v6243 = vpack.c.b16 %v5255, %v5253
    %v6244 = vpack.c.b16 %v5256, %v5254
    %v6245 = vpack.c.b16 %v5259, %v5257
    %v6246 = vpack.c.b16 %v5260, %v5258
    %v6247 = vpack.c.b16 %v5263, %v5261
    %v6248 = vpack.c.b16 %v5264, %v5262
    %v6249 = vpack.c.b16 %v5267, %v5265
    %v6250 = vpack.c.b16 %v5268, %v5266
    %v6251 = vpack.c.b16 %v5271, %v5269
    %v6252 = vpack.c.b16 %v5272, %v5270
    %v6253 = vpack.c.b16 %v5275, %v5273
    %v6254 = vpack.c.b16 %v5276, %v5274
    %v6255 = vpack.c.b16 %v5279, %v5277
    %v6256 = vpack.c.b16 %v5280, %v5278
    %v6257 = vpack.c.b16 %v5283, %v5281
    %v6258 = vpack.c.b16 %v5284, %v5282
    %v6259 = vpack.c.b16 %v5287, %v5285
    %v6260 = vpack.c.b16 %v5288, %v5286
    %v6261 = vpack.c.b16 %v5291, %v5289
    %v6262 = vpack.c.b16 %v5292, %v5290
    %v6263 = vpack.c.b16 %v5295, %v5293
    %v6264 = vpack.c.b16 %v5296, %v5294
    %v6265 = vpack.c.b16 %v5299, %v5297
    %v6266 = vpack.c.b16 %v5300, %v5298
    %v6267 = vpack.c.b16 %v5303, %v5301
    %v6268 = vpack.c.b16 %v5304, %v5302
    %v6269 = vpack.c.b16 %v5307, %v5305
    %v6270 = vpack.c.b16 %v5308, %v5306
    %v6271 = vpack.c.b16 %v5311, %v5309
    %v6272 = vpack.c.b16 %v5312, %v5310
    %v6273 = vpack.c.b16 %v5315, %v5313
    %v6274 = vpack.c.b16 %v5316, %v5314
    %v6275 = vpack.c.b16 %v5319, %v5317
    %v6276 = vpack.c.b16 %v5320, %v5318
    %v6277 = vpack.c.b16 %v5323, %v5321
    %v6278 = vpack.c.b16 %v5324, %v5322
    %v6279 = vpack.c.b16 %v5327, %v5325
    %v6280 = vpack.c.b16 %v5328, %v5326
    %v6281 = vpack.c.b16 %v5331, %v5329
    %v6282 = vpack.c.b16 %v5332, %v5330
    %v6283 = vpack.c.b16 %v5335, %v5333
    %v6284 = vpack.c.b16 %v5336, %v5334
    %v6285 = vpack.c.b16 %v5339, %v5337
    %v6286 = vpack.c.b16 %v5340, %v5338
    %v6287 = vpack.c.b16 %v5343, %v5341
    %v6288 = vpack.c.b16 %v5344, %v5342
    %v6289 = vpack.c.b16 %v5347, %v5345
    %v6290 = vpack.c.b16 %v5348, %v5346
    %v6291 = vpack.c.b16 %v5351, %v5349
    %v6292 = vpack.c.b16 %v5352, %v5350
    %v6293 = vpack.c.b16 %v5355, %v5353
    %v6294 = vpack.c.b16 %v5356, %v5354
    %v6295 = vpack.c.b16 %v5359, %v5357
    %v6296 = vpack.c.b16 %v5360, %v5358
    %v6297 = vpack.c.b16 %v5363, %v5361
    %v6298 = vpack.c.b16 %v5364, %v5362
    %v6299 = vpack.c.b16 %v5367, %v5365
    %v6300 = vpack.c.b16 %v5368, %v5366
    %v6301 = vpack.c.b16 %v5371, %v5369
    %v6302 = vpack.c.b16 %v5372, %v5370
    %v6303 = vpack.c.b16 %v5375, %v5373
    %v6304 = vpack.c.b16 %v5376, %v5374
    %v6305 = vpack.c.b16 %v5379, %v5377
    %v6306 = vpack.c.b16 %v5380, %v5378
    %v6307 = vpack.c.b16 %v5383, %v5381
    %v6308 = vpack.c.b16 %v5384, %v5382
    %v6309 = vpack.c.b16 %v5387, %v5385
    %v6310 = vpack.c.b16 %v5388, %v5386
    %v6311 = vpack.c.b16 %v5391, %v5389
    %v6312 = vpack.c.b16 %v5392, %v5390
    %v6313 = vpack.c.b16 %v5395, %v5393
    %v6314 = vpack.c.b16 %v5396, %v5394
    %v6315 = vpack.c.b16 %v5399, %v5397
    %v6316 = vpack.c.b16 %v5400, %v5398
    %v6317 = vpack.c.b16 %v5403, %v5401
    %v6318 = vpack.c.b16 %v5404, %v5402
    %v6319 = vpack.c.b16 %v5407, %v5405
    %v6320 = vpack.c.b16 %v5408, %v5406
    %v6321 = vpack.c.b16 %v5411, %v5409
    %v6322 = vpack.c.b16 %v5412, %v5410
    %v6323 = vpack.c.b16 %v5415, %v5413
    %v6324 = vpack.c.b16 %v5416, %v5414
    %v6325 = vpack.c.b16 %v5419, %v5417
    %v6326 = vpack.c.b16 %v5420, %v5418
    %v6327 = vpack.c.b16 %v5423, %v5421
    %v6328 = vpack.c.b16 %v5424, %v5422
    %v6329 = vpack.c.b16 %v5427, %v5425
    %v6330 = vpack.c.b16 %v5428, %v5426
    %v6331 = vpack.c.b16 %v5431, %v5429
    %v6332 = vpack.c.b16 %v5432, %v5430
    %v6333 = vpack.c.b16 %v5435, %v5433
    %v6334 = vpack.c.b16 %v5436, %v5434
    %v6335 = vpack.c.b16 %v5439, %v5437
    %v6336 = vpack.c.b16 %v5440, %v5438
    %v6337 = vpack.c.b16 %v5443, %v5441
    %v6338 = vpack.c.b16 %v5444, %v5442
    %v6339 = vpack.c.b16 %v5447, %v5445
    %v6340 = vpack.c.b16 %v5448, %v5446
    %v6341 = vpack.c.b16 %v5451, %v5449
    %v6342 = vpack.c.b16 %v5452, %v5450
    %v6343 = vpack.c.b16 %v5455, %v5453
    %v6344 = vpack.c.b16 %v5456, %v5454
    %v6345 = vpack.c.b16 %v5459, %v5457
    %v6346 = vpack.c.b16 %v5460, %v5458
    %v6347 = vpack.c.b16 %v5463, %v5461
    %v6348 = vpack.c.b16 %v5464, %v5462
    %v6349 = vpack.c.b16 %v5467, %v5465
    %v6350 = vpack.c.b16 %v5468, %v5466
    %v6351 = vpack.c.b16 %v5471, %v5469
    %v6352 = vpack.c.b16 %v5472, %v5470
    %v6353 = vpack.c.b16 %v5475, %v5473
    %v6354 = vpack.c.b16 %v5476, %v5474
    %v6355 = vpack.c.b16 %v5479, %v5477
    %v6356 = vpack.c.b16 %v5480, %v5478
    %v6357 = vpack.c.b16 %v5483, %v5481
    %v6358 = vpack.c.b16 %v5484, %v5482
    %v6359 = vpack.c.b16 %v5487, %v5485
    %v6360 = vpack.c.b16 %v5488, %v5486
    %v6361 = vpack.c.b16 %v5491, %v5489
    %v6362 = vpack.c.b16 %v5492, %v5490
    %v6363 = vpack.c.b16 %v5495, %v5493
    %v6364 = vpack.c.b16 %v5496, %v5494
    %v6365 = vpack.c.b16 %v5499, %v5497
    %v6366 = vpack.c.b16 %v5500, %v5498
    %v6367 = vpack.c.b16 %v5503, %v5501
    %v6368 = vpack.c.b16 %v5504, %v5502
    %v6369 = vpack.c.b16 %v5507, %v5505
    %v6370 = vpack.c.b16 %v5508, %v5506
    %v6371 = vpack.c.b16 %v5511, %v5509
    %v6372 = vpack.c.b16 %v5512, %v5510
    %v6373 = vpack.c.b16 %v5515, %v5513
    %v6374 = vpack.c.b16 %v5516, %v5514
    %v6375 = vpack.c.b16 %v5519, %v5517
    %v6376 = vpack.c.b16 %v5520, %v5518
    %v6377 = vpack.c.b16 %v5523, %v5521
    %v6378 = vpack.c.b16 %v5524, %v5522
    %v6379 = vpack.c.b16 %v5527, %v5525
    %v6380 = vpack.c.b16 %v5528, %v5526
    %v6381 = vpack.c.b16 %v5531, %v5529
    %v6382 = vpack.c.b16 %v5532, %v5530
    %v6383 = vpack.c.b16 %v5535, %v5533
    %v6384 = vpack.c.b16 %v5536, %v5534
    %v6385 = vpack.c.b16 %v5539, %v5537
    %v6386 = vpack.c.b16 %v5540, %v5538
    %v6387 = vpack.c.b16 %v5543, %v5541
    %v6388 = vpack.c.b16 %v5544, %v5542
    %v6389 = vpack.c.b16 %v5547, %v5545
    %v6390 = vpack.c.b16 %v5548, %v5546
    %v6391 = vpack.c.b16 %v5551, %v5549
    %v6392 = vpack.c.b16 %v5552, %v5550
    %v6393 = vpack.c.b16 %v5555, %v5553
    %v6394 = vpack.c.b16 %v5556, %v5554
    %v6395 = vpack.c.b16 %v5559, %v5557
    %v6396 = vpack.c.b16 %v5560, %v5558
    %v6397 = vpack.c.b16 %v5563, %v5561
    %v6398 = vpack.c.b16 %v5564, %v5562
    %v6399 = vpack.c.b16 %v5567, %v5565
    %v6400 = vpack.c.b16 %v5568, %v5566
    %v6401 = vpack.c.b16 %v5571, %v5569
    %v6402 = vpack.c.b16 %v5572, %v5570
    %v6403 = vpack.c.b16 %v5575, %v5573
    %v6404 = vpack.c.b16 %v5576, %v5574
    %v6405 = vpack.c.b16 %v5579, %v5577
    %v6406 = vpack.c.b16 %v5580, %v5578
    %v6407 = vpack.c.b16 %v5583, %v5581
    %v6408 = vpack.c.b16 %v5584, %v5582
    %v6409 = vpack.c.b16 %v5587, %v5585
    %v6410 = vpack.c.b16 %v5588, %v5586
    %v6411 = vpack.c.b16 %v5591, %v5589
    %v6412 = vpack.c.b16 %v5592, %v5590
    %v6413 = vpack.c.b16 %v5595, %v5593
    %v6414 = vpack.c.b16 %v5596, %v5594
    %v6415 = vpack.c.b16 %v5599, %v5597
    %v6416 = vpack.c.b16 %v5600, %v5598
    %v6417 = vpack.c.b16 %v5603, %v5601
    %v6418 = vpack.c.b16 %v5604, %v5602
    %v6419 = vpack.c.b16 %v5607, %v5605
    %v6420 = vpack.c.b16 %v5608, %v5606
    %v6421 = vpack.c.b16 %v5611, %v5609
    %v6422 = vpack.c.b16 %v5612, %v5610
    %v6423 = vpack.c.b16 %v5615, %v5613
    %v6424 = vpack.c.b16 %v5616, %v5614
    %v6425 = vpack.c.b16 %v5619, %v5617
    %v6426 = vpack.c.b16 %v5620, %v5618
    %v6427 = vpack.c.b16 %v5623, %v5621
    %v6428 = vpack.c.b16 %v5624, %v5622
    %v6429 = vpack.c.b16 %v5627, %v5625
    %v6430 = vpack.c.b16 %v5628, %v5626
    %v6431 = vpack.c.b16 %v5631, %v5629
    %v6432 = vpack.c.b16 %v5632, %v5630
    %7233 = vmatprep.subr.bf16.mxu0 %v5648
    %7234 = vmatpush1.bf16.msra.mxu0 %v5647
    %7235 = vmatprep.subr.bf16.mxu0 %v5646
    %7236 = vmatpush1.bf16.msra.mxu0 %v5645
    %7237 = vmatprep.subr.bf16.mxu0 %v5644
    %7238 = vmatpush1.bf16.msra.mxu0 %v5643
    %7239 = vmatprep.subr.bf16.mxu0 %v5642
    %7240 = vmatpush1.bf16.msra.mxu0 %v5641
    %7241 = vmatprep.subr.bf16.mxu0 %v5640
    %7242 = vmatpush1.bf16.msra.mxu0 %v5639
    %7243 = vmatprep.subr.bf16.mxu0 %v5638
    %7244 = vmatpush1.bf16.msra.mxu0 %v5637
    %7245 = vmatprep.subr.bf16.mxu0 %v5636
    %7246 = vmatpush1.bf16.msra.mxu0 %v5635
    %7247 = vmatprep.subr.bf16.mxu0 %v5634
    %7248 = vmatpush1.bf16.msra.mxu0 %v5633
    %7249 = vmatprep.subr.bf16.mxu0 %v5664
    %7250 = vmatpush2.bf16.msra.mxu0 %v5663
    %7251 = vmatprep.subr.bf16.mxu0 %v5662
    %7252 = vmatpush2.bf16.msra.mxu0 %v5661
    %7253 = vmatprep.subr.bf16.mxu0 %v5660
    %7254 = vmatpush2.bf16.msra.mxu0 %v5659
    %7255 = vmatprep.subr.bf16.mxu0 %v5658
    %7256 = vmatpush2.bf16.msra.mxu0 %v5657
    %7257 = vmatprep.subr.bf16.mxu0 %v5656
    %7258 = vmatpush2.bf16.msra.mxu0 %v5655
    %7259 = vmatprep.subr.bf16.mxu0 %v5654
    %7260 = vmatpush2.bf16.msra.mxu0 %v5653
    %7261 = vmatprep.subr.bf16.mxu0 %v5652
    %7262 = vmatpush2.bf16.msra.mxu0 %v5651
    %7263 = vmatprep.subr.bf16.mxu0 %v5650
    %7264 = vmatpush2.bf16.msra.mxu0 %v5649
    %7265 = vmatprep.mubr.bf16.mxu0 %v2434
    %7266 = vmatmul.mubr.bf16.gmra.mxu0 %v2433
    %v7267 = vpop.f32.mrf.mxu0
    %v7268 = vadd.f32 %v1226, %v7267
    %v7269 = vpop.f32.mrf.mxu0
    %v7270 = vadd.f32 %v1230, %v7269
    %v7271 = vpop.f32.mrf.mxu0
    %v7272 = vadd.f32 %v1226, %v7271
    %v7273 = vpop.f32.mrf.mxu0
    %v7274 = vadd.f32 %v1230, %v7273
    %7275 = vmatprep.mubr.bf16.mxu0 %v2484
    %7276 = vmatmul.mubr.bf16.gmra.mxu0 %v2483
    %v7277 = vpop.f32.mrf.mxu0
    %v7278 = vadd.f32 %v1226, %v7277
    %v7279 = vpop.f32.mrf.mxu0
    %v7280 = vadd.f32 %v1230, %v7279
    %v7281 = vpop.f32.mrf.mxu0
    %v7282 = vadd.f32 %v1226, %v7281
    %v7283 = vpop.f32.mrf.mxu0
    %v7284 = vadd.f32 %v1230, %v7283
    %7285 = vmatprep.mubr.bf16.mxu0 %v2534
    %7286 = vmatmul.mubr.bf16.gmra.mxu0 %v2533
    %v7287 = vpop.f32.mrf.mxu0
    %v7288 = vadd.f32 %v1226, %v7287
    %v7289 = vpop.f32.mrf.mxu0
    %v7290 = vadd.f32 %v1230, %v7289
    %v7291 = vpop.f32.mrf.mxu0
    %v7292 = vadd.f32 %v1226, %v7291
    %v7293 = vpop.f32.mrf.mxu0
    %v7294 = vadd.f32 %v1230, %v7293
    %7295 = vmatprep.mubr.bf16.mxu0 %v2584
    %7296 = vmatmul.mubr.bf16.gmra.mxu0 %v2583
    %v7297 = vpop.f32.mrf.mxu0
    %v7298 = vadd.f32 %v1226, %v7297
    %v7299 = vpop.f32.mrf.mxu0
    %v7300 = vadd.f32 %v1230, %v7299
    %v7301 = vpop.f32.mrf.mxu0
    %v7302 = vadd.f32 %v1226, %v7301
    %v7303 = vpop.f32.mrf.mxu0
    %v7304 = vadd.f32 %v1230, %v7303
    %7305 = vmatprep.mubr.bf16.mxu0 %v2634
    %7306 = vmatmul.mubr.bf16.gmra.mxu0 %v2633
    %v7307 = vpop.f32.mrf.mxu0
    %v7308 = vadd.f32 %v1226, %v7307
    %v7309 = vpop.f32.mrf.mxu0
    %v7310 = vadd.f32 %v1230, %v7309
    %v7311 = vpop.f32.mrf.mxu0
    %v7312 = vadd.f32 %v1226, %v7311
    %v7313 = vpop.f32.mrf.mxu0
    %v7314 = vadd.f32 %v1230, %v7313
    %7315 = vmatprep.mubr.bf16.mxu0 %v2684
    %7316 = vmatmul.mubr.bf16.gmra.mxu0 %v2683
    %v7317 = vpop.f32.mrf.mxu0
    %v7318 = vadd.f32 %v1226, %v7317
    %v7319 = vpop.f32.mrf.mxu0
    %v7320 = vadd.f32 %v1230, %v7319
    %v7321 = vpop.f32.mrf.mxu0
    %v7322 = vadd.f32 %v1226, %v7321
    %v7323 = vpop.f32.mrf.mxu0
    %v7324 = vadd.f32 %v1230, %v7323
    %7325 = vmatprep.mubr.bf16.mxu0 %v2734
    %7326 = vmatmul.mubr.bf16.gmra.mxu0 %v2733
    %v7327 = vpop.f32.mrf.mxu0
    %v7328 = vadd.f32 %v1226, %v7327
    %v7329 = vpop.f32.mrf.mxu0
    %v7330 = vadd.f32 %v1230, %v7329
    %v7331 = vpop.f32.mrf.mxu0
    %v7332 = vadd.f32 %v1226, %v7331
    %v7333 = vpop.f32.mrf.mxu0
    %v7334 = vadd.f32 %v1230, %v7333
    %7335 = vmatprep.mubr.bf16.mxu0 %v2784
    %7336 = vmatmul.mubr.bf16.gmra.mxu0 %v2783
    %v7337 = vpop.f32.mrf.mxu0
    %v7338 = vadd.f32 %v1226, %v7337
    %v7339 = vpop.f32.mrf.mxu0
    %v7340 = vadd.f32 %v1230, %v7339
    %v7341 = vpop.f32.mrf.mxu0
    %v7342 = vadd.f32 %v1226, %v7341
    %v7343 = vpop.f32.mrf.mxu0
    %v7344 = vadd.f32 %v1230, %v7343
    %7345 = vdwg.mxu0
    %7346 = vmatprep.subr.bf16.mxu0 %v5680
    %7347 = vmatpush1.bf16.msra.mxu0 %v5679
    %7348 = vmatprep.subr.bf16.mxu0 %v5678
    %7349 = vmatpush1.bf16.msra.mxu0 %v5677
    %7350 = vmatprep.subr.bf16.mxu0 %v5676
    %7351 = vmatpush1.bf16.msra.mxu0 %v5675
    %7352 = vmatprep.subr.bf16.mxu0 %v5674
    %7353 = vmatpush1.bf16.msra.mxu0 %v5673
    %7354 = vmatprep.subr.bf16.mxu0 %v5672
    %7355 = vmatpush1.bf16.msra.mxu0 %v5671
    %7356 = vmatprep.subr.bf16.mxu0 %v5670
    %7357 = vmatpush1.bf16.msra.mxu0 %v5669
    %7358 = vmatprep.subr.bf16.mxu0 %v5668
    %7359 = vmatpush1.bf16.msra.mxu0 %v5667
    %7360 = vmatprep.subr.bf16.mxu0 %v5666
    %7361 = vmatpush1.bf16.msra.mxu0 %v5665
    %7362 = vmatprep.subr.bf16.mxu0 %v5696
    %7363 = vmatpush2.bf16.msra.mxu0 %v5695
    %7364 = vmatprep.subr.bf16.mxu0 %v5694
    %7365 = vmatpush2.bf16.msra.mxu0 %v5693
    %7366 = vmatprep.subr.bf16.mxu0 %v5692
    %7367 = vmatpush2.bf16.msra.mxu0 %v5691
    %7368 = vmatprep.subr.bf16.mxu0 %v5690
    %7369 = vmatpush2.bf16.msra.mxu0 %v5689
    %7370 = vmatprep.subr.bf16.mxu0 %v5688
    %7371 = vmatpush2.bf16.msra.mxu0 %v5687
    %7372 = vmatprep.subr.bf16.mxu0 %v5686
    %7373 = vmatpush2.bf16.msra.mxu0 %v5685
    %7374 = vmatprep.subr.bf16.mxu0 %v5684
    %7375 = vmatpush2.bf16.msra.mxu0 %v5683
    %7376 = vmatprep.subr.bf16.mxu0 %v5682
    %7377 = vmatpush2.bf16.msra.mxu0 %v5681
    %7378 = vmatprep.mubr.bf16.mxu0 %v2436
    %7379 = vmatmul.mubr.bf16.gmra.mxu0 %v2435
    %v7380 = vpop.f32.mrf.mxu0
    %v7381 = vadd.f32 %v7268, %v7380
    %v7382 = vpop.f32.mrf.mxu0
    %v7383 = vadd.f32 %v7270, %v7382
    %v7384 = vpop.f32.mrf.mxu0
    %v7385 = vadd.f32 %v7272, %v7384
    %v7386 = vpop.f32.mrf.mxu0
    %v7387 = vadd.f32 %v7274, %v7386
    %7388 = vmatprep.mubr.bf16.mxu0 %v2486
    %7389 = vmatmul.mubr.bf16.gmra.mxu0 %v2485
    %v7390 = vpop.f32.mrf.mxu0
    %v7391 = vadd.f32 %v7278, %v7390
    %v7392 = vpop.f32.mrf.mxu0
    %v7393 = vadd.f32 %v7280, %v7392
    %v7394 = vpop.f32.mrf.mxu0
    %v7395 = vadd.f32 %v7282, %v7394
    %v7396 = vpop.f32.mrf.mxu0
    %v7397 = vadd.f32 %v7284, %v7396
    %7398 = vmatprep.mubr.bf16.mxu0 %v2536
    %7399 = vmatmul.mubr.bf16.gmra.mxu0 %v2535
    %v7400 = vpop.f32.mrf.mxu0
    %v7401 = vadd.f32 %v7288, %v7400
    %v7402 = vpop.f32.mrf.mxu0
    %v7403 = vadd.f32 %v7290, %v7402
    %v7404 = vpop.f32.mrf.mxu0
    %v7405 = vadd.f32 %v7292, %v7404
    %v7406 = vpop.f32.mrf.mxu0
    %v7407 = vadd.f32 %v7294, %v7406
    %7408 = vmatprep.mubr.bf16.mxu0 %v2586
    %7409 = vmatmul.mubr.bf16.gmra.mxu0 %v2585
    %v7410 = vpop.f32.mrf.mxu0
    %v7411 = vadd.f32 %v7298, %v7410
    %v7412 = vpop.f32.mrf.mxu0
    %v7413 = vadd.f32 %v7300, %v7412
    %v7414 = vpop.f32.mrf.mxu0
    %v7415 = vadd.f32 %v7302, %v7414
    %v7416 = vpop.f32.mrf.mxu0
    %v7417 = vadd.f32 %v7304, %v7416
    %7418 = vmatprep.mubr.bf16.mxu0 %v2636
    %7419 = vmatmul.mubr.bf16.gmra.mxu0 %v2635
    %v7420 = vpop.f32.mrf.mxu0
    %v7421 = vadd.f32 %v7308, %v7420
    %v7422 = vpop.f32.mrf.mxu0
    %v7423 = vadd.f32 %v7310, %v7422
    %v7424 = vpop.f32.mrf.mxu0
    %v7425 = vadd.f32 %v7312, %v7424
    %v7426 = vpop.f32.mrf.mxu0
    %v7427 = vadd.f32 %v7314, %v7426
    %7428 = vmatprep.mubr.bf16.mxu0 %v2686
    %7429 = vmatmul.mubr.bf16.gmra.mxu0 %v2685
    %v7430 = vpop.f32.mrf.mxu0
    %v7431 = vadd.f32 %v7318, %v7430
    %v7432 = vpop.f32.mrf.mxu0
    %v7433 = vadd.f32 %v7320, %v7432
    %v7434 = vpop.f32.mrf.mxu0
    %v7435 = vadd.f32 %v7322, %v7434
    %v7436 = vpop.f32.mrf.mxu0
    %v7437 = vadd.f32 %v7324, %v7436
    %7438 = vmatprep.mubr.bf16.mxu0 %v2736
    %7439 = vmatmul.mubr.bf16.gmra.mxu0 %v2735
    %v7440 = vpop.f32.mrf.mxu0
    %v7441 = vadd.f32 %v7328, %v7440
    %v7442 = vpop.f32.mrf.mxu0
    %v7443 = vadd.f32 %v7330, %v7442
    %v7444 = vpop.f32.mrf.mxu0
    %v7445 = vadd.f32 %v7332, %v7444
    %v7446 = vpop.f32.mrf.mxu0
    %v7447 = vadd.f32 %v7334, %v7446
    %7448 = vmatprep.mubr.bf16.mxu0 %v2786
    %7449 = vmatmul.mubr.bf16.gmra.mxu0 %v2785
    %v7450 = vpop.f32.mrf.mxu0
    %v7451 = vadd.f32 %v7338, %v7450
    %v7452 = vpop.f32.mrf.mxu0
    %v7453 = vadd.f32 %v7340, %v7452
    %v7454 = vpop.f32.mrf.mxu0
    %v7455 = vadd.f32 %v7342, %v7454
    %v7456 = vpop.f32.mrf.mxu0
    %v7457 = vadd.f32 %v7344, %v7456
    %7458 = vdwg.mxu0
    %7459 = vmatprep.subr.bf16.mxu0 %v5712
    %7460 = vmatpush1.bf16.msra.mxu0 %v5711
    %7461 = vmatprep.subr.bf16.mxu0 %v5710
    %7462 = vmatpush1.bf16.msra.mxu0 %v5709
    %7463 = vmatprep.subr.bf16.mxu0 %v5708
    %7464 = vmatpush1.bf16.msra.mxu0 %v5707
    %7465 = vmatprep.subr.bf16.mxu0 %v5706
    %7466 = vmatpush1.bf16.msra.mxu0 %v5705
    %7467 = vmatprep.subr.bf16.mxu0 %v5704
    %7468 = vmatpush1.bf16.msra.mxu0 %v5703
    %7469 = vmatprep.subr.bf16.mxu0 %v5702
    %7470 = vmatpush1.bf16.msra.mxu0 %v5701
    %7471 = vmatprep.subr.bf16.mxu0 %v5700
    %7472 = vmatpush1.bf16.msra.mxu0 %v5699
    %7473 = vmatprep.subr.bf16.mxu0 %v5698
    %7474 = vmatpush1.bf16.msra.mxu0 %v5697
    %7475 = vmatprep.subr.bf16.mxu0 %v5728
    %7476 = vmatpush2.bf16.msra.mxu0 %v5727
    %7477 = vmatprep.subr.bf16.mxu0 %v5726
    %7478 = vmatpush2.bf16.msra.mxu0 %v5725
    %7479 = vmatprep.subr.bf16.mxu0 %v5724
    %7480 = vmatpush2.bf16.msra.mxu0 %v5723
    %7481 = vmatprep.subr.bf16.mxu0 %v5722
    %7482 = vmatpush2.bf16.msra.mxu0 %v5721
    %7483 = vmatprep.subr.bf16.mxu0 %v5720
    %7484 = vmatpush2.bf16.msra.mxu0 %v5719
    %7485 = vmatprep.subr.bf16.mxu0 %v5718
    %7486 = vmatpush2.bf16.msra.mxu0 %v5717
    %7487 = vmatprep.subr.bf16.mxu0 %v5716
    %7488 = vmatpush2.bf16.msra.mxu0 %v5715
    %7489 = vmatprep.subr.bf16.mxu0 %v5714
    %7490 = vmatpush2.bf16.msra.mxu0 %v5713
    %7491 = vmatprep.mubr.bf16.mxu0 %v2438
    %7492 = vmatmul.mubr.bf16.gmra.mxu0 %v2437
    %v7493 = vpop.f32.mrf.mxu0
    %v7494 = vadd.f32 %v7381, %v7493
    %v7495 = vpop.f32.mrf.mxu0
    %v7496 = vadd.f32 %v7383, %v7495
    %v7497 = vpop.f32.mrf.mxu0
    %v7498 = vadd.f32 %v7385, %v7497
    %v7499 = vpop.f32.mrf.mxu0
    %v7500 = vadd.f32 %v7387, %v7499
    %7501 = vmatprep.mubr.bf16.mxu0 %v2488
    %7502 = vmatmul.mubr.bf16.gmra.mxu0 %v2487
    %v7503 = vpop.f32.mrf.mxu0
    %v7504 = vadd.f32 %v7391, %v7503
    %v7505 = vpop.f32.mrf.mxu0
    %v7506 = vadd.f32 %v7393, %v7505
    %v7507 = vpop.f32.mrf.mxu0
    %v7508 = vadd.f32 %v7395, %v7507
    %v7509 = vpop.f32.mrf.mxu0
    %v7510 = vadd.f32 %v7397, %v7509
    %7511 = vmatprep.mubr.bf16.mxu0 %v2538
    %7512 = vmatmul.mubr.bf16.gmra.mxu0 %v2537
    %v7513 = vpop.f32.mrf.mxu0
    %v7514 = vadd.f32 %v7401, %v7513
    %v7515 = vpop.f32.mrf.mxu0
    %v7516 = vadd.f32 %v7403, %v7515
    %v7517 = vpop.f32.mrf.mxu0
    %v7518 = vadd.f32 %v7405, %v7517
    %v7519 = vpop.f32.mrf.mxu0
    %v7520 = vadd.f32 %v7407, %v7519
    %7521 = vmatprep.mubr.bf16.mxu0 %v2588
    %7522 = vmatmul.mubr.bf16.gmra.mxu0 %v2587
    %v7523 = vpop.f32.mrf.mxu0
    %v7524 = vadd.f32 %v7411, %v7523
    %v7525 = vpop.f32.mrf.mxu0
    %v7526 = vadd.f32 %v7413, %v7525
    %v7527 = vpop.f32.mrf.mxu0
    %v7528 = vadd.f32 %v7415, %v7527
    %v7529 = vpop.f32.mrf.mxu0
    %v7530 = vadd.f32 %v7417, %v7529
    %7531 = vmatprep.mubr.bf16.mxu0 %v2638
    %7532 = vmatmul.mubr.bf16.gmra.mxu0 %v2637
    %v7533 = vpop.f32.mrf.mxu0
    %v7534 = vadd.f32 %v7421, %v7533
    %v7535 = vpop.f32.mrf.mxu0
    %v7536 = vadd.f32 %v7423, %v7535
    %v7537 = vpop.f32.mrf.mxu0
    %v7538 = vadd.f32 %v7425, %v7537
    %v7539 = vpop.f32.mrf.mxu0
    %v7540 = vadd.f32 %v7427, %v7539
    %7541 = vmatprep.mubr.bf16.mxu0 %v2688
    %7542 = vmatmul.mubr.bf16.gmra.mxu0 %v2687
    %v7543 = vpop.f32.mrf.mxu0
    %v7544 = vadd.f32 %v7431, %v7543
    %v7545 = vpop.f32.mrf.mxu0
    %v7546 = vadd.f32 %v7433, %v7545
    %v7547 = vpop.f32.mrf.mxu0
    %v7548 = vadd.f32 %v7435, %v7547
    %v7549 = vpop.f32.mrf.mxu0
    %v7550 = vadd.f32 %v7437, %v7549
    %7551 = vmatprep.mubr.bf16.mxu0 %v2738
    %7552 = vmatmul.mubr.bf16.gmra.mxu0 %v2737
    %v7553 = vpop.f32.mrf.mxu0
    %v7554 = vadd.f32 %v7441, %v7553
    %v7555 = vpop.f32.mrf.mxu0
    %v7556 = vadd.f32 %v7443, %v7555
    %v7557 = vpop.f32.mrf.mxu0
    %v7558 = vadd.f32 %v7445, %v7557
    %v7559 = vpop.f32.mrf.mxu0
    %v7560 = vadd.f32 %v7447, %v7559
    %7561 = vmatprep.mubr.bf16.mxu0 %v2788
    %7562 = vmatmul.mubr.bf16.gmra.mxu0 %v2787
    %v7563 = vpop.f32.mrf.mxu0
    %v7564 = vadd.f32 %v7451, %v7563
    %v7565 = vpop.f32.mrf.mxu0
    %v7566 = vadd.f32 %v7453, %v7565
    %v7567 = vpop.f32.mrf.mxu0
    %v7568 = vadd.f32 %v7455, %v7567
    %v7569 = vpop.f32.mrf.mxu0
    %v7570 = vadd.f32 %v7457, %v7569
    %7571 = vdwg.mxu0
    %7572 = vmatprep.subr.bf16.mxu0 %v5744
    %7573 = vmatpush1.bf16.msra.mxu0 %v5743
    %7574 = vmatprep.subr.bf16.mxu0 %v5742
    %7575 = vmatpush1.bf16.msra.mxu0 %v5741
    %7576 = vmatprep.subr.bf16.mxu0 %v5740
    %7577 = vmatpush1.bf16.msra.mxu0 %v5739
    %7578 = vmatprep.subr.bf16.mxu0 %v5738
    %7579 = vmatpush1.bf16.msra.mxu0 %v5737
    %7580 = vmatprep.subr.bf16.mxu0 %v5736
    %7581 = vmatpush1.bf16.msra.mxu0 %v5735
    %7582 = vmatprep.subr.bf16.mxu0 %v5734
    %7583 = vmatpush1.bf16.msra.mxu0 %v5733
    %7584 = vmatprep.subr.bf16.mxu0 %v5732
    %7585 = vmatpush1.bf16.msra.mxu0 %v5731
    %7586 = vmatprep.subr.bf16.mxu0 %v5730
    %7587 = vmatpush1.bf16.msra.mxu0 %v5729
    %7588 = vmatprep.subr.bf16.mxu0 %v5760
    %7589 = vmatpush2.bf16.msra.mxu0 %v5759
    %7590 = vmatprep.subr.bf16.mxu0 %v5758
    %7591 = vmatpush2.bf16.msra.mxu0 %v5757
    %7592 = vmatprep.subr.bf16.mxu0 %v5756
    %7593 = vmatpush2.bf16.msra.mxu0 %v5755
    %7594 = vmatprep.subr.bf16.mxu0 %v5754
    %7595 = vmatpush2.bf16.msra.mxu0 %v5753
    %7596 = vmatprep.subr.bf16.mxu0 %v5752
    %7597 = vmatpush2.bf16.msra.mxu0 %v5751
    %7598 = vmatprep.subr.bf16.mxu0 %v5750
    %7599 = vmatpush2.bf16.msra.mxu0 %v5749
    %7600 = vmatprep.subr.bf16.mxu0 %v5748
    %7601 = vmatpush2.bf16.msra.mxu0 %v5747
    %7602 = vmatprep.subr.bf16.mxu0 %v5746
    %7603 = vmatpush2.bf16.msra.mxu0 %v5745
    %7604 = vmatprep.mubr.bf16.mxu0 %v2440
    %7605 = vmatmul.mubr.bf16.gmra.mxu0 %v2439
    %v7606 = vpop.f32.mrf.mxu0
    %v7607 = vadd.f32 %v7494, %v7606
    %v7608 = vpop.f32.mrf.mxu0
    %v7609 = vadd.f32 %v7496, %v7608
    %v7610 = vpop.f32.mrf.mxu0
    %v7611 = vadd.f32 %v7498, %v7610
    %v7612 = vpop.f32.mrf.mxu0
    %v7613 = vadd.f32 %v7500, %v7612
    %7614 = vmatprep.mubr.bf16.mxu0 %v2490
    %7615 = vmatmul.mubr.bf16.gmra.mxu0 %v2489
    %v7616 = vpop.f32.mrf.mxu0
    %v7617 = vadd.f32 %v7504, %v7616
    %v7618 = vpop.f32.mrf.mxu0
    %v7619 = vadd.f32 %v7506, %v7618
    %v7620 = vpop.f32.mrf.mxu0
    %v7621 = vadd.f32 %v7508, %v7620
    %v7622 = vpop.f32.mrf.mxu0
    %v7623 = vadd.f32 %v7510, %v7622
    %7624 = vmatprep.mubr.bf16.mxu0 %v2540
    %7625 = vmatmul.mubr.bf16.gmra.mxu0 %v2539
    %v7626 = vpop.f32.mrf.mxu0
    %v7627 = vadd.f32 %v7514, %v7626
    %v7628 = vpop.f32.mrf.mxu0
    %v7629 = vadd.f32 %v7516, %v7628
    %v7630 = vpop.f32.mrf.mxu0
    %v7631 = vadd.f32 %v7518, %v7630
    %v7632 = vpop.f32.mrf.mxu0
    %v7633 = vadd.f32 %v7520, %v7632
    %7634 = vmatprep.mubr.bf16.mxu0 %v2590
    %7635 = vmatmul.mubr.bf16.gmra.mxu0 %v2589
    %v7636 = vpop.f32.mrf.mxu0
    %v7637 = vadd.f32 %v7524, %v7636
    %v7638 = vpop.f32.mrf.mxu0
    %v7639 = vadd.f32 %v7526, %v7638
    %v7640 = vpop.f32.mrf.mxu0
    %v7641 = vadd.f32 %v7528, %v7640
    %v7642 = vpop.f32.mrf.mxu0
    %v7643 = vadd.f32 %v7530, %v7642
    %7644 = vmatprep.mubr.bf16.mxu0 %v2640
    %7645 = vmatmul.mubr.bf16.gmra.mxu0 %v2639
    %v7646 = vpop.f32.mrf.mxu0
    %v7647 = vadd.f32 %v7534, %v7646
    %v7648 = vpop.f32.mrf.mxu0
    %v7649 = vadd.f32 %v7536, %v7648
    %v7650 = vpop.f32.mrf.mxu0
    %v7651 = vadd.f32 %v7538, %v7650
    %v7652 = vpop.f32.mrf.mxu0
    %v7653 = vadd.f32 %v7540, %v7652
    %7654 = vmatprep.mubr.bf16.mxu0 %v2690
    %7655 = vmatmul.mubr.bf16.gmra.mxu0 %v2689
    %v7656 = vpop.f32.mrf.mxu0
    %v7657 = vadd.f32 %v7544, %v7656
    %v7658 = vpop.f32.mrf.mxu0
    %v7659 = vadd.f32 %v7546, %v7658
    %v7660 = vpop.f32.mrf.mxu0
    %v7661 = vadd.f32 %v7548, %v7660
    %v7662 = vpop.f32.mrf.mxu0
    %v7663 = vadd.f32 %v7550, %v7662
    %7664 = vmatprep.mubr.bf16.mxu0 %v2740
    %7665 = vmatmul.mubr.bf16.gmra.mxu0 %v2739
    %v7666 = vpop.f32.mrf.mxu0
    %v7667 = vadd.f32 %v7554, %v7666
    %v7668 = vpop.f32.mrf.mxu0
    %v7669 = vadd.f32 %v7556, %v7668
    %v7670 = vpop.f32.mrf.mxu0
    %v7671 = vadd.f32 %v7558, %v7670
    %v7672 = vpop.f32.mrf.mxu0
    %v7673 = vadd.f32 %v7560, %v7672
    %7674 = vmatprep.mubr.bf16.mxu0 %v2790
    %7675 = vmatmul.mubr.bf16.gmra.mxu0 %v2789
    %v7676 = vpop.f32.mrf.mxu0
    %v7677 = vadd.f32 %v7564, %v7676
    %v7678 = vpop.f32.mrf.mxu0
    %v7679 = vadd.f32 %v7566, %v7678
    %v7680 = vpop.f32.mrf.mxu0
    %v7681 = vadd.f32 %v7568, %v7680
    %v7682 = vpop.f32.mrf.mxu0
    %v7683 = vadd.f32 %v7570, %v7682
    %7684 = vdwg.mxu0
    %7685 = vmatprep.subr.bf16.mxu0 %v5776
    %7686 = vmatpush1.bf16.msra.mxu0 %v5775
    %7687 = vmatprep.subr.bf16.mxu0 %v5774
    %7688 = vmatpush1.bf16.msra.mxu0 %v5773
    %7689 = vmatprep.subr.bf16.mxu0 %v5772
    %7690 = vmatpush1.bf16.msra.mxu0 %v5771
    %7691 = vmatprep.subr.bf16.mxu0 %v5770
    %7692 = vmatpush1.bf16.msra.mxu0 %v5769
    %7693 = vmatprep.subr.bf16.mxu0 %v5768
    %7694 = vmatpush1.bf16.msra.mxu0 %v5767
    %7695 = vmatprep.subr.bf16.mxu0 %v5766
    %7696 = vmatpush1.bf16.msra.mxu0 %v5765
    %7697 = vmatprep.subr.bf16.mxu0 %v5764
    %7698 = vmatpush1.bf16.msra.mxu0 %v5763
    %7699 = vmatprep.subr.bf16.mxu0 %v5762
    %7700 = vmatpush1.bf16.msra.mxu0 %v5761
    %7701 = vmatprep.subr.bf16.mxu0 %v5792
    %7702 = vmatpush2.bf16.msra.mxu0 %v5791
    %7703 = vmatprep.subr.bf16.mxu0 %v5790
    %7704 = vmatpush2.bf16.msra.mxu0 %v5789
    %7705 = vmatprep.subr.bf16.mxu0 %v5788
    %7706 = vmatpush2.bf16.msra.mxu0 %v5787
    %7707 = vmatprep.subr.bf16.mxu0 %v5786
    %7708 = vmatpush2.bf16.msra.mxu0 %v5785
    %7709 = vmatprep.subr.bf16.mxu0 %v5784
    %7710 = vmatpush2.bf16.msra.mxu0 %v5783
    %7711 = vmatprep.subr.bf16.mxu0 %v5782
    %7712 = vmatpush2.bf16.msra.mxu0 %v5781
    %7713 = vmatprep.subr.bf16.mxu0 %v5780
    %7714 = vmatpush2.bf16.msra.mxu0 %v5779
    %7715 = vmatprep.subr.bf16.mxu0 %v5778
    %7716 = vmatpush2.bf16.msra.mxu0 %v5777
    %7717 = vmatprep.mubr.bf16.mxu0 %v2442
    %7718 = vmatmul.mubr.bf16.gmra.mxu0 %v2441
    %v7719 = vpop.f32.mrf.mxu0
    %v7720 = vadd.f32 %v7607, %v7719
    %v7721 = vpop.f32.mrf.mxu0
    %v7722 = vadd.f32 %v7609, %v7721
    %v7723 = vpop.f32.mrf.mxu0
    %v7724 = vadd.f32 %v7611, %v7723
    %v7725 = vpop.f32.mrf.mxu0
    %v7726 = vadd.f32 %v7613, %v7725
    %7727 = vmatprep.mubr.bf16.mxu0 %v2492
    %7728 = vmatmul.mubr.bf16.gmra.mxu0 %v2491
    %v7729 = vpop.f32.mrf.mxu0
    %v7730 = vadd.f32 %v7617, %v7729
    %v7731 = vpop.f32.mrf.mxu0
    %v7732 = vadd.f32 %v7619, %v7731
    %v7733 = vpop.f32.mrf.mxu0
    %v7734 = vadd.f32 %v7621, %v7733
    %v7735 = vpop.f32.mrf.mxu0
    %v7736 = vadd.f32 %v7623, %v7735
    %7737 = vmatprep.mubr.bf16.mxu0 %v2542
    %7738 = vmatmul.mubr.bf16.gmra.mxu0 %v2541
    %v7739 = vpop.f32.mrf.mxu0
    %v7740 = vadd.f32 %v7627, %v7739
    %v7741 = vpop.f32.mrf.mxu0
    %v7742 = vadd.f32 %v7629, %v7741
    %v7743 = vpop.f32.mrf.mxu0
    %v7744 = vadd.f32 %v7631, %v7743
    %v7745 = vpop.f32.mrf.mxu0
    %v7746 = vadd.f32 %v7633, %v7745
    %7747 = vmatprep.mubr.bf16.mxu0 %v2592
    %7748 = vmatmul.mubr.bf16.gmra.mxu0 %v2591
    %v7749 = vpop.f32.mrf.mxu0
    %v7750 = vadd.f32 %v7637, %v7749
    %v7751 = vpop.f32.mrf.mxu0
    %v7752 = vadd.f32 %v7639, %v7751
    %v7753 = vpop.f32.mrf.mxu0
    %v7754 = vadd.f32 %v7641, %v7753
    %v7755 = vpop.f32.mrf.mxu0
    %v7756 = vadd.f32 %v7643, %v7755
    %7757 = vmatprep.mubr.bf16.mxu0 %v2642
    %7758 = vmatmul.mubr.bf16.gmra.mxu0 %v2641
    %v7759 = vpop.f32.mrf.mxu0
    %v7760 = vadd.f32 %v7647, %v7759
    %v7761 = vpop.f32.mrf.mxu0
    %v7762 = vadd.f32 %v7649, %v7761
    %v7763 = vpop.f32.mrf.mxu0
    %v7764 = vadd.f32 %v7651, %v7763
    %v7765 = vpop.f32.mrf.mxu0
    %v7766 = vadd.f32 %v7653, %v7765
    %7767 = vmatprep.mubr.bf16.mxu0 %v2692
    %7768 = vmatmul.mubr.bf16.gmra.mxu0 %v2691
    %v7769 = vpop.f32.mrf.mxu0
    %v7770 = vadd.f32 %v7657, %v7769
    %v7771 = vpop.f32.mrf.mxu0
    %v7772 = vadd.f32 %v7659, %v7771
    %v7773 = vpop.f32.mrf.mxu0
    %v7774 = vadd.f32 %v7661, %v7773
    %v7775 = vpop.f32.mrf.mxu0
    %v7776 = vadd.f32 %v7663, %v7775
    %7777 = vmatprep.mubr.bf16.mxu0 %v2742
    %7778 = vmatmul.mubr.bf16.gmra.mxu0 %v2741
    %v7779 = vpop.f32.mrf.mxu0
    %v7780 = vadd.f32 %v7667, %v7779
    %v7781 = vpop.f32.mrf.mxu0
    %v7782 = vadd.f32 %v7669, %v7781
    %v7783 = vpop.f32.mrf.mxu0
    %v7784 = vadd.f32 %v7671, %v7783
    %v7785 = vpop.f32.mrf.mxu0
    %v7786 = vadd.f32 %v7673, %v7785
    %7787 = vmatprep.mubr.bf16.mxu0 %v2792
    %7788 = vmatmul.mubr.bf16.gmra.mxu0 %v2791
    %v7789 = vpop.f32.mrf.mxu0
    %v7790 = vadd.f32 %v7677, %v7789
    %v7791 = vpop.f32.mrf.mxu0
    %v7792 = vadd.f32 %v7679, %v7791
    %v7793 = vpop.f32.mrf.mxu0
    %v7794 = vadd.f32 %v7681, %v7793
    %v7795 = vpop.f32.mrf.mxu0
    %v7796 = vadd.f32 %v7683, %v7795
    %7797 = vdwg.mxu0
    %7798 = vmatprep.subr.bf16.mxu0 %v5808
    %7799 = vmatpush1.bf16.msra.mxu0 %v5807
    %7800 = vmatprep.subr.bf16.mxu0 %v5806
    %7801 = vmatpush1.bf16.msra.mxu0 %v5805
    %7802 = vmatprep.subr.bf16.mxu0 %v5804
    %7803 = vmatpush1.bf16.msra.mxu0 %v5803
    %7804 = vmatprep.subr.bf16.mxu0 %v5802
    %7805 = vmatpush1.bf16.msra.mxu0 %v5801
    %7806 = vmatprep.subr.bf16.mxu0 %v5800
    %7807 = vmatpush1.bf16.msra.mxu0 %v5799
    %7808 = vmatprep.subr.bf16.mxu0 %v5798
    %7809 = vmatpush1.bf16.msra.mxu0 %v5797
    %7810 = vmatprep.subr.bf16.mxu0 %v5796
    %7811 = vmatpush1.bf16.msra.mxu0 %v5795
    %7812 = vmatprep.subr.bf16.mxu0 %v5794
    %7813 = vmatpush1.bf16.msra.mxu0 %v5793
    %7814 = vmatprep.subr.bf16.mxu0 %v5824
    %7815 = vmatpush2.bf16.msra.mxu0 %v5823
    %7816 = vmatprep.subr.bf16.mxu0 %v5822
    %7817 = vmatpush2.bf16.msra.mxu0 %v5821
    %7818 = vmatprep.subr.bf16.mxu0 %v5820
    %7819 = vmatpush2.bf16.msra.mxu0 %v5819
    %7820 = vmatprep.subr.bf16.mxu0 %v5818
    %7821 = vmatpush2.bf16.msra.mxu0 %v5817
    %7822 = vmatprep.subr.bf16.mxu0 %v5816
    %7823 = vmatpush2.bf16.msra.mxu0 %v5815
    %7824 = vmatprep.subr.bf16.mxu0 %v5814
    %7825 = vmatpush2.bf16.msra.mxu0 %v5813
    %7826 = vmatprep.subr.bf16.mxu0 %v5812
    %7827 = vmatpush2.bf16.msra.mxu0 %v5811
    %7828 = vmatprep.subr.bf16.mxu0 %v5810
    %7829 = vmatpush2.bf16.msra.mxu0 %v5809
    %7830 = vmatprep.mubr.bf16.mxu0 %v2444
    %7831 = vmatmul.mubr.bf16.gmra.mxu0 %v2443
    %v7832 = vpop.f32.mrf.mxu0
    %v7833 = vadd.f32 %v7720, %v7832
    %v7834 = vpop.f32.mrf.mxu0
    %v7835 = vadd.f32 %v7722, %v7834
    %v7836 = vpop.f32.mrf.mxu0
    %v7837 = vadd.f32 %v7724, %v7836
    %v7838 = vpop.f32.mrf.mxu0
    %v7839 = vadd.f32 %v7726, %v7838
    %7840 = vmatprep.mubr.bf16.mxu0 %v2494
    %7841 = vmatmul.mubr.bf16.gmra.mxu0 %v2493
    %v7842 = vpop.f32.mrf.mxu0
    %v7843 = vadd.f32 %v7730, %v7842
    %v7844 = vpop.f32.mrf.mxu0
    %v7845 = vadd.f32 %v7732, %v7844
    %v7846 = vpop.f32.mrf.mxu0
    %v7847 = vadd.f32 %v7734, %v7846
    %v7848 = vpop.f32.mrf.mxu0
    %v7849 = vadd.f32 %v7736, %v7848
    %7850 = vmatprep.mubr.bf16.mxu0 %v2544
    %7851 = vmatmul.mubr.bf16.gmra.mxu0 %v2543
    %v7852 = vpop.f32.mrf.mxu0
    %v7853 = vadd.f32 %v7740, %v7852
    %v7854 = vpop.f32.mrf.mxu0
    %v7855 = vadd.f32 %v7742, %v7854
    %v7856 = vpop.f32.mrf.mxu0
    %v7857 = vadd.f32 %v7744, %v7856
    %v7858 = vpop.f32.mrf.mxu0
    %v7859 = vadd.f32 %v7746, %v7858
    %7860 = vmatprep.mubr.bf16.mxu0 %v2594
    %7861 = vmatmul.mubr.bf16.gmra.mxu0 %v2593
    %v7862 = vpop.f32.mrf.mxu0
    %v7863 = vadd.f32 %v7750, %v7862
    %v7864 = vpop.f32.mrf.mxu0
    %v7865 = vadd.f32 %v7752, %v7864
    %v7866 = vpop.f32.mrf.mxu0
    %v7867 = vadd.f32 %v7754, %v7866
    %v7868 = vpop.f32.mrf.mxu0
    %v7869 = vadd.f32 %v7756, %v7868
    %7870 = vmatprep.mubr.bf16.mxu0 %v2644
    %7871 = vmatmul.mubr.bf16.gmra.mxu0 %v2643
    %v7872 = vpop.f32.mrf.mxu0
    %v7873 = vadd.f32 %v7760, %v7872
    %v7874 = vpop.f32.mrf.mxu0
    %v7875 = vadd.f32 %v7762, %v7874
    %v7876 = vpop.f32.mrf.mxu0
    %v7877 = vadd.f32 %v7764, %v7876
    %v7878 = vpop.f32.mrf.mxu0
    %v7879 = vadd.f32 %v7766, %v7878
    %7880 = vmatprep.mubr.bf16.mxu0 %v2694
    %7881 = vmatmul.mubr.bf16.gmra.mxu0 %v2693
    %v7882 = vpop.f32.mrf.mxu0
    %v7883 = vadd.f32 %v7770, %v7882
    %v7884 = vpop.f32.mrf.mxu0
    %v7885 = vadd.f32 %v7772, %v7884
    %v7886 = vpop.f32.mrf.mxu0
    %v7887 = vadd.f32 %v7774, %v7886
    %v7888 = vpop.f32.mrf.mxu0
    %v7889 = vadd.f32 %v7776, %v7888
    %7890 = vmatprep.mubr.bf16.mxu0 %v2744
    %7891 = vmatmul.mubr.bf16.gmra.mxu0 %v2743
    %v7892 = vpop.f32.mrf.mxu0
    %v7893 = vadd.f32 %v7780, %v7892
    %v7894 = vpop.f32.mrf.mxu0
    %v7895 = vadd.f32 %v7782, %v7894
    %v7896 = vpop.f32.mrf.mxu0
    %v7897 = vadd.f32 %v7784, %v7896
    %v7898 = vpop.f32.mrf.mxu0
    %v7899 = vadd.f32 %v7786, %v7898
    %7900 = vmatprep.mubr.bf16.mxu0 %v2794
    %7901 = vmatmul.mubr.bf16.gmra.mxu0 %v2793
    %v7902 = vpop.f32.mrf.mxu0
    %v7903 = vadd.f32 %v7790, %v7902
    %v7904 = vpop.f32.mrf.mxu0
    %v7905 = vadd.f32 %v7792, %v7904
    %v7906 = vpop.f32.mrf.mxu0
    %v7907 = vadd.f32 %v7794, %v7906
    %v7908 = vpop.f32.mrf.mxu0
    %v7909 = vadd.f32 %v7796, %v7908
    %7910 = vdwg.mxu0
    %7911 = vmatprep.subr.bf16.mxu0 %v5840
    %7912 = vmatpush1.bf16.msra.mxu0 %v5839
    %7913 = vmatprep.subr.bf16.mxu0 %v5838
    %7914 = vmatpush1.bf16.msra.mxu0 %v5837
    %7915 = vmatprep.subr.bf16.mxu0 %v5836
    %7916 = vmatpush1.bf16.msra.mxu0 %v5835
    %7917 = vmatprep.subr.bf16.mxu0 %v5834
    %7918 = vmatpush1.bf16.msra.mxu0 %v5833
    %7919 = vmatprep.subr.bf16.mxu0 %v5832
    %7920 = vmatpush1.bf16.msra.mxu0 %v5831
    %7921 = vmatprep.subr.bf16.mxu0 %v5830
    %7922 = vmatpush1.bf16.msra.mxu0 %v5829
    %7923 = vmatprep.subr.bf16.mxu0 %v5828
    %7924 = vmatpush1.bf16.msra.mxu0 %v5827
    %7925 = vmatprep.subr.bf16.mxu0 %v5826
    %7926 = vmatpush1.bf16.msra.mxu0 %v5825
    %7927 = vmatprep.subr.bf16.mxu0 %v5856
    %7928 = vmatpush2.bf16.msra.mxu0 %v5855
    %7929 = vmatprep.subr.bf16.mxu0 %v5854
    %7930 = vmatpush2.bf16.msra.mxu0 %v5853
    %7931 = vmatprep.subr.bf16.mxu0 %v5852
    %7932 = vmatpush2.bf16.msra.mxu0 %v5851
    %7933 = vmatprep.subr.bf16.mxu0 %v5850
    %7934 = vmatpush2.bf16.msra.mxu0 %v5849
    %7935 = vmatprep.subr.bf16.mxu0 %v5848
    %7936 = vmatpush2.bf16.msra.mxu0 %v5847
    %7937 = vmatprep.subr.bf16.mxu0 %v5846
    %7938 = vmatpush2.bf16.msra.mxu0 %v5845
    %7939 = vmatprep.subr.bf16.mxu0 %v5844
    %7940 = vmatpush2.bf16.msra.mxu0 %v5843
    %7941 = vmatprep.subr.bf16.mxu0 %v5842
    %7942 = vmatpush2.bf16.msra.mxu0 %v5841
    %7943 = vmatprep.mubr.bf16.mxu0 %v2446
    %7944 = vmatmul.mubr.bf16.gmra.mxu0 %v2445
    %v7945 = vpop.f32.mrf.mxu0
    %v7946 = vadd.f32 %v7833, %v7945
    %v7947 = vpop.f32.mrf.mxu0
    %v7948 = vadd.f32 %v7835, %v7947
    %v7949 = vpop.f32.mrf.mxu0
    %v7950 = vadd.f32 %v7837, %v7949
    %v7951 = vpop.f32.mrf.mxu0
    %v7952 = vadd.f32 %v7839, %v7951
    %7953 = vmatprep.mubr.bf16.mxu0 %v2496
    %7954 = vmatmul.mubr.bf16.gmra.mxu0 %v2495
    %v7955 = vpop.f32.mrf.mxu0
    %v7956 = vadd.f32 %v7843, %v7955
    %v7957 = vpop.f32.mrf.mxu0
    %v7958 = vadd.f32 %v7845, %v7957
    %v7959 = vpop.f32.mrf.mxu0
    %v7960 = vadd.f32 %v7847, %v7959
    %v7961 = vpop.f32.mrf.mxu0
    %v7962 = vadd.f32 %v7849, %v7961
    %7963 = vmatprep.mubr.bf16.mxu0 %v2546
    %7964 = vmatmul.mubr.bf16.gmra.mxu0 %v2545
    %v7965 = vpop.f32.mrf.mxu0
    %v7966 = vadd.f32 %v7853, %v7965
    %v7967 = vpop.f32.mrf.mxu0
    %v7968 = vadd.f32 %v7855, %v7967
    %v7969 = vpop.f32.mrf.mxu0
    %v7970 = vadd.f32 %v7857, %v7969
    %v7971 = vpop.f32.mrf.mxu0
    %v7972 = vadd.f32 %v7859, %v7971
    %7973 = vmatprep.mubr.bf16.mxu0 %v2596
    %7974 = vmatmul.mubr.bf16.gmra.mxu0 %v2595
    %v7975 = vpop.f32.mrf.mxu0
    %v7976 = vadd.f32 %v7863, %v7975
    %v7977 = vpop.f32.mrf.mxu0
    %v7978 = vadd.f32 %v7865, %v7977
    %v7979 = vpop.f32.mrf.mxu0
    %v7980 = vadd.f32 %v7867, %v7979
    %v7981 = vpop.f32.mrf.mxu0
    %v7982 = vadd.f32 %v7869, %v7981
    %7983 = vmatprep.mubr.bf16.mxu0 %v2646
    %7984 = vmatmul.mubr.bf16.gmra.mxu0 %v2645
    %v7985 = vpop.f32.mrf.mxu0
    %v7986 = vadd.f32 %v7873, %v7985
    %v7987 = vpop.f32.mrf.mxu0
    %v7988 = vadd.f32 %v7875, %v7987
    %v7989 = vpop.f32.mrf.mxu0
    %v7990 = vadd.f32 %v7877, %v7989
    %v7991 = vpop.f32.mrf.mxu0
    %v7992 = vadd.f32 %v7879, %v7991
    %7993 = vmatprep.mubr.bf16.mxu0 %v2696
    %7994 = vmatmul.mubr.bf16.gmra.mxu0 %v2695
    %v7995 = vpop.f32.mrf.mxu0
    %v7996 = vadd.f32 %v7883, %v7995
    %v7997 = vpop.f32.mrf.mxu0
    %v7998 = vadd.f32 %v7885, %v7997
    %v7999 = vpop.f32.mrf.mxu0
    %v8000 = vadd.f32 %v7887, %v7999
    %v8001 = vpop.f32.mrf.mxu0
    %v8002 = vadd.f32 %v7889, %v8001
    %8003 = vmatprep.mubr.bf16.mxu0 %v2746
    %8004 = vmatmul.mubr.bf16.gmra.mxu0 %v2745
    %v8005 = vpop.f32.mrf.mxu0
    %v8006 = vadd.f32 %v7893, %v8005
    %v8007 = vpop.f32.mrf.mxu0
    %v8008 = vadd.f32 %v7895, %v8007
    %v8009 = vpop.f32.mrf.mxu0
    %v8010 = vadd.f32 %v7897, %v8009
    %v8011 = vpop.f32.mrf.mxu0
    %v8012 = vadd.f32 %v7899, %v8011
    %8013 = vmatprep.mubr.bf16.mxu0 %v2796
    %8014 = vmatmul.mubr.bf16.gmra.mxu0 %v2795
    %v8015 = vpop.f32.mrf.mxu0
    %v8016 = vadd.f32 %v7903, %v8015
    %v8017 = vpop.f32.mrf.mxu0
    %v8018 = vadd.f32 %v7905, %v8017
    %v8019 = vpop.f32.mrf.mxu0
    %v8020 = vadd.f32 %v7907, %v8019
    %v8021 = vpop.f32.mrf.mxu0
    %v8022 = vadd.f32 %v7909, %v8021
    %8023 = vdwg.mxu0
    %8024 = vmatprep.subr.bf16.mxu0 %v5872
    %8025 = vmatpush1.bf16.msra.mxu0 %v5871
    %8026 = vmatprep.subr.bf16.mxu0 %v5870
    %8027 = vmatpush1.bf16.msra.mxu0 %v5869
    %8028 = vmatprep.subr.bf16.mxu0 %v5868
    %8029 = vmatpush1.bf16.msra.mxu0 %v5867
    %8030 = vmatprep.subr.bf16.mxu0 %v5866
    %8031 = vmatpush1.bf16.msra.mxu0 %v5865
    %8032 = vmatprep.subr.bf16.mxu0 %v5864
    %8033 = vmatpush1.bf16.msra.mxu0 %v5863
    %8034 = vmatprep.subr.bf16.mxu0 %v5862
    %8035 = vmatpush1.bf16.msra.mxu0 %v5861
    %8036 = vmatprep.subr.bf16.mxu0 %v5860
    %8037 = vmatpush1.bf16.msra.mxu0 %v5859
    %8038 = vmatprep.subr.bf16.mxu0 %v5858
    %8039 = vmatpush1.bf16.msra.mxu0 %v5857
    %8040 = vmatprep.subr.bf16.mxu0 %v5888
    %8041 = vmatpush2.bf16.msra.mxu0 %v5887
    %8042 = vmatprep.subr.bf16.mxu0 %v5886
    %8043 = vmatpush2.bf16.msra.mxu0 %v5885
    %8044 = vmatprep.subr.bf16.mxu0 %v5884
    %8045 = vmatpush2.bf16.msra.mxu0 %v5883
    %8046 = vmatprep.subr.bf16.mxu0 %v5882
    %8047 = vmatpush2.bf16.msra.mxu0 %v5881
    %8048 = vmatprep.subr.bf16.mxu0 %v5880
    %8049 = vmatpush2.bf16.msra.mxu0 %v5879
    %8050 = vmatprep.subr.bf16.mxu0 %v5878
    %8051 = vmatpush2.bf16.msra.mxu0 %v5877
    %8052 = vmatprep.subr.bf16.mxu0 %v5876
    %8053 = vmatpush2.bf16.msra.mxu0 %v5875
    %8054 = vmatprep.subr.bf16.mxu0 %v5874
    %8055 = vmatpush2.bf16.msra.mxu0 %v5873
    %8056 = vmatprep.mubr.bf16.mxu0 %v2448
    %8057 = vmatmul.mubr.bf16.gmra.mxu0 %v2447
    %v8058 = vpop.f32.mrf.mxu0
    %v8059 = vadd.f32 %v7946, %v8058
    %v8060 = vpop.f32.mrf.mxu0
    %v8061 = vadd.f32 %v7948, %v8060
    %v8062 = vpop.f32.mrf.mxu0
    %v8063 = vadd.f32 %v7950, %v8062
    %v8064 = vpop.f32.mrf.mxu0
    %v8065 = vadd.f32 %v7952, %v8064
    %8066 = vmatprep.mubr.bf16.mxu0 %v2498
    %8067 = vmatmul.mubr.bf16.gmra.mxu0 %v2497
    %v8068 = vpop.f32.mrf.mxu0
    %v8069 = vadd.f32 %v7956, %v8068
    %v8070 = vpop.f32.mrf.mxu0
    %v8071 = vadd.f32 %v7958, %v8070
    %v8072 = vpop.f32.mrf.mxu0
    %v8073 = vadd.f32 %v7960, %v8072
    %v8074 = vpop.f32.mrf.mxu0
    %v8075 = vadd.f32 %v7962, %v8074
    %8076 = vmatprep.mubr.bf16.mxu0 %v2548
    %8077 = vmatmul.mubr.bf16.gmra.mxu0 %v2547
    %v8078 = vpop.f32.mrf.mxu0
    %v8079 = vadd.f32 %v7966, %v8078
    %v8080 = vpop.f32.mrf.mxu0
    %v8081 = vadd.f32 %v7968, %v8080
    %v8082 = vpop.f32.mrf.mxu0
    %v8083 = vadd.f32 %v7970, %v8082
    %v8084 = vpop.f32.mrf.mxu0
    %v8085 = vadd.f32 %v7972, %v8084
    %8086 = vmatprep.mubr.bf16.mxu0 %v2598
    %8087 = vmatmul.mubr.bf16.gmra.mxu0 %v2597
    %v8088 = vpop.f32.mrf.mxu0
    %v8089 = vadd.f32 %v7976, %v8088
    %v8090 = vpop.f32.mrf.mxu0
    %v8091 = vadd.f32 %v7978, %v8090
    %v8092 = vpop.f32.mrf.mxu0
    %v8093 = vadd.f32 %v7980, %v8092
    %v8094 = vpop.f32.mrf.mxu0
    %v8095 = vadd.f32 %v7982, %v8094
    %8096 = vmatprep.mubr.bf16.mxu0 %v2648
    %8097 = vmatmul.mubr.bf16.gmra.mxu0 %v2647
    %v8098 = vpop.f32.mrf.mxu0
    %v8099 = vadd.f32 %v7986, %v8098
    %v8100 = vpop.f32.mrf.mxu0
    %v8101 = vadd.f32 %v7988, %v8100
    %v8102 = vpop.f32.mrf.mxu0
    %v8103 = vadd.f32 %v7990, %v8102
    %v8104 = vpop.f32.mrf.mxu0
    %v8105 = vadd.f32 %v7992, %v8104
    %8106 = vmatprep.mubr.bf16.mxu0 %v2698
    %8107 = vmatmul.mubr.bf16.gmra.mxu0 %v2697
    %v8108 = vpop.f32.mrf.mxu0
    %v8109 = vadd.f32 %v7996, %v8108
    %v8110 = vpop.f32.mrf.mxu0
    %v8111 = vadd.f32 %v7998, %v8110
    %v8112 = vpop.f32.mrf.mxu0
    %v8113 = vadd.f32 %v8000, %v8112
    %v8114 = vpop.f32.mrf.mxu0
    %v8115 = vadd.f32 %v8002, %v8114
    %8116 = vmatprep.mubr.bf16.mxu0 %v2748
    %8117 = vmatmul.mubr.bf16.gmra.mxu0 %v2747
    %v8118 = vpop.f32.mrf.mxu0
    %v8119 = vadd.f32 %v8006, %v8118
    %v8120 = vpop.f32.mrf.mxu0
    %v8121 = vadd.f32 %v8008, %v8120
    %v8122 = vpop.f32.mrf.mxu0
    %v8123 = vadd.f32 %v8010, %v8122
    %v8124 = vpop.f32.mrf.mxu0
    %v8125 = vadd.f32 %v8012, %v8124
    %8126 = vmatprep.mubr.bf16.mxu0 %v2798
    %8127 = vmatmul.mubr.bf16.gmra.mxu0 %v2797
    %v8128 = vpop.f32.mrf.mxu0
    %v8129 = vadd.f32 %v8016, %v8128
    %v8130 = vpop.f32.mrf.mxu0
    %v8131 = vadd.f32 %v8018, %v8130
    %v8132 = vpop.f32.mrf.mxu0
    %v8133 = vadd.f32 %v8020, %v8132
    %v8134 = vpop.f32.mrf.mxu0
    %v8135 = vadd.f32 %v8022, %v8134
    %8136 = vdwg.mxu0
    %8137 = vmatprep.subr.bf16.mxu0 %v5904
    %8138 = vmatpush1.bf16.msra.mxu0 %v5903
    %8139 = vmatprep.subr.bf16.mxu0 %v5902
    %8140 = vmatpush1.bf16.msra.mxu0 %v5901
    %8141 = vmatprep.subr.bf16.mxu0 %v5900
    %8142 = vmatpush1.bf16.msra.mxu0 %v5899
    %8143 = vmatprep.subr.bf16.mxu0 %v5898
    %8144 = vmatpush1.bf16.msra.mxu0 %v5897
    %8145 = vmatprep.subr.bf16.mxu0 %v5896
    %8146 = vmatpush1.bf16.msra.mxu0 %v5895
    %8147 = vmatprep.subr.bf16.mxu0 %v5894
    %8148 = vmatpush1.bf16.msra.mxu0 %v5893
    %8149 = vmatprep.subr.bf16.mxu0 %v5892
    %8150 = vmatpush1.bf16.msra.mxu0 %v5891
    %8151 = vmatprep.subr.bf16.mxu0 %v5890
    %8152 = vmatpush1.bf16.msra.mxu0 %v5889
    %8153 = vmatprep.subr.bf16.mxu0 %v5920
    %8154 = vmatpush2.bf16.msra.mxu0 %v5919
    %8155 = vmatprep.subr.bf16.mxu0 %v5918
    %8156 = vmatpush2.bf16.msra.mxu0 %v5917
    %8157 = vmatprep.subr.bf16.mxu0 %v5916
    %8158 = vmatpush2.bf16.msra.mxu0 %v5915
    %8159 = vmatprep.subr.bf16.mxu0 %v5914
    %8160 = vmatpush2.bf16.msra.mxu0 %v5913
    %8161 = vmatprep.subr.bf16.mxu0 %v5912
    %8162 = vmatpush2.bf16.msra.mxu0 %v5911
    %8163 = vmatprep.subr.bf16.mxu0 %v5910
    %8164 = vmatpush2.bf16.msra.mxu0 %v5909
    %8165 = vmatprep.subr.bf16.mxu0 %v5908
    %8166 = vmatpush2.bf16.msra.mxu0 %v5907
    %8167 = vmatprep.subr.bf16.mxu0 %v5906
    %8168 = vmatpush2.bf16.msra.mxu0 %v5905
    %8169 = vmatprep.mubr.bf16.mxu0 %v2450
    %8170 = vmatmul.mubr.bf16.gmra.mxu0 %v2449
    %v8171 = vpop.f32.mrf.mxu0
    %v8172 = vadd.f32 %v8059, %v8171
    %v8173 = vpop.f32.mrf.mxu0
    %v8174 = vadd.f32 %v8061, %v8173
    %v8175 = vpop.f32.mrf.mxu0
    %v8176 = vadd.f32 %v8063, %v8175
    %v8177 = vpop.f32.mrf.mxu0
    %v8178 = vadd.f32 %v8065, %v8177
    %8179 = vmatprep.mubr.bf16.mxu0 %v2500
    %8180 = vmatmul.mubr.bf16.gmra.mxu0 %v2499
    %v8181 = vpop.f32.mrf.mxu0
    %v8182 = vadd.f32 %v8069, %v8181
    %v8183 = vpop.f32.mrf.mxu0
    %v8184 = vadd.f32 %v8071, %v8183
    %v8185 = vpop.f32.mrf.mxu0
    %v8186 = vadd.f32 %v8073, %v8185
    %v8187 = vpop.f32.mrf.mxu0
    %v8188 = vadd.f32 %v8075, %v8187
    %8189 = vmatprep.mubr.bf16.mxu0 %v2550
    %8190 = vmatmul.mubr.bf16.gmra.mxu0 %v2549
    %v8191 = vpop.f32.mrf.mxu0
    %v8192 = vadd.f32 %v8079, %v8191
    %v8193 = vpop.f32.mrf.mxu0
    %v8194 = vadd.f32 %v8081, %v8193
    %v8195 = vpop.f32.mrf.mxu0
    %v8196 = vadd.f32 %v8083, %v8195
    %v8197 = vpop.f32.mrf.mxu0
    %v8198 = vadd.f32 %v8085, %v8197
    %8199 = vmatprep.mubr.bf16.mxu0 %v2600
    %8200 = vmatmul.mubr.bf16.gmra.mxu0 %v2599
    %v8201 = vpop.f32.mrf.mxu0
    %v8202 = vadd.f32 %v8089, %v8201
    %v8203 = vpop.f32.mrf.mxu0
    %v8204 = vadd.f32 %v8091, %v8203
    %v8205 = vpop.f32.mrf.mxu0
    %v8206 = vadd.f32 %v8093, %v8205
    %v8207 = vpop.f32.mrf.mxu0
    %v8208 = vadd.f32 %v8095, %v8207
    %8209 = vmatprep.mubr.bf16.mxu0 %v2650
    %8210 = vmatmul.mubr.bf16.gmra.mxu0 %v2649
    %v8211 = vpop.f32.mrf.mxu0
    %v8212 = vadd.f32 %v8099, %v8211
    %v8213 = vpop.f32.mrf.mxu0
    %v8214 = vadd.f32 %v8101, %v8213
    %v8215 = vpop.f32.mrf.mxu0
    %v8216 = vadd.f32 %v8103, %v8215
    %v8217 = vpop.f32.mrf.mxu0
    %v8218 = vadd.f32 %v8105, %v8217
    %8219 = vmatprep.mubr.bf16.mxu0 %v2700
    %8220 = vmatmul.mubr.bf16.gmra.mxu0 %v2699
    %v8221 = vpop.f32.mrf.mxu0
    %v8222 = vadd.f32 %v8109, %v8221
    %v8223 = vpop.f32.mrf.mxu0
    %v8224 = vadd.f32 %v8111, %v8223
    %v8225 = vpop.f32.mrf.mxu0
    %v8226 = vadd.f32 %v8113, %v8225
    %v8227 = vpop.f32.mrf.mxu0
    %v8228 = vadd.f32 %v8115, %v8227
    %8229 = vmatprep.mubr.bf16.mxu0 %v2750
    %8230 = vmatmul.mubr.bf16.gmra.mxu0 %v2749
    %v8231 = vpop.f32.mrf.mxu0
    %v8232 = vadd.f32 %v8119, %v8231
    %v8233 = vpop.f32.mrf.mxu0
    %v8234 = vadd.f32 %v8121, %v8233
    %v8235 = vpop.f32.mrf.mxu0
    %v8236 = vadd.f32 %v8123, %v8235
    %v8237 = vpop.f32.mrf.mxu0
    %v8238 = vadd.f32 %v8125, %v8237
    %8239 = vmatprep.mubr.bf16.mxu0 %v2800
    %8240 = vmatmul.mubr.bf16.gmra.mxu0 %v2799
    %v8241 = vpop.f32.mrf.mxu0
    %v8242 = vadd.f32 %v8129, %v8241
    %v8243 = vpop.f32.mrf.mxu0
    %v8244 = vadd.f32 %v8131, %v8243
    %v8245 = vpop.f32.mrf.mxu0
    %v8246 = vadd.f32 %v8133, %v8245
    %v8247 = vpop.f32.mrf.mxu0
    %v8248 = vadd.f32 %v8135, %v8247
    %8249 = vdwg.mxu0
    %8250 = vmatprep.subr.bf16.mxu0 %v5936
    %8251 = vmatpush1.bf16.msra.mxu0 %v5935
    %8252 = vmatprep.subr.bf16.mxu0 %v5934
    %8253 = vmatpush1.bf16.msra.mxu0 %v5933
    %8254 = vmatprep.subr.bf16.mxu0 %v5932
    %8255 = vmatpush1.bf16.msra.mxu0 %v5931
    %8256 = vmatprep.subr.bf16.mxu0 %v5930
    %8257 = vmatpush1.bf16.msra.mxu0 %v5929
    %8258 = vmatprep.subr.bf16.mxu0 %v5928
    %8259 = vmatpush1.bf16.msra.mxu0 %v5927
    %8260 = vmatprep.subr.bf16.mxu0 %v5926
    %8261 = vmatpush1.bf16.msra.mxu0 %v5925
    %8262 = vmatprep.subr.bf16.mxu0 %v5924
    %8263 = vmatpush1.bf16.msra.mxu0 %v5923
    %8264 = vmatprep.subr.bf16.mxu0 %v5922
    %8265 = vmatpush1.bf16.msra.mxu0 %v5921
    %8266 = vmatprep.subr.bf16.mxu0 %v5952
    %8267 = vmatpush2.bf16.msra.mxu0 %v5951
    %8268 = vmatprep.subr.bf16.mxu0 %v5950
    %8269 = vmatpush2.bf16.msra.mxu0 %v5949
    %8270 = vmatprep.subr.bf16.mxu0 %v5948
    %8271 = vmatpush2.bf16.msra.mxu0 %v5947
    %8272 = vmatprep.subr.bf16.mxu0 %v5946
    %8273 = vmatpush2.bf16.msra.mxu0 %v5945
    %8274 = vmatprep.subr.bf16.mxu0 %v5944
    %8275 = vmatpush2.bf16.msra.mxu0 %v5943
    %8276 = vmatprep.subr.bf16.mxu0 %v5942
    %8277 = vmatpush2.bf16.msra.mxu0 %v5941
    %8278 = vmatprep.subr.bf16.mxu0 %v5940
    %8279 = vmatpush2.bf16.msra.mxu0 %v5939
    %8280 = vmatprep.subr.bf16.mxu0 %v5938
    %8281 = vmatpush2.bf16.msra.mxu0 %v5937
    %8282 = vmatprep.mubr.bf16.mxu0 %v2452
    %8283 = vmatmul.mubr.bf16.gmra.mxu0 %v2451
    %v8284 = vpop.f32.mrf.mxu0
    %v8285 = vadd.f32 %v8172, %v8284
    %v8286 = vpop.f32.mrf.mxu0
    %v8287 = vadd.f32 %v8174, %v8286
    %v8288 = vpop.f32.mrf.mxu0
    %v8289 = vadd.f32 %v8176, %v8288
    %v8290 = vpop.f32.mrf.mxu0
    %v8291 = vadd.f32 %v8178, %v8290
    %8292 = vmatprep.mubr.bf16.mxu0 %v2502
    %8293 = vmatmul.mubr.bf16.gmra.mxu0 %v2501
    %v8294 = vpop.f32.mrf.mxu0
    %v8295 = vadd.f32 %v8182, %v8294
    %v8296 = vpop.f32.mrf.mxu0
    %v8297 = vadd.f32 %v8184, %v8296
    %v8298 = vpop.f32.mrf.mxu0
    %v8299 = vadd.f32 %v8186, %v8298
    %v8300 = vpop.f32.mrf.mxu0
    %v8301 = vadd.f32 %v8188, %v8300
    %8302 = vmatprep.mubr.bf16.mxu0 %v2552
    %8303 = vmatmul.mubr.bf16.gmra.mxu0 %v2551
    %v8304 = vpop.f32.mrf.mxu0
    %v8305 = vadd.f32 %v8192, %v8304
    %v8306 = vpop.f32.mrf.mxu0
    %v8307 = vadd.f32 %v8194, %v8306
    %v8308 = vpop.f32.mrf.mxu0
    %v8309 = vadd.f32 %v8196, %v8308
    %v8310 = vpop.f32.mrf.mxu0
    %v8311 = vadd.f32 %v8198, %v8310
    %8312 = vmatprep.mubr.bf16.mxu0 %v2602
    %8313 = vmatmul.mubr.bf16.gmra.mxu0 %v2601
    %v8314 = vpop.f32.mrf.mxu0
    %v8315 = vadd.f32 %v8202, %v8314
    %v8316 = vpop.f32.mrf.mxu0
    %v8317 = vadd.f32 %v8204, %v8316
    %v8318 = vpop.f32.mrf.mxu0
    %v8319 = vadd.f32 %v8206, %v8318
    %v8320 = vpop.f32.mrf.mxu0
    %v8321 = vadd.f32 %v8208, %v8320
    %8322 = vmatprep.mubr.bf16.mxu0 %v2652
    %8323 = vmatmul.mubr.bf16.gmra.mxu0 %v2651
    %v8324 = vpop.f32.mrf.mxu0
    %v8325 = vadd.f32 %v8212, %v8324
    %v8326 = vpop.f32.mrf.mxu0
    %v8327 = vadd.f32 %v8214, %v8326
    %v8328 = vpop.f32.mrf.mxu0
    %v8329 = vadd.f32 %v8216, %v8328
    %v8330 = vpop.f32.mrf.mxu0
    %v8331 = vadd.f32 %v8218, %v8330
    %8332 = vmatprep.mubr.bf16.mxu0 %v2702
    %8333 = vmatmul.mubr.bf16.gmra.mxu0 %v2701
    %v8334 = vpop.f32.mrf.mxu0
    %v8335 = vadd.f32 %v8222, %v8334
    %v8336 = vpop.f32.mrf.mxu0
    %v8337 = vadd.f32 %v8224, %v8336
    %v8338 = vpop.f32.mrf.mxu0
    %v8339 = vadd.f32 %v8226, %v8338
    %v8340 = vpop.f32.mrf.mxu0
    %v8341 = vadd.f32 %v8228, %v8340
    %8342 = vmatprep.mubr.bf16.mxu0 %v2752
    %8343 = vmatmul.mubr.bf16.gmra.mxu0 %v2751
    %v8344 = vpop.f32.mrf.mxu0
    %v8345 = vadd.f32 %v8232, %v8344
    %v8346 = vpop.f32.mrf.mxu0
    %v8347 = vadd.f32 %v8234, %v8346
    %v8348 = vpop.f32.mrf.mxu0
    %v8349 = vadd.f32 %v8236, %v8348
    %v8350 = vpop.f32.mrf.mxu0
    %v8351 = vadd.f32 %v8238, %v8350
    %8352 = vmatprep.mubr.bf16.mxu0 %v2802
    %8353 = vmatmul.mubr.bf16.gmra.mxu0 %v2801
    %v8354 = vpop.f32.mrf.mxu0
    %v8355 = vadd.f32 %v8242, %v8354
    %v8356 = vpop.f32.mrf.mxu0
    %v8357 = vadd.f32 %v8244, %v8356
    %v8358 = vpop.f32.mrf.mxu0
    %v8359 = vadd.f32 %v8246, %v8358
    %v8360 = vpop.f32.mrf.mxu0
    %v8361 = vadd.f32 %v8248, %v8360
    %8362 = vdwg.mxu0
    %8363 = vmatprep.subr.bf16.mxu0 %v5968
    %8364 = vmatpush1.bf16.msra.mxu0 %v5967
    %8365 = vmatprep.subr.bf16.mxu0 %v5966
    %8366 = vmatpush1.bf16.msra.mxu0 %v5965
    %8367 = vmatprep.subr.bf16.mxu0 %v5964
    %8368 = vmatpush1.bf16.msra.mxu0 %v5963
    %8369 = vmatprep.subr.bf16.mxu0 %v5962
    %8370 = vmatpush1.bf16.msra.mxu0 %v5961
    %8371 = vmatprep.subr.bf16.mxu0 %v5960
    %8372 = vmatpush1.bf16.msra.mxu0 %v5959
    %8373 = vmatprep.subr.bf16.mxu0 %v5958
    %8374 = vmatpush1.bf16.msra.mxu0 %v5957
    %8375 = vmatprep.subr.bf16.mxu0 %v5956
    %8376 = vmatpush1.bf16.msra.mxu0 %v5955
    %8377 = vmatprep.subr.bf16.mxu0 %v5954
    %8378 = vmatpush1.bf16.msra.mxu0 %v5953
    %8379 = vmatprep.subr.bf16.mxu0 %v5984
    %8380 = vmatpush2.bf16.msra.mxu0 %v5983
    %8381 = vmatprep.subr.bf16.mxu0 %v5982
    %8382 = vmatpush2.bf16.msra.mxu0 %v5981
    %8383 = vmatprep.subr.bf16.mxu0 %v5980
    %8384 = vmatpush2.bf16.msra.mxu0 %v5979
    %8385 = vmatprep.subr.bf16.mxu0 %v5978
    %8386 = vmatpush2.bf16.msra.mxu0 %v5977
    %8387 = vmatprep.subr.bf16.mxu0 %v5976
    %8388 = vmatpush2.bf16.msra.mxu0 %v5975
    %8389 = vmatprep.subr.bf16.mxu0 %v5974
    %8390 = vmatpush2.bf16.msra.mxu0 %v5973
    %8391 = vmatprep.subr.bf16.mxu0 %v5972
    %8392 = vmatpush2.bf16.msra.mxu0 %v5971
    %8393 = vmatprep.subr.bf16.mxu0 %v5970
    %8394 = vmatpush2.bf16.msra.mxu0 %v5969
    %8395 = vmatprep.mubr.bf16.mxu0 %v2454
    %8396 = vmatmul.mubr.bf16.gmra.mxu0 %v2453
    %v8397 = vpop.f32.mrf.mxu0
    %v8398 = vadd.f32 %v8285, %v8397
    %v8399 = vpop.f32.mrf.mxu0
    %v8400 = vadd.f32 %v8287, %v8399
    %v8401 = vpop.f32.mrf.mxu0
    %v8402 = vadd.f32 %v8289, %v8401
    %v8403 = vpop.f32.mrf.mxu0
    %v8404 = vadd.f32 %v8291, %v8403
    %8405 = vmatprep.mubr.bf16.mxu0 %v2504
    %8406 = vmatmul.mubr.bf16.gmra.mxu0 %v2503
    %v8407 = vpop.f32.mrf.mxu0
    %v8408 = vadd.f32 %v8295, %v8407
    %v8409 = vpop.f32.mrf.mxu0
    %v8410 = vadd.f32 %v8297, %v8409
    %v8411 = vpop.f32.mrf.mxu0
    %v8412 = vadd.f32 %v8299, %v8411
    %v8413 = vpop.f32.mrf.mxu0
    %v8414 = vadd.f32 %v8301, %v8413
    %8415 = vmatprep.mubr.bf16.mxu0 %v2554
    %8416 = vmatmul.mubr.bf16.gmra.mxu0 %v2553
    %v8417 = vpop.f32.mrf.mxu0
    %v8418 = vadd.f32 %v8305, %v8417
    %v8419 = vpop.f32.mrf.mxu0
    %v8420 = vadd.f32 %v8307, %v8419
    %v8421 = vpop.f32.mrf.mxu0
    %v8422 = vadd.f32 %v8309, %v8421
    %v8423 = vpop.f32.mrf.mxu0
    %v8424 = vadd.f32 %v8311, %v8423
    %8425 = vmatprep.mubr.bf16.mxu0 %v2604
    %8426 = vmatmul.mubr.bf16.gmra.mxu0 %v2603
    %v8427 = vpop.f32.mrf.mxu0
    %v8428 = vadd.f32 %v8315, %v8427
    %v8429 = vpop.f32.mrf.mxu0
    %v8430 = vadd.f32 %v8317, %v8429
    %v8431 = vpop.f32.mrf.mxu0
    %v8432 = vadd.f32 %v8319, %v8431
    %v8433 = vpop.f32.mrf.mxu0
    %v8434 = vadd.f32 %v8321, %v8433
    %8435 = vmatprep.mubr.bf16.mxu0 %v2654
    %8436 = vmatmul.mubr.bf16.gmra.mxu0 %v2653
    %v8437 = vpop.f32.mrf.mxu0
    %v8438 = vadd.f32 %v8325, %v8437
    %v8439 = vpop.f32.mrf.mxu0
    %v8440 = vadd.f32 %v8327, %v8439
    %v8441 = vpop.f32.mrf.mxu0
    %v8442 = vadd.f32 %v8329, %v8441
    %v8443 = vpop.f32.mrf.mxu0
    %v8444 = vadd.f32 %v8331, %v8443
    %8445 = vmatprep.mubr.bf16.mxu0 %v2704
    %8446 = vmatmul.mubr.bf16.gmra.mxu0 %v2703
    %v8447 = vpop.f32.mrf.mxu0
    %v8448 = vadd.f32 %v8335, %v8447
    %v8449 = vpop.f32.mrf.mxu0
    %v8450 = vadd.f32 %v8337, %v8449
    %v8451 = vpop.f32.mrf.mxu0
    %v8452 = vadd.f32 %v8339, %v8451
    %v8453 = vpop.f32.mrf.mxu0
    %v8454 = vadd.f32 %v8341, %v8453
    %8455 = vmatprep.mubr.bf16.mxu0 %v2754
    %8456 = vmatmul.mubr.bf16.gmra.mxu0 %v2753
    %v8457 = vpop.f32.mrf.mxu0
    %v8458 = vadd.f32 %v8345, %v8457
    %v8459 = vpop.f32.mrf.mxu0
    %v8460 = vadd.f32 %v8347, %v8459
    %v8461 = vpop.f32.mrf.mxu0
    %v8462 = vadd.f32 %v8349, %v8461
    %v8463 = vpop.f32.mrf.mxu0
    %v8464 = vadd.f32 %v8351, %v8463
    %8465 = vmatprep.mubr.bf16.mxu0 %v2804
    %8466 = vmatmul.mubr.bf16.gmra.mxu0 %v2803
    %v8467 = vpop.f32.mrf.mxu0
    %v8468 = vadd.f32 %v8355, %v8467
    %v8469 = vpop.f32.mrf.mxu0
    %v8470 = vadd.f32 %v8357, %v8469
    %v8471 = vpop.f32.mrf.mxu0
    %v8472 = vadd.f32 %v8359, %v8471
    %v8473 = vpop.f32.mrf.mxu0
    %v8474 = vadd.f32 %v8361, %v8473
    %8475 = vdwg.mxu0
    %8476 = vmatprep.subr.bf16.mxu0 %v6000
    %8477 = vmatpush1.bf16.msra.mxu0 %v5999
    %8478 = vmatprep.subr.bf16.mxu0 %v5998
    %8479 = vmatpush1.bf16.msra.mxu0 %v5997
    %8480 = vmatprep.subr.bf16.mxu0 %v5996
    %8481 = vmatpush1.bf16.msra.mxu0 %v5995
    %8482 = vmatprep.subr.bf16.mxu0 %v5994
    %8483 = vmatpush1.bf16.msra.mxu0 %v5993
    %8484 = vmatprep.subr.bf16.mxu0 %v5992
    %8485 = vmatpush1.bf16.msra.mxu0 %v5991
    %8486 = vmatprep.subr.bf16.mxu0 %v5990
    %8487 = vmatpush1.bf16.msra.mxu0 %v5989
    %8488 = vmatprep.subr.bf16.mxu0 %v5988
    %8489 = vmatpush1.bf16.msra.mxu0 %v5987
    %8490 = vmatprep.subr.bf16.mxu0 %v5986
    %8491 = vmatpush1.bf16.msra.mxu0 %v5985
    %8492 = vmatprep.subr.bf16.mxu0 %v6016
    %8493 = vmatpush2.bf16.msra.mxu0 %v6015
    %8494 = vmatprep.subr.bf16.mxu0 %v6014
    %8495 = vmatpush2.bf16.msra.mxu0 %v6013
    %8496 = vmatprep.subr.bf16.mxu0 %v6012
    %8497 = vmatpush2.bf16.msra.mxu0 %v6011
    %8498 = vmatprep.subr.bf16.mxu0 %v6010
    %8499 = vmatpush2.bf16.msra.mxu0 %v6009
    %8500 = vmatprep.subr.bf16.mxu0 %v6008
    %8501 = vmatpush2.bf16.msra.mxu0 %v6007
    %8502 = vmatprep.subr.bf16.mxu0 %v6006
    %8503 = vmatpush2.bf16.msra.mxu0 %v6005
    %8504 = vmatprep.subr.bf16.mxu0 %v6004
    %8505 = vmatpush2.bf16.msra.mxu0 %v6003
    %8506 = vmatprep.subr.bf16.mxu0 %v6002
    %8507 = vmatpush2.bf16.msra.mxu0 %v6001
    %8508 = vmatprep.mubr.bf16.mxu0 %v2456
    %8509 = vmatmul.mubr.bf16.gmra.mxu0 %v2455
    %v8510 = vpop.f32.mrf.mxu0
    %v8511 = vadd.f32 %v8398, %v8510
    %v8512 = vpop.f32.mrf.mxu0
    %v8513 = vadd.f32 %v8400, %v8512
    %v8514 = vpop.f32.mrf.mxu0
    %v8515 = vadd.f32 %v8402, %v8514
    %v8516 = vpop.f32.mrf.mxu0
    %v8517 = vadd.f32 %v8404, %v8516
    %8518 = vmatprep.mubr.bf16.mxu0 %v2506
    %8519 = vmatmul.mubr.bf16.gmra.mxu0 %v2505
    %v8520 = vpop.f32.mrf.mxu0
    %v8521 = vadd.f32 %v8408, %v8520
    %v8522 = vpop.f32.mrf.mxu0
    %v8523 = vadd.f32 %v8410, %v8522
    %v8524 = vpop.f32.mrf.mxu0
    %v8525 = vadd.f32 %v8412, %v8524
    %v8526 = vpop.f32.mrf.mxu0
    %v8527 = vadd.f32 %v8414, %v8526
    %8528 = vmatprep.mubr.bf16.mxu0 %v2556
    %8529 = vmatmul.mubr.bf16.gmra.mxu0 %v2555
    %v8530 = vpop.f32.mrf.mxu0
    %v8531 = vadd.f32 %v8418, %v8530
    %v8532 = vpop.f32.mrf.mxu0
    %v8533 = vadd.f32 %v8420, %v8532
    %v8534 = vpop.f32.mrf.mxu0
    %v8535 = vadd.f32 %v8422, %v8534
    %v8536 = vpop.f32.mrf.mxu0
    %v8537 = vadd.f32 %v8424, %v8536
    %8538 = vmatprep.mubr.bf16.mxu0 %v2606
    %8539 = vmatmul.mubr.bf16.gmra.mxu0 %v2605
    %v8540 = vpop.f32.mrf.mxu0
    %v8541 = vadd.f32 %v8428, %v8540
    %v8542 = vpop.f32.mrf.mxu0
    %v8543 = vadd.f32 %v8430, %v8542
    %v8544 = vpop.f32.mrf.mxu0
    %v8545 = vadd.f32 %v8432, %v8544
    %v8546 = vpop.f32.mrf.mxu0
    %v8547 = vadd.f32 %v8434, %v8546
    %8548 = vmatprep.mubr.bf16.mxu0 %v2656
    %8549 = vmatmul.mubr.bf16.gmra.mxu0 %v2655
    %v8550 = vpop.f32.mrf.mxu0
    %v8551 = vadd.f32 %v8438, %v8550
    %v8552 = vpop.f32.mrf.mxu0
    %v8553 = vadd.f32 %v8440, %v8552
    %v8554 = vpop.f32.mrf.mxu0
    %v8555 = vadd.f32 %v8442, %v8554
    %v8556 = vpop.f32.mrf.mxu0
    %v8557 = vadd.f32 %v8444, %v8556
    %8558 = vmatprep.mubr.bf16.mxu0 %v2706
    %8559 = vmatmul.mubr.bf16.gmra.mxu0 %v2705
    %v8560 = vpop.f32.mrf.mxu0
    %v8561 = vadd.f32 %v8448, %v8560
    %v8562 = vpop.f32.mrf.mxu0
    %v8563 = vadd.f32 %v8450, %v8562
    %v8564 = vpop.f32.mrf.mxu0
    %v8565 = vadd.f32 %v8452, %v8564
    %v8566 = vpop.f32.mrf.mxu0
    %v8567 = vadd.f32 %v8454, %v8566
    %8568 = vmatprep.mubr.bf16.mxu0 %v2756
    %8569 = vmatmul.mubr.bf16.gmra.mxu0 %v2755
    %v8570 = vpop.f32.mrf.mxu0
    %v8571 = vadd.f32 %v8458, %v8570
    %v8572 = vpop.f32.mrf.mxu0
    %v8573 = vadd.f32 %v8460, %v8572
    %v8574 = vpop.f32.mrf.mxu0
    %v8575 = vadd.f32 %v8462, %v8574
    %v8576 = vpop.f32.mrf.mxu0
    %v8577 = vadd.f32 %v8464, %v8576
    %8578 = vmatprep.mubr.bf16.mxu0 %v2806
    %8579 = vmatmul.mubr.bf16.gmra.mxu0 %v2805
    %v8580 = vpop.f32.mrf.mxu0
    %v8581 = vadd.f32 %v8468, %v8580
    %v8582 = vpop.f32.mrf.mxu0
    %v8583 = vadd.f32 %v8470, %v8582
    %v8584 = vpop.f32.mrf.mxu0
    %v8585 = vadd.f32 %v8472, %v8584
    %v8586 = vpop.f32.mrf.mxu0
    %v8587 = vadd.f32 %v8474, %v8586
    %8588 = vdwg.mxu0
    %8589 = vmatprep.subr.bf16.mxu0 %v6032
    %8590 = vmatpush1.bf16.msra.mxu0 %v6031
    %8591 = vmatprep.subr.bf16.mxu0 %v6030
    %8592 = vmatpush1.bf16.msra.mxu0 %v6029
    %8593 = vmatprep.subr.bf16.mxu0 %v6028
    %8594 = vmatpush1.bf16.msra.mxu0 %v6027
    %8595 = vmatprep.subr.bf16.mxu0 %v6026
    %8596 = vmatpush1.bf16.msra.mxu0 %v6025
    %8597 = vmatprep.subr.bf16.mxu0 %v6024
    %8598 = vmatpush1.bf16.msra.mxu0 %v6023
    %8599 = vmatprep.subr.bf16.mxu0 %v6022
    %8600 = vmatpush1.bf16.msra.mxu0 %v6021
    %8601 = vmatprep.subr.bf16.mxu0 %v6020
    %8602 = vmatpush1.bf16.msra.mxu0 %v6019
    %8603 = vmatprep.subr.bf16.mxu0 %v6018
    %8604 = vmatpush1.bf16.msra.mxu0 %v6017
    %8605 = vmatprep.subr.bf16.mxu0 %v6048
    %8606 = vmatpush2.bf16.msra.mxu0 %v6047
    %8607 = vmatprep.subr.bf16.mxu0 %v6046
    %8608 = vmatpush2.bf16.msra.mxu0 %v6045
    %8609 = vmatprep.subr.bf16.mxu0 %v6044
    %8610 = vmatpush2.bf16.msra.mxu0 %v6043
    %8611 = vmatprep.subr.bf16.mxu0 %v6042
    %8612 = vmatpush2.bf16.msra.mxu0 %v6041
    %8613 = vmatprep.subr.bf16.mxu0 %v6040
    %8614 = vmatpush2.bf16.msra.mxu0 %v6039
    %8615 = vmatprep.subr.bf16.mxu0 %v6038
    %8616 = vmatpush2.bf16.msra.mxu0 %v6037
    %8617 = vmatprep.subr.bf16.mxu0 %v6036
    %8618 = vmatpush2.bf16.msra.mxu0 %v6035
    %8619 = vmatprep.subr.bf16.mxu0 %v6034
    %8620 = vmatpush2.bf16.msra.mxu0 %v6033
    %8621 = vmatprep.mubr.bf16.mxu0 %v2458
    %8622 = vmatmul.mubr.bf16.gmra.mxu0 %v2457
    %v8623 = vpop.f32.mrf.mxu0
    %v8624 = vadd.f32 %v8511, %v8623
    %v8625 = vpop.f32.mrf.mxu0
    %v8626 = vadd.f32 %v8513, %v8625
    %v8627 = vpop.f32.mrf.mxu0
    %v8628 = vadd.f32 %v8515, %v8627
    %v8629 = vpop.f32.mrf.mxu0
    %v8630 = vadd.f32 %v8517, %v8629
    %8631 = vmatprep.mubr.bf16.mxu0 %v2508
    %8632 = vmatmul.mubr.bf16.gmra.mxu0 %v2507
    %v8633 = vpop.f32.mrf.mxu0
    %v8634 = vadd.f32 %v8521, %v8633
    %v8635 = vpop.f32.mrf.mxu0
    %v8636 = vadd.f32 %v8523, %v8635
    %v8637 = vpop.f32.mrf.mxu0
    %v8638 = vadd.f32 %v8525, %v8637
    %v8639 = vpop.f32.mrf.mxu0
    %v8640 = vadd.f32 %v8527, %v8639
    %8641 = vmatprep.mubr.bf16.mxu0 %v2558
    %8642 = vmatmul.mubr.bf16.gmra.mxu0 %v2557
    %v8643 = vpop.f32.mrf.mxu0
    %v8644 = vadd.f32 %v8531, %v8643
    %v8645 = vpop.f32.mrf.mxu0
    %v8646 = vadd.f32 %v8533, %v8645
    %v8647 = vpop.f32.mrf.mxu0
    %v8648 = vadd.f32 %v8535, %v8647
    %v8649 = vpop.f32.mrf.mxu0
    %v8650 = vadd.f32 %v8537, %v8649
    %8651 = vmatprep.mubr.bf16.mxu0 %v2608
    %8652 = vmatmul.mubr.bf16.gmra.mxu0 %v2607
    %v8653 = vpop.f32.mrf.mxu0
    %v8654 = vadd.f32 %v8541, %v8653
    %v8655 = vpop.f32.mrf.mxu0
    %v8656 = vadd.f32 %v8543, %v8655
    %v8657 = vpop.f32.mrf.mxu0
    %v8658 = vadd.f32 %v8545, %v8657
    %v8659 = vpop.f32.mrf.mxu0
    %v8660 = vadd.f32 %v8547, %v8659
    %8661 = vmatprep.mubr.bf16.mxu0 %v2658
    %8662 = vmatmul.mubr.bf16.gmra.mxu0 %v2657
    %v8663 = vpop.f32.mrf.mxu0
    %v8664 = vadd.f32 %v8551, %v8663
    %v8665 = vpop.f32.mrf.mxu0
    %v8666 = vadd.f32 %v8553, %v8665
    %v8667 = vpop.f32.mrf.mxu0
    %v8668 = vadd.f32 %v8555, %v8667
    %v8669 = vpop.f32.mrf.mxu0
    %v8670 = vadd.f32 %v8557, %v8669
    %8671 = vmatprep.mubr.bf16.mxu0 %v2708
    %8672 = vmatmul.mubr.bf16.gmra.mxu0 %v2707
    %v8673 = vpop.f32.mrf.mxu0
    %v8674 = vadd.f32 %v8561, %v8673
    %v8675 = vpop.f32.mrf.mxu0
    %v8676 = vadd.f32 %v8563, %v8675
    %v8677 = vpop.f32.mrf.mxu0
    %v8678 = vadd.f32 %v8565, %v8677
    %v8679 = vpop.f32.mrf.mxu0
    %v8680 = vadd.f32 %v8567, %v8679
    %8681 = vmatprep.mubr.bf16.mxu0 %v2758
    %8682 = vmatmul.mubr.bf16.gmra.mxu0 %v2757
    %v8683 = vpop.f32.mrf.mxu0
    %v8684 = vadd.f32 %v8571, %v8683
    %v8685 = vpop.f32.mrf.mxu0
    %v8686 = vadd.f32 %v8573, %v8685
    %v8687 = vpop.f32.mrf.mxu0
    %v8688 = vadd.f32 %v8575, %v8687
    %v8689 = vpop.f32.mrf.mxu0
    %v8690 = vadd.f32 %v8577, %v8689
    %8691 = vmatprep.mubr.bf16.mxu0 %v2808
    %8692 = vmatmul.mubr.bf16.gmra.mxu0 %v2807
    %v8693 = vpop.f32.mrf.mxu0
    %v8694 = vadd.f32 %v8581, %v8693
    %v8695 = vpop.f32.mrf.mxu0
    %v8696 = vadd.f32 %v8583, %v8695
    %v8697 = vpop.f32.mrf.mxu0
    %v8698 = vadd.f32 %v8585, %v8697
    %v8699 = vpop.f32.mrf.mxu0
    %v8700 = vadd.f32 %v8587, %v8699
    %8701 = vdwg.mxu0
    %8702 = vmatprep.subr.bf16.mxu0 %v6064
    %8703 = vmatpush1.bf16.msra.mxu0 %v6063
    %8704 = vmatprep.subr.bf16.mxu0 %v6062
    %8705 = vmatpush1.bf16.msra.mxu0 %v6061
    %8706 = vmatprep.subr.bf16.mxu0 %v6060
    %8707 = vmatpush1.bf16.msra.mxu0 %v6059
    %8708 = vmatprep.subr.bf16.mxu0 %v6058
    %8709 = vmatpush1.bf16.msra.mxu0 %v6057
    %8710 = vmatprep.subr.bf16.mxu0 %v6056
    %8711 = vmatpush1.bf16.msra.mxu0 %v6055
    %8712 = vmatprep.subr.bf16.mxu0 %v6054
    %8713 = vmatpush1.bf16.msra.mxu0 %v6053
    %8714 = vmatprep.subr.bf16.mxu0 %v6052
    %8715 = vmatpush1.bf16.msra.mxu0 %v6051
    %8716 = vmatprep.subr.bf16.mxu0 %v6050
    %8717 = vmatpush1.bf16.msra.mxu0 %v6049
    %8718 = vmatprep.subr.bf16.mxu0 %v6080
    %8719 = vmatpush2.bf16.msra.mxu0 %v6079
    %8720 = vmatprep.subr.bf16.mxu0 %v6078
    %8721 = vmatpush2.bf16.msra.mxu0 %v6077
    %8722 = vmatprep.subr.bf16.mxu0 %v6076
    %8723 = vmatpush2.bf16.msra.mxu0 %v6075
    %8724 = vmatprep.subr.bf16.mxu0 %v6074
    %8725 = vmatpush2.bf16.msra.mxu0 %v6073
    %8726 = vmatprep.subr.bf16.mxu0 %v6072
    %8727 = vmatpush2.bf16.msra.mxu0 %v6071
    %8728 = vmatprep.subr.bf16.mxu0 %v6070
    %8729 = vmatpush2.bf16.msra.mxu0 %v6069
    %8730 = vmatprep.subr.bf16.mxu0 %v6068
    %8731 = vmatpush2.bf16.msra.mxu0 %v6067
    %8732 = vmatprep.subr.bf16.mxu0 %v6066
    %8733 = vmatpush2.bf16.msra.mxu0 %v6065
    %8734 = vmatprep.mubr.bf16.mxu0 %v2460
    %8735 = vmatmul.mubr.bf16.gmra.mxu0 %v2459
    %v8736 = vpop.f32.mrf.mxu0
    %v8737 = vadd.f32 %v8624, %v8736
    %v8738 = vpop.f32.mrf.mxu0
    %v8739 = vadd.f32 %v8626, %v8738
    %v8740 = vpop.f32.mrf.mxu0
    %v8741 = vadd.f32 %v8628, %v8740
    %v8742 = vpop.f32.mrf.mxu0
    %v8743 = vadd.f32 %v8630, %v8742
    %8744 = vmatprep.mubr.bf16.mxu0 %v2510
    %8745 = vmatmul.mubr.bf16.gmra.mxu0 %v2509
    %v8746 = vpop.f32.mrf.mxu0
    %v8747 = vadd.f32 %v8634, %v8746
    %v8748 = vpop.f32.mrf.mxu0
    %v8749 = vadd.f32 %v8636, %v8748
    %v8750 = vpop.f32.mrf.mxu0
    %v8751 = vadd.f32 %v8638, %v8750
    %v8752 = vpop.f32.mrf.mxu0
    %v8753 = vadd.f32 %v8640, %v8752
    %8754 = vmatprep.mubr.bf16.mxu0 %v2560
    %8755 = vmatmul.mubr.bf16.gmra.mxu0 %v2559
    %v8756 = vpop.f32.mrf.mxu0
    %v8757 = vadd.f32 %v8644, %v8756
    %v8758 = vpop.f32.mrf.mxu0
    %v8759 = vadd.f32 %v8646, %v8758
    %v8760 = vpop.f32.mrf.mxu0
    %v8761 = vadd.f32 %v8648, %v8760
    %v8762 = vpop.f32.mrf.mxu0
    %v8763 = vadd.f32 %v8650, %v8762
    %8764 = vmatprep.mubr.bf16.mxu0 %v2610
    %8765 = vmatmul.mubr.bf16.gmra.mxu0 %v2609
    %v8766 = vpop.f32.mrf.mxu0
    %v8767 = vadd.f32 %v8654, %v8766
    %v8768 = vpop.f32.mrf.mxu0
    %v8769 = vadd.f32 %v8656, %v8768
    %v8770 = vpop.f32.mrf.mxu0
    %v8771 = vadd.f32 %v8658, %v8770
    %v8772 = vpop.f32.mrf.mxu0
    %v8773 = vadd.f32 %v8660, %v8772
    %8774 = vmatprep.mubr.bf16.mxu0 %v2660
    %8775 = vmatmul.mubr.bf16.gmra.mxu0 %v2659
    %v8776 = vpop.f32.mrf.mxu0
    %v8777 = vadd.f32 %v8664, %v8776
    %v8778 = vpop.f32.mrf.mxu0
    %v8779 = vadd.f32 %v8666, %v8778
    %v8780 = vpop.f32.mrf.mxu0
    %v8781 = vadd.f32 %v8668, %v8780
    %v8782 = vpop.f32.mrf.mxu0
    %v8783 = vadd.f32 %v8670, %v8782
    %8784 = vmatprep.mubr.bf16.mxu0 %v2710
    %8785 = vmatmul.mubr.bf16.gmra.mxu0 %v2709
    %v8786 = vpop.f32.mrf.mxu0
    %v8787 = vadd.f32 %v8674, %v8786
    %v8788 = vpop.f32.mrf.mxu0
    %v8789 = vadd.f32 %v8676, %v8788
    %v8790 = vpop.f32.mrf.mxu0
    %v8791 = vadd.f32 %v8678, %v8790
    %v8792 = vpop.f32.mrf.mxu0
    %v8793 = vadd.f32 %v8680, %v8792
    %8794 = vmatprep.mubr.bf16.mxu0 %v2760
    %8795 = vmatmul.mubr.bf16.gmra.mxu0 %v2759
    %v8796 = vpop.f32.mrf.mxu0
    %v8797 = vadd.f32 %v8684, %v8796
    %v8798 = vpop.f32.mrf.mxu0
    %v8799 = vadd.f32 %v8686, %v8798
    %v8800 = vpop.f32.mrf.mxu0
    %v8801 = vadd.f32 %v8688, %v8800
    %v8802 = vpop.f32.mrf.mxu0
    %v8803 = vadd.f32 %v8690, %v8802
    %8804 = vmatprep.mubr.bf16.mxu0 %v2810
    %8805 = vmatmul.mubr.bf16.gmra.mxu0 %v2809
    %v8806 = vpop.f32.mrf.mxu0
    %v8807 = vadd.f32 %v8694, %v8806
    %v8808 = vpop.f32.mrf.mxu0
    %v8809 = vadd.f32 %v8696, %v8808
    %v8810 = vpop.f32.mrf.mxu0
    %v8811 = vadd.f32 %v8698, %v8810
    %v8812 = vpop.f32.mrf.mxu0
    %v8813 = vadd.f32 %v8700, %v8812
    %8814 = vdwg.mxu0
    %8815 = vmatprep.subr.bf16.mxu0 %v6096
    %8816 = vmatpush1.bf16.msra.mxu0 %v6095
    %8817 = vmatprep.subr.bf16.mxu0 %v6094
    %8818 = vmatpush1.bf16.msra.mxu0 %v6093
    %8819 = vmatprep.subr.bf16.mxu0 %v6092
    %8820 = vmatpush1.bf16.msra.mxu0 %v6091
    %8821 = vmatprep.subr.bf16.mxu0 %v6090
    %8822 = vmatpush1.bf16.msra.mxu0 %v6089
    %8823 = vmatprep.subr.bf16.mxu0 %v6088
    %8824 = vmatpush1.bf16.msra.mxu0 %v6087
    %8825 = vmatprep.subr.bf16.mxu0 %v6086
    %8826 = vmatpush1.bf16.msra.mxu0 %v6085
    %8827 = vmatprep.subr.bf16.mxu0 %v6084
    %8828 = vmatpush1.bf16.msra.mxu0 %v6083
    %8829 = vmatprep.subr.bf16.mxu0 %v6082
    %8830 = vmatpush1.bf16.msra.mxu0 %v6081
    %8831 = vmatprep.subr.bf16.mxu0 %v6112
    %8832 = vmatpush2.bf16.msra.mxu0 %v6111
    %8833 = vmatprep.subr.bf16.mxu0 %v6110
    %8834 = vmatpush2.bf16.msra.mxu0 %v6109
    %8835 = vmatprep.subr.bf16.mxu0 %v6108
    %8836 = vmatpush2.bf16.msra.mxu0 %v6107
    %8837 = vmatprep.subr.bf16.mxu0 %v6106
    %8838 = vmatpush2.bf16.msra.mxu0 %v6105
    %8839 = vmatprep.subr.bf16.mxu0 %v6104
    %8840 = vmatpush2.bf16.msra.mxu0 %v6103
    %8841 = vmatprep.subr.bf16.mxu0 %v6102
    %8842 = vmatpush2.bf16.msra.mxu0 %v6101
    %8843 = vmatprep.subr.bf16.mxu0 %v6100
    %8844 = vmatpush2.bf16.msra.mxu0 %v6099
    %8845 = vmatprep.subr.bf16.mxu0 %v6098
    %8846 = vmatpush2.bf16.msra.mxu0 %v6097
    %8847 = vmatprep.mubr.bf16.mxu0 %v2462
    %8848 = vmatmul.mubr.bf16.gmra.mxu0 %v2461
    %v8849 = vpop.f32.mrf.mxu0
    %v8850 = vadd.f32 %v8737, %v8849
    %v8851 = vpop.f32.mrf.mxu0
    %v8852 = vadd.f32 %v8739, %v8851
    %v8853 = vpop.f32.mrf.mxu0
    %v8854 = vadd.f32 %v8741, %v8853
    %v8855 = vpop.f32.mrf.mxu0
    %v8856 = vadd.f32 %v8743, %v8855
    %8857 = vmatprep.mubr.bf16.mxu0 %v2512
    %8858 = vmatmul.mubr.bf16.gmra.mxu0 %v2511
    %v8859 = vpop.f32.mrf.mxu0
    %v8860 = vadd.f32 %v8747, %v8859
    %v8861 = vpop.f32.mrf.mxu0
    %v8862 = vadd.f32 %v8749, %v8861
    %v8863 = vpop.f32.mrf.mxu0
    %v8864 = vadd.f32 %v8751, %v8863
    %v8865 = vpop.f32.mrf.mxu0
    %v8866 = vadd.f32 %v8753, %v8865
    %8867 = vmatprep.mubr.bf16.mxu0 %v2562
    %8868 = vmatmul.mubr.bf16.gmra.mxu0 %v2561
    %v8869 = vpop.f32.mrf.mxu0
    %v8870 = vadd.f32 %v8757, %v8869
    %v8871 = vpop.f32.mrf.mxu0
    %v8872 = vadd.f32 %v8759, %v8871
    %v8873 = vpop.f32.mrf.mxu0
    %v8874 = vadd.f32 %v8761, %v8873
    %v8875 = vpop.f32.mrf.mxu0
    %v8876 = vadd.f32 %v8763, %v8875
    %8877 = vmatprep.mubr.bf16.mxu0 %v2612
    %8878 = vmatmul.mubr.bf16.gmra.mxu0 %v2611
    %v8879 = vpop.f32.mrf.mxu0
    %v8880 = vadd.f32 %v8767, %v8879
    %v8881 = vpop.f32.mrf.mxu0
    %v8882 = vadd.f32 %v8769, %v8881
    %v8883 = vpop.f32.mrf.mxu0
    %v8884 = vadd.f32 %v8771, %v8883
    %v8885 = vpop.f32.mrf.mxu0
    %v8886 = vadd.f32 %v8773, %v8885
    %8887 = vmatprep.mubr.bf16.mxu0 %v2662
    %8888 = vmatmul.mubr.bf16.gmra.mxu0 %v2661
    %v8889 = vpop.f32.mrf.mxu0
    %v8890 = vadd.f32 %v8777, %v8889
    %v8891 = vpop.f32.mrf.mxu0
    %v8892 = vadd.f32 %v8779, %v8891
    %v8893 = vpop.f32.mrf.mxu0
    %v8894 = vadd.f32 %v8781, %v8893
    %v8895 = vpop.f32.mrf.mxu0
    %v8896 = vadd.f32 %v8783, %v8895
    %8897 = vmatprep.mubr.bf16.mxu0 %v2712
    %8898 = vmatmul.mubr.bf16.gmra.mxu0 %v2711
    %v8899 = vpop.f32.mrf.mxu0
    %v8900 = vadd.f32 %v8787, %v8899
    %v8901 = vpop.f32.mrf.mxu0
    %v8902 = vadd.f32 %v8789, %v8901
    %v8903 = vpop.f32.mrf.mxu0
    %v8904 = vadd.f32 %v8791, %v8903
    %v8905 = vpop.f32.mrf.mxu0
    %v8906 = vadd.f32 %v8793, %v8905
    %8907 = vmatprep.mubr.bf16.mxu0 %v2762
    %8908 = vmatmul.mubr.bf16.gmra.mxu0 %v2761
    %v8909 = vpop.f32.mrf.mxu0
    %v8910 = vadd.f32 %v8797, %v8909
    %v8911 = vpop.f32.mrf.mxu0
    %v8912 = vadd.f32 %v8799, %v8911
    %v8913 = vpop.f32.mrf.mxu0
    %v8914 = vadd.f32 %v8801, %v8913
    %v8915 = vpop.f32.mrf.mxu0
    %v8916 = vadd.f32 %v8803, %v8915
    %8917 = vmatprep.mubr.bf16.mxu0 %v2812
    %8918 = vmatmul.mubr.bf16.gmra.mxu0 %v2811
    %v8919 = vpop.f32.mrf.mxu0
    %v8920 = vadd.f32 %v8807, %v8919
    %v8921 = vpop.f32.mrf.mxu0
    %v8922 = vadd.f32 %v8809, %v8921
    %v8923 = vpop.f32.mrf.mxu0
    %v8924 = vadd.f32 %v8811, %v8923
    %v8925 = vpop.f32.mrf.mxu0
    %v8926 = vadd.f32 %v8813, %v8925
    %8927 = vdwg.mxu0
    %8928 = vmatprep.subr.bf16.mxu0 %v6128
    %8929 = vmatpush1.bf16.msra.mxu0 %v6127
    %8930 = vmatprep.subr.bf16.mxu0 %v6126
    %8931 = vmatpush1.bf16.msra.mxu0 %v6125
    %8932 = vmatprep.subr.bf16.mxu0 %v6124
    %8933 = vmatpush1.bf16.msra.mxu0 %v6123
    %8934 = vmatprep.subr.bf16.mxu0 %v6122
    %8935 = vmatpush1.bf16.msra.mxu0 %v6121
    %8936 = vmatprep.subr.bf16.mxu0 %v6120
    %8937 = vmatpush1.bf16.msra.mxu0 %v6119
    %8938 = vmatprep.subr.bf16.mxu0 %v6118
    %8939 = vmatpush1.bf16.msra.mxu0 %v6117
    %8940 = vmatprep.subr.bf16.mxu0 %v6116
    %8941 = vmatpush1.bf16.msra.mxu0 %v6115
    %8942 = vmatprep.subr.bf16.mxu0 %v6114
    %8943 = vmatpush1.bf16.msra.mxu0 %v6113
    %8944 = vmatprep.subr.bf16.mxu0 %v6144
    %8945 = vmatpush2.bf16.msra.mxu0 %v6143
    %8946 = vmatprep.subr.bf16.mxu0 %v6142
    %8947 = vmatpush2.bf16.msra.mxu0 %v6141
    %8948 = vmatprep.subr.bf16.mxu0 %v6140
    %8949 = vmatpush2.bf16.msra.mxu0 %v6139
    %8950 = vmatprep.subr.bf16.mxu0 %v6138
    %8951 = vmatpush2.bf16.msra.mxu0 %v6137
    %8952 = vmatprep.subr.bf16.mxu0 %v6136
    %8953 = vmatpush2.bf16.msra.mxu0 %v6135
    %8954 = vmatprep.subr.bf16.mxu0 %v6134
    %8955 = vmatpush2.bf16.msra.mxu0 %v6133
    %8956 = vmatprep.subr.bf16.mxu0 %v6132
    %8957 = vmatpush2.bf16.msra.mxu0 %v6131
    %8958 = vmatprep.subr.bf16.mxu0 %v6130
    %8959 = vmatpush2.bf16.msra.mxu0 %v6129
    %8960 = vmatprep.mubr.bf16.mxu0 %v2464
    %8961 = vmatmul.mubr.bf16.gmra.mxu0 %v2463
    %v8962 = vpop.f32.mrf.mxu0
    %v8963 = vadd.f32 %v8850, %v8962
    %v8964 = vpop.f32.mrf.mxu0
    %v8965 = vadd.f32 %v8852, %v8964
    %v8966 = vpop.f32.mrf.mxu0
    %v8967 = vadd.f32 %v8854, %v8966
    %v8968 = vpop.f32.mrf.mxu0
    %v8969 = vadd.f32 %v8856, %v8968
    %8970 = vmatprep.mubr.bf16.mxu0 %v2514
    %8971 = vmatmul.mubr.bf16.gmra.mxu0 %v2513
    %v8972 = vpop.f32.mrf.mxu0
    %v8973 = vadd.f32 %v8860, %v8972
    %v8974 = vpop.f32.mrf.mxu0
    %v8975 = vadd.f32 %v8862, %v8974
    %v8976 = vpop.f32.mrf.mxu0
    %v8977 = vadd.f32 %v8864, %v8976
    %v8978 = vpop.f32.mrf.mxu0
    %v8979 = vadd.f32 %v8866, %v8978
    %8980 = vmatprep.mubr.bf16.mxu0 %v2564
    %8981 = vmatmul.mubr.bf16.gmra.mxu0 %v2563
    %v8982 = vpop.f32.mrf.mxu0
    %v8983 = vadd.f32 %v8870, %v8982
    %v8984 = vpop.f32.mrf.mxu0
    %v8985 = vadd.f32 %v8872, %v8984
    %v8986 = vpop.f32.mrf.mxu0
    %v8987 = vadd.f32 %v8874, %v8986
    %v8988 = vpop.f32.mrf.mxu0
    %v8989 = vadd.f32 %v8876, %v8988
    %8990 = vmatprep.mubr.bf16.mxu0 %v2614
    %8991 = vmatmul.mubr.bf16.gmra.mxu0 %v2613
    %v8992 = vpop.f32.mrf.mxu0
    %v8993 = vadd.f32 %v8880, %v8992
    %v8994 = vpop.f32.mrf.mxu0
    %v8995 = vadd.f32 %v8882, %v8994
    %v8996 = vpop.f32.mrf.mxu0
    %v8997 = vadd.f32 %v8884, %v8996
    %v8998 = vpop.f32.mrf.mxu0
    %v8999 = vadd.f32 %v8886, %v8998
    %9000 = vmatprep.mubr.bf16.mxu0 %v2664
    %9001 = vmatmul.mubr.bf16.gmra.mxu0 %v2663
    %v9002 = vpop.f32.mrf.mxu0
    %v9003 = vadd.f32 %v8890, %v9002
    %v9004 = vpop.f32.mrf.mxu0
    %v9005 = vadd.f32 %v8892, %v9004
    %v9006 = vpop.f32.mrf.mxu0
    %v9007 = vadd.f32 %v8894, %v9006
    %v9008 = vpop.f32.mrf.mxu0
    %v9009 = vadd.f32 %v8896, %v9008
    %9010 = vmatprep.mubr.bf16.mxu0 %v2714
    %9011 = vmatmul.mubr.bf16.gmra.mxu0 %v2713
    %v9012 = vpop.f32.mrf.mxu0
    %v9013 = vadd.f32 %v8900, %v9012
    %v9014 = vpop.f32.mrf.mxu0
    %v9015 = vadd.f32 %v8902, %v9014
    %v9016 = vpop.f32.mrf.mxu0
    %v9017 = vadd.f32 %v8904, %v9016
    %v9018 = vpop.f32.mrf.mxu0
    %v9019 = vadd.f32 %v8906, %v9018
    %9020 = vmatprep.mubr.bf16.mxu0 %v2764
    %9021 = vmatmul.mubr.bf16.gmra.mxu0 %v2763
    %v9022 = vpop.f32.mrf.mxu0
    %v9023 = vadd.f32 %v8910, %v9022
    %v9024 = vpop.f32.mrf.mxu0
    %v9025 = vadd.f32 %v8912, %v9024
    %v9026 = vpop.f32.mrf.mxu0
    %v9027 = vadd.f32 %v8914, %v9026
    %v9028 = vpop.f32.mrf.mxu0
    %v9029 = vadd.f32 %v8916, %v9028
    %9030 = vmatprep.mubr.bf16.mxu0 %v2814
    %9031 = vmatmul.mubr.bf16.gmra.mxu0 %v2813
    %v9032 = vpop.f32.mrf.mxu0
    %v9033 = vadd.f32 %v8920, %v9032
    %v9034 = vpop.f32.mrf.mxu0
    %v9035 = vadd.f32 %v8922, %v9034
    %v9036 = vpop.f32.mrf.mxu0
    %v9037 = vadd.f32 %v8924, %v9036
    %v9038 = vpop.f32.mrf.mxu0
    %v9039 = vadd.f32 %v8926, %v9038
    %9040 = vdwg.mxu0
    %9041 = vmatprep.subr.bf16.mxu0 %v6160
    %9042 = vmatpush1.bf16.msra.mxu0 %v6159
    %9043 = vmatprep.subr.bf16.mxu0 %v6158
    %9044 = vmatpush1.bf16.msra.mxu0 %v6157
    %9045 = vmatprep.subr.bf16.mxu0 %v6156
    %9046 = vmatpush1.bf16.msra.mxu0 %v6155
    %9047 = vmatprep.subr.bf16.mxu0 %v6154
    %9048 = vmatpush1.bf16.msra.mxu0 %v6153
    %9049 = vmatprep.subr.bf16.mxu0 %v6152
    %9050 = vmatpush1.bf16.msra.mxu0 %v6151
    %9051 = vmatprep.subr.bf16.mxu0 %v6150
    %9052 = vmatpush1.bf16.msra.mxu0 %v6149
    %9053 = vmatprep.subr.bf16.mxu0 %v6148
    %9054 = vmatpush1.bf16.msra.mxu0 %v6147
    %9055 = vmatprep.subr.bf16.mxu0 %v6146
    %9056 = vmatpush1.bf16.msra.mxu0 %v6145
    %9057 = vmatprep.subr.bf16.mxu0 %v6176
    %9058 = vmatpush2.bf16.msra.mxu0 %v6175
    %9059 = vmatprep.subr.bf16.mxu0 %v6174
    %9060 = vmatpush2.bf16.msra.mxu0 %v6173
    %9061 = vmatprep.subr.bf16.mxu0 %v6172
    %9062 = vmatpush2.bf16.msra.mxu0 %v6171
    %9063 = vmatprep.subr.bf16.mxu0 %v6170
    %9064 = vmatpush2.bf16.msra.mxu0 %v6169
    %9065 = vmatprep.subr.bf16.mxu0 %v6168
    %9066 = vmatpush2.bf16.msra.mxu0 %v6167
    %9067 = vmatprep.subr.bf16.mxu0 %v6166
    %9068 = vmatpush2.bf16.msra.mxu0 %v6165
    %9069 = vmatprep.subr.bf16.mxu0 %v6164
    %9070 = vmatpush2.bf16.msra.mxu0 %v6163
    %9071 = vmatprep.subr.bf16.mxu0 %v6162
    %9072 = vmatpush2.bf16.msra.mxu0 %v6161
    %9073 = vmatprep.mubr.bf16.mxu0 %v2466
    %9074 = vmatmul.mubr.bf16.gmra.mxu0 %v2465
    %v9075 = vpop.f32.mrf.mxu0
    %v9076 = vadd.f32 %v8963, %v9075
    %v9077 = vpop.f32.mrf.mxu0
    %v9078 = vadd.f32 %v8965, %v9077
    %v9079 = vpop.f32.mrf.mxu0
    %v9080 = vadd.f32 %v8967, %v9079
    %v9081 = vpop.f32.mrf.mxu0
    %v9082 = vadd.f32 %v8969, %v9081
    %9083 = vmatprep.mubr.bf16.mxu0 %v2516
    %9084 = vmatmul.mubr.bf16.gmra.mxu0 %v2515
    %v9085 = vpop.f32.mrf.mxu0
    %v9086 = vadd.f32 %v8973, %v9085
    %v9087 = vpop.f32.mrf.mxu0
    %v9088 = vadd.f32 %v8975, %v9087
    %v9089 = vpop.f32.mrf.mxu0
    %v9090 = vadd.f32 %v8977, %v9089
    %v9091 = vpop.f32.mrf.mxu0
    %v9092 = vadd.f32 %v8979, %v9091
    %9093 = vmatprep.mubr.bf16.mxu0 %v2566
    %9094 = vmatmul.mubr.bf16.gmra.mxu0 %v2565
    %v9095 = vpop.f32.mrf.mxu0
    %v9096 = vadd.f32 %v8983, %v9095
    %v9097 = vpop.f32.mrf.mxu0
    %v9098 = vadd.f32 %v8985, %v9097
    %v9099 = vpop.f32.mrf.mxu0
    %v9100 = vadd.f32 %v8987, %v9099
    %v9101 = vpop.f32.mrf.mxu0
    %v9102 = vadd.f32 %v8989, %v9101
    %9103 = vmatprep.mubr.bf16.mxu0 %v2616
    %9104 = vmatmul.mubr.bf16.gmra.mxu0 %v2615
    %v9105 = vpop.f32.mrf.mxu0
    %v9106 = vadd.f32 %v8993, %v9105
    %v9107 = vpop.f32.mrf.mxu0
    %v9108 = vadd.f32 %v8995, %v9107
    %v9109 = vpop.f32.mrf.mxu0
    %v9110 = vadd.f32 %v8997, %v9109
    %v9111 = vpop.f32.mrf.mxu0
    %v9112 = vadd.f32 %v8999, %v9111
    %9113 = vmatprep.mubr.bf16.mxu0 %v2666
    %9114 = vmatmul.mubr.bf16.gmra.mxu0 %v2665
    %v9115 = vpop.f32.mrf.mxu0
    %v9116 = vadd.f32 %v9003, %v9115
    %v9117 = vpop.f32.mrf.mxu0
    %v9118 = vadd.f32 %v9005, %v9117
    %v9119 = vpop.f32.mrf.mxu0
    %v9120 = vadd.f32 %v9007, %v9119
    %v9121 = vpop.f32.mrf.mxu0
    %v9122 = vadd.f32 %v9009, %v9121
    %9123 = vmatprep.mubr.bf16.mxu0 %v2716
    %9124 = vmatmul.mubr.bf16.gmra.mxu0 %v2715
    %v9125 = vpop.f32.mrf.mxu0
    %v9126 = vadd.f32 %v9013, %v9125
    %v9127 = vpop.f32.mrf.mxu0
    %v9128 = vadd.f32 %v9015, %v9127
    %v9129 = vpop.f32.mrf.mxu0
    %v9130 = vadd.f32 %v9017, %v9129
    %v9131 = vpop.f32.mrf.mxu0
    %v9132 = vadd.f32 %v9019, %v9131
    %9133 = vmatprep.mubr.bf16.mxu0 %v2766
    %9134 = vmatmul.mubr.bf16.gmra.mxu0 %v2765
    %v9135 = vpop.f32.mrf.mxu0
    %v9136 = vadd.f32 %v9023, %v9135
    %v9137 = vpop.f32.mrf.mxu0
    %v9138 = vadd.f32 %v9025, %v9137
    %v9139 = vpop.f32.mrf.mxu0
    %v9140 = vadd.f32 %v9027, %v9139
    %v9141 = vpop.f32.mrf.mxu0
    %v9142 = vadd.f32 %v9029, %v9141
    %9143 = vmatprep.mubr.bf16.mxu0 %v2816
    %9144 = vmatmul.mubr.bf16.gmra.mxu0 %v2815
    %v9145 = vpop.f32.mrf.mxu0
    %v9146 = vadd.f32 %v9033, %v9145
    %v9147 = vpop.f32.mrf.mxu0
    %v9148 = vadd.f32 %v9035, %v9147
    %v9149 = vpop.f32.mrf.mxu0
    %v9150 = vadd.f32 %v9037, %v9149
    %v9151 = vpop.f32.mrf.mxu0
    %v9152 = vadd.f32 %v9039, %v9151
    %9153 = vdwg.mxu0
    %9154 = vmatprep.subr.bf16.mxu0 %v6192
    %9155 = vmatpush1.bf16.msra.mxu0 %v6191
    %9156 = vmatprep.subr.bf16.mxu0 %v6190
    %9157 = vmatpush1.bf16.msra.mxu0 %v6189
    %9158 = vmatprep.subr.bf16.mxu0 %v6188
    %9159 = vmatpush1.bf16.msra.mxu0 %v6187
    %9160 = vmatprep.subr.bf16.mxu0 %v6186
    %9161 = vmatpush1.bf16.msra.mxu0 %v6185
    %9162 = vmatprep.subr.bf16.mxu0 %v6184
    %9163 = vmatpush1.bf16.msra.mxu0 %v6183
    %9164 = vmatprep.subr.bf16.mxu0 %v6182
    %9165 = vmatpush1.bf16.msra.mxu0 %v6181
    %9166 = vmatprep.subr.bf16.mxu0 %v6180
    %9167 = vmatpush1.bf16.msra.mxu0 %v6179
    %9168 = vmatprep.subr.bf16.mxu0 %v6178
    %9169 = vmatpush1.bf16.msra.mxu0 %v6177
    %9170 = vmatprep.subr.bf16.mxu0 %v6208
    %9171 = vmatpush2.bf16.msra.mxu0 %v6207
    %9172 = vmatprep.subr.bf16.mxu0 %v6206
    %9173 = vmatpush2.bf16.msra.mxu0 %v6205
    %9174 = vmatprep.subr.bf16.mxu0 %v6204
    %9175 = vmatpush2.bf16.msra.mxu0 %v6203
    %9176 = vmatprep.subr.bf16.mxu0 %v6202
    %9177 = vmatpush2.bf16.msra.mxu0 %v6201
    %9178 = vmatprep.subr.bf16.mxu0 %v6200
    %9179 = vmatpush2.bf16.msra.mxu0 %v6199
    %9180 = vmatprep.subr.bf16.mxu0 %v6198
    %9181 = vmatpush2.bf16.msra.mxu0 %v6197
    %9182 = vmatprep.subr.bf16.mxu0 %v6196
    %9183 = vmatpush2.bf16.msra.mxu0 %v6195
    %9184 = vmatprep.subr.bf16.mxu0 %v6194
    %9185 = vmatpush2.bf16.msra.mxu0 %v6193
    %9186 = vmatprep.mubr.bf16.mxu0 %v2468
    %9187 = vmatmul.mubr.bf16.gmra.mxu0 %v2467
    %v9188 = vpop.f32.mrf.mxu0
    %v9189 = vadd.f32 %v9076, %v9188
    %v9190 = vpop.f32.mrf.mxu0
    %v9191 = vadd.f32 %v9078, %v9190
    %v9192 = vpop.f32.mrf.mxu0
    %v9193 = vadd.f32 %v9080, %v9192
    %v9194 = vpop.f32.mrf.mxu0
    %v9195 = vadd.f32 %v9082, %v9194
    %9196 = vmatprep.mubr.bf16.mxu0 %v2518
    %9197 = vmatmul.mubr.bf16.gmra.mxu0 %v2517
    %v9198 = vpop.f32.mrf.mxu0
    %v9199 = vadd.f32 %v9086, %v9198
    %v9200 = vpop.f32.mrf.mxu0
    %v9201 = vadd.f32 %v9088, %v9200
    %v9202 = vpop.f32.mrf.mxu0
    %v9203 = vadd.f32 %v9090, %v9202
    %v9204 = vpop.f32.mrf.mxu0
    %v9205 = vadd.f32 %v9092, %v9204
    %9206 = vmatprep.mubr.bf16.mxu0 %v2568
    %9207 = vmatmul.mubr.bf16.gmra.mxu0 %v2567
    %v9208 = vpop.f32.mrf.mxu0
    %v9209 = vadd.f32 %v9096, %v9208
    %v9210 = vpop.f32.mrf.mxu0
    %v9211 = vadd.f32 %v9098, %v9210
    %v9212 = vpop.f32.mrf.mxu0
    %v9213 = vadd.f32 %v9100, %v9212
    %v9214 = vpop.f32.mrf.mxu0
    %v9215 = vadd.f32 %v9102, %v9214
    %9216 = vmatprep.mubr.bf16.mxu0 %v2618
    %9217 = vmatmul.mubr.bf16.gmra.mxu0 %v2617
    %v9218 = vpop.f32.mrf.mxu0
    %v9219 = vadd.f32 %v9106, %v9218
    %v9220 = vpop.f32.mrf.mxu0
    %v9221 = vadd.f32 %v9108, %v9220
    %v9222 = vpop.f32.mrf.mxu0
    %v9223 = vadd.f32 %v9110, %v9222
    %v9224 = vpop.f32.mrf.mxu0
    %v9225 = vadd.f32 %v9112, %v9224
    %9226 = vmatprep.mubr.bf16.mxu0 %v2668
    %9227 = vmatmul.mubr.bf16.gmra.mxu0 %v2667
    %v9228 = vpop.f32.mrf.mxu0
    %v9229 = vadd.f32 %v9116, %v9228
    %v9230 = vpop.f32.mrf.mxu0
    %v9231 = vadd.f32 %v9118, %v9230
    %v9232 = vpop.f32.mrf.mxu0
    %v9233 = vadd.f32 %v9120, %v9232
    %v9234 = vpop.f32.mrf.mxu0
    %v9235 = vadd.f32 %v9122, %v9234
    %9236 = vmatprep.mubr.bf16.mxu0 %v2718
    %9237 = vmatmul.mubr.bf16.gmra.mxu0 %v2717
    %v9238 = vpop.f32.mrf.mxu0
    %v9239 = vadd.f32 %v9126, %v9238
    %v9240 = vpop.f32.mrf.mxu0
    %v9241 = vadd.f32 %v9128, %v9240
    %v9242 = vpop.f32.mrf.mxu0
    %v9243 = vadd.f32 %v9130, %v9242
    %v9244 = vpop.f32.mrf.mxu0
    %v9245 = vadd.f32 %v9132, %v9244
    %9246 = vmatprep.mubr.bf16.mxu0 %v2768
    %9247 = vmatmul.mubr.bf16.gmra.mxu0 %v2767
    %v9248 = vpop.f32.mrf.mxu0
    %v9249 = vadd.f32 %v9136, %v9248
    %v9250 = vpop.f32.mrf.mxu0
    %v9251 = vadd.f32 %v9138, %v9250
    %v9252 = vpop.f32.mrf.mxu0
    %v9253 = vadd.f32 %v9140, %v9252
    %v9254 = vpop.f32.mrf.mxu0
    %v9255 = vadd.f32 %v9142, %v9254
    %9256 = vmatprep.mubr.bf16.mxu0 %v2818
    %9257 = vmatmul.mubr.bf16.gmra.mxu0 %v2817
    %v9258 = vpop.f32.mrf.mxu0
    %v9259 = vadd.f32 %v9146, %v9258
    %v9260 = vpop.f32.mrf.mxu0
    %v9261 = vadd.f32 %v9148, %v9260
    %v9262 = vpop.f32.mrf.mxu0
    %v9263 = vadd.f32 %v9150, %v9262
    %v9264 = vpop.f32.mrf.mxu0
    %v9265 = vadd.f32 %v9152, %v9264
    %9266 = vdwg.mxu0
    %9267 = vmatprep.subr.bf16.mxu0 %v6224
    %9268 = vmatpush1.bf16.msra.mxu0 %v6223
    %9269 = vmatprep.subr.bf16.mxu0 %v6222
    %9270 = vmatpush1.bf16.msra.mxu0 %v6221
    %9271 = vmatprep.subr.bf16.mxu0 %v6220
    %9272 = vmatpush1.bf16.msra.mxu0 %v6219
    %9273 = vmatprep.subr.bf16.mxu0 %v6218
    %9274 = vmatpush1.bf16.msra.mxu0 %v6217
    %9275 = vmatprep.subr.bf16.mxu0 %v6216
    %9276 = vmatpush1.bf16.msra.mxu0 %v6215
    %9277 = vmatprep.subr.bf16.mxu0 %v6214
    %9278 = vmatpush1.bf16.msra.mxu0 %v6213
    %9279 = vmatprep.subr.bf16.mxu0 %v6212
    %9280 = vmatpush1.bf16.msra.mxu0 %v6211
    %9281 = vmatprep.subr.bf16.mxu0 %v6210
    %9282 = vmatpush1.bf16.msra.mxu0 %v6209
    %9283 = vmatprep.subr.bf16.mxu0 %v6240
    %9284 = vmatpush2.bf16.msra.mxu0 %v6239
    %9285 = vmatprep.subr.bf16.mxu0 %v6238
    %9286 = vmatpush2.bf16.msra.mxu0 %v6237
    %9287 = vmatprep.subr.bf16.mxu0 %v6236
    %9288 = vmatpush2.bf16.msra.mxu0 %v6235
    %9289 = vmatprep.subr.bf16.mxu0 %v6234
    %9290 = vmatpush2.bf16.msra.mxu0 %v6233
    %9291 = vmatprep.subr.bf16.mxu0 %v6232
    %9292 = vmatpush2.bf16.msra.mxu0 %v6231
    %9293 = vmatprep.subr.bf16.mxu0 %v6230
    %9294 = vmatpush2.bf16.msra.mxu0 %v6229
    %9295 = vmatprep.subr.bf16.mxu0 %v6228
    %9296 = vmatpush2.bf16.msra.mxu0 %v6227
    %9297 = vmatprep.subr.bf16.mxu0 %v6226
    %9298 = vmatpush2.bf16.msra.mxu0 %v6225
    %9299 = vmatprep.mubr.bf16.mxu0 %v2470
    %9300 = vmatmul.mubr.bf16.gmra.mxu0 %v2469
    %v9301 = vpop.f32.mrf.mxu0
    %v9302 = vadd.f32 %v9189, %v9301
    %v9303 = vpop.f32.mrf.mxu0
    %v9304 = vadd.f32 %v9191, %v9303
    %v9305 = vpop.f32.mrf.mxu0
    %v9306 = vadd.f32 %v9193, %v9305
    %v9307 = vpop.f32.mrf.mxu0
    %v9308 = vadd.f32 %v9195, %v9307
    %9309 = vmatprep.mubr.bf16.mxu0 %v2520
    %9310 = vmatmul.mubr.bf16.gmra.mxu0 %v2519
    %v9311 = vpop.f32.mrf.mxu0
    %v9312 = vadd.f32 %v9199, %v9311
    %v9313 = vpop.f32.mrf.mxu0
    %v9314 = vadd.f32 %v9201, %v9313
    %v9315 = vpop.f32.mrf.mxu0
    %v9316 = vadd.f32 %v9203, %v9315
    %v9317 = vpop.f32.mrf.mxu0
    %v9318 = vadd.f32 %v9205, %v9317
    %9319 = vmatprep.mubr.bf16.mxu0 %v2570
    %9320 = vmatmul.mubr.bf16.gmra.mxu0 %v2569
    %v9321 = vpop.f32.mrf.mxu0
    %v9322 = vadd.f32 %v9209, %v9321
    %v9323 = vpop.f32.mrf.mxu0
    %v9324 = vadd.f32 %v9211, %v9323
    %v9325 = vpop.f32.mrf.mxu0
    %v9326 = vadd.f32 %v9213, %v9325
    %v9327 = vpop.f32.mrf.mxu0
    %v9328 = vadd.f32 %v9215, %v9327
    %9329 = vmatprep.mubr.bf16.mxu0 %v2620
    %9330 = vmatmul.mubr.bf16.gmra.mxu0 %v2619
    %v9331 = vpop.f32.mrf.mxu0
    %v9332 = vadd.f32 %v9219, %v9331
    %v9333 = vpop.f32.mrf.mxu0
    %v9334 = vadd.f32 %v9221, %v9333
    %v9335 = vpop.f32.mrf.mxu0
    %v9336 = vadd.f32 %v9223, %v9335
    %v9337 = vpop.f32.mrf.mxu0
    %v9338 = vadd.f32 %v9225, %v9337
    %9339 = vmatprep.mubr.bf16.mxu0 %v2670
    %9340 = vmatmul.mubr.bf16.gmra.mxu0 %v2669
    %v9341 = vpop.f32.mrf.mxu0
    %v9342 = vadd.f32 %v9229, %v9341
    %v9343 = vpop.f32.mrf.mxu0
    %v9344 = vadd.f32 %v9231, %v9343
    %v9345 = vpop.f32.mrf.mxu0
    %v9346 = vadd.f32 %v9233, %v9345
    %v9347 = vpop.f32.mrf.mxu0
    %v9348 = vadd.f32 %v9235, %v9347
    %9349 = vmatprep.mubr.bf16.mxu0 %v2720
    %9350 = vmatmul.mubr.bf16.gmra.mxu0 %v2719
    %v9351 = vpop.f32.mrf.mxu0
    %v9352 = vadd.f32 %v9239, %v9351
    %v9353 = vpop.f32.mrf.mxu0
    %v9354 = vadd.f32 %v9241, %v9353
    %v9355 = vpop.f32.mrf.mxu0
    %v9356 = vadd.f32 %v9243, %v9355
    %v9357 = vpop.f32.mrf.mxu0
    %v9358 = vadd.f32 %v9245, %v9357
    %9359 = vmatprep.mubr.bf16.mxu0 %v2770
    %9360 = vmatmul.mubr.bf16.gmra.mxu0 %v2769
    %v9361 = vpop.f32.mrf.mxu0
    %v9362 = vadd.f32 %v9249, %v9361
    %v9363 = vpop.f32.mrf.mxu0
    %v9364 = vadd.f32 %v9251, %v9363
    %v9365 = vpop.f32.mrf.mxu0
    %v9366 = vadd.f32 %v9253, %v9365
    %v9367 = vpop.f32.mrf.mxu0
    %v9368 = vadd.f32 %v9255, %v9367
    %9369 = vmatprep.mubr.bf16.mxu0 %v2820
    %9370 = vmatmul.mubr.bf16.gmra.mxu0 %v2819
    %v9371 = vpop.f32.mrf.mxu0
    %v9372 = vadd.f32 %v9259, %v9371
    %v9373 = vpop.f32.mrf.mxu0
    %v9374 = vadd.f32 %v9261, %v9373
    %v9375 = vpop.f32.mrf.mxu0
    %v9376 = vadd.f32 %v9263, %v9375
    %v9377 = vpop.f32.mrf.mxu0
    %v9378 = vadd.f32 %v9265, %v9377
    %9379 = vdwg.mxu0
    %9380 = vmatprep.subr.bf16.mxu0 %v6256
    %9381 = vmatpush1.bf16.msra.mxu0 %v6255
    %9382 = vmatprep.subr.bf16.mxu0 %v6254
    %9383 = vmatpush1.bf16.msra.mxu0 %v6253
    %9384 = vmatprep.subr.bf16.mxu0 %v6252
    %9385 = vmatpush1.bf16.msra.mxu0 %v6251
    %9386 = vmatprep.subr.bf16.mxu0 %v6250
    %9387 = vmatpush1.bf16.msra.mxu0 %v6249
    %9388 = vmatprep.subr.bf16.mxu0 %v6248
    %9389 = vmatpush1.bf16.msra.mxu0 %v6247
    %9390 = vmatprep.subr.bf16.mxu0 %v6246
    %9391 = vmatpush1.bf16.msra.mxu0 %v6245
    %9392 = vmatprep.subr.bf16.mxu0 %v6244
    %9393 = vmatpush1.bf16.msra.mxu0 %v6243
    %9394 = vmatprep.subr.bf16.mxu0 %v6242
    %9395 = vmatpush1.bf16.msra.mxu0 %v6241
    %9396 = vmatprep.subr.bf16.mxu0 %v6272
    %9397 = vmatpush2.bf16.msra.mxu0 %v6271
    %9398 = vmatprep.subr.bf16.mxu0 %v6270
    %9399 = vmatpush2.bf16.msra.mxu0 %v6269
    %9400 = vmatprep.subr.bf16.mxu0 %v6268
    %9401 = vmatpush2.bf16.msra.mxu0 %v6267
    %9402 = vmatprep.subr.bf16.mxu0 %v6266
    %9403 = vmatpush2.bf16.msra.mxu0 %v6265
    %9404 = vmatprep.subr.bf16.mxu0 %v6264
    %9405 = vmatpush2.bf16.msra.mxu0 %v6263
    %9406 = vmatprep.subr.bf16.mxu0 %v6262
    %9407 = vmatpush2.bf16.msra.mxu0 %v6261
    %9408 = vmatprep.subr.bf16.mxu0 %v6260
    %9409 = vmatpush2.bf16.msra.mxu0 %v6259
    %9410 = vmatprep.subr.bf16.mxu0 %v6258
    %9411 = vmatpush2.bf16.msra.mxu0 %v6257
    %9412 = vmatprep.mubr.bf16.mxu0 %v2472
    %9413 = vmatmul.mubr.bf16.gmra.mxu0 %v2471
    %v9414 = vpop.f32.mrf.mxu0
    %v9415 = vadd.f32 %v9302, %v9414
    %v9416 = vpop.f32.mrf.mxu0
    %v9417 = vadd.f32 %v9304, %v9416
    %v9418 = vpop.f32.mrf.mxu0
    %v9419 = vadd.f32 %v9306, %v9418
    %v9420 = vpop.f32.mrf.mxu0
    %v9421 = vadd.f32 %v9308, %v9420
    %9422 = vmatprep.mubr.bf16.mxu0 %v2522
    %9423 = vmatmul.mubr.bf16.gmra.mxu0 %v2521
    %v9424 = vpop.f32.mrf.mxu0
    %v9425 = vadd.f32 %v9312, %v9424
    %v9426 = vpop.f32.mrf.mxu0
    %v9427 = vadd.f32 %v9314, %v9426
    %v9428 = vpop.f32.mrf.mxu0
    %v9429 = vadd.f32 %v9316, %v9428
    %v9430 = vpop.f32.mrf.mxu0
    %v9431 = vadd.f32 %v9318, %v9430
    %9432 = vmatprep.mubr.bf16.mxu0 %v2572
    %9433 = vmatmul.mubr.bf16.gmra.mxu0 %v2571
    %v9434 = vpop.f32.mrf.mxu0
    %v9435 = vadd.f32 %v9322, %v9434
    %v9436 = vpop.f32.mrf.mxu0
    %v9437 = vadd.f32 %v9324, %v9436
    %v9438 = vpop.f32.mrf.mxu0
    %v9439 = vadd.f32 %v9326, %v9438
    %v9440 = vpop.f32.mrf.mxu0
    %v9441 = vadd.f32 %v9328, %v9440
    %9442 = vmatprep.mubr.bf16.mxu0 %v2622
    %9443 = vmatmul.mubr.bf16.gmra.mxu0 %v2621
    %v9444 = vpop.f32.mrf.mxu0
    %v9445 = vadd.f32 %v9332, %v9444
    %v9446 = vpop.f32.mrf.mxu0
    %v9447 = vadd.f32 %v9334, %v9446
    %v9448 = vpop.f32.mrf.mxu0
    %v9449 = vadd.f32 %v9336, %v9448
    %v9450 = vpop.f32.mrf.mxu0
    %v9451 = vadd.f32 %v9338, %v9450
    %9452 = vmatprep.mubr.bf16.mxu0 %v2672
    %9453 = vmatmul.mubr.bf16.gmra.mxu0 %v2671
    %v9454 = vpop.f32.mrf.mxu0
    %v9455 = vadd.f32 %v9342, %v9454
    %v9456 = vpop.f32.mrf.mxu0
    %v9457 = vadd.f32 %v9344, %v9456
    %v9458 = vpop.f32.mrf.mxu0
    %v9459 = vadd.f32 %v9346, %v9458
    %v9460 = vpop.f32.mrf.mxu0
    %v9461 = vadd.f32 %v9348, %v9460
    %9462 = vmatprep.mubr.bf16.mxu0 %v2722
    %9463 = vmatmul.mubr.bf16.gmra.mxu0 %v2721
    %v9464 = vpop.f32.mrf.mxu0
    %v9465 = vadd.f32 %v9352, %v9464
    %v9466 = vpop.f32.mrf.mxu0
    %v9467 = vadd.f32 %v9354, %v9466
    %v9468 = vpop.f32.mrf.mxu0
    %v9469 = vadd.f32 %v9356, %v9468
    %v9470 = vpop.f32.mrf.mxu0
    %v9471 = vadd.f32 %v9358, %v9470
    %9472 = vmatprep.mubr.bf16.mxu0 %v2772
    %9473 = vmatmul.mubr.bf16.gmra.mxu0 %v2771
    %v9474 = vpop.f32.mrf.mxu0
    %v9475 = vadd.f32 %v9362, %v9474
    %v9476 = vpop.f32.mrf.mxu0
    %v9477 = vadd.f32 %v9364, %v9476
    %v9478 = vpop.f32.mrf.mxu0
    %v9479 = vadd.f32 %v9366, %v9478
    %v9480 = vpop.f32.mrf.mxu0
    %v9481 = vadd.f32 %v9368, %v9480
    %9482 = vmatprep.mubr.bf16.mxu0 %v2822
    %9483 = vmatmul.mubr.bf16.gmra.mxu0 %v2821
    %v9484 = vpop.f32.mrf.mxu0
    %v9485 = vadd.f32 %v9372, %v9484
    %v9486 = vpop.f32.mrf.mxu0
    %v9487 = vadd.f32 %v9374, %v9486
    %v9488 = vpop.f32.mrf.mxu0
    %v9489 = vadd.f32 %v9376, %v9488
    %v9490 = vpop.f32.mrf.mxu0
    %v9491 = vadd.f32 %v9378, %v9490
    %9492 = vdwg.mxu0
    %9493 = vmatprep.subr.bf16.mxu0 %v6288
    %9494 = vmatpush1.bf16.msra.mxu0 %v6287
    %9495 = vmatprep.subr.bf16.mxu0 %v6286
    %9496 = vmatpush1.bf16.msra.mxu0 %v6285
    %9497 = vmatprep.subr.bf16.mxu0 %v6284
    %9498 = vmatpush1.bf16.msra.mxu0 %v6283
    %9499 = vmatprep.subr.bf16.mxu0 %v6282
    %9500 = vmatpush1.bf16.msra.mxu0 %v6281
    %9501 = vmatprep.subr.bf16.mxu0 %v6280
    %9502 = vmatpush1.bf16.msra.mxu0 %v6279
    %9503 = vmatprep.subr.bf16.mxu0 %v6278
    %9504 = vmatpush1.bf16.msra.mxu0 %v6277
    %9505 = vmatprep.subr.bf16.mxu0 %v6276
    %9506 = vmatpush1.bf16.msra.mxu0 %v6275
    %9507 = vmatprep.subr.bf16.mxu0 %v6274
    %9508 = vmatpush1.bf16.msra.mxu0 %v6273
    %9509 = vmatprep.subr.bf16.mxu0 %v6304
    %9510 = vmatpush2.bf16.msra.mxu0 %v6303
    %9511 = vmatprep.subr.bf16.mxu0 %v6302
    %9512 = vmatpush2.bf16.msra.mxu0 %v6301
    %9513 = vmatprep.subr.bf16.mxu0 %v6300
    %9514 = vmatpush2.bf16.msra.mxu0 %v6299
    %9515 = vmatprep.subr.bf16.mxu0 %v6298
    %9516 = vmatpush2.bf16.msra.mxu0 %v6297
    %9517 = vmatprep.subr.bf16.mxu0 %v6296
    %9518 = vmatpush2.bf16.msra.mxu0 %v6295
    %9519 = vmatprep.subr.bf16.mxu0 %v6294
    %9520 = vmatpush2.bf16.msra.mxu0 %v6293
    %9521 = vmatprep.subr.bf16.mxu0 %v6292
    %9522 = vmatpush2.bf16.msra.mxu0 %v6291
    %9523 = vmatprep.subr.bf16.mxu0 %v6290
    %9524 = vmatpush2.bf16.msra.mxu0 %v6289
    %9525 = vmatprep.mubr.bf16.mxu0 %v2474
    %9526 = vmatmul.mubr.bf16.gmra.mxu0 %v2473
    %v9527 = vpop.f32.mrf.mxu0
    %v9528 = vadd.f32 %v9415, %v9527
    %v9529 = vpop.f32.mrf.mxu0
    %v9530 = vadd.f32 %v9417, %v9529
    %v9531 = vpop.f32.mrf.mxu0
    %v9532 = vadd.f32 %v9419, %v9531
    %v9533 = vpop.f32.mrf.mxu0
    %v9534 = vadd.f32 %v9421, %v9533
    %9535 = vmatprep.mubr.bf16.mxu0 %v2524
    %9536 = vmatmul.mubr.bf16.gmra.mxu0 %v2523
    %v9537 = vpop.f32.mrf.mxu0
    %v9538 = vadd.f32 %v9425, %v9537
    %v9539 = vpop.f32.mrf.mxu0
    %v9540 = vadd.f32 %v9427, %v9539
    %v9541 = vpop.f32.mrf.mxu0
    %v9542 = vadd.f32 %v9429, %v9541
    %v9543 = vpop.f32.mrf.mxu0
    %v9544 = vadd.f32 %v9431, %v9543
    %9545 = vmatprep.mubr.bf16.mxu0 %v2574
    %9546 = vmatmul.mubr.bf16.gmra.mxu0 %v2573
    %v9547 = vpop.f32.mrf.mxu0
    %v9548 = vadd.f32 %v9435, %v9547
    %v9549 = vpop.f32.mrf.mxu0
    %v9550 = vadd.f32 %v9437, %v9549
    %v9551 = vpop.f32.mrf.mxu0
    %v9552 = vadd.f32 %v9439, %v9551
    %v9553 = vpop.f32.mrf.mxu0
    %v9554 = vadd.f32 %v9441, %v9553
    %9555 = vmatprep.mubr.bf16.mxu0 %v2624
    %9556 = vmatmul.mubr.bf16.gmra.mxu0 %v2623
    %v9557 = vpop.f32.mrf.mxu0
    %v9558 = vadd.f32 %v9445, %v9557
    %v9559 = vpop.f32.mrf.mxu0
    %v9560 = vadd.f32 %v9447, %v9559
    %v9561 = vpop.f32.mrf.mxu0
    %v9562 = vadd.f32 %v9449, %v9561
    %v9563 = vpop.f32.mrf.mxu0
    %v9564 = vadd.f32 %v9451, %v9563
    %9565 = vmatprep.mubr.bf16.mxu0 %v2674
    %9566 = vmatmul.mubr.bf16.gmra.mxu0 %v2673
    %v9567 = vpop.f32.mrf.mxu0
    %v9568 = vadd.f32 %v9455, %v9567
    %v9569 = vpop.f32.mrf.mxu0
    %v9570 = vadd.f32 %v9457, %v9569
    %v9571 = vpop.f32.mrf.mxu0
    %v9572 = vadd.f32 %v9459, %v9571
    %v9573 = vpop.f32.mrf.mxu0
    %v9574 = vadd.f32 %v9461, %v9573
    %9575 = vmatprep.mubr.bf16.mxu0 %v2724
    %9576 = vmatmul.mubr.bf16.gmra.mxu0 %v2723
    %v9577 = vpop.f32.mrf.mxu0
    %v9578 = vadd.f32 %v9465, %v9577
    %v9579 = vpop.f32.mrf.mxu0
    %v9580 = vadd.f32 %v9467, %v9579
    %v9581 = vpop.f32.mrf.mxu0
    %v9582 = vadd.f32 %v9469, %v9581
    %v9583 = vpop.f32.mrf.mxu0
    %v9584 = vadd.f32 %v9471, %v9583
    %9585 = vmatprep.mubr.bf16.mxu0 %v2774
    %9586 = vmatmul.mubr.bf16.gmra.mxu0 %v2773
    %v9587 = vpop.f32.mrf.mxu0
    %v9588 = vadd.f32 %v9475, %v9587
    %v9589 = vpop.f32.mrf.mxu0
    %v9590 = vadd.f32 %v9477, %v9589
    %v9591 = vpop.f32.mrf.mxu0
    %v9592 = vadd.f32 %v9479, %v9591
    %v9593 = vpop.f32.mrf.mxu0
    %v9594 = vadd.f32 %v9481, %v9593
    %9595 = vmatprep.mubr.bf16.mxu0 %v2824
    %9596 = vmatmul.mubr.bf16.gmra.mxu0 %v2823
    %v9597 = vpop.f32.mrf.mxu0
    %v9598 = vadd.f32 %v9485, %v9597
    %v9599 = vpop.f32.mrf.mxu0
    %v9600 = vadd.f32 %v9487, %v9599
    %v9601 = vpop.f32.mrf.mxu0
    %v9602 = vadd.f32 %v9489, %v9601
    %v9603 = vpop.f32.mrf.mxu0
    %v9604 = vadd.f32 %v9491, %v9603
    %9605 = vdwg.mxu0
    %9606 = vmatprep.subr.bf16.mxu0 %v6320
    %9607 = vmatpush1.bf16.msra.mxu0 %v6319
    %9608 = vmatprep.subr.bf16.mxu0 %v6318
    %9609 = vmatpush1.bf16.msra.mxu0 %v6317
    %9610 = vmatprep.subr.bf16.mxu0 %v6316
    %9611 = vmatpush1.bf16.msra.mxu0 %v6315
    %9612 = vmatprep.subr.bf16.mxu0 %v6314
    %9613 = vmatpush1.bf16.msra.mxu0 %v6313
    %9614 = vmatprep.subr.bf16.mxu0 %v6312
    %9615 = vmatpush1.bf16.msra.mxu0 %v6311
    %9616 = vmatprep.subr.bf16.mxu0 %v6310
    %9617 = vmatpush1.bf16.msra.mxu0 %v6309
    %9618 = vmatprep.subr.bf16.mxu0 %v6308
    %9619 = vmatpush1.bf16.msra.mxu0 %v6307
    %9620 = vmatprep.subr.bf16.mxu0 %v6306
    %9621 = vmatpush1.bf16.msra.mxu0 %v6305
    %9622 = vmatprep.subr.bf16.mxu0 %v6336
    %9623 = vmatpush2.bf16.msra.mxu0 %v6335
    %9624 = vmatprep.subr.bf16.mxu0 %v6334
    %9625 = vmatpush2.bf16.msra.mxu0 %v6333
    %9626 = vmatprep.subr.bf16.mxu0 %v6332
    %9627 = vmatpush2.bf16.msra.mxu0 %v6331
    %9628 = vmatprep.subr.bf16.mxu0 %v6330
    %9629 = vmatpush2.bf16.msra.mxu0 %v6329
    %9630 = vmatprep.subr.bf16.mxu0 %v6328
    %9631 = vmatpush2.bf16.msra.mxu0 %v6327
    %9632 = vmatprep.subr.bf16.mxu0 %v6326
    %9633 = vmatpush2.bf16.msra.mxu0 %v6325
    %9634 = vmatprep.subr.bf16.mxu0 %v6324
    %9635 = vmatpush2.bf16.msra.mxu0 %v6323
    %9636 = vmatprep.subr.bf16.mxu0 %v6322
    %9637 = vmatpush2.bf16.msra.mxu0 %v6321
    %9638 = vmatprep.mubr.bf16.mxu0 %v2476
    %9639 = vmatmul.mubr.bf16.gmra.mxu0 %v2475
    %v9640 = vpop.f32.mrf.mxu0
    %v9641 = vadd.f32 %v9528, %v9640
    %v9642 = vpop.f32.mrf.mxu0
    %v9643 = vadd.f32 %v9530, %v9642
    %v9644 = vpop.f32.mrf.mxu0
    %v9645 = vadd.f32 %v9532, %v9644
    %v9646 = vpop.f32.mrf.mxu0
    %v9647 = vadd.f32 %v9534, %v9646
    %9648 = vmatprep.mubr.bf16.mxu0 %v2526
    %9649 = vmatmul.mubr.bf16.gmra.mxu0 %v2525
    %v9650 = vpop.f32.mrf.mxu0
    %v9651 = vadd.f32 %v9538, %v9650
    %v9652 = vpop.f32.mrf.mxu0
    %v9653 = vadd.f32 %v9540, %v9652
    %v9654 = vpop.f32.mrf.mxu0
    %v9655 = vadd.f32 %v9542, %v9654
    %v9656 = vpop.f32.mrf.mxu0
    %v9657 = vadd.f32 %v9544, %v9656
    %9658 = vmatprep.mubr.bf16.mxu0 %v2576
    %9659 = vmatmul.mubr.bf16.gmra.mxu0 %v2575
    %v9660 = vpop.f32.mrf.mxu0
    %v9661 = vadd.f32 %v9548, %v9660
    %v9662 = vpop.f32.mrf.mxu0
    %v9663 = vadd.f32 %v9550, %v9662
    %v9664 = vpop.f32.mrf.mxu0
    %v9665 = vadd.f32 %v9552, %v9664
    %v9666 = vpop.f32.mrf.mxu0
    %v9667 = vadd.f32 %v9554, %v9666
    %9668 = vmatprep.mubr.bf16.mxu0 %v2626
    %9669 = vmatmul.mubr.bf16.gmra.mxu0 %v2625
    %v9670 = vpop.f32.mrf.mxu0
    %v9671 = vadd.f32 %v9558, %v9670
    %v9672 = vpop.f32.mrf.mxu0
    %v9673 = vadd.f32 %v9560, %v9672
    %v9674 = vpop.f32.mrf.mxu0
    %v9675 = vadd.f32 %v9562, %v9674
    %v9676 = vpop.f32.mrf.mxu0
    %v9677 = vadd.f32 %v9564, %v9676
    %9678 = vmatprep.mubr.bf16.mxu0 %v2676
    %9679 = vmatmul.mubr.bf16.gmra.mxu0 %v2675
    %v9680 = vpop.f32.mrf.mxu0
    %v9681 = vadd.f32 %v9568, %v9680
    %v9682 = vpop.f32.mrf.mxu0
    %v9683 = vadd.f32 %v9570, %v9682
    %v9684 = vpop.f32.mrf.mxu0
    %v9685 = vadd.f32 %v9572, %v9684
    %v9686 = vpop.f32.mrf.mxu0
    %v9687 = vadd.f32 %v9574, %v9686
    %9688 = vmatprep.mubr.bf16.mxu0 %v2726
    %9689 = vmatmul.mubr.bf16.gmra.mxu0 %v2725
    %v9690 = vpop.f32.mrf.mxu0
    %v9691 = vadd.f32 %v9578, %v9690
    %v9692 = vpop.f32.mrf.mxu0
    %v9693 = vadd.f32 %v9580, %v9692
    %v9694 = vpop.f32.mrf.mxu0
    %v9695 = vadd.f32 %v9582, %v9694
    %v9696 = vpop.f32.mrf.mxu0
    %v9697 = vadd.f32 %v9584, %v9696
    %9698 = vmatprep.mubr.bf16.mxu0 %v2776
    %9699 = vmatmul.mubr.bf16.gmra.mxu0 %v2775
    %v9700 = vpop.f32.mrf.mxu0
    %v9701 = vadd.f32 %v9588, %v9700
    %v9702 = vpop.f32.mrf.mxu0
    %v9703 = vadd.f32 %v9590, %v9702
    %v9704 = vpop.f32.mrf.mxu0
    %v9705 = vadd.f32 %v9592, %v9704
    %v9706 = vpop.f32.mrf.mxu0
    %v9707 = vadd.f32 %v9594, %v9706
    %9708 = vmatprep.mubr.bf16.mxu0 %v2826
    %9709 = vmatmul.mubr.bf16.gmra.mxu0 %v2825
    %v9710 = vpop.f32.mrf.mxu0
    %v9711 = vadd.f32 %v9598, %v9710
    %v9712 = vpop.f32.mrf.mxu0
    %v9713 = vadd.f32 %v9600, %v9712
    %v9714 = vpop.f32.mrf.mxu0
    %v9715 = vadd.f32 %v9602, %v9714
    %v9716 = vpop.f32.mrf.mxu0
    %v9717 = vadd.f32 %v9604, %v9716
    %9718 = vdwg.mxu0
    %9719 = vmatprep.subr.bf16.mxu0 %v6352
    %9720 = vmatpush1.bf16.msra.mxu0 %v6351
    %9721 = vmatprep.subr.bf16.mxu0 %v6350
    %9722 = vmatpush1.bf16.msra.mxu0 %v6349
    %9723 = vmatprep.subr.bf16.mxu0 %v6348
    %9724 = vmatpush1.bf16.msra.mxu0 %v6347
    %9725 = vmatprep.subr.bf16.mxu0 %v6346
    %9726 = vmatpush1.bf16.msra.mxu0 %v6345
    %9727 = vmatprep.subr.bf16.mxu0 %v6344
    %9728 = vmatpush1.bf16.msra.mxu0 %v6343
    %9729 = vmatprep.subr.bf16.mxu0 %v6342
    %9730 = vmatpush1.bf16.msra.mxu0 %v6341
    %9731 = vmatprep.subr.bf16.mxu0 %v6340
    %9732 = vmatpush1.bf16.msra.mxu0 %v6339
    %9733 = vmatprep.subr.bf16.mxu0 %v6338
    %9734 = vmatpush1.bf16.msra.mxu0 %v6337
    %9735 = vmatprep.subr.bf16.mxu0 %v6368
    %9736 = vmatpush2.bf16.msra.mxu0 %v6367
    %9737 = vmatprep.subr.bf16.mxu0 %v6366
    %9738 = vmatpush2.bf16.msra.mxu0 %v6365
    %9739 = vmatprep.subr.bf16.mxu0 %v6364
    %9740 = vmatpush2.bf16.msra.mxu0 %v6363
    %9741 = vmatprep.subr.bf16.mxu0 %v6362
    %9742 = vmatpush2.bf16.msra.mxu0 %v6361
    %9743 = vmatprep.subr.bf16.mxu0 %v6360
    %9744 = vmatpush2.bf16.msra.mxu0 %v6359
    %9745 = vmatprep.subr.bf16.mxu0 %v6358
    %9746 = vmatpush2.bf16.msra.mxu0 %v6357
    %9747 = vmatprep.subr.bf16.mxu0 %v6356
    %9748 = vmatpush2.bf16.msra.mxu0 %v6355
    %9749 = vmatprep.subr.bf16.mxu0 %v6354
    %9750 = vmatpush2.bf16.msra.mxu0 %v6353
    %9751 = vmatprep.mubr.bf16.mxu0 %v2478
    %9752 = vmatmul.mubr.bf16.gmra.mxu0 %v2477
    %v9753 = vpop.f32.mrf.mxu0
    %v9754 = vadd.f32 %v9641, %v9753
    %v9755 = vpop.f32.mrf.mxu0
    %v9756 = vadd.f32 %v9643, %v9755
    %v9757 = vpop.f32.mrf.mxu0
    %v9758 = vadd.f32 %v9645, %v9757
    %v9759 = vpop.f32.mrf.mxu0
    %v9760 = vadd.f32 %v9647, %v9759
    %9761 = vmatprep.mubr.bf16.mxu0 %v2528
    %9762 = vmatmul.mubr.bf16.gmra.mxu0 %v2527
    %v9763 = vpop.f32.mrf.mxu0
    %v9764 = vadd.f32 %v9651, %v9763
    %v9765 = vpop.f32.mrf.mxu0
    %v9766 = vadd.f32 %v9653, %v9765
    %v9767 = vpop.f32.mrf.mxu0
    %v9768 = vadd.f32 %v9655, %v9767
    %v9769 = vpop.f32.mrf.mxu0
    %v9770 = vadd.f32 %v9657, %v9769
    %9771 = vmatprep.mubr.bf16.mxu0 %v2578
    %9772 = vmatmul.mubr.bf16.gmra.mxu0 %v2577
    %v9773 = vpop.f32.mrf.mxu0
    %v9774 = vadd.f32 %v9661, %v9773
    %v9775 = vpop.f32.mrf.mxu0
    %v9776 = vadd.f32 %v9663, %v9775
    %v9777 = vpop.f32.mrf.mxu0
    %v9778 = vadd.f32 %v9665, %v9777
    %v9779 = vpop.f32.mrf.mxu0
    %v9780 = vadd.f32 %v9667, %v9779
    %9781 = vmatprep.mubr.bf16.mxu0 %v2628
    %9782 = vmatmul.mubr.bf16.gmra.mxu0 %v2627
    %v9783 = vpop.f32.mrf.mxu0
    %v9784 = vadd.f32 %v9671, %v9783
    %v9785 = vpop.f32.mrf.mxu0
    %v9786 = vadd.f32 %v9673, %v9785
    %v9787 = vpop.f32.mrf.mxu0
    %v9788 = vadd.f32 %v9675, %v9787
    %v9789 = vpop.f32.mrf.mxu0
    %v9790 = vadd.f32 %v9677, %v9789
    %9791 = vmatprep.mubr.bf16.mxu0 %v2678
    %9792 = vmatmul.mubr.bf16.gmra.mxu0 %v2677
    %v9793 = vpop.f32.mrf.mxu0
    %v9794 = vadd.f32 %v9681, %v9793
    %v9795 = vpop.f32.mrf.mxu0
    %v9796 = vadd.f32 %v9683, %v9795
    %v9797 = vpop.f32.mrf.mxu0
    %v9798 = vadd.f32 %v9685, %v9797
    %v9799 = vpop.f32.mrf.mxu0
    %v9800 = vadd.f32 %v9687, %v9799
    %9801 = vmatprep.mubr.bf16.mxu0 %v2728
    %9802 = vmatmul.mubr.bf16.gmra.mxu0 %v2727
    %v9803 = vpop.f32.mrf.mxu0
    %v9804 = vadd.f32 %v9691, %v9803
    %v9805 = vpop.f32.mrf.mxu0
    %v9806 = vadd.f32 %v9693, %v9805
    %v9807 = vpop.f32.mrf.mxu0
    %v9808 = vadd.f32 %v9695, %v9807
    %v9809 = vpop.f32.mrf.mxu0
    %v9810 = vadd.f32 %v9697, %v9809
    %9811 = vmatprep.mubr.bf16.mxu0 %v2778
    %9812 = vmatmul.mubr.bf16.gmra.mxu0 %v2777
    %v9813 = vpop.f32.mrf.mxu0
    %v9814 = vadd.f32 %v9701, %v9813
    %v9815 = vpop.f32.mrf.mxu0
    %v9816 = vadd.f32 %v9703, %v9815
    %v9817 = vpop.f32.mrf.mxu0
    %v9818 = vadd.f32 %v9705, %v9817
    %v9819 = vpop.f32.mrf.mxu0
    %v9820 = vadd.f32 %v9707, %v9819
    %9821 = vmatprep.mubr.bf16.mxu0 %v2828
    %9822 = vmatmul.mubr.bf16.gmra.mxu0 %v2827
    %v9823 = vpop.f32.mrf.mxu0
    %v9824 = vadd.f32 %v9711, %v9823
    %v9825 = vpop.f32.mrf.mxu0
    %v9826 = vadd.f32 %v9713, %v9825
    %v9827 = vpop.f32.mrf.mxu0
    %v9828 = vadd.f32 %v9715, %v9827
    %v9829 = vpop.f32.mrf.mxu0
    %v9830 = vadd.f32 %v9717, %v9829
    %9831 = vdwg.mxu0
    %9832 = vmatprep.subr.bf16.mxu0 %v6384
    %9833 = vmatpush1.bf16.msra.mxu0 %v6383
    %9834 = vmatprep.subr.bf16.mxu0 %v6382
    %9835 = vmatpush1.bf16.msra.mxu0 %v6381
    %9836 = vmatprep.subr.bf16.mxu0 %v6380
    %9837 = vmatpush1.bf16.msra.mxu0 %v6379
    %9838 = vmatprep.subr.bf16.mxu0 %v6378
    %9839 = vmatpush1.bf16.msra.mxu0 %v6377
    %9840 = vmatprep.subr.bf16.mxu0 %v6376
    %9841 = vmatpush1.bf16.msra.mxu0 %v6375
    %9842 = vmatprep.subr.bf16.mxu0 %v6374
    %9843 = vmatpush1.bf16.msra.mxu0 %v6373
    %9844 = vmatprep.subr.bf16.mxu0 %v6372
    %9845 = vmatpush1.bf16.msra.mxu0 %v6371
    %9846 = vmatprep.subr.bf16.mxu0 %v6370
    %9847 = vmatpush1.bf16.msra.mxu0 %v6369
    %9848 = vmatprep.subr.bf16.mxu0 %v6400
    %9849 = vmatpush2.bf16.msra.mxu0 %v6399
    %9850 = vmatprep.subr.bf16.mxu0 %v6398
    %9851 = vmatpush2.bf16.msra.mxu0 %v6397
    %9852 = vmatprep.subr.bf16.mxu0 %v6396
    %9853 = vmatpush2.bf16.msra.mxu0 %v6395
    %9854 = vmatprep.subr.bf16.mxu0 %v6394
    %9855 = vmatpush2.bf16.msra.mxu0 %v6393
    %9856 = vmatprep.subr.bf16.mxu0 %v6392
    %9857 = vmatpush2.bf16.msra.mxu0 %v6391
    %9858 = vmatprep.subr.bf16.mxu0 %v6390
    %9859 = vmatpush2.bf16.msra.mxu0 %v6389
    %9860 = vmatprep.subr.bf16.mxu0 %v6388
    %9861 = vmatpush2.bf16.msra.mxu0 %v6387
    %9862 = vmatprep.subr.bf16.mxu0 %v6386
    %9863 = vmatpush2.bf16.msra.mxu0 %v6385
    %9864 = vmatprep.mubr.bf16.mxu0 %v2480
    %9865 = vmatmul.mubr.bf16.gmra.mxu0 %v2479
    %v9866 = vpop.f32.mrf.mxu0
    %v9867 = vadd.f32 %v9754, %v9866
    %v9868 = vpop.f32.mrf.mxu0
    %v9869 = vadd.f32 %v9756, %v9868
    %v9870 = vpop.f32.mrf.mxu0
    %v9871 = vadd.f32 %v9758, %v9870
    %v9872 = vpop.f32.mrf.mxu0
    %v9873 = vadd.f32 %v9760, %v9872
    %9874 = vmatprep.mubr.bf16.mxu0 %v2530
    %9875 = vmatmul.mubr.bf16.gmra.mxu0 %v2529
    %v9876 = vpop.f32.mrf.mxu0
    %v9877 = vadd.f32 %v9764, %v9876
    %v9878 = vpop.f32.mrf.mxu0
    %v9879 = vadd.f32 %v9766, %v9878
    %v9880 = vpop.f32.mrf.mxu0
    %v9881 = vadd.f32 %v9768, %v9880
    %v9882 = vpop.f32.mrf.mxu0
    %v9883 = vadd.f32 %v9770, %v9882
    %9884 = vmatprep.mubr.bf16.mxu0 %v2580
    %9885 = vmatmul.mubr.bf16.gmra.mxu0 %v2579
    %v9886 = vpop.f32.mrf.mxu0
    %v9887 = vadd.f32 %v9774, %v9886
    %v9888 = vpop.f32.mrf.mxu0
    %v9889 = vadd.f32 %v9776, %v9888
    %v9890 = vpop.f32.mrf.mxu0
    %v9891 = vadd.f32 %v9778, %v9890
    %v9892 = vpop.f32.mrf.mxu0
    %v9893 = vadd.f32 %v9780, %v9892
    %9894 = vmatprep.mubr.bf16.mxu0 %v2630
    %9895 = vmatmul.mubr.bf16.gmra.mxu0 %v2629
    %v9896 = vpop.f32.mrf.mxu0
    %v9897 = vadd.f32 %v9784, %v9896
    %v9898 = vpop.f32.mrf.mxu0
    %v9899 = vadd.f32 %v9786, %v9898
    %v9900 = vpop.f32.mrf.mxu0
    %v9901 = vadd.f32 %v9788, %v9900
    %v9902 = vpop.f32.mrf.mxu0
    %v9903 = vadd.f32 %v9790, %v9902
    %9904 = vmatprep.mubr.bf16.mxu0 %v2680
    %9905 = vmatmul.mubr.bf16.gmra.mxu0 %v2679
    %v9906 = vpop.f32.mrf.mxu0
    %v9907 = vadd.f32 %v9794, %v9906
    %v9908 = vpop.f32.mrf.mxu0
    %v9909 = vadd.f32 %v9796, %v9908
    %v9910 = vpop.f32.mrf.mxu0
    %v9911 = vadd.f32 %v9798, %v9910
    %v9912 = vpop.f32.mrf.mxu0
    %v9913 = vadd.f32 %v9800, %v9912
    %9914 = vmatprep.mubr.bf16.mxu0 %v2730
    %9915 = vmatmul.mubr.bf16.gmra.mxu0 %v2729
    %v9916 = vpop.f32.mrf.mxu0
    %v9917 = vadd.f32 %v9804, %v9916
    %v9918 = vpop.f32.mrf.mxu0
    %v9919 = vadd.f32 %v9806, %v9918
    %v9920 = vpop.f32.mrf.mxu0
    %v9921 = vadd.f32 %v9808, %v9920
    %v9922 = vpop.f32.mrf.mxu0
    %v9923 = vadd.f32 %v9810, %v9922
    %9924 = vmatprep.mubr.bf16.mxu0 %v2780
    %9925 = vmatmul.mubr.bf16.gmra.mxu0 %v2779
    %v9926 = vpop.f32.mrf.mxu0
    %v9927 = vadd.f32 %v9814, %v9926
    %v9928 = vpop.f32.mrf.mxu0
    %v9929 = vadd.f32 %v9816, %v9928
    %v9930 = vpop.f32.mrf.mxu0
    %v9931 = vadd.f32 %v9818, %v9930
    %v9932 = vpop.f32.mrf.mxu0
    %v9933 = vadd.f32 %v9820, %v9932
    %9934 = vmatprep.mubr.bf16.mxu0 %v2830
    %9935 = vmatmul.mubr.bf16.gmra.mxu0 %v2829
    %v9936 = vpop.f32.mrf.mxu0
    %v9937 = vadd.f32 %v9824, %v9936
    %v9938 = vpop.f32.mrf.mxu0
    %v9939 = vadd.f32 %v9826, %v9938
    %v9940 = vpop.f32.mrf.mxu0
    %v9941 = vadd.f32 %v9828, %v9940
    %v9942 = vpop.f32.mrf.mxu0
    %v9943 = vadd.f32 %v9830, %v9942
    %9944 = vdwg.mxu0
    %9945 = vmatprep.subr.bf16.mxu0 %v6416
    %9946 = vmatpush1.bf16.msra.mxu0 %v6415
    %9947 = vmatprep.subr.bf16.mxu0 %v6414
    %9948 = vmatpush1.bf16.msra.mxu0 %v6413
    %9949 = vmatprep.subr.bf16.mxu0 %v6412
    %9950 = vmatpush1.bf16.msra.mxu0 %v6411
    %9951 = vmatprep.subr.bf16.mxu0 %v6410
    %9952 = vmatpush1.bf16.msra.mxu0 %v6409
    %9953 = vmatprep.subr.bf16.mxu0 %v6408
    %9954 = vmatpush1.bf16.msra.mxu0 %v6407
    %9955 = vmatprep.subr.bf16.mxu0 %v6406
    %9956 = vmatpush1.bf16.msra.mxu0 %v6405
    %9957 = vmatprep.subr.bf16.mxu0 %v6404
    %9958 = vmatpush1.bf16.msra.mxu0 %v6403
    %9959 = vmatprep.subr.bf16.mxu0 %v6402
    %9960 = vmatpush1.bf16.msra.mxu0 %v6401
    %9961 = vmatprep.subr.bf16.mxu0 %v6432
    %9962 = vmatpush2.bf16.msra.mxu0 %v6431
    %9963 = vmatprep.subr.bf16.mxu0 %v6430
    %9964 = vmatpush2.bf16.msra.mxu0 %v6429
    %9965 = vmatprep.subr.bf16.mxu0 %v6428
    %9966 = vmatpush2.bf16.msra.mxu0 %v6427
    %9967 = vmatprep.subr.bf16.mxu0 %v6426
    %9968 = vmatpush2.bf16.msra.mxu0 %v6425
    %9969 = vmatprep.subr.bf16.mxu0 %v6424
    %9970 = vmatpush2.bf16.msra.mxu0 %v6423
    %9971 = vmatprep.subr.bf16.mxu0 %v6422
    %9972 = vmatpush2.bf16.msra.mxu0 %v6421
    %9973 = vmatprep.subr.bf16.mxu0 %v6420
    %9974 = vmatpush2.bf16.msra.mxu0 %v6419
    %9975 = vmatprep.subr.bf16.mxu0 %v6418
    %9976 = vmatpush2.bf16.msra.mxu0 %v6417
    %9977 = vmatprep.mubr.bf16.mxu0 %v2482
    %9978 = vmatmul.mubr.bf16.gmra.mxu0 %v2481
    %v9979 = vpop.f32.mrf.mxu0
    %v9980 = vadd.f32 %v9867, %v9979
    %v9981 = vpop.f32.mrf.mxu0
    %v9982 = vadd.f32 %v9869, %v9981
    %v9983 = vpop.f32.mrf.mxu0
    %v9984 = vadd.f32 %v9871, %v9983
    %v9985 = vpop.f32.mrf.mxu0
    %v9986 = vadd.f32 %v9873, %v9985
    %9987 = vmatprep.mubr.bf16.mxu0 %v2532
    %9988 = vmatmul.mubr.bf16.gmra.mxu0 %v2531
    %v9989 = vpop.f32.mrf.mxu0
    %v9990 = vadd.f32 %v9877, %v9989
    %v9991 = vpop.f32.mrf.mxu0
    %v9992 = vadd.f32 %v9879, %v9991
    %v9993 = vpop.f32.mrf.mxu0
    %v9994 = vadd.f32 %v9881, %v9993
    %v9995 = vpop.f32.mrf.mxu0
    %v9996 = vadd.f32 %v9883, %v9995
    %9997 = vmatprep.mubr.bf16.mxu0 %v2582
    %9998 = vmatmul.mubr.bf16.gmra.mxu0 %v2581
    %v9999 = vpop.f32.mrf.mxu0
    %v10000 = vadd.f32 %v9887, %v9999
    %v10001 = vpop.f32.mrf.mxu0
    %v10002 = vadd.f32 %v9889, %v10001
    %v10003 = vpop.f32.mrf.mxu0
    %v10004 = vadd.f32 %v9891, %v10003
    %v10005 = vpop.f32.mrf.mxu0
    %v10006 = vadd.f32 %v9893, %v10005
    %10007 = vmatprep.mubr.bf16.mxu0 %v2632
    %10008 = vmatmul.mubr.bf16.gmra.mxu0 %v2631
    %v10009 = vpop.f32.mrf.mxu0
    %v10010 = vadd.f32 %v9897, %v10009
    %v10011 = vpop.f32.mrf.mxu0
    %v10012 = vadd.f32 %v9899, %v10011
    %v10013 = vpop.f32.mrf.mxu0
    %v10014 = vadd.f32 %v9901, %v10013
    %v10015 = vpop.f32.mrf.mxu0
    %v10016 = vadd.f32 %v9903, %v10015
    %10017 = vmatprep.mubr.bf16.mxu0 %v2682
    %10018 = vmatmul.mubr.bf16.gmra.mxu0 %v2681
    %v10019 = vpop.f32.mrf.mxu0
    %v10020 = vadd.f32 %v9907, %v10019
    %v10021 = vpop.f32.mrf.mxu0
    %v10022 = vadd.f32 %v9909, %v10021
    %v10023 = vpop.f32.mrf.mxu0
    %v10024 = vadd.f32 %v9911, %v10023
    %v10025 = vpop.f32.mrf.mxu0
    %v10026 = vadd.f32 %v9913, %v10025
    %10027 = vmatprep.mubr.bf16.mxu0 %v2732
    %10028 = vmatmul.mubr.bf16.gmra.mxu0 %v2731
    %v10029 = vpop.f32.mrf.mxu0
    %v10030 = vadd.f32 %v9917, %v10029
    %v10031 = vpop.f32.mrf.mxu0
    %v10032 = vadd.f32 %v9919, %v10031
    %v10033 = vpop.f32.mrf.mxu0
    %v10034 = vadd.f32 %v9921, %v10033
    %v10035 = vpop.f32.mrf.mxu0
    %v10036 = vadd.f32 %v9923, %v10035
    %10037 = vmatprep.mubr.bf16.mxu0 %v2782
    %10038 = vmatmul.mubr.bf16.gmra.mxu0 %v2781
    %v10039 = vpop.f32.mrf.mxu0
    %v10040 = vadd.f32 %v9927, %v10039
    %v10041 = vpop.f32.mrf.mxu0
    %v10042 = vadd.f32 %v9929, %v10041
    %v10043 = vpop.f32.mrf.mxu0
    %v10044 = vadd.f32 %v9931, %v10043
    %v10045 = vpop.f32.mrf.mxu0
    %v10046 = vadd.f32 %v9933, %v10045
    %10047 = vmatprep.mubr.bf16.mxu0 %v2832
    %10048 = vmatmul.mubr.bf16.gmra.mxu0 %v2831
    %v10049 = vpop.f32.mrf.mxu0
    %v10050 = vadd.f32 %v9937, %v10049
    %v10051 = vpop.f32.mrf.mxu0
    %v10052 = vadd.f32 %v9939, %v10051
    %v10053 = vpop.f32.mrf.mxu0
    %v10054 = vadd.f32 %v9941, %v10053
    %v10055 = vpop.f32.mrf.mxu0
    %v10056 = vadd.f32 %v9943, %v10055
    %10057 = vdwg.mxu0
    %v10058 = vmax.f32 %v9980, 0.0
    %v10059 = vmax.f32 %v9982, 0.0
    %v10060 = vmax.f32 %v9984, 0.0
    %v10061 = vmax.f32 %v9986, 0.0
    %v10062 = vmax.f32 %v9990, 0.0
    %v10063 = vmax.f32 %v9992, 0.0
    %v10064 = vmax.f32 %v9994, 0.0
    %v10065 = vmax.f32 %v9996, 0.0
    %v10066 = vmax.f32 %v10000, 0.0
    %v10067 = vmax.f32 %v10002, 0.0
    %v10068 = vmax.f32 %v10004, 0.0
    %v10069 = vmax.f32 %v10006, 0.0
    %v10070 = vmax.f32 %v10010, 0.0
    %v10071 = vmax.f32 %v10012, 0.0
    %v10072 = vmax.f32 %v10014, 0.0
    %v10073 = vmax.f32 %v10016, 0.0
    %v10074 = vmax.f32 %v10020, 0.0
    %v10075 = vmax.f32 %v10022, 0.0
    %v10076 = vmax.f32 %v10024, 0.0
    %v10077 = vmax.f32 %v10026, 0.0
    %v10078 = vmax.f32 %v10030, 0.0
    %v10079 = vmax.f32 %v10032, 0.0
    %v10080 = vmax.f32 %v10034, 0.0
    %v10081 = vmax.f32 %v10036, 0.0
    %v10082 = vmax.f32 %v10040, 0.0
    %v10083 = vmax.f32 %v10042, 0.0
    %v10084 = vmax.f32 %v10044, 0.0
    %v10085 = vmax.f32 %v10046, 0.0
    %v10086 = vmax.f32 %v10050, 0.0
    %v10087 = vmax.f32 %v10052, 0.0
    %v10088 = vmax.f32 %v10054, 0.0
    %v10089 = vmax.f32 %v10056, 0.0
    %v10090 = vld [vmem:[%s3] sm:$0xff]
    %v10091 = vld [vmem:[%s3 + $0x8] sm:$0xff]
    %v10092 = vld [vmem:[%s3 + $0x10] sm:$0xff]
    %v10093 = vld [vmem:[%s3 + $0x18] sm:$0xff]
    %v10094 = vld [vmem:[%s3 + $0x20] sm:$0xff]
    %v10095 = vld [vmem:[%s3 + $0x28] sm:$0xff]
    %v10096 = vld [vmem:[%s3 + $0x30] sm:$0xff]
    %v10097 = vld [vmem:[%s3 + $0x38] sm:$0xff]
    %v10098 = vld [vmem:[%s3 + $0x40] sm:$0xff]
    %v10099 = vld [vmem:[%s3 + $0x48] sm:$0xff]
    %v10100 = vld [vmem:[%s3 + $0x50] sm:$0xff]
    %v10101 = vld [vmem:[%s3 + $0x58] sm:$0xff]
    %v10102 = vld [vmem:[%s3 + $0x60] sm:$0xff]
    %v10103 = vld [vmem:[%s3 + $0x68] sm:$0xff]
    %v10104 = vld [vmem:[%s3 + $0x70] sm:$0xff]
    %v10105 = vld [vmem:[%s3 + $0x78] sm:$0xff]
    %v10106 = vld [vmem:[%s3 + $0x80] sm:$0xff]
    %v10107 = vld [vmem:[%s3 + $0x88] sm:$0xff]
    %v10108 = vld [vmem:[%s3 + $0x90] sm:$0xff]
    %v10109 = vld [vmem:[%s3 + $0x98] sm:$0xff]
    %v10110 = vld [vmem:[%s3 + $0xa0] sm:$0xff]
    %v10111 = vld [vmem:[%s3 + $0xa8] sm:$0xff]
    %v10112 = vld [vmem:[%s3 + $0xb0] sm:$0xff]
    %v10113 = vld [vmem:[%s3 + $0xb8] sm:$0xff]
    %v10114 = vld [vmem:[%s3 + $0xc0] sm:$0xff]
    %v10115 = vld [vmem:[%s4] sm:$0x1]
    %v10117 = vlaneseq
    %v10118 = vshrl.u32 %v10117, 7
    %v10119 = vsub.s32 0, %v10118
    %v10120 = vrot.slane %v10115, %v10119
    %vm10122 = vcmask 588800
    %v10124 = vsel %vm10122, %v10059, 0
    %v10127 = vsel %vm10122, %v10061, 0
    %v10130 = vsel %vm10122, %v10063, 0
    %v10133 = vsel %vm10122, %v10065, 0
    %v10136 = vsel %vm10122, %v10067, 0
    %v10139 = vsel %vm10122, %v10069, 0
    %v10142 = vsel %vm10122, %v10071, 0
    %v10145 = vsel %vm10122, %v10073, 0
    %v10148 = vsel %vm10122, %v10075, 0
    %v10151 = vsel %vm10122, %v10077, 0
    %v10154 = vsel %vm10122, %v10079, 0
    %v10157 = vsel %vm10122, %v10081, 0
    %v10160 = vsel %vm10122, %v10083, 0
    %v10163 = vsel %vm10122, %v10085, 0
    %v10166 = vsel %vm10122, %v10087, 0
    %v10169 = vsel %vm10122, %v10089, 0
    %10171 = vmatprep.subr.mxu0 0.0
    %10172 = vmatpush1.msra.mxu0 %v10105
    %10173 = vmatprep.subr.mxu0 0.0
    %10174 = vmatpush1.msra.mxu0 %v10104
    %10175 = vmatprep.subr.mxu0 0.0
    %10176 = vmatpush1.msra.mxu0 %v10103
    %10177 = vmatprep.subr.mxu0 0.0
    %10178 = vmatpush1.msra.mxu0 %v10102
    %10179 = vmatprep.subr.mxu0 0.0
    %10180 = vmatpush1.msra.mxu0 %v10101
    %10181 = vmatprep.subr.mxu0 0.0
    %10182 = vmatpush1.msra.mxu0 %v10100
    %10183 = vmatprep.subr.mxu0 0.0
    %10184 = vmatpush1.msra.mxu0 %v10099
    %10185 = vmatprep.subr.mxu0 0.0
    %10186 = vmatpush1.msra.mxu0 %v10098
    %10187 = vmatprep.subr.mxu0 0.0
    %10188 = vmatpush1.msra.mxu0 %v10097
    %10189 = vmatprep.subr.mxu0 0.0
    %10190 = vmatpush1.msra.mxu0 %v10096
    %10191 = vmatprep.subr.mxu0 0.0
    %10192 = vmatpush1.msra.mxu0 %v10095
    %10193 = vmatprep.subr.mxu0 0.0
    %10194 = vmatpush1.msra.mxu0 %v10094
    %10195 = vmatprep.subr.mxu0 0.0
    %10196 = vmatpush1.msra.mxu0 %v10093
    %10197 = vmatprep.subr.mxu0 0.0
    %10198 = vmatpush1.msra.mxu0 %v10092
    %10199 = vmatprep.subr.mxu0 0.0
    %10200 = vmatpush1.msra.mxu0 %v10091
    %10201 = vmatprep.subr.mxu0 0.0
    %10202 = vmatpush1.msra.mxu0 %v10090
    %10203 = vmatprep.subr.mxu0 0.0
    %10204 = vmatpush2.msra.mxu0 0.0
    %10205 = vmatprep.subr.mxu0 0.0
    %10206 = vmatpush2.msra.mxu0 0.0
    %10207 = vmatprep.subr.mxu0 0.0
    %10208 = vmatpush2.msra.mxu0 0.0
    %10209 = vmatprep.subr.mxu0 0.0
    %10210 = vmatpush2.msra.mxu0 0.0
    %10211 = vmatprep.subr.mxu0 0.0
    %10212 = vmatpush2.msra.mxu0 0.0
    %10213 = vmatprep.subr.mxu0 0.0
    %10214 = vmatpush2.msra.mxu0 0.0
    %10215 = vmatprep.subr.mxu0 0.0
    %10216 = vmatpush2.msra.mxu0 0.0
    %10217 = vmatprep.subr.mxu0 0.0
    %10218 = vmatpush2.msra.mxu0 %v10114
    %10219 = vmatprep.subr.mxu0 0.0
    %10220 = vmatpush2.msra.mxu0 %v10113
    %10221 = vmatprep.subr.mxu0 0.0
    %10222 = vmatpush2.msra.mxu0 %v10112
    %10223 = vmatprep.subr.mxu0 0.0
    %10224 = vmatpush2.msra.mxu0 %v10111
    %10225 = vmatprep.subr.mxu0 0.0
    %10226 = vmatpush2.msra.mxu0 %v10110
    %10227 = vmatprep.subr.mxu0 0.0
    %10228 = vmatpush2.msra.mxu0 %v10109
    %10229 = vmatprep.subr.mxu0 0.0
    %10230 = vmatpush2.msra.mxu0 %v10108
    %10231 = vmatprep.subr.mxu0 0.0
    %10232 = vmatpush2.msra.mxu0 %v10107
    %10233 = vmatprep.subr.mxu0 0.0
    %10234 = vmatpush2.msra.mxu0 %v10106
    %10235 = vmatprep.mubr.f32.mxu0 %v10124
    %10236 = vmatmul.mubr.f32.gmra.mxu0 %v10058
    %v10237 = vpop.f32.mrf.mxu0
    %v10238 = vadd.f32 %v10120, %v10237
    %v10239 = vpop.f32.mrf.mxu0
    %10240 = vmatprep.mubr.f32.mxu0 %v10127
    %10241 = vmatmul.mubr.f32.gmra.mxu0 %v10060
    %v10242 = vpop.f32.mrf.mxu0
    %v10243 = vadd.f32 %v10120, %v10242
    %v10244 = vpop.f32.mrf.mxu0
    %10245 = vmatprep.mubr.f32.mxu0 %v10130
    %10246 = vmatmul.mubr.f32.gmra.mxu0 %v10062
    %v10247 = vpop.f32.mrf.mxu0
    %v10248 = vadd.f32 %v10120, %v10247
    %v10249 = vpop.f32.mrf.mxu0
    %10250 = vmatprep.mubr.f32.mxu0 %v10133
    %10251 = vmatmul.mubr.f32.gmra.mxu0 %v10064
    %v10252 = vpop.f32.mrf.mxu0
    %v10253 = vadd.f32 %v10120, %v10252
    %v10254 = vpop.f32.mrf.mxu0
    %10255 = vmatprep.mubr.f32.mxu0 %v10136
    %10256 = vmatmul.mubr.f32.gmra.mxu0 %v10066
    %v10257 = vpop.f32.mrf.mxu0
    %v10258 = vadd.f32 %v10120, %v10257
    %v10259 = vpop.f32.mrf.mxu0
    %10260 = vmatprep.mubr.f32.mxu0 %v10139
    %10261 = vmatmul.mubr.f32.gmra.mxu0 %v10068
    %v10262 = vpop.f32.mrf.mxu0
    %v10263 = vadd.f32 %v10120, %v10262
    %v10264 = vpop.f32.mrf.mxu0
    %10265 = vmatprep.mubr.f32.mxu0 %v10142
    %10266 = vmatmul.mubr.f32.gmra.mxu0 %v10070
    %v10267 = vpop.f32.mrf.mxu0
    %v10268 = vadd.f32 %v10120, %v10267
    %v10269 = vpop.f32.mrf.mxu0
    %10270 = vmatprep.mubr.f32.mxu0 %v10145
    %10271 = vmatmul.mubr.f32.gmra.mxu0 %v10072
    %v10272 = vpop.f32.mrf.mxu0
    %v10273 = vadd.f32 %v10120, %v10272
    %v10274 = vpop.f32.mrf.mxu0
    %10275 = vmatprep.mubr.f32.mxu0 %v10148
    %10276 = vmatmul.mubr.f32.gmra.mxu0 %v10074
    %v10277 = vpop.f32.mrf.mxu0
    %v10278 = vadd.f32 %v10120, %v10277
    %v10279 = vpop.f32.mrf.mxu0
    %10280 = vmatprep.mubr.f32.mxu0 %v10151
    %10281 = vmatmul.mubr.f32.gmra.mxu0 %v10076
    %v10282 = vpop.f32.mrf.mxu0
    %v10283 = vadd.f32 %v10120, %v10282
    %v10284 = vpop.f32.mrf.mxu0
    %10285 = vmatprep.mubr.f32.mxu0 %v10154
    %10286 = vmatmul.mubr.f32.gmra.mxu0 %v10078
    %v10287 = vpop.f32.mrf.mxu0
    %v10288 = vadd.f32 %v10120, %v10287
    %v10289 = vpop.f32.mrf.mxu0
    %10290 = vmatprep.mubr.f32.mxu0 %v10157
    %10291 = vmatmul.mubr.f32.gmra.mxu0 %v10080
    %v10292 = vpop.f32.mrf.mxu0
    %v10293 = vadd.f32 %v10120, %v10292
    %v10294 = vpop.f32.mrf.mxu0
    %10295 = vmatprep.mubr.f32.mxu0 %v10160
    %10296 = vmatmul.mubr.f32.gmra.mxu0 %v10082
    %v10297 = vpop.f32.mrf.mxu0
    %v10298 = vadd.f32 %v10120, %v10297
    %v10299 = vpop.f32.mrf.mxu0
    %10300 = vmatprep.mubr.f32.mxu0 %v10163
    %10301 = vmatmul.mubr.f32.gmra.mxu0 %v10084
    %v10302 = vpop.f32.mrf.mxu0
    %v10303 = vadd.f32 %v10120, %v10302
    %v10304 = vpop.f32.mrf.mxu0
    %10305 = vmatprep.mubr.f32.mxu0 %v10166
    %10306 = vmatmul.mubr.f32.gmra.mxu0 %v10086
    %v10307 = vpop.f32.mrf.mxu0
    %v10308 = vadd.f32 %v10120, %v10307
    %v10309 = vpop.f32.mrf.mxu0
    %10310 = vmatprep.mubr.f32.mxu0 %v10169
    %10311 = vmatmul.mubr.f32.gmra.mxu0 %v10088
    %v10312 = vpop.f32.mrf.mxu0
    %v10313 = vadd.f32 %v10120, %v10312
    %v10314 = vpop.f32.mrf.mxu0
    %10315 = vdwg.mxu0
    %10316 = vmax.xlane.f32.xlu0 %v10238
    %v10317 = vpop.xlane.xlu0 %10316
    %10318 = vmax.xlane.f32.xlu0 %v10243
    %v10319 = vpop.xlane.xlu0 %10318
    %10320 = vmax.xlane.f32.xlu0 %v10248
    %v10321 = vpop.xlane.xlu0 %10320
    %10322 = vmax.xlane.f32.xlu0 %v10253
    %v10323 = vpop.xlane.xlu0 %10322
    %10324 = vmax.xlane.f32.xlu0 %v10258
    %v10325 = vpop.xlane.xlu0 %10324
    %10326 = vmax.xlane.f32.xlu0 %v10263
    %v10327 = vpop.xlane.xlu0 %10326
    %10328 = vmax.xlane.f32.xlu0 %v10268
    %v10329 = vpop.xlane.xlu0 %10328
    %10330 = vmax.xlane.f32.xlu0 %v10273
    %v10331 = vpop.xlane.xlu0 %10330
    %10332 = vmax.xlane.f32.xlu0 %v10278
    %v10333 = vpop.xlane.xlu0 %10332
    %10334 = vmax.xlane.f32.xlu0 %v10283
    %v10335 = vpop.xlane.xlu0 %10334
    %10336 = vmax.xlane.f32.xlu0 %v10288
    %v10337 = vpop.xlane.xlu0 %10336
    %10338 = vmax.xlane.f32.xlu0 %v10293
    %v10339 = vpop.xlane.xlu0 %10338
    %10340 = vmax.xlane.f32.xlu0 %v10298
    %v10341 = vpop.xlane.xlu0 %10340
    %10342 = vmax.xlane.f32.xlu0 %v10303
    %v10343 = vpop.xlane.xlu0 %10342
    %10344 = vmax.xlane.f32.xlu0 %v10308
    %v10345 = vpop.xlane.xlu0 %10344
    %10346 = vmax.xlane.f32.xlu0 %v10313
    %v10347 = vpop.xlane.xlu0 %10346
    %v10348 = vsub.f32 %v10238, %v10317
    %v10349 = vsub.f32 %v10243, %v10319
    %v10350 = vsub.f32 %v10248, %v10321
    %v10351 = vsub.f32 %v10253, %v10323
    %v10352 = vsub.f32 %v10258, %v10325
    %v10353 = vsub.f32 %v10263, %v10327
    %v10354 = vsub.f32 %v10268, %v10329
    %v10355 = vsub.f32 %v10273, %v10331
    %v10356 = vsub.f32 %v10278, %v10333
    %v10357 = vsub.f32 %v10283, %v10335
    %v10358 = vsub.f32 %v10288, %v10337
    %v10359 = vsub.f32 %v10293, %v10339
    %v10360 = vsub.f32 %v10298, %v10341
    %v10361 = vsub.f32 %v10303, %v10343
    %v10362 = vsub.f32 %v10308, %v10345
    %v10363 = vsub.f32 %v10313, %v10347
    %v10364 = vmul.f32 %v10348, 1.442695
    %v10365 = vpow.pop %v10364
    %v10366 = vmul.f32 %v10349, 1.442695
    %v10367 = vpow.pop %v10366
    %v10368 = vmul.f32 %v10350, 1.442695
    %v10369 = vpow.pop %v10368
    %v10370 = vmul.f32 %v10351, 1.442695
    %v10371 = vpow.pop %v10370
    %v10372 = vmul.f32 %v10352, 1.442695
    %v10373 = vpow.pop %v10372
    %v10374 = vmul.f32 %v10353, 1.442695
    %v10375 = vpow.pop %v10374
    %v10376 = vmul.f32 %v10354, 1.442695
    %v10377 = vpow.pop %v10376
    %v10378 = vmul.f32 %v10355, 1.442695
    %v10379 = vpow.pop %v10378
    %v10380 = vmul.f32 %v10356, 1.442695
    %v10381 = vpow.pop %v10380
    %v10382 = vmul.f32 %v10357, 1.442695
    %v10383 = vpow.pop %v10382
    %v10384 = vmul.f32 %v10358, 1.442695
    %v10385 = vpow.pop %v10384
    %v10386 = vmul.f32 %v10359, 1.442695
    %v10387 = vpow.pop %v10386
    %v10388 = vmul.f32 %v10360, 1.442695
    %v10389 = vpow.pop %v10388
    %v10390 = vmul.f32 %v10361, 1.442695
    %v10391 = vpow.pop %v10390
    %v10392 = vmul.f32 %v10362, 1.442695
    %v10393 = vpow.pop %v10392
    %v10394 = vmul.f32 %v10363, 1.442695
    %v10395 = vpow.pop %v10394
    %10396 = vadd.xlane.f32.xlu0 %v10365
    %v10397 = vpop.xlane.xlu0 %10396
    %10398 = vadd.xlane.f32.xlu0 %v10367
    %v10399 = vpop.xlane.xlu0 %10398
    %10400 = vadd.xlane.f32.xlu0 %v10369
    %v10401 = vpop.xlane.xlu0 %10400
    %10402 = vadd.xlane.f32.xlu0 %v10371
    %v10403 = vpop.xlane.xlu0 %10402
    %10404 = vadd.xlane.f32.xlu0 %v10373
    %v10405 = vpop.xlane.xlu0 %10404
    %10406 = vadd.xlane.f32.xlu0 %v10375
    %v10407 = vpop.xlane.xlu0 %10406
    %10408 = vadd.xlane.f32.xlu0 %v10377
    %v10409 = vpop.xlane.xlu0 %10408
    %10410 = vadd.xlane.f32.xlu0 %v10379
    %v10411 = vpop.xlane.xlu0 %10410
    %10412 = vadd.xlane.f32.xlu0 %v10381
    %v10413 = vpop.xlane.xlu0 %10412
    %10414 = vadd.xlane.f32.xlu0 %v10383
    %v10415 = vpop.xlane.xlu0 %10414
    %10416 = vadd.xlane.f32.xlu0 %v10385
    %v10417 = vpop.xlane.xlu0 %10416
    %10418 = vadd.xlane.f32.xlu0 %v10387
    %v10419 = vpop.xlane.xlu0 %10418
    %10420 = vadd.xlane.f32.xlu0 %v10389
    %v10421 = vpop.xlane.xlu0 %10420
    %10422 = vadd.xlane.f32.xlu0 %v10391
    %v10423 = vpop.xlane.xlu0 %10422
    %10424 = vadd.xlane.f32.xlu0 %v10393
    %v10425 = vpop.xlane.xlu0 %10424
    %10426 = vadd.xlane.f32.xlu0 %v10395
    %v10427 = vpop.xlane.xlu0 %10426
    %v10428 = vrcp.pop %v10397
    %v10429 = vmul.f32 %v10365, %v10428
    %v10430 = vrcp.pop %v10399
    %v10431 = vmul.f32 %v10367, %v10430
    %v10432 = vrcp.pop %v10401
    %v10433 = vmul.f32 %v10369, %v10432
    %v10434 = vrcp.pop %v10403
    %v10435 = vmul.f32 %v10371, %v10434
    %v10436 = vrcp.pop %v10405
    %v10437 = vmul.f32 %v10373, %v10436
    %v10438 = vrcp.pop %v10407
    %v10439 = vmul.f32 %v10375, %v10438
    %v10440 = vrcp.pop %v10409
    %v10441 = vmul.f32 %v10377, %v10440
    %v10442 = vrcp.pop %v10411
    %v10443 = vmul.f32 %v10379, %v10442
    %v10444 = vrcp.pop %v10413
    %v10445 = vmul.f32 %v10381, %v10444
    %v10446 = vrcp.pop %v10415
    %v10447 = vmul.f32 %v10383, %v10446
    %v10448 = vrcp.pop %v10417
    %v10449 = vmul.f32 %v10385, %v10448
    %v10450 = vrcp.pop %v10419
    %v10451 = vmul.f32 %v10387, %v10450
    %v10452 = vrcp.pop %v10421
    %v10453 = vmul.f32 %v10389, %v10452
    %v10454 = vrcp.pop %v10423
    %v10455 = vmul.f32 %v10391, %v10454
    %v10456 = vrcp.pop %v10425
    %v10457 = vmul.f32 %v10393, %v10456
    %v10458 = vrcp.pop %v10427
    %v10459 = vmul.f32 %v10395, %v10458
    %10460 = vst [vmem:[#allocation2] sm:$0xff] %v10429
    %10461 = vst [vmem:[#allocation2 + $0x8] sm:$0xff] %v10431
    %10462 = vst [vmem:[#allocation2 + $0x10] sm:$0xff] %v10433
    %10463 = vst [vmem:[#allocation2 + $0x18] sm:$0xff] %v10435
    %10464 = vst [vmem:[#allocation2 + $0x20] sm:$0xff] %v10437
    %10465 = vst [vmem:[#allocation2 + $0x28] sm:$0xff] %v10439
    %10466 = vst [vmem:[#allocation2 + $0x30] sm:$0xff] %v10441
    %10467 = vst [vmem:[#allocation2 + $0x38] sm:$0xff] %v10443
    %10468 = vst [vmem:[#allocation2 + $0x40] sm:$0xff] %v10445
    %10469 = vst [vmem:[#allocation2 + $0x48] sm:$0xff] %v10447
    %10470 = vst [vmem:[#allocation2 + $0x50] sm:$0xff] %v10449
    %10471 = vst [vmem:[#allocation2 + $0x58] sm:$0xff] %v10451
    %10472 = vst [vmem:[#allocation2 + $0x60] sm:$0xff] %v10453
    %10473 = vst [vmem:[#allocation2 + $0x68] sm:$0xff] %v10455
    %10474 = vst [vmem:[#allocation2 + $0x70] sm:$0xff] %v10457
    %10475 = vst [vmem:[#allocation2 + $0x78] sm:$0xff] %v10459
    // Predicated region
    $region22: #{_policy_forward_padded.1} parent=1 // pred_check
      _
    $region23: #{_policy_forward_padded.1} parent=1 // pred_check_branch
      %10477 = sbr.rel (0) target = $region25
    $region24: #{_policy_forward_padded.1} parent=1 // pred_region
      %s10479 = ssub.s32 2048, 2048
      %10480 = vsyncadd [#allocation3], %s10479
      %s10481 = sshll.u32 [#allocation2], 4
      %s10482 = int_to_ptr.vmem [resolvable:$true] %s10481
      %10487 = dma.vmem_to_hbm [thread:$0]  %s10482, 2048, %s5, [#allocation3], 128, 128, 8
    $region25: #{_policy_forward_padded.1} parent=1 // pred_fallthru
      _
    // Predicated region
    $region26: #{_policy_forward_padded.1} parent=1 // pred_check
      _
    $region27: #{_policy_forward_padded.1} parent=1 // pred_check_branch
      %10489 = sbr.rel (0) target = $region29
    $region28: #{_policy_forward_padded.1} parent=1 // pred_region
      %10490 = dma.done [#allocation3], 2048
    $region29: #{_policy_forward_padded.1} parent=1 // pred_fallthru
      _
    %10491 = vsyncpa [#allocation3], 1

</llo_original>
